<compile_context>
chip_gen: v5e
topology: v5e:2x2
jax: 0.10.0
libtpu: 0.0.40
codegen_flags: <defaults>
</compile_context>

<pallas_src>
import numpy as np
import jax
import jax.numpy as jnp
from jax import lax
from jax.experimental import pallas as pl
from jax.experimental.pallas import tpu as pltpu


# ----------------------------------------------------------------------------
# Static (host-side numpy, one-time) helpers
# ----------------------------------------------------------------------------
def _bilinear_matrix(in_size, out_size):
    """PyTorch nn.Upsample(mode='bilinear', align_corners=False) as a matrix."""
    i = np.arange(out_size)
    src = (i + 0.5) * (in_size / out_size) - 0.5
    src = np.maximum(src, 0.0)                        # PyTorch clamps negatives
    i0 = np.minimum(np.floor(src).astype(np.int64), in_size - 1)
    i1 = np.minimum(i0 + 1, in_size - 1)
    w1 = (src - i0).astype(np.float32)
    w0 = 1.0 - w1
    U = np.zeros((out_size, in_size), np.float32)
    U[i, i0] += w0
    U[i, i1] += w1
    return U


def _col_shift_stack(W):
    """S[dx, a, b] = 1 iff a == b + dx - 1 (conv column tap with zero padding)."""
    S = np.zeros((3, W, W), np.float32)
    for dx in range(3):
        for b in range(W):
            a = b + dx - 1
            if 0 <= a < W:
                S[dx, a, b] = 1.0
    return S


def _band(w_hwio, W):
    """3x3 conv -> per-row-tap band matrices (3, W*Cin, W*Cout).

    Lane layout is channel-interleaved (lane = w*C + c); the dx taps, the W
    zero padding and the channel mix are folded into one static matrix."""
    S = _col_shift_stack(W)
    ci, co = w_hwio.shape[2], w_hwio.shape[3]
    b = np.einsum('xab,yxio->yaibo', S, w_hwio)            # (3, W, ci, W, co)
    return b.reshape(3, W * ci, W * co)


def _kron_w_upsample(w_in, W_out, c):
    """Bilinear W-upsample acting on channel-interleaved lanes: (w_in*c, W_out*c)."""
    U = _bilinear_matrix(w_in, W_out)
    return np.kron(U.T, np.eye(c, dtype=np.float32))


def _block_h_upsample(h_in, H_out, nb):
    """Per-image bilinear H-upsample, block-diagonal over the nb batch
    elements stacked into M; padded-to-8 activation rows hit zero columns."""
    U = _bilinear_matrix(h_in, H_out)
    hp = max(8, h_in)
    if hp != h_in:
        U = np.pad(U, ((0, 0), (0, hp - h_in)))
    return np.kron(np.eye(nb, dtype=np.float32), U)        # (nb*H_out, nb*hp)


# ----------------------------------------------------------------------------
# One-time preprocessing + jitted fused forward
# ----------------------------------------------------------------------------
def make_unet_up1_forward(params, input_shapes, *, bn, nb=None):
    shapes = [tuple(int(d) for d in s) for s in input_shapes]
    N, C1, H, W = shapes[0]
    Cout = int(params["w"][0].shape[-1])
    LC = W * Cout
    assert H >= 8 and all(s[0] == N for s in shapes)

    # Batch-block size: stack nb images into the matmul M dim (target ~128 rows).
    if nb is None:
        nb = 1
        for cand in range(1, N + 1):
            if N % cand == 0 and cand * H <= 128:
                nb = cand
    assert N % nb == 0
    M = nb * H

    hgps = [max(8, s[2]) for s in shapes]                  # padded row counts
    kins = [s[3] * s[1] for s in shapes]                   # raw lane widths (w*c)

    wnp = [np.asarray(jax.device_get(w), np.float32) for w in params["w"]]
    bnp = [np.asarray(jax.device_get(b), np.float32) for b in params["b"]]

    # ---- folded BN (inference running stats) + conv bias -> scale/shift -----
    if bn:
        p = params["bn"]
        s = np.asarray(jax.device_get(p["gamma"]), np.float32) / np.sqrt(
            np.asarray(jax.device_get(p["var"]), np.float32) + float(p["eps"]))
        t = (np.asarray(jax.device_get(p["beta"]), np.float32)
             - np.asarray(jax.device_get(p["mean"]), np.float32) * s)
    else:
        s = np.ones((Cout,), np.float32)
        t = np.zeros((Cout,), np.float32)
    sslab = np.stack([np.tile(s, W)] +
                     [np.tile(bnp[i] * s + t, W) for i in range(6)])      # (7, LC)

    # ---- bf16 weight slab (lane width LC), built once ------------------------
    # TODO(synk): the band matrices are ~(3/W) dense; if weight DMA ever
    # dominates, store only the 3-wide band (or raw 3x3 weights) and expand
    # in-kernel instead of shipping the structural zeros.
    rows = []

    def _add(mat):
        off = sum(r.shape[0] for r in rows)
        assert mat.shape[1] == LC and mat.shape[0] % 8 == 0
        rows.append(np.asarray(mat, np.float32))
        return off

    def _band_block(w_hwio, ck):
        b = _band(w_hwio, W)                               # (3, W*ci, LC)
        if b.shape[1] < ck:
            b = np.pad(b, ((0, 0), (0, ck - b.shape[1]), (0, 0)))
        return b.reshape(3 * ck, LC)

    metas = []
    for gi in (1, 2, 3, 4):                                # upsampled branches
        _, c, hh, ww = shapes[gi]
        wck = W * c
        nch = -(-wck // LC)                                # 256-lane chunks
        ck = nch * LC
        uw = _kron_w_upsample(ww, W, c)                    # (ww*c, W*c)
        uw_offs = []
        for j in range(nch):
            chunk = uw[:, j * LC:(j + 1) * LC]
            if chunk.shape[1] < LC:
                chunk = np.pad(chunk, ((0, 0), (0, LC - chunk.shape[1])))
            uw_offs.append(_add(chunk))
        metas.append(dict(kin=kins[gi], ck=ck, uw_offs=tuple(uw_offs),
                          kh=nb * hgps[gi]))

    meta1 = dict(ck=kins[0], b_off=_add(_band_block(wnp[0], kins[0])))
    for gi, meta in zip((1, 2, 3, 4), metas):
        meta["b_off"] = _add(_band_block(wnp[gi], meta["ck"]))
    # concat conv: per-group bands pre-concatenated along K -> (3, 5*LC, LC)
    b6 = np.concatenate(
        [_band(wnp[5][:, :, g * Cout:(g + 1) * Cout, :], W) for g in range(5)],
        axis=1)
    b6_off = _add(b6.reshape(3 * 5 * LC, LC))
    wslab = np.concatenate(rows, axis=0)

    # ---- small bf16 slab: block-diagonal H-upsample matrices -----------------
    UHW = 128
    assert max(m["kh"] for m in metas) <= UHW
    uhslab = np.zeros((4 * M, UHW), np.float32)
    for j, (gi, meta) in enumerate(zip((1, 2, 3, 4), metas)):
        Ub = _block_h_upsample(shapes[gi][2], H, nb)       # (M, kh)
        uhslab[j * M:(j + 1) * M, :Ub.shape[1]] = Ub
        meta["uh_off"] = j * M

    wslab_d = jnp.asarray(wslab, jnp.bfloat16)
    uhslab_d = jnp.asarray(uhslab, jnp.bfloat16)
    sslab_d = jnp.asarray(sslab, jnp.float32)

    # ---- the fused kernel -----------------------------------------------------
    def kernel(x1, x2, x3, x4, x5, wr, uhr, ssr, o_ref):
        f32, bf16 = jnp.float32, jnp.bfloat16
        scale = ssr[0:1, :]                                # (1, LC) f32

        # Per-image top/bottom row masks: implement the conv's H zero padding
        # and keep the sublane roll from leaking rows between the nb batch
        # elements stacked into M.
        row = lax.broadcasted_iota(jnp.int32, (M, 1), 0) % H
        not_top = row != 0
        not_bot = row != (H - 1)

        def conv_rows(v, off, kl, acc=None):
            # v: (M, kl) f32. Bands for dy=0,1,2 at wr rows [off+dy*kl, ...).
            # Row taps are sublane rolls (XLU) + masks; all sums stay f32.
            c = jnp.dot(v.astype(bf16), wr[off + kl:off + 2 * kl, :],
                        preferred_element_type=f32)                   # dy = 1
            acc = c if acc is None else acc + c
            vd = jnp.where(not_top, pltpu.roll(v, 1, axis=0), 0.0)    # v[i-1]
            acc = acc + jnp.dot(vd.astype(bf16), wr[off:off + kl, :],
                                preferred_element_type=f32)           # dy = 0
            vu = jnp.where(not_bot, pltpu.roll(v, M - 1, axis=0), 0.0)  # v[i+1]
            acc = acc + jnp.dot(vu.astype(bf16),
                                wr[off + 2 * kl:off + 3 * kl, :],
                                preferred_element_type=f32)           # dy = 2
            return acc

        def affine_relu(acc, idx):
            return jnp.maximum(acc * scale + ssr[1 + idx:2 + idx, :], 0.0)

        def upsampled(x_ref, meta):
            # Bilinear W-upsample (per 256-lane chunk) then the block-diagonal
            # bilinear H-upsample (one small matmul); stays in VMEM/vregs.
            t2 = x_ref[0]                                  # (trows, kin) bf16
            uh = uhr[meta["uh_off"]:meta["uh_off"] + M, 0:meta["kh"]]
            chunks = []
            for coff in meta["uw_offs"]:
                t = jnp.dot(t2, wr[coff:coff + meta["kin"], :],
                            preferred_element_type=f32)
                chunks.append(jnp.dot(uh, t.astype(bf16),
                                      preferred_element_type=f32))    # (M, LC)
            return chunks[0] if len(chunks) == 1 else jnp.concatenate(chunks, axis=1)

        h = [affine_relu(conv_rows(x1[0].astype(f32), meta1["b_off"], meta1["ck"]), 0)]
        for idx, (x_ref, meta) in enumerate(zip((x2, x3, x4, x5), metas)):
            h.append(affine_relu(conv_rows(upsampled(x_ref, meta),
                                           meta["b_off"], meta["ck"]), idx + 1))

        # Concat conv: h_cat never hits HBM -> 3 wide-K (K = 5*LC) MXU matmuls.
        h_all = jnp.concatenate(h, axis=1)                 # (M, 5*LC) f32
        o_ref[0] = affine_relu(conv_rows(h_all, b6_off, 5 * LC), 5)

    act_blocks = [(1, nb * hgps[g], kins[g]) for g in range(5)]

    def act_spec(blk):
        return pl.BlockSpec(blk, lambda n: (n, 0, 0))

    def const_spec(arr):
        nd = arr.ndim
        return pl.BlockSpec(arr.shape, lambda n, _nd=nd: (0,) * _nd)

    # NOTE: the constant slabs use a constant index_map (no re-DMA per grid
    # step). Single-buffering them (pl.Buffered(1)) would halve their VMEM
    # footprint on v7x; left at the default since the total is only ~10 MiB.
    call = pl.pallas_call(
        kernel,
        out_shape=jax.ShapeDtypeStruct((N // nb, M, LC), jnp.float32),
        grid=(N // nb,),
        in_specs=[act_spec(b) for b in act_blocks]
                 + [const_spec(wslab_d), const_spec(uhslab_d), const_spec(sslab_d)],
        out_specs=pl.BlockSpec((1, M, LC), lambda n: (n, 0, 0)),
        compiler_params=pltpu.CompilerParams(
            dimension_semantics=("parallel",),
            vmem_limit_bytes=32 * 1024 * 1024),
    )

    @jax.jit
    def _forward(wsl, uhsl, ssl, x1, x2, x3, x4, x5):
        acts = []
        for x, hp in zip((x1, x2, x3, x4, x5), hgps):
            n, c, hh, ww = x.shape
            r = jnp.transpose(x, (0, 2, 3, 1)).reshape(n, hh, ww * c)
            if hp != hh:
                r = jnp.pad(r, ((0, 0), (0, hp - hh), (0, 0)))
            acts.append(r.astype(jnp.bfloat16).reshape(n // nb, nb * hp, ww * c))
        rows_out = call(*acts, wsl, uhsl, ssl)             # (N//nb, M, LC)
        out = rows_out.reshape(N, H, W, Cout)
        # Kept for NCHW parity with the PyTorch module; a lane-dense consumer
        # could take rows_out directly and skip this transpose.
        return jnp.transpose(out, (0, 3, 1, 2))

    def forward(x1, x2, x3, x4, x5):
        return _forward(wslab_d, uhslab_d, sslab_d, x1, x2, x3, x4, x5)

    return forward


# ----------------------------------------------------------------------------
# Parameters (deterministic synthetic init)
# ----------------------------------------------------------------------------
def init_params(key, filters, out_size):
    count = 5
    cins = [filters[0], out_size, out_size, out_size, filters[4], filters[0] * count]
    keys = jax.random.split(key, 2 * len(cins) + 1)
    params = {"w": [], "b": []}
    for i, cin in enumerate(cins):
        params["w"].append(0.1 * jax.random.normal(keys[2 * i], (3, 3, cin, out_size),
                                                   jnp.float32))
        params["b"].append(0.05 * jax.random.normal(keys[2 * i + 1], (out_size,),
                                                    jnp.float32))
    c = jnp.arange(out_size, dtype=jnp.float32)
    params["bn"] = {"gamma": 1.0 + 0.1 * c, "beta": 0.05 * c,
                    "mean": 0.01 * c, "var": 1.0 + 0.02 * c, "eps": 1e-5}
    return params


# ----------------------------------------------------------------------------
# Plain-JAX reference (correctness check only)
# ----------------------------------------------------------------------------
def _bilinear_upsample_ref(x_nhwc, scale):
    _, H, W, _ = x_nhwc.shape
    Uh = jnp.asarray(_bilinear_matrix(H, H * scale))
    Uw = jnp.asarray(_bilinear_matrix(W, W * scale))
    return jnp.einsum('ph,qw,nhwc->npqc', Uh, Uw, x_nhwc)


def _conv_affine_relu_ref(x_nhwc, w_hwio, scale, shift):
    y = jax.lax.conv_general_dilated(
        x_nhwc, w_hwio, window_strides=(1, 1), padding="SAME",
        dimension_numbers=("NHWC", "HWIO", "NHWC"))
    return jnp.maximum(y * scale + shift, 0.0)


def unet_up1_reference(params, inputs1, inputs2, inputs3, inputs4, inputs5, bn):
    to_nhwc = lambda x: jnp.transpose(x, (0, 2, 3, 1))
    x1, x2, x3, x4, x5 = map(to_nhwc, (inputs1, inputs2, inputs3, inputs4, inputs5))
    if bn:
        p = params["bn"]
        s = p["gamma"] / jnp.sqrt(p["var"] + p["eps"])
        t = p["beta"] - p["mean"] * s
    else:
        s = jnp.ones((params["w"][0].shape[-1],), jnp.float32)
        t = jnp.zeros_like(s)

    def branch(x, idx):
        return _conv_affine_relu_ref(x, params["w"][idx], s, params["b"][idx] * s + t)

    h1 = branch(x1, 0)
    h2 = branch(_bilinear_upsample_ref(x2, 2), 1)
    h3 = branch(_bilinear_upsample_ref(x3, 4), 2)
    h4 = branch(_bilinear_upsample_ref(x4, 8), 3)
    h5 = branch(_bilinear_upsample_ref(x5, 16), 4)
    h = branch(jnp.concatenate([h1, h2, h3, h4, h5], axis=-1), 5)
    return jnp.transpose(h, (0, 3, 1, 2))


# ----------------------------------------------------------------------------
if __name__ == "__main__":
    key = jax.random.PRNGKey(0)
    filters = [8, 16, 32, 64, 16]   # only filters[0] and filters[4] are used
    out_size = filters[0]           # module requires filters[0] == out_size
    B, H, W = 2, 32, 32

    keys = jax.random.split(key, 6)
    inputs1 = jax.random.normal(keys[0], (B, filters[0], H, W), jnp.float32)
    inputs2 = jax.random.normal(keys[1], (B, out_size, H // 2, W // 2), jnp.float32)
    inputs3 = jax.random.normal(keys[2], (B, out_size, H // 4, W // 4), jnp.float32)
    inputs4 = jax.random.normal(keys[3], (B, out_size, H // 8, W // 8), jnp.float32)
    inputs5 = jax.random.normal(keys[4], (B, filters[4], H // 16, W // 16), jnp.float32)
    params = init_params(keys[5], filters, out_size)

    in_shapes = [x.shape for x in (inputs1, inputs2, inputs3, inputs4, inputs5)]
    fwd_bn = make_unet_up1_forward(params, in_shapes, bn=True)
    fwd_nobn = make_unet_up1_forward(params, in_shapes, bn=False)

    out_bn = fwd_bn(inputs1, inputs2, inputs3, inputs4, inputs5)
    out_nobn = fwd_nobn(inputs1, inputs2, inputs3, inputs4, inputs5)
    jax.block_until_ready((out_bn, out_nobn))

    ref_bn = unet_up1_reference(params, inputs1, inputs2, inputs3, inputs4, inputs5, True)
    ref_nobn = unet_up1_reference(params, inputs1, inputs2, inputs3, inputs4, inputs5, False)

    # MXU operands are bf16 (f32 accumulation), so tolerances are relaxed vs
    # the f32 reference; structural bugs would produce O(1) errors and fail.
    np.testing.assert_allclose(np.asarray(out_bn), np.asarray(ref_bn),
                               atol=1.5e-1, rtol=5e-2)
    np.testing.assert_allclose(np.asarray(out_nobn), np.asarray(ref_nobn),
                               atol=1.5e-1, rtol=5e-2)
    assert out_bn.shape == (B, out_size, H, W)

    print("KERNEL_OK")
</pallas_src>

<mosaic_0001>
module attributes {stable_mosaic.version = 11 : i64} {
  func.func @kernel(%arg0: i32, %arg1: memref<1x64x256xbf16, #tpu.memory_space<vmem>>, %arg2: memref<1x32x128xbf16, #tpu.memory_space<vmem>>, %arg3: memref<1x16x64xbf16, #tpu.memory_space<vmem>>, %arg4: memref<1x16x32xbf16, #tpu.memory_space<vmem>>, %arg5: memref<1x16x32xbf16, #tpu.memory_space<vmem>>, %arg6: memref<8736x256xbf16, #tpu.memory_space<vmem>>, %arg7: memref<256x128xbf16, #tpu.memory_space<vmem>>, %arg8: memref<7x256xf32, #tpu.memory_space<vmem>>, %arg9: memref<1x64x256xf32, #tpu.memory_space<vmem>>) attributes {dimension_semantics = [#tpu.dimension_semantics<parallel>], iteration_bounds = array<i64: 1>, scalar_prefetch = 0 : i64, scratch_operands = 0 : i64, tpu.core_type = #tpu.core_type<tc>, window_params = [{transform_indices = @transform_0, window_bounds = array<i64: 1, 64, 256>}, {transform_indices = @transform_1, window_bounds = array<i64: 1, 32, 128>}, {transform_indices = @transform_2, window_bounds = array<i64: 1, 16, 64>}, {transform_indices = @transform_3, window_bounds = array<i64: 1, 16, 32>}, {transform_indices = @transform_4, window_bounds = array<i64: 1, 16, 32>}, {pipeline_mode = #tpu.pipeline_mode<synchronous>, transform_indices = @transform_5, window_bounds = array<i64: 8736, 256>}, {pipeline_mode = #tpu.pipeline_mode<synchronous>, transform_indices = @transform_6, window_bounds = array<i64: 256, 128>}, {pipeline_mode = #tpu.pipeline_mode<synchronous>, transform_indices = @transform_7, window_bounds = array<i64: 7, 256>}, {transform_indices = @transform_8, window_bounds = array<i64: 1, 64, 256>}]} {
    %c0 = arith.constant 0 : index
    %c0_0 = arith.constant 0 : index
    %0 = vector.load %arg8[%c0, %c0_0] : memref<7x256xf32, #tpu.memory_space<vmem>>, vector<1x256xf32>
    %1 = tpu.iota {dimensions = array<i32: 0>} : vector<64x1xi32>
    %c32_i32 = arith.constant 32 : i32
    %c0_i32 = arith.constant 0 : i32
    %2 = arith.cmpi eq, %c32_i32, %c0_i32 : i32
    %c1_i32 = arith.constant 1 : i32
    %3 = arith.select %2, %c1_i32, %c32_i32 : i32
    %4 = vector.broadcast %3 : i32 to vector<64x1xi32>
    %5 = arith.remsi %1, %4 : vector<64x1xi32>
    %c0_i32_1 = arith.constant 0 : i32
    %6 = vector.broadcast %c0_i32_1 : i32 to vector<64x1xi32>
    %7 = arith.cmpi ne, %5, %6 : vector<64x1xi32>
    %c0_i32_2 = arith.constant 0 : i32
    %8 = vector.broadcast %c0_i32_2 : i32 to vector<64x1xi32>
    %9 = arith.cmpi slt, %5, %8 : vector<64x1xi32>
    %c0_i32_3 = arith.constant 0 : i32
    %10 = arith.cmpi slt, %3, %c0_i32_3 : i32
    %11 = vector.broadcast %10 : i1 to vector<64x1xi1>
    %12 = vector.broadcast %11 : vector<64x1xi1> to vector<64x1xi1>
    %13 = arith.xori %9, %12 : vector<64x1xi1>
    %14 = arith.andi %13, %7 : vector<64x1xi1>
    %15 = vector.broadcast %3 : i32 to vector<64x1xi32>
    %16 = arith.addi %5, %15 : vector<64x1xi32>
    %17 = arith.select %14, %16, %5 : vector<64x1xi1>, vector<64x1xi32>
    %c0_i32_4 = arith.constant 0 : i32
    %18 = vector.broadcast %c0_i32_4 : i32 to vector<64x1xi32>
    %19 = arith.cmpi ne, %17, %18 : vector<64x1xi32>
    %c31_i32 = arith.constant 31 : i32
    %20 = vector.broadcast %c31_i32 : i32 to vector<64x1xi32>
    %21 = arith.cmpi ne, %17, %20 : vector<64x1xi32>
    %c0_5 = arith.constant 0 : index
    %c0_6 = arith.constant 0 : index
    %c0_7 = arith.constant 0 : index
    %22 = vector.load %arg1[%c0_5, %c0_6, %c0_7] : memref<1x64x256xbf16, #tpu.memory_space<vmem>>, vector<1x64x256xbf16>
    %23 = vector.shape_cast %22 : vector<1x64x256xbf16> to vector<64x256xbf16>
    %24 = arith.extf %23 : vector<64x256xbf16> to vector<64x256xf32>
    %25 = arith.truncf %24 : vector<64x256xf32> to vector<64x256xbf16>
    %c544 = arith.constant 544 : index
    %c0_8 = arith.constant 0 : index
    %26 = vector.load %arg6[%c544, %c0_8] : memref<8736x256xbf16, #tpu.memory_space<vmem>>, vector<256x256xbf16>
    %cst = arith.constant dense<0.000000e+00> : vector<64x256xf32>
    %27 = tpu.matmul %25, %26, %cst {dimension_numbers = #tpu.dot_dimension_numbers<[1], [0], [0], [1], [0, 0, 1, 1], [], []>} : vector<64x256xbf16>, vector<256x256xbf16>, vector<64x256xf32> -> vector<64x256xf32>
    %c1_i32_9 = arith.constant 1 : i32
    %28 = tpu.dynamic_rotate %24 by %c1_i32_9 dim 0 : vector<64x256xf32>, i32 -> vector<64x256xf32>
    %cst_10 = arith.constant 0.000000e+00 : f32
    %29 = vector.shape_cast %19 : vector<64x1xi1> to vector<64x1xi1>
    %30 = vector.broadcast %29 : vector<64x1xi1> to vector<64x256xi1>
    %31 = vector.broadcast %cst_10 : f32 to vector<64x256xf32>
    %32 = arith.select %30, %28, %31 : vector<64x256xi1>, vector<64x256xf32>
    %33 = arith.truncf %32 : vector<64x256xf32> to vector<64x256xbf16>
    %c288 = arith.constant 288 : index
    %c0_11 = arith.constant 0 : index
    %34 = vector.load %arg6[%c288, %c0_11] : memref<8736x256xbf16, #tpu.memory_space<vmem>>, vector<256x256xbf16>
    %cst_12 = arith.constant dense<0.000000e+00> : vector<64x256xf32>
    %35 = tpu.matmul %33, %34, %cst_12 {dimension_numbers = #tpu.dot_dimension_numbers<[1], [0], [0], [1], [0, 0, 1, 1], [], []>} : vector<64x256xbf16>, vector<256x256xbf16>, vector<64x256xf32> -> vector<64x256xf32>
    %36 = arith.addf %27, %35 : vector<64x256xf32>
    %c63_i32 = arith.constant 63 : i32
    %37 = tpu.dynamic_rotate %24 by %c63_i32 dim 0 : vector<64x256xf32>, i32 -> vector<64x256xf32>
    %cst_13 = arith.constant 0.000000e+00 : f32
    %38 = vector.shape_cast %21 : vector<64x1xi1> to vector<64x1xi1>
    %39 = vector.broadcast %38 : vector<64x1xi1> to vector<64x256xi1>
    %40 = vector.broadcast %cst_13 : f32 to vector<64x256xf32>
    %41 = arith.select %39, %37, %40 : vector<64x256xi1>, vector<64x256xf32>
    %42 = arith.truncf %41 : vector<64x256xf32> to vector<64x256xbf16>
    %c800 = arith.constant 800 : index
    %c0_14 = arith.constant 0 : index
    %43 = vector.load %arg6[%c800, %c0_14] : memref<8736x256xbf16, #tpu.memory_space<vmem>>, vector<256x256xbf16>
    %cst_15 = arith.constant dense<0.000000e+00> : vector<64x256xf32>
    %44 = tpu.matmul %42, %43, %cst_15 {dimension_numbers = #tpu.dot_dimension_numbers<[1], [0], [0], [1], [0, 0, 1, 1], [], []>} : vector<64x256xbf16>, vector<256x256xbf16>, vector<64x256xf32> -> vector<64x256xf32>
    %45 = arith.addf %36, %44 : vector<64x256xf32>
    %46 = vector.broadcast %0 : vector<1x256xf32> to vector<64x256xf32>
    %47 = arith.mulf %45, %46 : vector<64x256xf32>
    %c1 = arith.constant 1 : index
    %c0_16 = arith.constant 0 : index
    %48 = vector.load %arg8[%c1, %c0_16] : memref<7x256xf32, #tpu.memory_space<vmem>>, vector<1x256xf32>
    %49 = vector.broadcast %48 : vector<1x256xf32> to vector<64x256xf32>
    %50 = arith.addf %47, %49 : vector<64x256xf32>
    %cst_17 = arith.constant 0.000000e+00 : f32
    %51 = vector.broadcast %cst_17 : f32 to vector<64x256xf32>
    %52 = arith.maximumf %50, %51 : vector<64x256xf32>
    %c0_18 = arith.constant 0 : index
    %c0_19 = arith.constant 0 : index
    %c0_20 = arith.constant 0 : index
    %53 = vector.load %arg2[%c0_18, %c0_19, %c0_20] : memref<1x32x128xbf16, #tpu.memory_space<vmem>>, vector<1x32x128xbf16>
    %54 = vector.shape_cast %53 : vector<1x32x128xbf16> to vector<32x128xbf16>
    %c0_21 = arith.constant 0 : index
    %c0_22 = arith.constant 0 : index
    %55 = vector.load %arg7[%c0_21, %c0_22] : memref<256x128xbf16, #tpu.memory_space<vmem>>, vector<64x32xbf16>
    %c0_23 = arith.constant 0 : index
    %c0_24 = arith.constant 0 : index
    %56 = vector.load %arg6[%c0_23, %c0_24] : memref<8736x256xbf16, #tpu.memory_space<vmem>>, vector<128x256xbf16>
    %cst_25 = arith.constant dense<0.000000e+00> : vector<32x256xf32>
    %57 = tpu.matmul %54, %56, %cst_25 {dimension_numbers = #tpu.dot_dimension_numbers<[1], [0], [0], [1], [0, 0, 1, 1], [], []>} : vector<32x128xbf16>, vector<128x256xbf16>, vector<32x256xf32> -> vector<32x256xf32>
    %58 = arith.truncf %57 : vector<32x256xf32> to vector<32x256xbf16>
    %cst_26 = arith.constant dense<0.000000e+00> : vector<64x256xf32>
    %59 = tpu.matmul %55, %58, %cst_26 {dimension_numbers = #tpu.dot_dimension_numbers<[1], [0], [0], [1], [0, 0, 1, 1], [], []>} : vector<64x32xbf16>, vector<32x256xbf16>, vector<64x256xf32> -> vector<64x256xf32>
    %60 = arith.truncf %59 : vector<64x256xf32> to vector<64x256xbf16>
    %c1312 = arith.constant 1312 : index
    %c0_27 = arith.constant 0 : index
    %61 = vector.load %arg6[%c1312, %c0_27] : memref<8736x256xbf16, #tpu.memory_space<vmem>>, vector<256x256xbf16>
    %cst_28 = arith.constant dense<0.000000e+00> : vector<64x256xf32>
    %62 = tpu.matmul %60, %61, %cst_28 {dimension_numbers = #tpu.dot_dimension_numbers<[1], [0], [0], [1], [0, 0, 1, 1], [], []>} : vector<64x256xbf16>, vector<256x256xbf16>, vector<64x256xf32> -> vector<64x256xf32>
    %c1_i32_29 = arith.constant 1 : i32
    %63 = tpu.dynamic_rotate %59 by %c1_i32_29 dim 0 : vector<64x256xf32>, i32 -> vector<64x256xf32>
    %cst_30 = arith.constant 0.000000e+00 : f32
    %64 = vector.shape_cast %19 : vector<64x1xi1> to vector<64x1xi1>
    %65 = vector.broadcast %64 : vector<64x1xi1> to vector<64x256xi1>
    %66 = vector.broadcast %cst_30 : f32 to vector<64x256xf32>
    %67 = arith.select %65, %63, %66 : vector<64x256xi1>, vector<64x256xf32>
    %68 = arith.truncf %67 : vector<64x256xf32> to vector<64x256xbf16>
    %c1056 = arith.constant 1056 : index
    %c0_31 = arith.constant 0 : index
    %69 = vector.load %arg6[%c1056, %c0_31] : memref<8736x256xbf16, #tpu.memory_space<vmem>>, vector<256x256xbf16>
    %cst_32 = arith.constant dense<0.000000e+00> : vector<64x256xf32>
    %70 = tpu.matmul %68, %69, %cst_32 {dimension_numbers = #tpu.dot_dimension_numbers<[1], [0], [0], [1], [0, 0, 1, 1], [], []>} : vector<64x256xbf16>, vector<256x256xbf16>, vector<64x256xf32> -> vector<64x256xf32>
    %71 = arith.addf %62, %70 : vector<64x256xf32>
    %c63_i32_33 = arith.constant 63 : i32
    %72 = tpu.dynamic_rotate %59 by %c63_i32_33 dim 0 : vector<64x256xf32>, i32 -> vector<64x256xf32>
    %cst_34 = arith.constant 0.000000e+00 : f32
    %73 = vector.shape_cast %21 : vector<64x1xi1> to vector<64x1xi1>
    %74 = vector.broadcast %73 : vector<64x1xi1> to vector<64x256xi1>
    %75 = vector.broadcast %cst_34 : f32 to vector<64x256xf32>
    %76 = arith.select %74, %72, %75 : vector<64x256xi1>, vector<64x256xf32>
    %77 = arith.truncf %76 : vector<64x256xf32> to vector<64x256xbf16>
    %c1568 = arith.constant 1568 : index
    %c0_35 = arith.constant 0 : index
    %78 = vector.load %arg6[%c1568, %c0_35] : memref<8736x256xbf16, #tpu.memory_space<vmem>>, vector<256x256xbf16>
    %cst_36 = arith.constant dense<0.000000e+00> : vector<64x256xf32>
    %79 = tpu.matmul %77, %78, %cst_36 {dimension_numbers = #tpu.dot_dimension_numbers<[1], [0], [0], [1], [0, 0, 1, 1], [], []>} : vector<64x256xbf16>, vector<256x256xbf16>, vector<64x256xf32> -> vector<64x256xf32>
    %80 = arith.addf %71, %79 : vector<64x256xf32>
    %81 = vector.broadcast %0 : vector<1x256xf32> to vector<64x256xf32>
    %82 = arith.mulf %80, %81 : vector<64x256xf32>
    %c2 = arith.constant 2 : index
    %c0_37 = arith.constant 0 : index
    %83 = vector.load %arg8[%c2, %c0_37] : memref<7x256xf32, #tpu.memory_space<vmem>>, vector<1x256xf32>
    %84 = vector.broadcast %83 : vector<1x256xf32> to vector<64x256xf32>
    %85 = arith.addf %82, %84 : vector<64x256xf32>
    %cst_38 = arith.constant 0.000000e+00 : f32
    %86 = vector.broadcast %cst_38 : f32 to vector<64x256xf32>
    %87 = arith.maximumf %85, %86 : vector<64x256xf32>
    %c0_39 = arith.constant 0 : index
    %c0_40 = arith.constant 0 : index
    %c0_41 = arith.constant 0 : index
    %88 = vector.load %arg3[%c0_39, %c0_40, %c0_41] : memref<1x16x64xbf16, #tpu.memory_space<vmem>>, vector<1x16x64xbf16>
    %89 = vector.shape_cast %88 : vector<1x16x64xbf16> to vector<16x64xbf16>
    %c64 = arith.constant 64 : index
    %c0_42 = arith.constant 0 : index
    %90 = vector.load %arg7[%c64, %c0_42] : memref<256x128xbf16, #tpu.memory_space<vmem>>, vector<64x16xbf16>
    %c128 = arith.constant 128 : index
    %c0_43 = arith.constant 0 : index
    %91 = vector.load %arg6[%c128, %c0_43] : memref<8736x256xbf16, #tpu.memory_space<vmem>>, vector<64x256xbf16>
    %cst_44 = arith.constant dense<0.000000e+00> : vector<16x256xf32>
    %92 = tpu.matmul %89, %91, %cst_44 {dimension_numbers = #tpu.dot_dimension_numbers<[1], [0], [0], [1], [0, 0, 1, 1], [], []>} : vector<16x64xbf16>, vector<64x256xbf16>, vector<16x256xf32> -> vector<16x256xf32>
    %93 = arith.truncf %92 : vector<16x256xf32> to vector<16x256xbf16>
    %cst_45 = arith.constant dense<0.000000e+00> : vector<64x256xf32>
    %94 = tpu.matmul %90, %93, %cst_45 {dimension_numbers = #tpu.dot_dimension_numbers<[1], [0], [0], [1], [0, 0, 1, 1], [], []>} : vector<64x16xbf16>, vector<16x256xbf16>, vector<64x256xf32> -> vector<64x256xf32>
    %95 = arith.truncf %94 : vector<64x256xf32> to vector<64x256xbf16>
    %c2080 = arith.constant 2080 : index
    %c0_46 = arith.constant 0 : index
    %96 = vector.load %arg6[%c2080, %c0_46] : memref<8736x256xbf16, #tpu.memory_space<vmem>>, vector<256x256xbf16>
    %cst_47 = arith.constant dense<0.000000e+00> : vector<64x256xf32>
    %97 = tpu.matmul %95, %96, %cst_47 {dimension_numbers = #tpu.dot_dimension_numbers<[1], [0], [0], [1], [0, 0, 1, 1], [], []>} : vector<64x256xbf16>, vector<256x256xbf16>, vector<64x256xf32> -> vector<64x256xf32>
    %c1_i32_48 = arith.constant 1 : i32
    %98 = tpu.dynamic_rotate %94 by %c1_i32_48 dim 0 : vector<64x256xf32>, i32 -> vector<64x256xf32>
    %cst_49 = arith.constant 0.000000e+00 : f32
    %99 = vector.shape_cast %19 : vector<64x1xi1> to vector<64x1xi1>
    %100 = vector.broadcast %99 : vector<64x1xi1> to vector<64x256xi1>
    %101 = vector.broadcast %cst_49 : f32 to vector<64x256xf32>
    %102 = arith.select %100, %98, %101 : vector<64x256xi1>, vector<64x256xf32>
    %103 = arith.truncf %102 : vector<64x256xf32> to vector<64x256xbf16>
    %c1824 = arith.constant 1824 : index
    %c0_50 = arith.constant 0 : index
    %104 = vector.load %arg6[%c1824, %c0_50] : memref<8736x256xbf16, #tpu.memory_space<vmem>>, vector<256x256xbf16>
    %cst_51 = arith.constant dense<0.000000e+00> : vector<64x256xf32>
    %105 = tpu.matmul %103, %104, %cst_51 {dimension_numbers = #tpu.dot_dimension_numbers<[1], [0], [0], [1], [0, 0, 1, 1], [], []>} : vector<64x256xbf16>, vector<256x256xbf16>, vector<64x256xf32> -> vector<64x256xf32>
    %106 = arith.addf %97, %105 : vector<64x256xf32>
    %c63_i32_52 = arith.constant 63 : i32
    %107 = tpu.dynamic_rotate %94 by %c63_i32_52 dim 0 : vector<64x256xf32>, i32 -> vector<64x256xf32>
    %cst_53 = arith.constant 0.000000e+00 : f32
    %108 = vector.shape_cast %21 : vector<64x1xi1> to vector<64x1xi1>
    %109 = vector.broadcast %108 : vector<64x1xi1> to vector<64x256xi1>
    %110 = vector.broadcast %cst_53 : f32 to vector<64x256xf32>
    %111 = arith.select %109, %107, %110 : vector<64x256xi1>, vector<64x256xf32>
    %112 = arith.truncf %111 : vector<64x256xf32> to vector<64x256xbf16>
    %c2336 = arith.constant 2336 : index
    %c0_54 = arith.constant 0 : index
    %113 = vector.load %arg6[%c2336, %c0_54] : memref<8736x256xbf16, #tpu.memory_space<vmem>>, vector<256x256xbf16>
    %cst_55 = arith.constant dense<0.000000e+00> : vector<64x256xf32>
    %114 = tpu.matmul %112, %113, %cst_55 {dimension_numbers = #tpu.dot_dimension_numbers<[1], [0], [0], [1], [0, 0, 1, 1], [], []>} : vector<64x256xbf16>, vector<256x256xbf16>, vector<64x256xf32> -> vector<64x256xf32>
    %115 = arith.addf %106, %114 : vector<64x256xf32>
    %116 = vector.broadcast %0 : vector<1x256xf32> to vector<64x256xf32>
    %117 = arith.mulf %115, %116 : vector<64x256xf32>
    %c3 = arith.constant 3 : index
    %c0_56 = arith.constant 0 : index
    %118 = vector.load %arg8[%c3, %c0_56] : memref<7x256xf32, #tpu.memory_space<vmem>>, vector<1x256xf32>
    %119 = vector.broadcast %118 : vector<1x256xf32> to vector<64x256xf32>
    %120 = arith.addf %117, %119 : vector<64x256xf32>
    %cst_57 = arith.constant 0.000000e+00 : f32
    %121 = vector.broadcast %cst_57 : f32 to vector<64x256xf32>
    %122 = arith.maximumf %120, %121 : vector<64x256xf32>
    %c0_58 = arith.constant 0 : index
    %c0_59 = arith.constant 0 : index
    %c0_60 = arith.constant 0 : index
    %123 = vector.load %arg4[%c0_58, %c0_59, %c0_60] : memref<1x16x32xbf16, #tpu.memory_space<vmem>>, vector<1x16x32xbf16>
    %124 = vector.shape_cast %123 : vector<1x16x32xbf16> to vector<16x32xbf16>
    %c128_61 = arith.constant 128 : index
    %c0_62 = arith.constant 0 : index
    %125 = vector.load %arg7[%c128_61, %c0_62] : memref<256x128xbf16, #tpu.memory_space<vmem>>, vector<64x16xbf16>
    %c192 = arith.constant 192 : index
    %c0_63 = arith.constant 0 : index
    %126 = vector.load %arg6[%c192, %c0_63] : memref<8736x256xbf16, #tpu.memory_space<vmem>>, vector<32x256xbf16>
    %cst_64 = arith.constant dense<0.000000e+00> : vector<16x256xf32>
    %127 = tpu.matmul %124, %126, %cst_64 {dimension_numbers = #tpu.dot_dimension_numbers<[1], [0], [0], [1], [0, 0, 1, 1], [], []>} : vector<16x32xbf16>, vector<32x256xbf16>, vector<16x256xf32> -> vector<16x256xf32>
    %128 = arith.truncf %127 : vector<16x256xf32> to vector<16x256xbf16>
    %cst_65 = arith.constant dense<0.000000e+00> : vector<64x256xf32>
    %129 = tpu.matmul %125, %128, %cst_65 {dimension_numbers = #tpu.dot_dimension_numbers<[1], [0], [0], [1], [0, 0, 1, 1], [], []>} : vector<64x16xbf16>, vector<16x256xbf16>, vector<64x256xf32> -> vector<64x256xf32>
    %130 = arith.truncf %129 : vector<64x256xf32> to vector<64x256xbf16>
    %c2848 = arith.constant 2848 : index
    %c0_66 = arith.constant 0 : index
    %131 = vector.load %arg6[%c2848, %c0_66] : memref<8736x256xbf16, #tpu.memory_space<vmem>>, vector<256x256xbf16>
    %cst_67 = arith.constant dense<0.000000e+00> : vector<64x256xf32>
    %132 = tpu.matmul %130, %131, %cst_67 {dimension_numbers = #tpu.dot_dimension_numbers<[1], [0], [0], [1], [0, 0, 1, 1], [], []>} : vector<64x256xbf16>, vector<256x256xbf16>, vector<64x256xf32> -> vector<64x256xf32>
    %c1_i32_68 = arith.constant 1 : i32
    %133 = tpu.dynamic_rotate %129 by %c1_i32_68 dim 0 : vector<64x256xf32>, i32 -> vector<64x256xf32>
    %cst_69 = arith.constant 0.000000e+00 : f32
    %134 = vector.shape_cast %19 : vector<64x1xi1> to vector<64x1xi1>
    %135 = vector.broadcast %134 : vector<64x1xi1> to vector<64x256xi1>
    %136 = vector.broadcast %cst_69 : f32 to vector<64x256xf32>
    %137 = arith.select %135, %133, %136 : vector<64x256xi1>, vector<64x256xf32>
    %138 = arith.truncf %137 : vector<64x256xf32> to vector<64x256xbf16>
    %c2592 = arith.constant 2592 : index
    %c0_70 = arith.constant 0 : index
    %139 = vector.load %arg6[%c2592, %c0_70] : memref<8736x256xbf16, #tpu.memory_space<vmem>>, vector<256x256xbf16>
    %cst_71 = arith.constant dense<0.000000e+00> : vector<64x256xf32>
    %140 = tpu.matmul %138, %139, %cst_71 {dimension_numbers = #tpu.dot_dimension_numbers<[1], [0], [0], [1], [0, 0, 1, 1], [], []>} : vector<64x256xbf16>, vector<256x256xbf16>, vector<64x256xf32> -> vector<64x256xf32>
    %141 = arith.addf %132, %140 : vector<64x256xf32>
    %c63_i32_72 = arith.constant 63 : i32
    %142 = tpu.dynamic_rotate %129 by %c63_i32_72 dim 0 : vector<64x256xf32>, i32 -> vector<64x256xf32>
    %cst_73 = arith.constant 0.000000e+00 : f32
    %143 = vector.shape_cast %21 : vector<64x1xi1> to vector<64x1xi1>
    %144 = vector.broadcast %143 : vector<64x1xi1> to vector<64x256xi1>
    %145 = vector.broadcast %cst_73 : f32 to vector<64x256xf32>
    %146 = arith.select %144, %142, %145 : vector<64x256xi1>, vector<64x256xf32>
    %147 = arith.truncf %146 : vector<64x256xf32> to vector<64x256xbf16>
    %c3104 = arith.constant 3104 : index
    %c0_74 = arith.constant 0 : index
    %148 = vector.load %arg6[%c3104, %c0_74] : memref<8736x256xbf16, #tpu.memory_space<vmem>>, vector<256x256xbf16>
    %cst_75 = arith.constant dense<0.000000e+00> : vector<64x256xf32>
    %149 = tpu.matmul %147, %148, %cst_75 {dimension_numbers = #tpu.dot_dimension_numbers<[1], [0], [0], [1], [0, 0, 1, 1], [], []>} : vector<64x256xbf16>, vector<256x256xbf16>, vector<64x256xf32> -> vector<64x256xf32>
    %150 = arith.addf %141, %149 : vector<64x256xf32>
    %151 = vector.broadcast %0 : vector<1x256xf32> to vector<64x256xf32>
    %152 = arith.mulf %150, %151 : vector<64x256xf32>
    %c4 = arith.constant 4 : index
    %c0_76 = arith.constant 0 : index
    %153 = vector.load %arg8[%c4, %c0_76] : memref<7x256xf32, #tpu.memory_space<vmem>>, vector<1x256xf32>
    %154 = vector.broadcast %153 : vector<1x256xf32> to vector<64x256xf32>
    %155 = arith.addf %152, %154 : vector<64x256xf32>
    %cst_77 = arith.constant 0.000000e+00 : f32
    %156 = vector.broadcast %cst_77 : f32 to vector<64x256xf32>
    %157 = arith.maximumf %155, %156 : vector<64x256xf32>
    %c0_78 = arith.constant 0 : index
    %c0_79 = arith.constant 0 : index
    %c0_80 = arith.constant 0 : index
    %158 = vector.load %arg5[%c0_78, %c0_79, %c0_80] : memref<1x16x32xbf16, #tpu.memory_space<vmem>>, vector<1x16x32xbf16>
    %159 = vector.shape_cast %158 : vector<1x16x32xbf16> to vector<16x32xbf16>
    %c192_81 = arith.constant 192 : index
    %c0_82 = arith.constant 0 : index
    %160 = vector.load %arg7[%c192_81, %c0_82] : memref<256x128xbf16, #tpu.memory_space<vmem>>, vector<64x16xbf16>
    %c224 = arith.constant 224 : index
    %c0_83 = arith.constant 0 : index
    %161 = vector.load %arg6[%c224, %c0_83] : memref<8736x256xbf16, #tpu.memory_space<vmem>>, vector<32x256xbf16>
    %cst_84 = arith.constant dense<0.000000e+00> : vector<16x256xf32>
    %162 = tpu.matmul %159, %161, %cst_84 {dimension_numbers = #tpu.dot_dimension_numbers<[1], [0], [0], [1], [0, 0, 1, 1], [], []>} : vector<16x32xbf16>, vector<32x256xbf16>, vector<16x256xf32> -> vector<16x256xf32>
    %163 = arith.truncf %162 : vector<16x256xf32> to vector<16x256xbf16>
    %cst_85 = arith.constant dense<0.000000e+00> : vector<64x256xf32>
    %164 = tpu.matmul %160, %163, %cst_85 {dimension_numbers = #tpu.dot_dimension_numbers<[1], [0], [0], [1], [0, 0, 1, 1], [], []>} : vector<64x16xbf16>, vector<16x256xbf16>, vector<64x256xf32> -> vector<64x256xf32>
    %c256 = arith.constant 256 : index
    %c0_86 = arith.constant 0 : index
    %165 = vector.load %arg6[%c256, %c0_86] : memref<8736x256xbf16, #tpu.memory_space<vmem>>, vector<32x256xbf16>
    %cst_87 = arith.constant dense<0.000000e+00> : vector<16x256xf32>
    %166 = tpu.matmul %159, %165, %cst_87 {dimension_numbers = #tpu.dot_dimension_numbers<[1], [0], [0], [1], [0, 0, 1, 1], [], []>} : vector<16x32xbf16>, vector<32x256xbf16>, vector<16x256xf32> -> vector<16x256xf32>
    %167 = arith.truncf %166 : vector<16x256xf32> to vector<16x256xbf16>
    %cst_88 = arith.constant dense<0.000000e+00> : vector<64x256xf32>
    %168 = tpu.matmul %160, %167, %cst_88 {dimension_numbers = #tpu.dot_dimension_numbers<[1], [0], [0], [1], [0, 0, 1, 1], [], []>} : vector<64x16xbf16>, vector<16x256xbf16>, vector<64x256xf32> -> vector<64x256xf32>
    %169 = tpu.concatenate %164, %168 in 1 : vector<64x256xf32>, vector<64x256xf32> -> vector<64x512xf32>
    %170 = arith.truncf %169 : vector<64x512xf32> to vector<64x512xbf16>
    %c3872 = arith.constant 3872 : index
    %c0_89 = arith.constant 0 : index
    %171 = vector.load %arg6[%c3872, %c0_89] : memref<8736x256xbf16, #tpu.memory_space<vmem>>, vector<512x256xbf16>
    %cst_90 = arith.constant dense<0.000000e+00> : vector<64x256xf32>
    %172 = tpu.matmul %170, %171, %cst_90 {dimension_numbers = #tpu.dot_dimension_numbers<[1], [0], [0], [1], [0, 0, 1, 1], [], []>} : vector<64x512xbf16>, vector<512x256xbf16>, vector<64x256xf32> -> vector<64x256xf32>
    %c1_i32_91 = arith.constant 1 : i32
    %173 = tpu.dynamic_rotate %169 by %c1_i32_91 dim 0 : vector<64x512xf32>, i32 -> vector<64x512xf32>
    %cst_92 = arith.constant 0.000000e+00 : f32
    %174 = vector.shape_cast %19 : vector<64x1xi1> to vector<64x1xi1>
    %175 = vector.broadcast %174 : vector<64x1xi1> to vector<64x512xi1>
    %176 = vector.broadcast %cst_92 : f32 to vector<64x512xf32>
    %177 = arith.select %175, %173, %176 : vector<64x512xi1>, vector<64x512xf32>
    %178 = arith.truncf %177 : vector<64x512xf32> to vector<64x512xbf16>
    %c3360 = arith.constant 3360 : index
    %c0_93 = arith.constant 0 : index
    %179 = vector.load %arg6[%c3360, %c0_93] : memref<8736x256xbf16, #tpu.memory_space<vmem>>, vector<512x256xbf16>
    %cst_94 = arith.constant dense<0.000000e+00> : vector<64x256xf32>
    %180 = tpu.matmul %178, %179, %cst_94 {dimension_numbers = #tpu.dot_dimension_numbers<[1], [0], [0], [1], [0, 0, 1, 1], [], []>} : vector<64x512xbf16>, vector<512x256xbf16>, vector<64x256xf32> -> vector<64x256xf32>
    %181 = arith.addf %172, %180 : vector<64x256xf32>
    %c63_i32_95 = arith.constant 63 : i32
    %182 = tpu.dynamic_rotate %169 by %c63_i32_95 dim 0 : vector<64x512xf32>, i32 -> vector<64x512xf32>
    %cst_96 = arith.constant 0.000000e+00 : f32
    %183 = vector.shape_cast %21 : vector<64x1xi1> to vector<64x1xi1>
    %184 = vector.broadcast %183 : vector<64x1xi1> to vector<64x512xi1>
    %185 = vector.broadcast %cst_96 : f32 to vector<64x512xf32>
    %186 = arith.select %184, %182, %185 : vector<64x512xi1>, vector<64x512xf32>
    %187 = arith.truncf %186 : vector<64x512xf32> to vector<64x512xbf16>
    %c4384 = arith.constant 4384 : index
    %c0_97 = arith.constant 0 : index
    %188 = vector.load %arg6[%c4384, %c0_97] : memref<8736x256xbf16, #tpu.memory_space<vmem>>, vector<512x256xbf16>
    %cst_98 = arith.constant dense<0.000000e+00> : vector<64x256xf32>
    %189 = tpu.matmul %187, %188, %cst_98 {dimension_numbers = #tpu.dot_dimension_numbers<[1], [0], [0], [1], [0, 0, 1, 1], [], []>} : vector<64x512xbf16>, vector<512x256xbf16>, vector<64x256xf32> -> vector<64x256xf32>
    %190 = arith.addf %181, %189 : vector<64x256xf32>
    %191 = vector.broadcast %0 : vector<1x256xf32> to vector<64x256xf32>
    %192 = arith.mulf %190, %191 : vector<64x256xf32>
    %c5 = arith.constant 5 : index
    %c0_99 = arith.constant 0 : index
    %193 = vector.load %arg8[%c5, %c0_99] : memref<7x256xf32, #tpu.memory_space<vmem>>, vector<1x256xf32>
    %194 = vector.broadcast %193 : vector<1x256xf32> to vector<64x256xf32>
    %195 = arith.addf %192, %194 : vector<64x256xf32>
    %cst_100 = arith.constant 0.000000e+00 : f32
    %196 = vector.broadcast %cst_100 : f32 to vector<64x256xf32>
    %197 = arith.maximumf %195, %196 : vector<64x256xf32>
    %198 = tpu.concatenate %52, %87, %122, %157, %197 in 1 : vector<64x256xf32>, vector<64x256xf32>, vector<64x256xf32>, vector<64x256xf32>, vector<64x256xf32> -> vector<64x1280xf32>
    %199 = arith.truncf %198 : vector<64x1280xf32> to vector<64x1280xbf16>
    %c6176 = arith.constant 6176 : index
    %c0_101 = arith.constant 0 : index
    %200 = vector.load %arg6[%c6176, %c0_101] : memref<8736x256xbf16, #tpu.memory_space<vmem>>, vector<1280x256xbf16>
    %cst_102 = arith.constant dense<0.000000e+00> : vector<64x256xf32>
    %201 = tpu.matmul %199, %200, %cst_102 {dimension_numbers = #tpu.dot_dimension_numbers<[1], [0], [0], [1], [0, 0, 1, 1], [], []>} : vector<64x1280xbf16>, vector<1280x256xbf16>, vector<64x256xf32> -> vector<64x256xf32>
    %c1_i32_103 = arith.constant 1 : i32
    %202 = tpu.dynamic_rotate %198 by %c1_i32_103 dim 0 : vector<64x1280xf32>, i32 -> vector<64x1280xf32>
    %cst_104 = arith.constant 0.000000e+00 : f32
    %203 = vector.shape_cast %19 : vector<64x1xi1> to vector<64x1xi1>
    %204 = vector.broadcast %203 : vector<64x1xi1> to vector<64x1280xi1>
    %205 = vector.broadcast %cst_104 : f32 to vector<64x1280xf32>
    %206 = arith.select %204, %202, %205 : vector<64x1280xi1>, vector<64x1280xf32>
    %207 = arith.truncf %206 : vector<64x1280xf32> to vector<64x1280xbf16>
    %c4896 = arith.constant 4896 : index
    %c0_105 = arith.constant 0 : index
    %208 = vector.load %arg6[%c4896, %c0_105] : memref<8736x256xbf16, #tpu.memory_space<vmem>>, vector<1280x256xbf16>
    %cst_106 = arith.constant dense<0.000000e+00> : vector<64x256xf32>
    %209 = tpu.matmul %207, %208, %cst_106 {dimension_numbers = #tpu.dot_dimension_numbers<[1], [0], [0], [1], [0, 0, 1, 1], [], []>} : vector<64x1280xbf16>, vector<1280x256xbf16>, vector<64x256xf32> -> vector<64x256xf32>
    %210 = arith.addf %201, %209 : vector<64x256xf32>
    %c63_i32_107 = arith.constant 63 : i32
    %211 = tpu.dynamic_rotate %198 by %c63_i32_107 dim 0 : vector<64x1280xf32>, i32 -> vector<64x1280xf32>
    %cst_108 = arith.constant 0.000000e+00 : f32
    %212 = vector.shape_cast %21 : vector<64x1xi1> to vector<64x1xi1>
    %213 = vector.broadcast %212 : vector<64x1xi1> to vector<64x1280xi1>
    %214 = vector.broadcast %cst_108 : f32 to vector<64x1280xf32>
    %215 = arith.select %213, %211, %214 : vector<64x1280xi1>, vector<64x1280xf32>
    %216 = arith.truncf %215 : vector<64x1280xf32> to vector<64x1280xbf16>
    %c7456 = arith.constant 7456 : index
    %c0_109 = arith.constant 0 : index
    %217 = vector.load %arg6[%c7456, %c0_109] : memref<8736x256xbf16, #tpu.memory_space<vmem>>, vector<1280x256xbf16>
    %cst_110 = arith.constant dense<0.000000e+00> : vector<64x256xf32>
    %218 = tpu.matmul %216, %217, %cst_110 {dimension_numbers = #tpu.dot_dimension_numbers<[1], [0], [0], [1], [0, 0, 1, 1], [], []>} : vector<64x1280xbf16>, vector<1280x256xbf16>, vector<64x256xf32> -> vector<64x256xf32>
    %219 = arith.addf %210, %218 : vector<64x256xf32>
    %220 = vector.broadcast %0 : vector<1x256xf32> to vector<64x256xf32>
    %221 = arith.mulf %219, %220 : vector<64x256xf32>
    %c6 = arith.constant 6 : index
    %c0_111 = arith.constant 0 : index
    %222 = vector.load %arg8[%c6, %c0_111] : memref<7x256xf32, #tpu.memory_space<vmem>>, vector<1x256xf32>
    %223 = vector.broadcast %222 : vector<1x256xf32> to vector<64x256xf32>
    %224 = arith.addf %221, %223 : vector<64x256xf32>
    %cst_112 = arith.constant 0.000000e+00 : f32
    %225 = vector.broadcast %cst_112 : f32 to vector<64x256xf32>
    %226 = arith.maximumf %224, %225 : vector<64x256xf32>
    %c0_113 = arith.constant 0 : index
    %c0_114 = arith.constant 0 : index
    %c0_115 = arith.constant 0 : index
    %227 = vector.load %arg9[%c0_113, %c0_114, %c0_115] : memref<1x64x256xf32, #tpu.memory_space<vmem>>, vector<1x64x256xf32>
    %228 = vector.shape_cast %227 : vector<1x64x256xf32> to vector<64x256xf32>
    %229 = vector.shape_cast %226 : vector<64x256xf32> to vector<1x64x256xf32>
    tpu.vector_store %arg9[%c0_113, %c0_114, %c0_115], %229 {strides = array<i32>} : memref<1x64x256xf32, #tpu.memory_space<vmem>>, vector<1x64x256xf32>,
    return
  }
  func.func @transform_0(%arg0: i32) -> (i32, i32, i32) {
    %c0_i32 = arith.constant 0 : i32
    %c0_i32_0 = arith.constant 0 : i32
    %c0_i32_1 = arith.constant 0 : i32
    return %arg0, %c0_i32, %c0_i32_0 : i32, i32, i32
  }
  func.func @transform_1(%arg0: i32) -> (i32, i32, i32) {
    %c0_i32 = arith.constant 0 : i32
    %c0_i32_0 = arith.constant 0 : i32
    %c0_i32_1 = arith.constant 0 : i32
    return %arg0, %c0_i32, %c0_i32_0 : i32, i32, i32
  }
  func.func @transform_2(%arg0: i32) -> (i32, i32, i32) {
    %c0_i32 = arith.constant 0 : i32
    %c0_i32_0 = arith.constant 0 : i32
    %c0_i32_1 = arith.constant 0 : i32
    return %arg0, %c0_i32, %c0_i32_0 : i32, i32, i32
  }
  func.func @transform_3(%arg0: i32) -> (i32, i32, i32) {
    %c0_i32 = arith.constant 0 : i32
    %c0_i32_0 = arith.constant 0 : i32
    %c0_i32_1 = arith.constant 0 : i32
    return %arg0, %c0_i32, %c0_i32_0 : i32, i32, i32
  }
  func.func @transform_4(%arg0: i32) -> (i32, i32, i32) {
    %c0_i32 = arith.constant 0 : i32
    %c0_i32_0 = arith.constant 0 : i32
    %c0_i32_1 = arith.constant 0 : i32
    return %arg0, %c0_i32, %c0_i32_0 : i32, i32, i32
  }
  func.func @transform_5(%arg0: i32) -> (i32, i32) {
    %c0_i32 = arith.constant 0 : i32
    %c0_i32_0 = arith.constant 0 : i32
    %c0_i32_1 = arith.constant 0 : i32
    return %c0_i32, %c0_i32_0 : i32, i32
  }
  func.func @transform_6(%arg0: i32) -> (i32, i32) {
    %c0_i32 = arith.constant 0 : i32
    %c0_i32_0 = arith.constant 0 : i32
    %c0_i32_1 = arith.constant 0 : i32
    return %c0_i32, %c0_i32_0 : i32, i32
  }
  func.func @transform_7(%arg0: i32) -> (i32, i32) {
    %c0_i32 = arith.constant 0 : i32
    %c0_i32_0 = arith.constant 0 : i32
    %c0_i32_1 = arith.constant 0 : i32
    return %c0_i32, %c0_i32_0 : i32, i32
  }
  func.func @transform_8(%arg0: i32) -> (i32, i32, i32) {
    %c0_i32 = arith.constant 0 : i32
    %c0_i32_0 = arith.constant 0 : i32
    %c0_i32_1 = arith.constant 0 : i32
    return %arg0, %c0_i32, %c0_i32_0 : i32, i32, i32
  }
}

</mosaic_0001>

<llo_original>
// kernel: _forward.1
$region0: #{_forward.1}
  #allocation0 [shape = 'u32[]', space=smem, size = 0x4, offset = 0x4, fixed_abs, tag = 'smem constant byte address 0x4 - core index']
  #allocation1 [shape = 'u32[72,128]{1,0:T(1,128)}', space=vmem, size = 0x9000, scoped, tag = 'internal scratch']
  %s0 = inlined_call_operand.vmem [shape: bf16[1,64,256], index: 0, kind: input, shape index: {}]
  %s1 = inlined_call_operand.vmem [shape: bf16[1,32,128], index: 1, kind: input, shape index: {}]
  %s2 = inlined_call_operand.vmem [shape: bf16[1,16,64], index: 2, kind: input, shape index: {}]
  %s3 = inlined_call_operand.vmem [shape: bf16[1,16,32], index: 3, kind: input, shape index: {}]
  %s4 = inlined_call_operand.vmem [shape: bf16[1,16,32], index: 4, kind: input, shape index: {}]
  %s5 = inlined_call_operand.hbm [shape: bf16[8736,256], index: 5, kind: input, shape index: {}]
  %s6 = inlined_call_operand.hbm [shape: bf16[256,128], index: 6, kind: input, shape index: {}]
  %s7 = inlined_call_operand.hbm [shape: f32[7,256], index: 7, kind: input, shape index: {}]
  %s8 = inlined_call_operand.vmem [shape: f32[1,64,256], index: 8, kind: output, shape index: {}]
  %s9 = sld [smem:[#allocation0]]
  $region54: #{_forward.1} parent=0
    _
  %s11 = ssub.s32 1, %s9
  %s12 = scalar_select 0, %s11, %s9
  $region1: #{_forward.1} parent=0
    #allocation2 [shape = 'u8[4472832]{0}', space=vmem, size = 0x444000, scoped, tag = 'input window, operand 5, single buffered']
    #allocation3 [shape = 's32[1]{0}', space=sflag, size = 0x4, scoped, tag = 'scoped memory for _forward.1']
    #allocation4 [shape = 'u8[65536]{0}', space=vmem, size = 0x10000, scoped, tag = 'input window, operand 6, single buffered']
    #allocation5 [shape = 's32[1]{0}', space=sflag, size = 0x4, scoped, tag = 'scoped memory for _forward.1']
    #allocation6 [shape = 'u8[8192]{0}', space=vmem, size = 0x2000, scoped, tag = 'input window, operand 7, single buffered']
    %13 = vsyncpa [#allocation3], 0
    %14 = vsyncpa [#allocation5], 0
    // Predicated region
    $region2: #{_forward.1} parent=1 // pred_check
      _
    $region3: #{_forward.1} parent=1 // pred_check_branch
      %16 = sbr.rel (0) target = $region5
    $region4: #{_forward.1} parent=1 // pred_region
      _
    $region5: #{_forward.1} parent=1 // pred_fallthru
      _
    // Predicated region
    $region6: #{_forward.1} parent=1 // pred_check
      _
    $region7: #{_forward.1} parent=1 // pred_check_branch
      %18 = sbr.rel (0) target = $region9
    $region8: #{_forward.1} parent=1 // pred_region
      _
    $region9: #{_forward.1} parent=1 // pred_fallthru
      _
    // Predicated region
    $region10: #{_forward.1} parent=1 // pred_check
      _
    $region11: #{_forward.1} parent=1 // pred_check_branch
      %20 = sbr.rel (0) target = $region13
    $region12: #{_forward.1} parent=1 // pred_region
      _
    $region13: #{_forward.1} parent=1 // pred_fallthru
      _
    // Predicated region
    $region14: #{_forward.1} parent=1 // pred_check
      _
    $region15: #{_forward.1} parent=1 // pred_check_branch
      %22 = sbr.rel (0) target = $region17
    $region16: #{_forward.1} parent=1 // pred_region
      _
    $region17: #{_forward.1} parent=1 // pred_fallthru
      _
    // Predicated region
    $region18: #{_forward.1} parent=1 // pred_check
      _
    $region19: #{_forward.1} parent=1 // pred_check_branch
      %24 = sbr.rel (0) target = $region21
    $region20: #{_forward.1} parent=1 // pred_region
      _
    $region21: #{_forward.1} parent=1 // pred_fallthru
      _
    // Predicated region
    $region22: #{_forward.1} parent=1 // pred_check
      _
    $region23: #{_forward.1} parent=1 // pred_check_branch
      %26 = sbr.rel (0) target = $region25
    $region24: #{_forward.1} parent=1 // pred_region
      %28 = vsyncadd [#allocation3], 0
      %s29 = sshll.u32 %s5, 4
      %s30 = int_to_ptr.hbm [resolvable:$true] %s29
      %s31 = sshll.u32 [#allocation2], 4
      %s32 = int_to_ptr.vmem [resolvable:$true] %s31
      %37 = dma.hbm_to_vmem [thread:$0]  %s30, 139776, %s32, [#allocation3], 128, 128, 8
    $region25: #{_forward.1} parent=1 // pred_fallthru
      _
    // Predicated region
    $region26: #{_forward.1} parent=1 // pred_check
      _
    $region27: #{_forward.1} parent=1 // pred_check_branch
      %39 = sbr.rel (0) target = $region29
    $region28: #{_forward.1} parent=1 // pred_region
      %41 = vsyncadd [#allocation5], 0
      %s42 = sshll.u32 %s6, 4
      %s43 = int_to_ptr.hbm [resolvable:$true] %s42
      %s44 = sshll.u32 [#allocation4], 4
      %s45 = int_to_ptr.vmem [resolvable:$true] %s44
      %50 = dma.hbm_to_vmem [thread:$0]  %s43, 2048, %s45, [#allocation5], 64, 64, 4
    $region29: #{_forward.1} parent=1 // pred_fallthru
      _
    // Predicated region
    $region30: #{_forward.1} parent=1 // pred_check
      _
    $region31: #{_forward.1} parent=1 // pred_check_branch
      %52 = sbr.rel (0) target = $region33
    $region32: #{_forward.1} parent=1 // pred_region
      %54 = vsyncadd [#allocation5], 0
      %s56 = sshll.u32 %s7, 4
      %s57 = int_to_ptr.hbm [resolvable:$true] %s56
      %s58 = sshll.u32 [#allocation6], 4
      %s59 = int_to_ptr.vmem [resolvable:$true] %s58
      %61 = dma.hbm_to_vmem [thread:$0]  %s57, 256, %s59, [#allocation5]
    $region33: #{_forward.1} parent=1 // pred_fallthru
      _
    // Predicated region
    $region34: #{_forward.1} parent=1 // pred_check
      _
    $region35: #{_forward.1} parent=1 // pred_check_branch
      %63 = sbr.rel (0) target = $region37
    $region36: #{_forward.1} parent=1 // pred_region
      %65 = dma.done [#allocation3], 139776
    $region37: #{_forward.1} parent=1 // pred_fallthru
      _
    // Predicated region
    $region38: #{_forward.1} parent=1 // pred_check
      _
    $region39: #{_forward.1} parent=1 // pred_check_branch
      %67 = sbr.rel (0) target = $region41
    $region40: #{_forward.1} parent=1 // pred_region
      %69 = dma.done [#allocation5], 2048
    $region41: #{_forward.1} parent=1 // pred_fallthru
      _
    // Predicated region
    $region42: #{_forward.1} parent=1 // pred_check
      _
    $region43: #{_forward.1} parent=1 // pred_check_branch
      %71 = sbr.rel (0) target = $region45
    $region44: #{_forward.1} parent=1 // pred_region
      %73 = dma.done [#allocation5], 256
    $region45: #{_forward.1} parent=1 // pred_fallthru
      _
    %v75 = vld [vmem:[#allocation6] ss:$8 sm:$0x3]
    %v76 = vlaneseq
    %v77 = vshrl.u32 %v76, 7
    %v78 = vadd.s32 %v77, 8
    %v79 = vadd.s32 %v77, 16
    %v80 = vadd.s32 %v77, 24
    %v81 = vadd.s32 %v77, 32
    %v82 = vadd.s32 %v77, 40
    %v83 = vadd.s32 %v77, 48
    %v84 = vadd.s32 %v77, 56
    %vm85 = vcmp.lt.s32.totalorder %v77, 0
    %v86 = vsub.s32 0, %v77
    %v87 = vsel %vm85, %v86, %v77
    %v88 = vshrl.u32 %v87, 5
    %v89 = vand.u32 %v87, 31
    %v90 = vsub.s32 0, %v89
    %v91 = vsel %vm85, %v90, %v89
    %vm92 = vcmp.lt.s32.totalorder %v78, 0
    %v93 = vsub.s32 0, %v78
    %v94 = vsel %vm92, %v93, %v78
    %v95 = vshrl.u32 %v94, 5
    %v96 = vand.u32 %v94, 31
    %v97 = vsub.s32 0, %v96
    %v98 = vsel %vm92, %v97, %v96
    %vm99 = vcmp.lt.s32.totalorder %v79, 0
    %v100 = vsub.s32 0, %v79
    %v101 = vsel %vm99, %v100, %v79
    %v102 = vshrl.u32 %v101, 5
    %v103 = vand.u32 %v101, 31
    %v104 = vsub.s32 0, %v103
    %v105 = vsel %vm99, %v104, %v103
    %vm106 = vcmp.lt.s32.totalorder %v80, 0
    %v107 = vsub.s32 0, %v80
    %v108 = vsel %vm106, %v107, %v80
    %v109 = vshrl.u32 %v108, 5
    %v110 = vand.u32 %v108, 31
    %v111 = vsub.s32 0, %v110
    %v112 = vsel %vm106, %v111, %v110
    %vm113 = vcmp.lt.s32.totalorder %v81, 0
    %v114 = vsub.s32 0, %v81
    %v115 = vsel %vm113, %v114, %v81
    %v116 = vshrl.u32 %v115, 5
    %v117 = vand.u32 %v115, 31
    %v118 = vsub.s32 0, %v117
    %v119 = vsel %vm113, %v118, %v117
    %vm120 = vcmp.lt.s32.totalorder %v82, 0
    %v121 = vsub.s32 0, %v82
    %v122 = vsel %vm120, %v121, %v82
    %v123 = vshrl.u32 %v122, 5
    %v124 = vand.u32 %v122, 31
    %v125 = vsub.s32 0, %v124
    %v126 = vsel %vm120, %v125, %v124
    %vm127 = vcmp.lt.s32.totalorder %v83, 0
    %v128 = vsub.s32 0, %v83
    %v129 = vsel %vm127, %v128, %v83
    %v130 = vshrl.u32 %v129, 5
    %v131 = vand.u32 %v129, 31
    %v132 = vsub.s32 0, %v131
    %v133 = vsel %vm127, %v132, %v131
    %vm134 = vcmp.lt.s32.totalorder %v84, 0
    %v135 = vsub.s32 0, %v84
    %v136 = vsel %vm134, %v135, %v84
    %v137 = vshrl.u32 %v136, 5
    %v138 = vand.u32 %v136, 31
    %v139 = vsub.s32 0, %v138
    %v140 = vsel %vm134, %v139, %v138
    %vm141 = vcmp.ne.s32.totalorder %v91, 0
    %vm142 = vcmp.ne.s32.totalorder %v98, 0
    %vm143 = vcmp.ne.s32.totalorder %v105, 0
    %vm144 = vcmp.ne.s32.totalorder %v112, 0
    %vm145 = vcmp.ne.s32.totalorder %v119, 0
    %vm146 = vcmp.ne.s32.totalorder %v126, 0
    %vm147 = vcmp.ne.s32.totalorder %v133, 0
    %vm148 = vcmp.ne.s32.totalorder %v140, 0
    %vm149 = vcmp.lt.s32.totalorder %v91, 0
    %vm150 = vcmp.lt.s32.totalorder %v98, 0
    %vm151 = vcmp.lt.s32.totalorder %v105, 0
    %vm152 = vcmp.lt.s32.totalorder %v112, 0
    %vm153 = vcmp.lt.s32.totalorder %v119, 0
    %vm154 = vcmp.lt.s32.totalorder %v126, 0
    %vm155 = vcmp.lt.s32.totalorder %v133, 0
    %vm156 = vcmp.lt.s32.totalorder %v140, 0
    %vm157 = vmand %vm149, %vm141
    %vm158 = vmand %vm150, %vm142
    %vm159 = vmand %vm151, %vm143
    %vm160 = vmand %vm152, %vm144
    %vm161 = vmand %vm153, %vm145
    %vm162 = vmand %vm154, %vm146
    %vm163 = vmand %vm155, %vm147
    %vm164 = vmand %vm156, %vm148
    %v165 = vadd.s32 %v91, 32
    %v166 = vadd.s32 %v98, 32
    %v167 = vadd.s32 %v105, 32
    %v168 = vadd.s32 %v112, 32
    %v169 = vadd.s32 %v119, 32
    %v170 = vadd.s32 %v126, 32
    %v171 = vadd.s32 %v133, 32
    %v172 = vadd.s32 %v140, 32
    %v173 = vsel %vm157, %v165, %v91
    %v174 = vsel %vm158, %v166, %v98
    %v175 = vsel %vm159, %v167, %v105
    %v176 = vsel %vm160, %v168, %v112
    %v177 = vsel %vm161, %v169, %v119
    %v178 = vsel %vm162, %v170, %v126
    %v179 = vsel %vm163, %v171, %v133
    %v180 = vsel %vm164, %v172, %v140
    %vm181 = vcmp.ne.s32.totalorder %v173, 0
    %vm182 = vcmp.ne.s32.totalorder %v174, 0
    %vm183 = vcmp.ne.s32.totalorder %v175, 0
    %vm184 = vcmp.ne.s32.totalorder %v176, 0
    %vm185 = vcmp.ne.s32.totalorder %v177, 0
    %vm186 = vcmp.ne.s32.totalorder %v178, 0
    %vm187 = vcmp.ne.s32.totalorder %v179, 0
    %vm188 = vcmp.ne.s32.totalorder %v180, 0
    %vm189 = vcmp.ne.s32.totalorder %v173, 31
    %vm190 = vcmp.ne.s32.totalorder %v174, 31
    %vm191 = vcmp.ne.s32.totalorder %v175, 31
    %vm192 = vcmp.ne.s32.totalorder %v176, 31
    %vm193 = vcmp.ne.s32.totalorder %v177, 31
    %vm194 = vcmp.ne.s32.totalorder %v178, 31
    %vm195 = vcmp.ne.s32.totalorder %v179, 31
    %vm196 = vcmp.ne.s32.totalorder %v180, 31
    %v197 = vld [vmem:[%s0] sm:$0xff]
    %v198 = vld [vmem:[%s0 + $0x8] sm:$0xff]
    %v199 = vld [vmem:[%s0 + $0x10] sm:$0xff]
    %v200 = vld [vmem:[%s0 + $0x18] sm:$0xff]
    %v201 = vld [vmem:[%s0 + $0x20] sm:$0xff]
    %v202 = vld [vmem:[%s0 + $0x28] sm:$0xff]
    %v203 = vld [vmem:[%s0 + $0x30] sm:$0xff]
    %v204 = vld [vmem:[%s0 + $0x38] sm:$0xff]
    %v205 = vunpack.c.l.bf16 %v197
    %v206 = vunpack.c.h.bf16 %v197
    %v207 = vunpack.c.l.bf16 %v198
    %v208 = vunpack.c.h.bf16 %v198
    %v209 = vunpack.c.l.bf16 %v199
    %v210 = vunpack.c.h.bf16 %v199
    %v211 = vunpack.c.l.bf16 %v200
    %v212 = vunpack.c.h.bf16 %v200
    %v213 = vunpack.c.l.bf16 %v201
    %v214 = vunpack.c.h.bf16 %v201
    %v215 = vunpack.c.l.bf16 %v202
    %v216 = vunpack.c.h.bf16 %v202
    %v217 = vunpack.c.l.bf16 %v203
    %v218 = vunpack.c.h.bf16 %v203
    %v219 = vunpack.c.l.bf16 %v204
    %v220 = vunpack.c.h.bf16 %v204
    %v221 = vld [vmem:[#allocation2 + $0x220] sm:$0xff]
    %v222 = vld [vmem:[#allocation2 + $0x228] sm:$0xff]
    %v223 = vld [vmem:[#allocation2 + $0x230] sm:$0xff]
    %v224 = vld [vmem:[#allocation2 + $0x238] sm:$0xff]
    %v225 = vld [vmem:[#allocation2 + $0x240] sm:$0xff]
    %v226 = vld [vmem:[#allocation2 + $0x248] sm:$0xff]
    %v227 = vld [vmem:[#allocation2 + $0x250] sm:$0xff]
    %v228 = vld [vmem:[#allocation2 + $0x258] sm:$0xff]
    %v229 = vld [vmem:[#allocation2 + $0x260] sm:$0xff]
    %v230 = vld [vmem:[#allocation2 + $0x268] sm:$0xff]
    %v231 = vld [vmem:[#allocation2 + $0x270] sm:$0xff]
    %v232 = vld [vmem:[#allocation2 + $0x278] sm:$0xff]
    %v233 = vld [vmem:[#allocation2 + $0x280] sm:$0xff]
    %v234 = vld [vmem:[#allocation2 + $0x288] sm:$0xff]
    %v235 = vld [vmem:[#allocation2 + $0x290] sm:$0xff]
    %v236 = vld [vmem:[#allocation2 + $0x298] sm:$0xff]
    %v237 = vld [vmem:[#allocation2 + $0x2a0] sm:$0xff]
    %v238 = vld [vmem:[#allocation2 + $0x2a8] sm:$0xff]
    %v239 = vld [vmem:[#allocation2 + $0x2b0] sm:$0xff]
    %v240 = vld [vmem:[#allocation2 + $0x2b8] sm:$0xff]
    %v241 = vld [vmem:[#allocation2 + $0x2c0] sm:$0xff]
    %v242 = vld [vmem:[#allocation2 + $0x2c8] sm:$0xff]
    %v243 = vld [vmem:[#allocation2 + $0x2d0] sm:$0xff]
    %v244 = vld [vmem:[#allocation2 + $0x2d8] sm:$0xff]
    %v245 = vld [vmem:[#allocation2 + $0x2e0] sm:$0xff]
    %v246 = vld [vmem:[#allocation2 + $0x2e8] sm:$0xff]
    %v247 = vld [vmem:[#allocation2 + $0x2f0] sm:$0xff]
    %v248 = vld [vmem:[#allocation2 + $0x2f8] sm:$0xff]
    %v249 = vld [vmem:[#allocation2 + $0x300] sm:$0xff]
    %v250 = vld [vmem:[#allocation2 + $0x308] sm:$0xff]
    %v251 = vld [vmem:[#allocation2 + $0x310] sm:$0xff]
    %v252 = vld [vmem:[#allocation2 + $0x318] sm:$0xff]
    %v253 = vrot.slane %v205, 7
    %v254 = vrot.slane %v206, 7
    %v255 = vrot.slane %v207, 7
    %v256 = vrot.slane %v208, 7
    %v257 = vrot.slane %v209, 7
    %v258 = vrot.slane %v210, 7
    %v259 = vrot.slane %v211, 7
    %v260 = vrot.slane %v212, 7
    %v261 = vrot.slane %v213, 7
    %v262 = vrot.slane %v214, 7
    %v263 = vrot.slane %v215, 7
    %v264 = vrot.slane %v216, 7
    %v265 = vrot.slane %v217, 7
    %v266 = vrot.slane %v218, 7
    %v267 = vrot.slane %v219, 7
    %v268 = vrot.slane %v220, 7
    %vm269 = vcmp.lt.s32.totalorder %v77, 1
    %v270 = vsel %vm269, %v265, %v267
    %v271 = vsel %vm269, %v266, %v268
    %v272 = vsel %vm269, %v263, %v265
    %v273 = vsel %vm269, %v264, %v266
    %v274 = vsel %vm269, %v261, %v263
    %v275 = vsel %vm269, %v262, %v264
    %v276 = vsel %vm269, %v259, %v261
    %v277 = vsel %vm269, %v260, %v262
    %v278 = vsel %vm269, %v257, %v259
    %v279 = vsel %vm269, %v258, %v260
    %v280 = vsel %vm269, %v255, %v257
    %v281 = vsel %vm269, %v256, %v258
    %v282 = vsel %vm269, %v253, %v255
    %v283 = vsel %vm269, %v254, %v256
    %v284 = vsel %vm269, %v267, %v253
    %v285 = vsel %vm269, %v268, %v254
    %v286 = vsel %vm181, 1, 0
    %v287 = vsel %vm182, 1, 0
    %v288 = vsel %vm183, 1, 0
    %v289 = vsel %vm184, 1, 0
    %v290 = vsel %vm185, 1, 0
    %v291 = vsel %vm186, 1, 0
    %v292 = vsel %vm187, 1, 0
    %v293 = vsel %vm188, 1, 0
    %vm294 = vcmp.eq.s32.totalorder %v286, 1
    %vm295 = vcmp.eq.s32.totalorder %v287, 1
    %vm296 = vcmp.eq.s32.totalorder %v288, 1
    %vm297 = vcmp.eq.s32.totalorder %v289, 1
    %vm298 = vcmp.eq.s32.totalorder %v290, 1
    %vm299 = vcmp.eq.s32.totalorder %v291, 1
    %vm300 = vcmp.eq.s32.totalorder %v292, 1
    %vm301 = vcmp.eq.s32.totalorder %v293, 1
    %v302 = vsel %vm294, %v284, 0.0
    %v303 = vsel %vm294, %v285, 0.0
    %v304 = vsel %vm295, %v282, 0.0
    %v305 = vsel %vm295, %v283, 0.0
    %v306 = vsel %vm296, %v280, 0.0
    %v307 = vsel %vm296, %v281, 0.0
    %v308 = vsel %vm297, %v278, 0.0
    %v309 = vsel %vm297, %v279, 0.0
    %v310 = vsel %vm298, %v276, 0.0
    %v311 = vsel %vm298, %v277, 0.0
    %v312 = vsel %vm299, %v274, 0.0
    %v313 = vsel %vm299, %v275, 0.0
    %v314 = vsel %vm300, %v272, 0.0
    %v315 = vsel %vm300, %v273, 0.0
    %v316 = vsel %vm301, %v270, 0.0
    %v317 = vsel %vm301, %v271, 0.0
    %v318 = vpack.c.bf16 %v304, %v302
    %v319 = vpack.c.bf16 %v305, %v303
    %v320 = vpack.c.bf16 %v308, %v306
    %v321 = vpack.c.bf16 %v309, %v307
    %v322 = vpack.c.bf16 %v312, %v310
    %v323 = vpack.c.bf16 %v313, %v311
    %v324 = vpack.c.bf16 %v316, %v314
    %v325 = vpack.c.bf16 %v317, %v315
    %v326 = vld [vmem:[#allocation2 + $0x120] sm:$0xff]
    %v327 = vld [vmem:[#allocation2 + $0x128] sm:$0xff]
    %v328 = vld [vmem:[#allocation2 + $0x130] sm:$0xff]
    %v329 = vld [vmem:[#allocation2 + $0x138] sm:$0xff]
    %v330 = vld [vmem:[#allocation2 + $0x140] sm:$0xff]
    %v331 = vld [vmem:[#allocation2 + $0x148] sm:$0xff]
    %v332 = vld [vmem:[#allocation2 + $0x150] sm:$0xff]
    %v333 = vld [vmem:[#allocation2 + $0x158] sm:$0xff]
    %v334 = vld [vmem:[#allocation2 + $0x160] sm:$0xff]
    %v335 = vld [vmem:[#allocation2 + $0x168] sm:$0xff]
    %v336 = vld [vmem:[#allocation2 + $0x170] sm:$0xff]
    %v337 = vld [vmem:[#allocation2 + $0x178] sm:$0xff]
    %v338 = vld [vmem:[#allocation2 + $0x180] sm:$0xff]
    %v339 = vld [vmem:[#allocation2 + $0x188] sm:$0xff]
    %v340 = vld [vmem:[#allocation2 + $0x190] sm:$0xff]
    %v341 = vld [vmem:[#allocation2 + $0x198] sm:$0xff]
    %v342 = vld [vmem:[#allocation2 + $0x1a0] sm:$0xff]
    %v343 = vld [vmem:[#allocation2 + $0x1a8] sm:$0xff]
    %v344 = vld [vmem:[#allocation2 + $0x1b0] sm:$0xff]
    %v345 = vld [vmem:[#allocation2 + $0x1b8] sm:$0xff]
    %v346 = vld [vmem:[#allocation2 + $0x1c0] sm:$0xff]
    %v347 = vld [vmem:[#allocation2 + $0x1c8] sm:$0xff]
    %v348 = vld [vmem:[#allocation2 + $0x1d0] sm:$0xff]
    %v349 = vld [vmem:[#allocation2 + $0x1d8] sm:$0xff]
    %v350 = vld [vmem:[#allocation2 + $0x1e0] sm:$0xff]
    %v351 = vld [vmem:[#allocation2 + $0x1e8] sm:$0xff]
    %v352 = vld [vmem:[#allocation2 + $0x1f0] sm:$0xff]
    %v353 = vld [vmem:[#allocation2 + $0x1f8] sm:$0xff]
    %v354 = vld [vmem:[#allocation2 + $0x200] sm:$0xff]
    %v355 = vld [vmem:[#allocation2 + $0x208] sm:$0xff]
    %v356 = vld [vmem:[#allocation2 + $0x210] sm:$0xff]
    %v357 = vld [vmem:[#allocation2 + $0x218] sm:$0xff]
    %v390 = vunpack.c.l.b16 %v326
    %v391 = vunpack.c.h.b16 %v326
    %v392 = vunpack.c.l.b16 %v327
    %v393 = vunpack.c.h.b16 %v327
    %v394 = vunpack.c.l.b16 %v328
    %v395 = vunpack.c.h.b16 %v328
    %v396 = vunpack.c.l.b16 %v329
    %v397 = vunpack.c.h.b16 %v329
    %v398 = vunpack.c.l.b16 %v330
    %v399 = vunpack.c.h.b16 %v330
    %v400 = vunpack.c.l.b16 %v331
    %v401 = vunpack.c.h.b16 %v331
    %v402 = vunpack.c.l.b16 %v332
    %v403 = vunpack.c.h.b16 %v332
    %v404 = vunpack.c.l.b16 %v333
    %v405 = vunpack.c.h.b16 %v333
    %v406 = vunpack.c.l.b16 %v334
    %v407 = vunpack.c.h.b16 %v334
    %v408 = vunpack.c.l.b16 %v335
    %v409 = vunpack.c.h.b16 %v335
    %v410 = vunpack.c.l.b16 %v336
    %v411 = vunpack.c.h.b16 %v336
    %v412 = vunpack.c.l.b16 %v337
    %v413 = vunpack.c.h.b16 %v337
    %v414 = vunpack.c.l.b16 %v338
    %v415 = vunpack.c.h.b16 %v338
    %v416 = vunpack.c.l.b16 %v339
    %v417 = vunpack.c.h.b16 %v339
    %v418 = vunpack.c.l.b16 %v340
    %v419 = vunpack.c.h.b16 %v340
    %v420 = vunpack.c.l.b16 %v341
    %v421 = vunpack.c.h.b16 %v341
    %v422 = vunpack.c.l.b16 %v342
    %v423 = vunpack.c.h.b16 %v342
    %v424 = vunpack.c.l.b16 %v343
    %v425 = vunpack.c.h.b16 %v343
    %v426 = vunpack.c.l.b16 %v344
    %v427 = vunpack.c.h.b16 %v344
    %v428 = vunpack.c.l.b16 %v345
    %v429 = vunpack.c.h.b16 %v345
    %v430 = vunpack.c.l.b16 %v346
    %v431 = vunpack.c.h.b16 %v346
    %v432 = vunpack.c.l.b16 %v347
    %v433 = vunpack.c.h.b16 %v347
    %v434 = vunpack.c.l.b16 %v348
    %v435 = vunpack.c.h.b16 %v348
    %v436 = vunpack.c.l.b16 %v349
    %v437 = vunpack.c.h.b16 %v349
    %v438 = vunpack.c.l.b16 %v350
    %v439 = vunpack.c.h.b16 %v350
    %v440 = vunpack.c.l.b16 %v351
    %v441 = vunpack.c.h.b16 %v351
    %v442 = vunpack.c.l.b16 %v352
    %v443 = vunpack.c.h.b16 %v352
    %v444 = vunpack.c.l.b16 %v353
    %v445 = vunpack.c.h.b16 %v353
    %v446 = vunpack.c.l.b16 %v354
    %v447 = vunpack.c.h.b16 %v354
    %v448 = vunpack.c.l.b16 %v355
    %v449 = vunpack.c.h.b16 %v355
    %v450 = vunpack.c.l.b16 %v356
    %v451 = vunpack.c.h.b16 %v356
    %v452 = vunpack.c.l.b16 %v357
    %v453 = vunpack.c.h.b16 %v357
    %v454 = vpack.c.b16 %v392, %v390
    %v455 = vpack.c.b16 %v393, %v391
    %v456 = vpack.c.b16 %v396, %v394
    %v457 = vpack.c.b16 %v397, %v395
    %v458 = vpack.c.b16 %v400, %v398
    %v459 = vpack.c.b16 %v401, %v399
    %v460 = vpack.c.b16 %v404, %v402
    %v461 = vpack.c.b16 %v405, %v403
    %v462 = vpack.c.b16 %v408, %v406
    %v463 = vpack.c.b16 %v409, %v407
    %v464 = vpack.c.b16 %v412, %v410
    %v465 = vpack.c.b16 %v413, %v411
    %v466 = vpack.c.b16 %v416, %v414
    %v467 = vpack.c.b16 %v417, %v415
    %v468 = vpack.c.b16 %v420, %v418
    %v469 = vpack.c.b16 %v421, %v419
    %v470 = vpack.c.b16 %v424, %v422
    %v471 = vpack.c.b16 %v425, %v423
    %v472 = vpack.c.b16 %v428, %v426
    %v473 = vpack.c.b16 %v429, %v427
    %v474 = vpack.c.b16 %v432, %v430
    %v475 = vpack.c.b16 %v433, %v431
    %v476 = vpack.c.b16 %v436, %v434
    %v477 = vpack.c.b16 %v437, %v435
    %v478 = vpack.c.b16 %v440, %v438
    %v479 = vpack.c.b16 %v441, %v439
    %v480 = vpack.c.b16 %v444, %v442
    %v481 = vpack.c.b16 %v445, %v443
    %v482 = vpack.c.b16 %v448, %v446
    %v483 = vpack.c.b16 %v449, %v447
    %v484 = vpack.c.b16 %v452, %v450
    %v485 = vpack.c.b16 %v453, %v451
    %518 = vmatpush.bf16.msra.mxu0 %v468
    %519 = vmatpush.bf16.msra.mxu0 %v466
    %520 = vmatpush.bf16.msra.mxu0 %v464
    %521 = vmatpush.bf16.msra.mxu0 %v462
    %522 = vmatpush.bf16.msra.mxu0 %v460
    %523 = vmatpush.bf16.msra.mxu0 %v458
    %524 = vmatpush.bf16.msra.mxu0 %v456
    %525 = vmatpush.bf16.msra.mxu0 %v454
    %526 = vmatmul.bf16.gmra.mxu0 %v318
    %v527 = vpop.f32.mrf.mxu0
    %v528 = vadd.f32 0.0, %v527
    %v529 = vpop.f32.mrf.mxu0
    %v530 = vadd.f32 0.0, %v529
    %531 = vmatmul.bf16.gmra.mxu0 %v320
    %v532 = vpop.f32.mrf.mxu0
    %v533 = vadd.f32 0.0, %v532
    %v534 = vpop.f32.mrf.mxu0
    %v535 = vadd.f32 0.0, %v534
    %536 = vmatmul.bf16.gmra.mxu0 %v322
    %v537 = vpop.f32.mrf.mxu0
    %v538 = vadd.f32 0.0, %v537
    %v539 = vpop.f32.mrf.mxu0
    %v540 = vadd.f32 0.0, %v539
    %541 = vmatmul.bf16.gmra.mxu0 %v324
    %v542 = vpop.f32.mrf.mxu0
    %v543 = vadd.f32 0.0, %v542
    %v544 = vpop.f32.mrf.mxu0
    %v545 = vadd.f32 0.0, %v544
    %546 = vdwg.mxu0
    %547 = vmatpush.bf16.msra.mxu0 %v484
    %548 = vmatpush.bf16.msra.mxu0 %v482
    %549 = vmatpush.bf16.msra.mxu0 %v480
    %550 = vmatpush.bf16.msra.mxu0 %v478
    %551 = vmatpush.bf16.msra.mxu0 %v476
    %552 = vmatpush.bf16.msra.mxu0 %v474
    %553 = vmatpush.bf16.msra.mxu0 %v472
    %554 = vmatpush.bf16.msra.mxu0 %v470
    %555 = vmatmul.bf16.gmra.mxu0 %v319
    %v556 = vpop.f32.mrf.mxu0
    %v557 = vadd.f32 %v528, %v556
    %v558 = vpop.f32.mrf.mxu0
    %v559 = vadd.f32 %v530, %v558
    %560 = vmatmul.bf16.gmra.mxu0 %v321
    %v561 = vpop.f32.mrf.mxu0
    %v562 = vadd.f32 %v533, %v561
    %v563 = vpop.f32.mrf.mxu0
    %v564 = vadd.f32 %v535, %v563
    %565 = vmatmul.bf16.gmra.mxu0 %v323
    %v566 = vpop.f32.mrf.mxu0
    %v567 = vadd.f32 %v538, %v566
    %v568 = vpop.f32.mrf.mxu0
    %v569 = vadd.f32 %v540, %v568
    %570 = vmatmul.bf16.gmra.mxu0 %v325
    %v571 = vpop.f32.mrf.mxu0
    %v572 = vadd.f32 %v543, %v571
    %v573 = vpop.f32.mrf.mxu0
    %v574 = vadd.f32 %v545, %v573
    %575 = vdwg.mxu0
    %576 = vmatpush.bf16.msra.mxu0 %v469
    %577 = vmatpush.bf16.msra.mxu0 %v467
    %578 = vmatpush.bf16.msra.mxu0 %v465
    %579 = vmatpush.bf16.msra.mxu0 %v463
    %580 = vmatpush.bf16.msra.mxu0 %v461
    %581 = vmatpush.bf16.msra.mxu0 %v459
    %582 = vmatpush.bf16.msra.mxu0 %v457
    %583 = vmatpush.bf16.msra.mxu0 %v455
    %584 = vmatmul.bf16.gmra.mxu0 %v318
    %v585 = vpop.f32.mrf.mxu0
    %v586 = vadd.f32 0.0, %v585
    %v587 = vpop.f32.mrf.mxu0
    %v588 = vadd.f32 0.0, %v587
    %589 = vmatmul.bf16.gmra.mxu0 %v320
    %v590 = vpop.f32.mrf.mxu0
    %v591 = vadd.f32 0.0, %v590
    %v592 = vpop.f32.mrf.mxu0
    %v593 = vadd.f32 0.0, %v592
    %594 = vmatmul.bf16.gmra.mxu0 %v322
    %v595 = vpop.f32.mrf.mxu0
    %v596 = vadd.f32 0.0, %v595
    %v597 = vpop.f32.mrf.mxu0
    %v598 = vadd.f32 0.0, %v597
    %599 = vmatmul.bf16.gmra.mxu0 %v324
    %v600 = vpop.f32.mrf.mxu0
    %v601 = vadd.f32 0.0, %v600
    %v602 = vpop.f32.mrf.mxu0
    %v603 = vadd.f32 0.0, %v602
    %604 = vdwg.mxu0
    %605 = vmatpush.bf16.msra.mxu0 %v485
    %606 = vmatpush.bf16.msra.mxu0 %v483
    %607 = vmatpush.bf16.msra.mxu0 %v481
    %608 = vmatpush.bf16.msra.mxu0 %v479
    %609 = vmatpush.bf16.msra.mxu0 %v477
    %610 = vmatpush.bf16.msra.mxu0 %v475
    %611 = vmatpush.bf16.msra.mxu0 %v473
    %612 = vmatpush.bf16.msra.mxu0 %v471
    %613 = vmatmul.bf16.gmra.mxu0 %v319
    %v614 = vpop.f32.mrf.mxu0
    %v615 = vadd.f32 %v586, %v614
    %v616 = vpop.f32.mrf.mxu0
    %v617 = vadd.f32 %v588, %v616
    %618 = vmatmul.bf16.gmra.mxu0 %v321
    %v619 = vpop.f32.mrf.mxu0
    %v620 = vadd.f32 %v591, %v619
    %v621 = vpop.f32.mrf.mxu0
    %v622 = vadd.f32 %v593, %v621
    %623 = vmatmul.bf16.gmra.mxu0 %v323
    %v624 = vpop.f32.mrf.mxu0
    %v625 = vadd.f32 %v596, %v624
    %v626 = vpop.f32.mrf.mxu0
    %v627 = vadd.f32 %v598, %v626
    %628 = vmatmul.bf16.gmra.mxu0 %v325
    %v629 = vpop.f32.mrf.mxu0
    %v630 = vadd.f32 %v601, %v629
    %v631 = vpop.f32.mrf.mxu0
    %v632 = vadd.f32 %v603, %v631
    %633 = vdwg.mxu0
    %v642 = vunpack.c.l.b16 %v197
    %v643 = vunpack.c.h.b16 %v197
    %v644 = vunpack.c.l.b16 %v198
    %v645 = vunpack.c.h.b16 %v198
    %v646 = vunpack.c.l.b16 %v199
    %v647 = vunpack.c.h.b16 %v199
    %v648 = vunpack.c.l.b16 %v200
    %v649 = vunpack.c.h.b16 %v200
    %v650 = vunpack.c.l.b16 %v201
    %v651 = vunpack.c.h.b16 %v201
    %v652 = vunpack.c.l.b16 %v202
    %v653 = vunpack.c.h.b16 %v202
    %v654 = vunpack.c.l.b16 %v203
    %v655 = vunpack.c.h.b16 %v203
    %v656 = vunpack.c.l.b16 %v204
    %v657 = vunpack.c.h.b16 %v204
    %v658 = vpack.c.b16 %v644, %v642
    %v659 = vpack.c.b16 %v645, %v643
    %v660 = vpack.c.b16 %v648, %v646
    %v661 = vpack.c.b16 %v649, %v647
    %v662 = vpack.c.b16 %v652, %v650
    %v663 = vpack.c.b16 %v653, %v651
    %v664 = vpack.c.b16 %v656, %v654
    %v665 = vpack.c.b16 %v657, %v655
    %v706 = vunpack.c.l.b16 %v221
    %v707 = vunpack.c.h.b16 %v221
    %v708 = vunpack.c.l.b16 %v222
    %v709 = vunpack.c.h.b16 %v222
    %v710 = vunpack.c.l.b16 %v223
    %v711 = vunpack.c.h.b16 %v223
    %v712 = vunpack.c.l.b16 %v224
    %v713 = vunpack.c.h.b16 %v224
    %v714 = vunpack.c.l.b16 %v225
    %v715 = vunpack.c.h.b16 %v225
    %v716 = vunpack.c.l.b16 %v226
    %v717 = vunpack.c.h.b16 %v226
    %v718 = vunpack.c.l.b16 %v227
    %v719 = vunpack.c.h.b16 %v227
    %v720 = vunpack.c.l.b16 %v228
    %v721 = vunpack.c.h.b16 %v228
    %v722 = vunpack.c.l.b16 %v229
    %v723 = vunpack.c.h.b16 %v229
    %v724 = vunpack.c.l.b16 %v230
    %v725 = vunpack.c.h.b16 %v230
    %v726 = vunpack.c.l.b16 %v231
    %v727 = vunpack.c.h.b16 %v231
    %v728 = vunpack.c.l.b16 %v232
    %v729 = vunpack.c.h.b16 %v232
    %v730 = vunpack.c.l.b16 %v233
    %v731 = vunpack.c.h.b16 %v233
    %v732 = vunpack.c.l.b16 %v234
    %v733 = vunpack.c.h.b16 %v234
    %v734 = vunpack.c.l.b16 %v235
    %v735 = vunpack.c.h.b16 %v235
    %v736 = vunpack.c.l.b16 %v236
    %v737 = vunpack.c.h.b16 %v236
    %v738 = vunpack.c.l.b16 %v237
    %v739 = vunpack.c.h.b16 %v237
    %v740 = vunpack.c.l.b16 %v238
    %v741 = vunpack.c.h.b16 %v238
    %v742 = vunpack.c.l.b16 %v239
    %v743 = vunpack.c.h.b16 %v239
    %v744 = vunpack.c.l.b16 %v240
    %v745 = vunpack.c.h.b16 %v240
    %v746 = vunpack.c.l.b16 %v241
    %v747 = vunpack.c.h.b16 %v241
    %v748 = vunpack.c.l.b16 %v242
    %v749 = vunpack.c.h.b16 %v242
    %v750 = vunpack.c.l.b16 %v243
    %v751 = vunpack.c.h.b16 %v243
    %v752 = vunpack.c.l.b16 %v244
    %v753 = vunpack.c.h.b16 %v244
    %v754 = vunpack.c.l.b16 %v245
    %v755 = vunpack.c.h.b16 %v245
    %v756 = vunpack.c.l.b16 %v246
    %v757 = vunpack.c.h.b16 %v246
    %v758 = vunpack.c.l.b16 %v247
    %v759 = vunpack.c.h.b16 %v247
    %v760 = vunpack.c.l.b16 %v248
    %v761 = vunpack.c.h.b16 %v248
    %v762 = vunpack.c.l.b16 %v249
    %v763 = vunpack.c.h.b16 %v249
    %v764 = vunpack.c.l.b16 %v250
    %v765 = vunpack.c.h.b16 %v250
    %v766 = vunpack.c.l.b16 %v251
    %v767 = vunpack.c.h.b16 %v251
    %v768 = vunpack.c.l.b16 %v252
    %v769 = vunpack.c.h.b16 %v252
    %v770 = vpack.c.b16 %v708, %v706
    %v771 = vpack.c.b16 %v709, %v707
    %v772 = vpack.c.b16 %v712, %v710
    %v773 = vpack.c.b16 %v713, %v711
    %v774 = vpack.c.b16 %v716, %v714
    %v775 = vpack.c.b16 %v717, %v715
    %v776 = vpack.c.b16 %v720, %v718
    %v777 = vpack.c.b16 %v721, %v719
    %v778 = vpack.c.b16 %v724, %v722
    %v779 = vpack.c.b16 %v725, %v723
    %v780 = vpack.c.b16 %v728, %v726
    %v781 = vpack.c.b16 %v729, %v727
    %v782 = vpack.c.b16 %v732, %v730
    %v783 = vpack.c.b16 %v733, %v731
    %v784 = vpack.c.b16 %v736, %v734
    %v785 = vpack.c.b16 %v737, %v735
    %v786 = vpack.c.b16 %v740, %v738
    %v787 = vpack.c.b16 %v741, %v739
    %v788 = vpack.c.b16 %v744, %v742
    %v789 = vpack.c.b16 %v745, %v743
    %v790 = vpack.c.b16 %v748, %v746
    %v791 = vpack.c.b16 %v749, %v747
    %v792 = vpack.c.b16 %v752, %v750
    %v793 = vpack.c.b16 %v753, %v751
    %v794 = vpack.c.b16 %v756, %v754
    %v795 = vpack.c.b16 %v757, %v755
    %v796 = vpack.c.b16 %v760, %v758
    %v797 = vpack.c.b16 %v761, %v759
    %v798 = vpack.c.b16 %v764, %v762
    %v799 = vpack.c.b16 %v765, %v763
    %v800 = vpack.c.b16 %v768, %v766
    %v801 = vpack.c.b16 %v769, %v767
    %834 = vmatpush.bf16.msra.mxu0 %v784
    %835 = vmatpush.bf16.msra.mxu0 %v782
    %836 = vmatpush.bf16.msra.mxu0 %v780
    %837 = vmatpush.bf16.msra.mxu0 %v778
    %838 = vmatpush.bf16.msra.mxu0 %v776
    %839 = vmatpush.bf16.msra.mxu0 %v774
    %840 = vmatpush.bf16.msra.mxu0 %v772
    %841 = vmatpush.bf16.msra.mxu0 %v770
    %842 = vmatmul.bf16.gmra.mxu0 %v658
    %v843 = vpop.f32.mrf.mxu0
    %v844 = vadd.f32 %v557, %v843
    %v845 = vpop.f32.mrf.mxu0
    %v846 = vadd.f32 %v559, %v845
    %847 = vmatmul.bf16.gmra.mxu0 %v660
    %v848 = vpop.f32.mrf.mxu0
    %v849 = vadd.f32 %v562, %v848
    %v850 = vpop.f32.mrf.mxu0
    %v851 = vadd.f32 %v564, %v850
    %852 = vmatmul.bf16.gmra.mxu0 %v662
    %v853 = vpop.f32.mrf.mxu0
    %v854 = vadd.f32 %v567, %v853
    %v855 = vpop.f32.mrf.mxu0
    %v856 = vadd.f32 %v569, %v855
    %857 = vmatmul.bf16.gmra.mxu0 %v664
    %v858 = vpop.f32.mrf.mxu0
    %v859 = vadd.f32 %v572, %v858
    %v860 = vpop.f32.mrf.mxu0
    %v861 = vadd.f32 %v574, %v860
    %862 = vdwg.mxu0
    %863 = vmatpush.bf16.msra.mxu0 %v800
    %864 = vmatpush.bf16.msra.mxu0 %v798
    %865 = vmatpush.bf16.msra.mxu0 %v796
    %866 = vmatpush.bf16.msra.mxu0 %v794
    %867 = vmatpush.bf16.msra.mxu0 %v792
    %868 = vmatpush.bf16.msra.mxu0 %v790
    %869 = vmatpush.bf16.msra.mxu0 %v788
    %870 = vmatpush.bf16.msra.mxu0 %v786
    %871 = vmatmul.bf16.gmra.mxu0 %v659
    %v872 = vpop.f32.mrf.mxu0
    %v873 = vadd.f32 %v844, %v872
    %v874 = vpop.f32.mrf.mxu0
    %v875 = vadd.f32 %v846, %v874
    %876 = vmatmul.bf16.gmra.mxu0 %v661
    %v877 = vpop.f32.mrf.mxu0
    %v878 = vadd.f32 %v849, %v877
    %v879 = vpop.f32.mrf.mxu0
    %v880 = vadd.f32 %v851, %v879
    %881 = vmatmul.bf16.gmra.mxu0 %v663
    %v882 = vpop.f32.mrf.mxu0
    %v883 = vadd.f32 %v854, %v882
    %v884 = vpop.f32.mrf.mxu0
    %v885 = vadd.f32 %v856, %v884
    %886 = vmatmul.bf16.gmra.mxu0 %v665
    %v887 = vpop.f32.mrf.mxu0
    %v888 = vadd.f32 %v859, %v887
    %v889 = vpop.f32.mrf.mxu0
    %v890 = vadd.f32 %v861, %v889
    %891 = vdwg.mxu0
    %892 = vmatpush.bf16.msra.mxu0 %v785
    %893 = vmatpush.bf16.msra.mxu0 %v783
    %894 = vmatpush.bf16.msra.mxu0 %v781
    %895 = vmatpush.bf16.msra.mxu0 %v779
    %896 = vmatpush.bf16.msra.mxu0 %v777
    %897 = vmatpush.bf16.msra.mxu0 %v775
    %898 = vmatpush.bf16.msra.mxu0 %v773
    %899 = vmatpush.bf16.msra.mxu0 %v771
    %900 = vmatmul.bf16.gmra.mxu0 %v658
    %v901 = vpop.f32.mrf.mxu0
    %v902 = vadd.f32 %v615, %v901
    %v903 = vpop.f32.mrf.mxu0
    %v904 = vadd.f32 %v617, %v903
    %905 = vmatmul.bf16.gmra.mxu0 %v660
    %v906 = vpop.f32.mrf.mxu0
    %v907 = vadd.f32 %v620, %v906
    %v908 = vpop.f32.mrf.mxu0
    %v909 = vadd.f32 %v622, %v908
    %910 = vmatmul.bf16.gmra.mxu0 %v662
    %v911 = vpop.f32.mrf.mxu0
    %v912 = vadd.f32 %v625, %v911
    %v913 = vpop.f32.mrf.mxu0
    %v914 = vadd.f32 %v627, %v913
    %915 = vmatmul.bf16.gmra.mxu0 %v664
    %v916 = vpop.f32.mrf.mxu0
    %v917 = vadd.f32 %v630, %v916
    %v918 = vpop.f32.mrf.mxu0
    %v919 = vadd.f32 %v632, %v918
    %920 = vdwg.mxu0
    %921 = vmatpush.bf16.msra.mxu0 %v801
    %922 = vmatpush.bf16.msra.mxu0 %v799
    %923 = vmatpush.bf16.msra.mxu0 %v797
    %924 = vmatpush.bf16.msra.mxu0 %v795
    %925 = vmatpush.bf16.msra.mxu0 %v793
    %926 = vmatpush.bf16.msra.mxu0 %v791
    %927 = vmatpush.bf16.msra.mxu0 %v789
    %928 = vmatpush.bf16.msra.mxu0 %v787
    %929 = vmatmul.bf16.gmra.mxu0 %v659
    %v930 = vpop.f32.mrf.mxu0
    %v931 = vadd.f32 %v902, %v930
    %v932 = vpop.f32.mrf.mxu0
    %v933 = vadd.f32 %v904, %v932
    %934 = vmatmul.bf16.gmra.mxu0 %v661
    %v935 = vpop.f32.mrf.mxu0
    %v936 = vadd.f32 %v907, %v935
    %v937 = vpop.f32.mrf.mxu0
    %v938 = vadd.f32 %v909, %v937
    %939 = vmatmul.bf16.gmra.mxu0 %v663
    %v940 = vpop.f32.mrf.mxu0
    %v941 = vadd.f32 %v912, %v940
    %v942 = vpop.f32.mrf.mxu0
    %v943 = vadd.f32 %v914, %v942
    %944 = vmatmul.bf16.gmra.mxu0 %v665
    %v945 = vpop.f32.mrf.mxu0
    %v946 = vadd.f32 %v917, %v945
    %v947 = vpop.f32.mrf.mxu0
    %v948 = vadd.f32 %v919, %v947
    %949 = vdwg.mxu0
    %v950 = vrot.slane %v205, 1
    %v951 = vrot.slane %v206, 1
    %v952 = vrot.slane %v207, 1
    %v953 = vrot.slane %v208, 1
    %v954 = vrot.slane %v209, 1
    %v955 = vrot.slane %v210, 1
    %v956 = vrot.slane %v211, 1
    %v957 = vrot.slane %v212, 1
    %v958 = vrot.slane %v213, 1
    %v959 = vrot.slane %v214, 1
    %v960 = vrot.slane %v215, 1
    %v961 = vrot.slane %v216, 1
    %v962 = vrot.slane %v217, 1
    %v963 = vrot.slane %v218, 1
    %v964 = vrot.slane %v219, 1
    %v965 = vrot.slane %v220, 1
    %vm966 = vcmp.lt.s32.totalorder %v77, 7
    %v967 = vsel %vm966, %v962, %v964
    %v968 = vsel %vm966, %v963, %v965
    %v969 = vsel %vm966, %v960, %v962
    %v970 = vsel %vm966, %v961, %v963
    %v971 = vsel %vm966, %v958, %v960
    %v972 = vsel %vm966, %v959, %v961
    %v973 = vsel %vm966, %v956, %v958
    %v974 = vsel %vm966, %v957, %v959
    %v975 = vsel %vm966, %v954, %v956
    %v976 = vsel %vm966, %v955, %v957
    %v977 = vsel %vm966, %v952, %v954
    %v978 = vsel %vm966, %v953, %v955
    %v979 = vsel %vm966, %v950, %v952
    %v980 = vsel %vm966, %v951, %v953
    %v981 = vsel %vm966, %v964, %v950
    %v982 = vsel %vm966, %v965, %v951
    %v983 = vsel %vm189, 1, 0
    %v984 = vsel %vm190, 1, 0
    %v985 = vsel %vm191, 1, 0
    %v986 = vsel %vm192, 1, 0
    %v987 = vsel %vm193, 1, 0
    %v988 = vsel %vm194, 1, 0
    %v989 = vsel %vm195, 1, 0
    %v990 = vsel %vm196, 1, 0
    %vm991 = vcmp.eq.s32.totalorder %v983, 1
    %vm992 = vcmp.eq.s32.totalorder %v984, 1
    %vm993 = vcmp.eq.s32.totalorder %v985, 1
    %vm994 = vcmp.eq.s32.totalorder %v986, 1
    %vm995 = vcmp.eq.s32.totalorder %v987, 1
    %vm996 = vcmp.eq.s32.totalorder %v988, 1
    %vm997 = vcmp.eq.s32.totalorder %v989, 1
    %vm998 = vcmp.eq.s32.totalorder %v990, 1
    %v999 = vsel %vm991, %v979, 0.0
    %v1000 = vsel %vm991, %v980, 0.0
    %v1001 = vsel %vm992, %v977, 0.0
    %v1002 = vsel %vm992, %v978, 0.0
    %v1003 = vsel %vm993, %v975, 0.0
    %v1004 = vsel %vm993, %v976, 0.0
    %v1005 = vsel %vm994, %v973, 0.0
    %v1006 = vsel %vm994, %v974, 0.0
    %v1007 = vsel %vm995, %v971, 0.0
    %v1008 = vsel %vm995, %v972, 0.0
    %v1009 = vsel %vm996, %v969, 0.0
    %v1010 = vsel %vm996, %v970, 0.0
    %v1011 = vsel %vm997, %v967, 0.0
    %v1012 = vsel %vm997, %v968, 0.0
    %v1013 = vsel %vm998, %v981, 0.0
    %v1014 = vsel %vm998, %v982, 0.0
    %v1015 = vpack.c.bf16 %v1001, %v999
    %v1016 = vpack.c.bf16 %v1002, %v1000
    %v1017 = vpack.c.bf16 %v1005, %v1003
    %v1018 = vpack.c.bf16 %v1006, %v1004
    %v1019 = vpack.c.bf16 %v1009, %v1007
    %v1020 = vpack.c.bf16 %v1010, %v1008
    %v1021 = vpack.c.bf16 %v1013, %v1011
    %v1022 = vpack.c.bf16 %v1014, %v1012
    %v1023 = vld [vmem:[#allocation2 + $0x320] sm:$0xff]
    %v1024 = vld [vmem:[#allocation2 + $0x328] sm:$0xff]
    %v1025 = vld [vmem:[#allocation2 + $0x330] sm:$0xff]
    %v1026 = vld [vmem:[#allocation2 + $0x338] sm:$0xff]
    %v1027 = vld [vmem:[#allocation2 + $0x340] sm:$0xff]
    %v1028 = vld [vmem:[#allocation2 + $0x348] sm:$0xff]
    %v1029 = vld [vmem:[#allocation2 + $0x350] sm:$0xff]
    %v1030 = vld [vmem:[#allocation2 + $0x358] sm:$0xff]
    %v1031 = vld [vmem:[#allocation2 + $0x360] sm:$0xff]
    %v1032 = vld [vmem:[#allocation2 + $0x368] sm:$0xff]
    %v1033 = vld [vmem:[#allocation2 + $0x370] sm:$0xff]
    %v1034 = vld [vmem:[#allocation2 + $0x378] sm:$0xff]
    %v1035 = vld [vmem:[#allocation2 + $0x380] sm:$0xff]
    %v1036 = vld [vmem:[#allocation2 + $0x388] sm:$0xff]
    %v1037 = vld [vmem:[#allocation2 + $0x390] sm:$0xff]
    %v1038 = vld [vmem:[#allocation2 + $0x398] sm:$0xff]
    %v1039 = vld [vmem:[#allocation2 + $0x3a0] sm:$0xff]
    %v1040 = vld [vmem:[#allocation2 + $0x3a8] sm:$0xff]
    %v1041 = vld [vmem:[#allocation2 + $0x3b0] sm:$0xff]
    %v1042 = vld [vmem:[#allocation2 + $0x3b8] sm:$0xff]
    %v1043 = vld [vmem:[#allocation2 + $0x3c0] sm:$0xff]
    %v1044 = vld [vmem:[#allocation2 + $0x3c8] sm:$0xff]
    %v1045 = vld [vmem:[#allocation2 + $0x3d0] sm:$0xff]
    %v1046 = vld [vmem:[#allocation2 + $0x3d8] sm:$0xff]
    %v1047 = vld [vmem:[#allocation2 + $0x3e0] sm:$0xff]
    %v1048 = vld [vmem:[#allocation2 + $0x3e8] sm:$0xff]
    %v1049 = vld [vmem:[#allocation2 + $0x3f0] sm:$0xff]
    %v1050 = vld [vmem:[#allocation2 + $0x3f8] sm:$0xff]
    %v1051 = vld [vmem:[#allocation2 + $0x400] sm:$0xff]
    %v1052 = vld [vmem:[#allocation2 + $0x408] sm:$0xff]
    %v1053 = vld [vmem:[#allocation2 + $0x410] sm:$0xff]
    %v1054 = vld [vmem:[#allocation2 + $0x418] sm:$0xff]
    %v1087 = vunpack.c.l.b16 %v1023
    %v1088 = vunpack.c.h.b16 %v1023
    %v1089 = vunpack.c.l.b16 %v1024
    %v1090 = vunpack.c.h.b16 %v1024
    %v1091 = vunpack.c.l.b16 %v1025
    %v1092 = vunpack.c.h.b16 %v1025
    %v1093 = vunpack.c.l.b16 %v1026
    %v1094 = vunpack.c.h.b16 %v1026
    %v1095 = vunpack.c.l.b16 %v1027
    %v1096 = vunpack.c.h.b16 %v1027
    %v1097 = vunpack.c.l.b16 %v1028
    %v1098 = vunpack.c.h.b16 %v1028
    %v1099 = vunpack.c.l.b16 %v1029
    %v1100 = vunpack.c.h.b16 %v1029
    %v1101 = vunpack.c.l.b16 %v1030
    %v1102 = vunpack.c.h.b16 %v1030
    %v1103 = vunpack.c.l.b16 %v1031
    %v1104 = vunpack.c.h.b16 %v1031
    %v1105 = vunpack.c.l.b16 %v1032
    %v1106 = vunpack.c.h.b16 %v1032
    %v1107 = vunpack.c.l.b16 %v1033
    %v1108 = vunpack.c.h.b16 %v1033
    %v1109 = vunpack.c.l.b16 %v1034
    %v1110 = vunpack.c.h.b16 %v1034
    %v1111 = vunpack.c.l.b16 %v1035
    %v1112 = vunpack.c.h.b16 %v1035
    %v1113 = vunpack.c.l.b16 %v1036
    %v1114 = vunpack.c.h.b16 %v1036
    %v1115 = vunpack.c.l.b16 %v1037
    %v1116 = vunpack.c.h.b16 %v1037
    %v1117 = vunpack.c.l.b16 %v1038
    %v1118 = vunpack.c.h.b16 %v1038
    %v1119 = vunpack.c.l.b16 %v1039
    %v1120 = vunpack.c.h.b16 %v1039
    %v1121 = vunpack.c.l.b16 %v1040
    %v1122 = vunpack.c.h.b16 %v1040
    %v1123 = vunpack.c.l.b16 %v1041
    %v1124 = vunpack.c.h.b16 %v1041
    %v1125 = vunpack.c.l.b16 %v1042
    %v1126 = vunpack.c.h.b16 %v1042
    %v1127 = vunpack.c.l.b16 %v1043
    %v1128 = vunpack.c.h.b16 %v1043
    %v1129 = vunpack.c.l.b16 %v1044
    %v1130 = vunpack.c.h.b16 %v1044
    %v1131 = vunpack.c.l.b16 %v1045
    %v1132 = vunpack.c.h.b16 %v1045
    %v1133 = vunpack.c.l.b16 %v1046
    %v1134 = vunpack.c.h.b16 %v1046
    %v1135 = vunpack.c.l.b16 %v1047
    %v1136 = vunpack.c.h.b16 %v1047
    %v1137 = vunpack.c.l.b16 %v1048
    %v1138 = vunpack.c.h.b16 %v1048
    %v1139 = vunpack.c.l.b16 %v1049
    %v1140 = vunpack.c.h.b16 %v1049
    %v1141 = vunpack.c.l.b16 %v1050
    %v1142 = vunpack.c.h.b16 %v1050
    %v1143 = vunpack.c.l.b16 %v1051
    %v1144 = vunpack.c.h.b16 %v1051
    %v1145 = vunpack.c.l.b16 %v1052
    %v1146 = vunpack.c.h.b16 %v1052
    %v1147 = vunpack.c.l.b16 %v1053
    %v1148 = vunpack.c.h.b16 %v1053
    %v1149 = vunpack.c.l.b16 %v1054
    %v1150 = vunpack.c.h.b16 %v1054
    %v1151 = vpack.c.b16 %v1089, %v1087
    %v1152 = vpack.c.b16 %v1090, %v1088
    %v1153 = vpack.c.b16 %v1093, %v1091
    %v1154 = vpack.c.b16 %v1094, %v1092
    %v1155 = vpack.c.b16 %v1097, %v1095
    %v1156 = vpack.c.b16 %v1098, %v1096
    %v1157 = vpack.c.b16 %v1101, %v1099
    %v1158 = vpack.c.b16 %v1102, %v1100
    %v1159 = vpack.c.b16 %v1105, %v1103
    %v1160 = vpack.c.b16 %v1106, %v1104
    %v1161 = vpack.c.b16 %v1109, %v1107
    %v1162 = vpack.c.b16 %v1110, %v1108
    %v1163 = vpack.c.b16 %v1113, %v1111
    %v1164 = vpack.c.b16 %v1114, %v1112
    %v1165 = vpack.c.b16 %v1117, %v1115
    %v1166 = vpack.c.b16 %v1118, %v1116
    %v1167 = vpack.c.b16 %v1121, %v1119
    %v1168 = vpack.c.b16 %v1122, %v1120
    %v1169 = vpack.c.b16 %v1125, %v1123
    %v1170 = vpack.c.b16 %v1126, %v1124
    %v1171 = vpack.c.b16 %v1129, %v1127
    %v1172 = vpack.c.b16 %v1130, %v1128
    %v1173 = vpack.c.b16 %v1133, %v1131
    %v1174 = vpack.c.b16 %v1134, %v1132
    %v1175 = vpack.c.b16 %v1137, %v1135
    %v1176 = vpack.c.b16 %v1138, %v1136
    %v1177 = vpack.c.b16 %v1141, %v1139
    %v1178 = vpack.c.b16 %v1142, %v1140
    %v1179 = vpack.c.b16 %v1145, %v1143
    %v1180 = vpack.c.b16 %v1146, %v1144
    %v1181 = vpack.c.b16 %v1149, %v1147
    %v1182 = vpack.c.b16 %v1150, %v1148
    %1215 = vmatpush.bf16.msra.mxu0 %v1165
    %1216 = vmatpush.bf16.msra.mxu0 %v1163
    %1217 = vmatpush.bf16.msra.mxu0 %v1161
    %1218 = vmatpush.bf16.msra.mxu0 %v1159
    %1219 = vmatpush.bf16.msra.mxu0 %v1157
    %1220 = vmatpush.bf16.msra.mxu0 %v1155
    %1221 = vmatpush.bf16.msra.mxu0 %v1153
    %1222 = vmatpush.bf16.msra.mxu0 %v1151
    %1223 = vmatmul.bf16.gmra.mxu0 %v1015
    %v1224 = vpop.f32.mrf.mxu0
    %v1225 = vadd.f32 0.0, %v1224
    %v1226 = vpop.f32.mrf.mxu0
    %v1227 = vadd.f32 0.0, %v1226
    %1228 = vmatmul.bf16.gmra.mxu0 %v1017
    %v1229 = vpop.f32.mrf.mxu0
    %v1230 = vadd.f32 0.0, %v1229
    %v1231 = vpop.f32.mrf.mxu0
    %v1232 = vadd.f32 0.0, %v1231
    %1233 = vmatmul.bf16.gmra.mxu0 %v1019
    %v1234 = vpop.f32.mrf.mxu0
    %v1235 = vadd.f32 0.0, %v1234
    %v1236 = vpop.f32.mrf.mxu0
    %v1237 = vadd.f32 0.0, %v1236
    %1238 = vmatmul.bf16.gmra.mxu0 %v1021
    %v1239 = vpop.f32.mrf.mxu0
    %v1240 = vadd.f32 0.0, %v1239
    %v1241 = vpop.f32.mrf.mxu0
    %v1242 = vadd.f32 0.0, %v1241
    %1243 = vdwg.mxu0
    %1244 = vmatpush.bf16.msra.mxu0 %v1181
    %1245 = vmatpush.bf16.msra.mxu0 %v1179
    %1246 = vmatpush.bf16.msra.mxu0 %v1177
    %1247 = vmatpush.bf16.msra.mxu0 %v1175
    %1248 = vmatpush.bf16.msra.mxu0 %v1173
    %1249 = vmatpush.bf16.msra.mxu0 %v1171
    %1250 = vmatpush.bf16.msra.mxu0 %v1169
    %1251 = vmatpush.bf16.msra.mxu0 %v1167
    %1252 = vmatmul.bf16.gmra.mxu0 %v1016
    %v1253 = vpop.f32.mrf.mxu0
    %v1254 = vadd.f32 %v1225, %v1253
    %v1255 = vpop.f32.mrf.mxu0
    %v1256 = vadd.f32 %v1227, %v1255
    %1257 = vmatmul.bf16.gmra.mxu0 %v1018
    %v1258 = vpop.f32.mrf.mxu0
    %v1259 = vadd.f32 %v1230, %v1258
    %v1260 = vpop.f32.mrf.mxu0
    %v1261 = vadd.f32 %v1232, %v1260
    %1262 = vmatmul.bf16.gmra.mxu0 %v1020
    %v1263 = vpop.f32.mrf.mxu0
    %v1264 = vadd.f32 %v1235, %v1263
    %v1265 = vpop.f32.mrf.mxu0
    %v1266 = vadd.f32 %v1237, %v1265
    %1267 = vmatmul.bf16.gmra.mxu0 %v1022
    %v1268 = vpop.f32.mrf.mxu0
    %v1269 = vadd.f32 %v1240, %v1268
    %v1270 = vpop.f32.mrf.mxu0
    %v1271 = vadd.f32 %v1242, %v1270
    %1272 = vdwg.mxu0
    %1273 = vmatpush.bf16.msra.mxu0 %v1166
    %1274 = vmatpush.bf16.msra.mxu0 %v1164
    %1275 = vmatpush.bf16.msra.mxu0 %v1162
    %1276 = vmatpush.bf16.msra.mxu0 %v1160
    %1277 = vmatpush.bf16.msra.mxu0 %v1158
    %1278 = vmatpush.bf16.msra.mxu0 %v1156
    %1279 = vmatpush.bf16.msra.mxu0 %v1154
    %1280 = vmatpush.bf16.msra.mxu0 %v1152
    %1281 = vmatmul.bf16.gmra.mxu0 %v1015
    %v1282 = vpop.f32.mrf.mxu0
    %v1283 = vadd.f32 0.0, %v1282
    %v1284 = vpop.f32.mrf.mxu0
    %v1285 = vadd.f32 0.0, %v1284
    %1286 = vmatmul.bf16.gmra.mxu0 %v1017
    %v1287 = vpop.f32.mrf.mxu0
    %v1288 = vadd.f32 0.0, %v1287
    %v1289 = vpop.f32.mrf.mxu0
    %v1290 = vadd.f32 0.0, %v1289
    %1291 = vmatmul.bf16.gmra.mxu0 %v1019
    %v1292 = vpop.f32.mrf.mxu0
    %v1293 = vadd.f32 0.0, %v1292
    %v1294 = vpop.f32.mrf.mxu0
    %v1295 = vadd.f32 0.0, %v1294
    %1296 = vmatmul.bf16.gmra.mxu0 %v1021
    %v1297 = vpop.f32.mrf.mxu0
    %v1298 = vadd.f32 0.0, %v1297
    %v1299 = vpop.f32.mrf.mxu0
    %v1300 = vadd.f32 0.0, %v1299
    %1301 = vdwg.mxu0
    %1302 = vmatpush.bf16.msra.mxu0 %v1182
    %1303 = vmatpush.bf16.msra.mxu0 %v1180
    %1304 = vmatpush.bf16.msra.mxu0 %v1178
    %1305 = vmatpush.bf16.msra.mxu0 %v1176
    %1306 = vmatpush.bf16.msra.mxu0 %v1174
    %1307 = vmatpush.bf16.msra.mxu0 %v1172
    %1308 = vmatpush.bf16.msra.mxu0 %v1170
    %1309 = vmatpush.bf16.msra.mxu0 %v1168
    %1310 = vmatmul.bf16.gmra.mxu0 %v1016
    %v1311 = vpop.f32.mrf.mxu0
    %v1312 = vadd.f32 %v1283, %v1311
    %v1313 = vpop.f32.mrf.mxu0
    %v1314 = vadd.f32 %v1285, %v1313
    %1315 = vmatmul.bf16.gmra.mxu0 %v1018
    %v1316 = vpop.f32.mrf.mxu0
    %v1317 = vadd.f32 %v1288, %v1316
    %v1318 = vpop.f32.mrf.mxu0
    %v1319 = vadd.f32 %v1290, %v1318
    %1320 = vmatmul.bf16.gmra.mxu0 %v1020
    %v1321 = vpop.f32.mrf.mxu0
    %v1322 = vadd.f32 %v1293, %v1321
    %v1323 = vpop.f32.mrf.mxu0
    %v1324 = vadd.f32 %v1295, %v1323
    %1325 = vmatmul.bf16.gmra.mxu0 %v1022
    %v1326 = vpop.f32.mrf.mxu0
    %v1327 = vadd.f32 %v1298, %v1326
    %v1328 = vpop.f32.mrf.mxu0
    %v1329 = vadd.f32 %v1300, %v1328
    %1330 = vdwg.mxu0
    %v1331 = vadd.f32 %v873, %v1254
    %v1332 = vadd.f32 %v931, %v1312
    %v1333 = vadd.f32 %v875, %v1256
    %v1334 = vadd.f32 %v933, %v1314
    %v1335 = vadd.f32 %v878, %v1259
    %v1336 = vadd.f32 %v936, %v1317
    %v1337 = vadd.f32 %v880, %v1261
    %v1338 = vadd.f32 %v938, %v1319
    %v1339 = vadd.f32 %v883, %v1264
    %v1340 = vadd.f32 %v941, %v1322
    %v1341 = vadd.f32 %v885, %v1266
    %v1342 = vadd.f32 %v943, %v1324
    %v1343 = vadd.f32 %v888, %v1269
    %v1344 = vadd.f32 %v946, %v1327
    %v1345 = vadd.f32 %v890, %v1271
    %v1346 = vadd.f32 %v948, %v1329
    %v1348 = vperm.slane %v75, 0
    %v1349 = vperm.slane %v75, 1
    %v1352 = vmul.f32 %v1331, %v1348
    %v1353 = vmul.f32 %v1332, %v1349
    %v1354 = vmul.f32 %v1333, %v1348
    %v1355 = vmul.f32 %v1334, %v1349
    %v1356 = vmul.f32 %v1335, %v1348
    %v1357 = vmul.f32 %v1336, %v1349
    %v1358 = vmul.f32 %v1337, %v1348
    %v1359 = vmul.f32 %v1338, %v1349
    %v1360 = vmul.f32 %v1339, %v1348
    %v1361 = vmul.f32 %v1340, %v1349
    %v1362 = vmul.f32 %v1341, %v1348
    %v1363 = vmul.f32 %v1342, %v1349
    %v1364 = vmul.f32 %v1343, %v1348
    %v1365 = vmul.f32 %v1344, %v1349
    %v1366 = vmul.f32 %v1345, %v1348
    %v1367 = vmul.f32 %v1346, %v1349
    %s1368 = scalar_lea.vmem [#allocation6], 1
    %v1369 = vld [vmem:[%s1368] ss:$8 sm:$0x3]
    %v1371 = vperm.slane %v1369, 0
    %v1372 = vperm.slane %v1369, 1
    %v1375 = vadd.f32 %v1352, %v1371
    %v1376 = vadd.f32 %v1353, %v1372
    %v1377 = vadd.f32 %v1354, %v1371
    %v1378 = vadd.f32 %v1355, %v1372
    %v1379 = vadd.f32 %v1356, %v1371
    %v1380 = vadd.f32 %v1357, %v1372
    %v1381 = vadd.f32 %v1358, %v1371
    %v1382 = vadd.f32 %v1359, %v1372
    %v1383 = vadd.f32 %v1360, %v1371
    %v1384 = vadd.f32 %v1361, %v1372
    %v1385 = vadd.f32 %v1362, %v1371
    %v1386 = vadd.f32 %v1363, %v1372
    %v1387 = vadd.f32 %v1364, %v1371
    %v1388 = vadd.f32 %v1365, %v1372
    %v1389 = vadd.f32 %v1366, %v1371
    %v1390 = vadd.f32 %v1367, %v1372
    %v1391 = vmax.f32 %v1375, 0.0
    %v1392 = vmax.f32 %v1376, 0.0
    %v1393 = vmax.f32 %v1377, 0.0
    %v1394 = vmax.f32 %v1378, 0.0
    %v1395 = vmax.f32 %v1379, 0.0
    %v1396 = vmax.f32 %v1380, 0.0
    %v1397 = vmax.f32 %v1381, 0.0
    %v1398 = vmax.f32 %v1382, 0.0
    %v1399 = vmax.f32 %v1383, 0.0
    %v1400 = vmax.f32 %v1384, 0.0
    %v1401 = vmax.f32 %v1385, 0.0
    %v1402 = vmax.f32 %v1386, 0.0
    %v1403 = vmax.f32 %v1387, 0.0
    %v1404 = vmax.f32 %v1388, 0.0
    %v1405 = vmax.f32 %v1389, 0.0
    %v1406 = vmax.f32 %v1390, 0.0
    %v1407 = vld [vmem:[%s1] sm:$0xf]
    %v1408 = vld [vmem:[%s1 + $0x4] sm:$0xf]
    %v1409 = vld [vmem:[%s1 + $0x8] sm:$0xf]
    %v1410 = vld [vmem:[%s1 + $0xc] sm:$0xf]
    %v1411 = vld [vmem:[#allocation4] sm:$0xf]
    %v1412 = vld [vmem:[#allocation4 + $0x4] sm:$0xf]
    %v1413 = vld [vmem:[#allocation4 + $0x8] sm:$0xf]
    %v1414 = vld [vmem:[#allocation4 + $0xc] sm:$0xf]
    %v1415 = vld [vmem:[#allocation4 + $0x10] sm:$0xf]
    %v1416 = vld [vmem:[#allocation4 + $0x14] sm:$0xf]
    %v1417 = vld [vmem:[#allocation4 + $0x18] sm:$0xf]
    %v1418 = vld [vmem:[#allocation4 + $0x1c] sm:$0xf]
    %v1419 = vld [vmem:[#allocation2] sm:$0xff]
    %v1420 = vld [vmem:[#allocation2 + $0x8] sm:$0xff]
    %v1421 = vld [vmem:[#allocation2 + $0x10] sm:$0xff]
    %v1422 = vld [vmem:[#allocation2 + $0x18] sm:$0xff]
    %v1423 = vld [vmem:[#allocation2 + $0x20] sm:$0xff]
    %v1424 = vld [vmem:[#allocation2 + $0x28] sm:$0xff]
    %v1425 = vld [vmem:[#allocation2 + $0x30] sm:$0xff]
    %v1426 = vld [vmem:[#allocation2 + $0x38] sm:$0xff]
    %v1427 = vld [vmem:[#allocation2 + $0x40] sm:$0xff]
    %v1428 = vld [vmem:[#allocation2 + $0x48] sm:$0xff]
    %v1429 = vld [vmem:[#allocation2 + $0x50] sm:$0xff]
    %v1430 = vld [vmem:[#allocation2 + $0x58] sm:$0xff]
    %v1431 = vld [vmem:[#allocation2 + $0x60] sm:$0xff]
    %v1432 = vld [vmem:[#allocation2 + $0x68] sm:$0xff]
    %v1433 = vld [vmem:[#allocation2 + $0x70] sm:$0xff]
    %v1434 = vld [vmem:[#allocation2 + $0x78] sm:$0xff]
    %v1439 = vunpack.c.l.b16 %v1407
    %v1440 = vunpack.c.l.b16 %v1408
    %v1441 = vunpack.c.l.b16 %v1409
    %v1442 = vunpack.c.l.b16 %v1410
    %v1443 = vpack.c.b16 %v1440, %v1439
    %v1444 = vpack.c.b16 %v1442, %v1441
    %v1463 = vunpack.c.l.b16 %v1419
    %v1464 = vunpack.c.h.b16 %v1419
    %v1465 = vunpack.c.l.b16 %v1420
    %v1466 = vunpack.c.h.b16 %v1420
    %v1467 = vunpack.c.l.b16 %v1421
    %v1468 = vunpack.c.h.b16 %v1421
    %v1469 = vunpack.c.l.b16 %v1422
    %v1470 = vunpack.c.h.b16 %v1422
    %v1471 = vunpack.c.l.b16 %v1423
    %v1472 = vunpack.c.h.b16 %v1423
    %v1473 = vunpack.c.l.b16 %v1424
    %v1474 = vunpack.c.h.b16 %v1424
    %v1475 = vunpack.c.l.b16 %v1425
    %v1476 = vunpack.c.h.b16 %v1425
    %v1477 = vunpack.c.l.b16 %v1426
    %v1478 = vunpack.c.h.b16 %v1426
    %v1479 = vunpack.c.l.b16 %v1427
    %v1480 = vunpack.c.h.b16 %v1427
    %v1481 = vunpack.c.l.b16 %v1428
    %v1482 = vunpack.c.h.b16 %v1428
    %v1483 = vunpack.c.l.b16 %v1429
    %v1484 = vunpack.c.h.b16 %v1429
    %v1485 = vunpack.c.l.b16 %v1430
    %v1486 = vunpack.c.h.b16 %v1430
    %v1487 = vunpack.c.l.b16 %v1431
    %v1488 = vunpack.c.h.b16 %v1431
    %v1489 = vunpack.c.l.b16 %v1432
    %v1490 = vunpack.c.h.b16 %v1432
    %v1491 = vunpack.c.l.b16 %v1433
    %v1492 = vunpack.c.h.b16 %v1433
    %v1493 = vunpack.c.l.b16 %v1434
    %v1494 = vunpack.c.h.b16 %v1434
    %v1495 = vpack.c.b16 %v1465, %v1463
    %v1496 = vpack.c.b16 %v1466, %v1464
    %v1497 = vpack.c.b16 %v1469, %v1467
    %v1498 = vpack.c.b16 %v1470, %v1468
    %v1499 = vpack.c.b16 %v1473, %v1471
    %v1500 = vpack.c.b16 %v1474, %v1472
    %v1501 = vpack.c.b16 %v1477, %v1475
    %v1502 = vpack.c.b16 %v1478, %v1476
    %v1503 = vpack.c.b16 %v1481, %v1479
    %v1504 = vpack.c.b16 %v1482, %v1480
    %v1505 = vpack.c.b16 %v1485, %v1483
    %v1506 = vpack.c.b16 %v1486, %v1484
    %v1507 = vpack.c.b16 %v1489, %v1487
    %v1508 = vpack.c.b16 %v1490, %v1488
    %v1509 = vpack.c.b16 %v1493, %v1491
    %v1510 = vpack.c.b16 %v1494, %v1492
    %1527 = vmatpush.bf16.msra.mxu0 %v1509
    %1528 = vmatpush.bf16.msra.mxu0 %v1507
    %1529 = vmatpush.bf16.msra.mxu0 %v1505
    %1530 = vmatpush.bf16.msra.mxu0 %v1503
    %1531 = vmatpush.bf16.msra.mxu0 %v1501
    %1532 = vmatpush.bf16.msra.mxu0 %v1499
    %1533 = vmatpush.bf16.msra.mxu0 %v1497
    %1534 = vmatpush.bf16.msra.mxu0 %v1495
    %1535 = vmatmul.bf16.gmra.mxu0 %v1443
    %v1536 = vpop.f32.mrf.mxu0
    %v1537 = vadd.f32 0.0, %v1536
    %v1538 = vpop.f32.mrf.mxu0
    %v1539 = vadd.f32 0.0, %v1538
    %1540 = vmatmul.bf16.gmra.mxu0 %v1444
    %v1541 = vpop.f32.mrf.mxu0
    %v1542 = vadd.f32 0.0, %v1541
    %v1543 = vpop.f32.mrf.mxu0
    %v1544 = vadd.f32 0.0, %v1543
    %1545 = vdwg.mxu0
    %1546 = vmatpush.bf16.msra.mxu0 %v1510
    %1547 = vmatpush.bf16.msra.mxu0 %v1508
    %1548 = vmatpush.bf16.msra.mxu0 %v1506
    %1549 = vmatpush.bf16.msra.mxu0 %v1504
    %1550 = vmatpush.bf16.msra.mxu0 %v1502
    %1551 = vmatpush.bf16.msra.mxu0 %v1500
    %1552 = vmatpush.bf16.msra.mxu0 %v1498
    %1553 = vmatpush.bf16.msra.mxu0 %v1496
    %1554 = vmatmul.bf16.gmra.mxu0 %v1443
    %v1555 = vpop.f32.mrf.mxu0
    %v1556 = vadd.f32 0.0, %v1555
    %v1557 = vpop.f32.mrf.mxu0
    %v1558 = vadd.f32 0.0, %v1557
    %1559 = vmatmul.bf16.gmra.mxu0 %v1444
    %v1560 = vpop.f32.mrf.mxu0
    %v1561 = vadd.f32 0.0, %v1560
    %v1562 = vpop.f32.mrf.mxu0
    %v1563 = vadd.f32 0.0, %v1562
    %1564 = vdwg.mxu0
    %v1565 = vpack.c.bf16 %v1539, %v1537
    %v1566 = vpack.c.bf16 %v1558, %v1556
    %v1567 = vpack.c.bf16 %v1544, %v1542
    %v1568 = vpack.c.bf16 %v1563, %v1561
    %v1577 = vunpack.c.l.b16 %v1411
    %v1578 = vunpack.c.l.b16 %v1412
    %v1579 = vunpack.c.l.b16 %v1413
    %v1580 = vunpack.c.l.b16 %v1414
    %v1581 = vunpack.c.l.b16 %v1415
    %v1582 = vunpack.c.l.b16 %v1416
    %v1583 = vunpack.c.l.b16 %v1417
    %v1584 = vunpack.c.l.b16 %v1418
    %v1585 = vpack.c.b16 %v1578, %v1577
    %v1586 = vpack.c.b16 %v1580, %v1579
    %v1587 = vpack.c.b16 %v1582, %v1581
    %v1588 = vpack.c.b16 %v1584, %v1583
    %vm1589 = vcmask 261120
    %v1591 = vsel %vm1589, %v1585, 0
    %v1594 = vsel %vm1589, %v1586, 0
    %v1597 = vsel %vm1589, %v1587, 0
    %v1600 = vsel %vm1589, %v1588, 0
    %1602 = vmatpush.bf16.msra.mxu0 0
    %1603 = vmatpush.bf16.msra.mxu0 0
    %1604 = vmatpush.bf16.msra.mxu0 0
    %1605 = vmatpush.bf16.msra.mxu0 0
    %1606 = vmatpush.bf16.msra.mxu0 0
    %1607 = vmatpush.bf16.msra.mxu0 0
    %1608 = vmatpush.bf16.msra.mxu0 %v1567
    %1609 = vmatpush.bf16.msra.mxu0 %v1565
    %1610 = vmatmul.bf16.gmra.mxu0 %v1591
    %v1611 = vpop.f32.mrf.mxu0
    %v1612 = vadd.f32 0.0, %v1611
    %v1613 = vpop.f32.mrf.mxu0
    %v1614 = vadd.f32 0.0, %v1613
    %1615 = vmatmul.bf16.gmra.mxu0 %v1594
    %v1616 = vpop.f32.mrf.mxu0
    %v1617 = vadd.f32 0.0, %v1616
    %v1618 = vpop.f32.mrf.mxu0
    %v1619 = vadd.f32 0.0, %v1618
    %1620 = vmatmul.bf16.gmra.mxu0 %v1597
    %v1621 = vpop.f32.mrf.mxu0
    %v1622 = vadd.f32 0.0, %v1621
    %v1623 = vpop.f32.mrf.mxu0
    %v1624 = vadd.f32 0.0, %v1623
    %1625 = vmatmul.bf16.gmra.mxu0 %v1600
    %v1626 = vpop.f32.mrf.mxu0
    %v1627 = vadd.f32 0.0, %v1626
    %v1628 = vpop.f32.mrf.mxu0
    %v1629 = vadd.f32 0.0, %v1628
    %1630 = vdwg.mxu0
    %1631 = vmatpush.bf16.msra.mxu0 0
    %1632 = vmatpush.bf16.msra.mxu0 0
    %1633 = vmatpush.bf16.msra.mxu0 0
    %1634 = vmatpush.bf16.msra.mxu0 0
    %1635 = vmatpush.bf16.msra.mxu0 0
    %1636 = vmatpush.bf16.msra.mxu0 0
    %1637 = vmatpush.bf16.msra.mxu0 %v1568
    %1638 = vmatpush.bf16.msra.mxu0 %v1566
    %1639 = vmatmul.bf16.gmra.mxu0 %v1591
    %v1640 = vpop.f32.mrf.mxu0
    %v1641 = vadd.f32 0.0, %v1640
    %v1642 = vpop.f32.mrf.mxu0
    %v1643 = vadd.f32 0.0, %v1642
    %1644 = vmatmul.bf16.gmra.mxu0 %v1594
    %v1645 = vpop.f32.mrf.mxu0
    %v1646 = vadd.f32 0.0, %v1645
    %v1647 = vpop.f32.mrf.mxu0
    %v1648 = vadd.f32 0.0, %v1647
    %1649 = vmatmul.bf16.gmra.mxu0 %v1597
    %v1650 = vpop.f32.mrf.mxu0
    %v1651 = vadd.f32 0.0, %v1650
    %v1652 = vpop.f32.mrf.mxu0
    %v1653 = vadd.f32 0.0, %v1652
    %1654 = vmatmul.bf16.gmra.mxu0 %v1600
    %v1655 = vpop.f32.mrf.mxu0
    %v1656 = vadd.f32 0.0, %v1655
    %v1657 = vpop.f32.mrf.mxu0
    %v1658 = vadd.f32 0.0, %v1657
    %1659 = vdwg.mxu0
    %v1660 = vpack.c.bf16 %v1614, %v1612
    %v1661 = vpack.c.bf16 %v1643, %v1641
    %v1662 = vpack.c.bf16 %v1619, %v1617
    %v1663 = vpack.c.bf16 %v1648, %v1646
    %v1664 = vpack.c.bf16 %v1624, %v1622
    %v1665 = vpack.c.bf16 %v1653, %v1651
    %v1666 = vpack.c.bf16 %v1629, %v1627
    %v1667 = vpack.c.bf16 %v1658, %v1656
    %v1668 = vld [vmem:[#allocation2 + $0x520] sm:$0xff]
    %v1669 = vld [vmem:[#allocation2 + $0x528] sm:$0xff]
    %v1670 = vld [vmem:[#allocation2 + $0x530] sm:$0xff]
    %v1671 = vld [vmem:[#allocation2 + $0x538] sm:$0xff]
    %v1672 = vld [vmem:[#allocation2 + $0x540] sm:$0xff]
    %v1673 = vld [vmem:[#allocation2 + $0x548] sm:$0xff]
    %v1674 = vld [vmem:[#allocation2 + $0x550] sm:$0xff]
    %v1675 = vld [vmem:[#allocation2 + $0x558] sm:$0xff]
    %v1676 = vld [vmem:[#allocation2 + $0x560] sm:$0xff]
    %v1677 = vld [vmem:[#allocation2 + $0x568] sm:$0xff]
    %v1678 = vld [vmem:[#allocation2 + $0x570] sm:$0xff]
    %v1679 = vld [vmem:[#allocation2 + $0x578] sm:$0xff]
    %v1680 = vld [vmem:[#allocation2 + $0x580] sm:$0xff]
    %v1681 = vld [vmem:[#allocation2 + $0x588] sm:$0xff]
    %v1682 = vld [vmem:[#allocation2 + $0x590] sm:$0xff]
    %v1683 = vld [vmem:[#allocation2 + $0x598] sm:$0xff]
    %v1684 = vld [vmem:[#allocation2 + $0x5a0] sm:$0xff]
    %v1685 = vld [vmem:[#allocation2 + $0x5a8] sm:$0xff]
    %v1686 = vld [vmem:[#allocation2 + $0x5b0] sm:$0xff]
    %v1687 = vld [vmem:[#allocation2 + $0x5b8] sm:$0xff]
    %v1688 = vld [vmem:[#allocation2 + $0x5c0] sm:$0xff]
    %v1689 = vld [vmem:[#allocation2 + $0x5c8] sm:$0xff]
    %v1690 = vld [vmem:[#allocation2 + $0x5d0] sm:$0xff]
    %v1691 = vld [vmem:[#allocation2 + $0x5d8] sm:$0xff]
    %v1692 = vld [vmem:[#allocation2 + $0x5e0] sm:$0xff]
    %v1693 = vld [vmem:[#allocation2 + $0x5e8] sm:$0xff]
    %v1694 = vld [vmem:[#allocation2 + $0x5f0] sm:$0xff]
    %v1695 = vld [vmem:[#allocation2 + $0x5f8] sm:$0xff]
    %v1696 = vld [vmem:[#allocation2 + $0x600] sm:$0xff]
    %v1697 = vld [vmem:[#allocation2 + $0x608] sm:$0xff]
    %v1698 = vld [vmem:[#allocation2 + $0x610] sm:$0xff]
    %v1699 = vld [vmem:[#allocation2 + $0x618] sm:$0xff]
    %v1700 = vrot.slane %v1612, 7
    %v1701 = vrot.slane %v1641, 7
    %v1702 = vrot.slane %v1614, 7
    %v1703 = vrot.slane %v1643, 7
    %v1704 = vrot.slane %v1617, 7
    %v1705 = vrot.slane %v1646, 7
    %v1706 = vrot.slane %v1619, 7
    %v1707 = vrot.slane %v1648, 7
    %v1708 = vrot.slane %v1622, 7
    %v1709 = vrot.slane %v1651, 7
    %v1710 = vrot.slane %v1624, 7
    %v1711 = vrot.slane %v1653, 7
    %v1712 = vrot.slane %v1627, 7
    %v1713 = vrot.slane %v1656, 7
    %v1714 = vrot.slane %v1629, 7
    %v1715 = vrot.slane %v1658, 7
    %v1716 = vsel %vm269, %v1712, %v1714
    %v1717 = vsel %vm269, %v1713, %v1715
    %v1718 = vsel %vm269, %v1710, %v1712
    %v1719 = vsel %vm269, %v1711, %v1713
    %v1720 = vsel %vm269, %v1708, %v1710
    %v1721 = vsel %vm269, %v1709, %v1711
    %v1722 = vsel %vm269, %v1706, %v1708
    %v1723 = vsel %vm269, %v1707, %v1709
    %v1724 = vsel %vm269, %v1704, %v1706
    %v1725 = vsel %vm269, %v1705, %v1707
    %v1726 = vsel %vm269, %v1702, %v1704
    %v1727 = vsel %vm269, %v1703, %v1705
    %v1728 = vsel %vm269, %v1700, %v1702
    %v1729 = vsel %vm269, %v1701, %v1703
    %v1730 = vsel %vm269, %v1714, %v1700
    %v1731 = vsel %vm269, %v1715, %v1701
    %v1732 = vsel %vm294, %v1730, 0.0
    %v1733 = vsel %vm294, %v1731, 0.0
    %v1734 = vsel %vm295, %v1728, 0.0
    %v1735 = vsel %vm295, %v1729, 0.0
    %v1736 = vsel %vm296, %v1726, 0.0
    %v1737 = vsel %vm296, %v1727, 0.0
    %v1738 = vsel %vm297, %v1724, 0.0
    %v1739 = vsel %vm297, %v1725, 0.0
    %v1740 = vsel %vm298, %v1722, 0.0
    %v1741 = vsel %vm298, %v1723, 0.0
    %v1742 = vsel %vm299, %v1720, 0.0
    %v1743 = vsel %vm299, %v1721, 0.0
    %v1744 = vsel %vm300, %v1718, 0.0
    %v1745 = vsel %vm300, %v1719, 0.0
    %v1746 = vsel %vm301, %v1716, 0.0
    %v1747 = vsel %vm301, %v1717, 0.0
    %v1748 = vpack.c.bf16 %v1734, %v1732
    %v1749 = vpack.c.bf16 %v1735, %v1733
    %v1750 = vpack.c.bf16 %v1738, %v1736
    %v1751 = vpack.c.bf16 %v1739, %v1737
    %v1752 = vpack.c.bf16 %v1742, %v1740
    %v1753 = vpack.c.bf16 %v1743, %v1741
    %v1754 = vpack.c.bf16 %v1746, %v1744
    %v1755 = vpack.c.bf16 %v1747, %v1745
    %v1756 = vld [vmem:[#allocation2 + $0x420] sm:$0xff]
    %v1757 = vld [vmem:[#allocation2 + $0x428] sm:$0xff]
    %v1758 = vld [vmem:[#allocation2 + $0x430] sm:$0xff]
    %v1759 = vld [vmem:[#allocation2 + $0x438] sm:$0xff]
    %v1760 = vld [vmem:[#allocation2 + $0x440] sm:$0xff]
    %v1761 = vld [vmem:[#allocation2 + $0x448] sm:$0xff]
    %v1762 = vld [vmem:[#allocation2 + $0x450] sm:$0xff]
    %v1763 = vld [vmem:[#allocation2 + $0x458] sm:$0xff]
    %v1764 = vld [vmem:[#allocation2 + $0x460] sm:$0xff]
    %v1765 = vld [vmem:[#allocation2 + $0x468] sm:$0xff]
    %v1766 = vld [vmem:[#allocation2 + $0x470] sm:$0xff]
    %v1767 = vld [vmem:[#allocation2 + $0x478] sm:$0xff]
    %v1768 = vld [vmem:[#allocation2 + $0x480] sm:$0xff]
    %v1769 = vld [vmem:[#allocation2 + $0x488] sm:$0xff]
    %v1770 = vld [vmem:[#allocation2 + $0x490] sm:$0xff]
    %v1771 = vld [vmem:[#allocation2 + $0x498] sm:$0xff]
    %v1772 = vld [vmem:[#allocation2 + $0x4a0] sm:$0xff]
    %v1773 = vld [vmem:[#allocation2 + $0x4a8] sm:$0xff]
    %v1774 = vld [vmem:[#allocation2 + $0x4b0] sm:$0xff]
    %v1775 = vld [vmem:[#allocation2 + $0x4b8] sm:$0xff]
    %v1776 = vld [vmem:[#allocation2 + $0x4c0] sm:$0xff]
    %v1777 = vld [vmem:[#allocation2 + $0x4c8] sm:$0xff]
    %v1778 = vld [vmem:[#allocation2 + $0x4d0] sm:$0xff]
    %v1779 = vld [vmem:[#allocation2 + $0x4d8] sm:$0xff]
    %v1780 = vld [vmem:[#allocation2 + $0x4e0] sm:$0xff]
    %v1781 = vld [vmem:[#allocation2 + $0x4e8] sm:$0xff]
    %v1782 = vld [vmem:[#allocation2 + $0x4f0] sm:$0xff]
    %v1783 = vld [vmem:[#allocation2 + $0x4f8] sm:$0xff]
    %v1784 = vld [vmem:[#allocation2 + $0x500] sm:$0xff]
    %v1785 = vld [vmem:[#allocation2 + $0x508] sm:$0xff]
    %v1786 = vld [vmem:[#allocation2 + $0x510] sm:$0xff]
    %v1787 = vld [vmem:[#allocation2 + $0x518] sm:$0xff]
    %v1820 = vunpack.c.l.b16 %v1756
    %v1821 = vunpack.c.h.b16 %v1756
    %v1822 = vunpack.c.l.b16 %v1757
    %v1823 = vunpack.c.h.b16 %v1757
    %v1824 = vunpack.c.l.b16 %v1758
    %v1825 = vunpack.c.h.b16 %v1758
    %v1826 = vunpack.c.l.b16 %v1759
    %v1827 = vunpack.c.h.b16 %v1759
    %v1828 = vunpack.c.l.b16 %v1760
    %v1829 = vunpack.c.h.b16 %v1760
    %v1830 = vunpack.c.l.b16 %v1761
    %v1831 = vunpack.c.h.b16 %v1761
    %v1832 = vunpack.c.l.b16 %v1762
    %v1833 = vunpack.c.h.b16 %v1762
    %v1834 = vunpack.c.l.b16 %v1763
    %v1835 = vunpack.c.h.b16 %v1763
    %v1836 = vunpack.c.l.b16 %v1764
    %v1837 = vunpack.c.h.b16 %v1764
    %v1838 = vunpack.c.l.b16 %v1765
    %v1839 = vunpack.c.h.b16 %v1765
    %v1840 = vunpack.c.l.b16 %v1766
    %v1841 = vunpack.c.h.b16 %v1766
    %v1842 = vunpack.c.l.b16 %v1767
    %v1843 = vunpack.c.h.b16 %v1767
    %v1844 = vunpack.c.l.b16 %v1768
    %v1845 = vunpack.c.h.b16 %v1768
    %v1846 = vunpack.c.l.b16 %v1769
    %v1847 = vunpack.c.h.b16 %v1769
    %v1848 = vunpack.c.l.b16 %v1770
    %v1849 = vunpack.c.h.b16 %v1770
    %v1850 = vunpack.c.l.b16 %v1771
    %v1851 = vunpack.c.h.b16 %v1771
    %v1852 = vunpack.c.l.b16 %v1772
    %v1853 = vunpack.c.h.b16 %v1772
    %v1854 = vunpack.c.l.b16 %v1773
    %v1855 = vunpack.c.h.b16 %v1773
    %v1856 = vunpack.c.l.b16 %v1774
    %v1857 = vunpack.c.h.b16 %v1774
    %v1858 = vunpack.c.l.b16 %v1775
    %v1859 = vunpack.c.h.b16 %v1775
    %v1860 = vunpack.c.l.b16 %v1776
    %v1861 = vunpack.c.h.b16 %v1776
    %v1862 = vunpack.c.l.b16 %v1777
    %v1863 = vunpack.c.h.b16 %v1777
    %v1864 = vunpack.c.l.b16 %v1778
    %v1865 = vunpack.c.h.b16 %v1778
    %v1866 = vunpack.c.l.b16 %v1779
    %v1867 = vunpack.c.h.b16 %v1779
    %v1868 = vunpack.c.l.b16 %v1780
    %v1869 = vunpack.c.h.b16 %v1780
    %v1870 = vunpack.c.l.b16 %v1781
    %v1871 = vunpack.c.h.b16 %v1781
    %v1872 = vunpack.c.l.b16 %v1782
    %v1873 = vunpack.c.h.b16 %v1782
    %v1874 = vunpack.c.l.b16 %v1783
    %v1875 = vunpack.c.h.b16 %v1783
    %v1876 = vunpack.c.l.b16 %v1784
    %v1877 = vunpack.c.h.b16 %v1784
    %v1878 = vunpack.c.l.b16 %v1785
    %v1879 = vunpack.c.h.b16 %v1785
    %v1880 = vunpack.c.l.b16 %v1786
    %v1881 = vunpack.c.h.b16 %v1786
    %v1882 = vunpack.c.l.b16 %v1787
    %v1883 = vunpack.c.h.b16 %v1787
    %v1884 = vpack.c.b16 %v1822, %v1820
    %v1885 = vpack.c.b16 %v1823, %v1821
    %v1886 = vpack.c.b16 %v1826, %v1824
    %v1887 = vpack.c.b16 %v1827, %v1825
    %v1888 = vpack.c.b16 %v1830, %v1828
    %v1889 = vpack.c.b16 %v1831, %v1829
    %v1890 = vpack.c.b16 %v1834, %v1832
    %v1891 = vpack.c.b16 %v1835, %v1833
    %v1892 = vpack.c.b16 %v1838, %v1836
    %v1893 = vpack.c.b16 %v1839, %v1837
    %v1894 = vpack.c.b16 %v1842, %v1840
    %v1895 = vpack.c.b16 %v1843, %v1841
    %v1896 = vpack.c.b16 %v1846, %v1844
    %v1897 = vpack.c.b16 %v1847, %v1845
    %v1898 = vpack.c.b16 %v1850, %v1848
    %v1899 = vpack.c.b16 %v1851, %v1849
    %v1900 = vpack.c.b16 %v1854, %v1852
    %v1901 = vpack.c.b16 %v1855, %v1853
    %v1902 = vpack.c.b16 %v1858, %v1856
    %v1903 = vpack.c.b16 %v1859, %v1857
    %v1904 = vpack.c.b16 %v1862, %v1860
    %v1905 = vpack.c.b16 %v1863, %v1861
    %v1906 = vpack.c.b16 %v1866, %v1864
    %v1907 = vpack.c.b16 %v1867, %v1865
    %v1908 = vpack.c.b16 %v1870, %v1868
    %v1909 = vpack.c.b16 %v1871, %v1869
    %v1910 = vpack.c.b16 %v1874, %v1872
    %v1911 = vpack.c.b16 %v1875, %v1873
    %v1912 = vpack.c.b16 %v1878, %v1876
    %v1913 = vpack.c.b16 %v1879, %v1877
    %v1914 = vpack.c.b16 %v1882, %v1880
    %v1915 = vpack.c.b16 %v1883, %v1881
    %1948 = vmatpush.bf16.msra.mxu0 %v1898
    %1949 = vmatpush.bf16.msra.mxu0 %v1896
    %1950 = vmatpush.bf16.msra.mxu0 %v1894
    %1951 = vmatpush.bf16.msra.mxu0 %v1892
    %1952 = vmatpush.bf16.msra.mxu0 %v1890
    %1953 = vmatpush.bf16.msra.mxu0 %v1888
    %1954 = vmatpush.bf16.msra.mxu0 %v1886
    %1955 = vmatpush.bf16.msra.mxu0 %v1884
    %1956 = vmatmul.bf16.gmra.mxu0 %v1748
    %v1957 = vpop.f32.mrf.mxu0
    %v1958 = vadd.f32 0.0, %v1957
    %v1959 = vpop.f32.mrf.mxu0
    %v1960 = vadd.f32 0.0, %v1959
    %1961 = vmatmul.bf16.gmra.mxu0 %v1750
    %v1962 = vpop.f32.mrf.mxu0
    %v1963 = vadd.f32 0.0, %v1962
    %v1964 = vpop.f32.mrf.mxu0
    %v1965 = vadd.f32 0.0, %v1964
    %1966 = vmatmul.bf16.gmra.mxu0 %v1752
    %v1967 = vpop.f32.mrf.mxu0
    %v1968 = vadd.f32 0.0, %v1967
    %v1969 = vpop.f32.mrf.mxu0
    %v1970 = vadd.f32 0.0, %v1969
    %1971 = vmatmul.bf16.gmra.mxu0 %v1754
    %v1972 = vpop.f32.mrf.mxu0
    %v1973 = vadd.f32 0.0, %v1972
    %v1974 = vpop.f32.mrf.mxu0
    %v1975 = vadd.f32 0.0, %v1974
    %1976 = vdwg.mxu0
    %1977 = vmatpush.bf16.msra.mxu0 %v1914
    %1978 = vmatpush.bf16.msra.mxu0 %v1912
    %1979 = vmatpush.bf16.msra.mxu0 %v1910
    %1980 = vmatpush.bf16.msra.mxu0 %v1908
    %1981 = vmatpush.bf16.msra.mxu0 %v1906
    %1982 = vmatpush.bf16.msra.mxu0 %v1904
    %1983 = vmatpush.bf16.msra.mxu0 %v1902
    %1984 = vmatpush.bf16.msra.mxu0 %v1900
    %1985 = vmatmul.bf16.gmra.mxu0 %v1749
    %v1986 = vpop.f32.mrf.mxu0
    %v1987 = vadd.f32 %v1958, %v1986
    %v1988 = vpop.f32.mrf.mxu0
    %v1989 = vadd.f32 %v1960, %v1988
    %1990 = vmatmul.bf16.gmra.mxu0 %v1751
    %v1991 = vpop.f32.mrf.mxu0
    %v1992 = vadd.f32 %v1963, %v1991
    %v1993 = vpop.f32.mrf.mxu0
    %v1994 = vadd.f32 %v1965, %v1993
    %1995 = vmatmul.bf16.gmra.mxu0 %v1753
    %v1996 = vpop.f32.mrf.mxu0
    %v1997 = vadd.f32 %v1968, %v1996
    %v1998 = vpop.f32.mrf.mxu0
    %v1999 = vadd.f32 %v1970, %v1998
    %2000 = vmatmul.bf16.gmra.mxu0 %v1755
    %v2001 = vpop.f32.mrf.mxu0
    %v2002 = vadd.f32 %v1973, %v2001
    %v2003 = vpop.f32.mrf.mxu0
    %v2004 = vadd.f32 %v1975, %v2003
    %2005 = vdwg.mxu0
    %2006 = vmatpush.bf16.msra.mxu0 %v1899
    %2007 = vmatpush.bf16.msra.mxu0 %v1897
    %2008 = vmatpush.bf16.msra.mxu0 %v1895
    %2009 = vmatpush.bf16.msra.mxu0 %v1893
    %2010 = vmatpush.bf16.msra.mxu0 %v1891
    %2011 = vmatpush.bf16.msra.mxu0 %v1889
    %2012 = vmatpush.bf16.msra.mxu0 %v1887
    %2013 = vmatpush.bf16.msra.mxu0 %v1885
    %2014 = vmatmul.bf16.gmra.mxu0 %v1748
    %v2015 = vpop.f32.mrf.mxu0
    %v2016 = vadd.f32 0.0, %v2015
    %v2017 = vpop.f32.mrf.mxu0
    %v2018 = vadd.f32 0.0, %v2017
    %2019 = vmatmul.bf16.gmra.mxu0 %v1750
    %v2020 = vpop.f32.mrf.mxu0
    %v2021 = vadd.f32 0.0, %v2020
    %v2022 = vpop.f32.mrf.mxu0
    %v2023 = vadd.f32 0.0, %v2022
    %2024 = vmatmul.bf16.gmra.mxu0 %v1752
    %v2025 = vpop.f32.mrf.mxu0
    %v2026 = vadd.f32 0.0, %v2025
    %v2027 = vpop.f32.mrf.mxu0
    %v2028 = vadd.f32 0.0, %v2027
    %2029 = vmatmul.bf16.gmra.mxu0 %v1754
    %v2030 = vpop.f32.mrf.mxu0
    %v2031 = vadd.f32 0.0, %v2030
    %v2032 = vpop.f32.mrf.mxu0
    %v2033 = vadd.f32 0.0, %v2032
    %2034 = vdwg.mxu0
    %2035 = vmatpush.bf16.msra.mxu0 %v1915
    %2036 = vmatpush.bf16.msra.mxu0 %v1913
    %2037 = vmatpush.bf16.msra.mxu0 %v1911
    %2038 = vmatpush.bf16.msra.mxu0 %v1909
    %2039 = vmatpush.bf16.msra.mxu0 %v1907
    %2040 = vmatpush.bf16.msra.mxu0 %v1905
    %2041 = vmatpush.bf16.msra.mxu0 %v1903
    %2042 = vmatpush.bf16.msra.mxu0 %v1901
    %2043 = vmatmul.bf16.gmra.mxu0 %v1749
    %v2044 = vpop.f32.mrf.mxu0
    %v2045 = vadd.f32 %v2016, %v2044
    %v2046 = vpop.f32.mrf.mxu0
    %v2047 = vadd.f32 %v2018, %v2046
    %2048 = vmatmul.bf16.gmra.mxu0 %v1751
    %v2049 = vpop.f32.mrf.mxu0
    %v2050 = vadd.f32 %v2021, %v2049
    %v2051 = vpop.f32.mrf.mxu0
    %v2052 = vadd.f32 %v2023, %v2051
    %2053 = vmatmul.bf16.gmra.mxu0 %v1753
    %v2054 = vpop.f32.mrf.mxu0
    %v2055 = vadd.f32 %v2026, %v2054
    %v2056 = vpop.f32.mrf.mxu0
    %v2057 = vadd.f32 %v2028, %v2056
    %2058 = vmatmul.bf16.gmra.mxu0 %v1755
    %v2059 = vpop.f32.mrf.mxu0
    %v2060 = vadd.f32 %v2031, %v2059
    %v2061 = vpop.f32.mrf.mxu0
    %v2062 = vadd.f32 %v2033, %v2061
    %2063 = vdwg.mxu0
    %v2096 = vunpack.c.l.b16 %v1668
    %v2097 = vunpack.c.h.b16 %v1668
    %v2098 = vunpack.c.l.b16 %v1669
    %v2099 = vunpack.c.h.b16 %v1669
    %v2100 = vunpack.c.l.b16 %v1670
    %v2101 = vunpack.c.h.b16 %v1670
    %v2102 = vunpack.c.l.b16 %v1671
    %v2103 = vunpack.c.h.b16 %v1671
    %v2104 = vunpack.c.l.b16 %v1672
    %v2105 = vunpack.c.h.b16 %v1672
    %v2106 = vunpack.c.l.b16 %v1673
    %v2107 = vunpack.c.h.b16 %v1673
    %v2108 = vunpack.c.l.b16 %v1674
    %v2109 = vunpack.c.h.b16 %v1674
    %v2110 = vunpack.c.l.b16 %v1675
    %v2111 = vunpack.c.h.b16 %v1675
    %v2112 = vunpack.c.l.b16 %v1676
    %v2113 = vunpack.c.h.b16 %v1676
    %v2114 = vunpack.c.l.b16 %v1677
    %v2115 = vunpack.c.h.b16 %v1677
    %v2116 = vunpack.c.l.b16 %v1678
    %v2117 = vunpack.c.h.b16 %v1678
    %v2118 = vunpack.c.l.b16 %v1679
    %v2119 = vunpack.c.h.b16 %v1679
    %v2120 = vunpack.c.l.b16 %v1680
    %v2121 = vunpack.c.h.b16 %v1680
    %v2122 = vunpack.c.l.b16 %v1681
    %v2123 = vunpack.c.h.b16 %v1681
    %v2124 = vunpack.c.l.b16 %v1682
    %v2125 = vunpack.c.h.b16 %v1682
    %v2126 = vunpack.c.l.b16 %v1683
    %v2127 = vunpack.c.h.b16 %v1683
    %v2128 = vunpack.c.l.b16 %v1684
    %v2129 = vunpack.c.h.b16 %v1684
    %v2130 = vunpack.c.l.b16 %v1685
    %v2131 = vunpack.c.h.b16 %v1685
    %v2132 = vunpack.c.l.b16 %v1686
    %v2133 = vunpack.c.h.b16 %v1686
    %v2134 = vunpack.c.l.b16 %v1687
    %v2135 = vunpack.c.h.b16 %v1687
    %v2136 = vunpack.c.l.b16 %v1688
    %v2137 = vunpack.c.h.b16 %v1688
    %v2138 = vunpack.c.l.b16 %v1689
    %v2139 = vunpack.c.h.b16 %v1689
    %v2140 = vunpack.c.l.b16 %v1690
    %v2141 = vunpack.c.h.b16 %v1690
    %v2142 = vunpack.c.l.b16 %v1691
    %v2143 = vunpack.c.h.b16 %v1691
    %v2144 = vunpack.c.l.b16 %v1692
    %v2145 = vunpack.c.h.b16 %v1692
    %v2146 = vunpack.c.l.b16 %v1693
    %v2147 = vunpack.c.h.b16 %v1693
    %v2148 = vunpack.c.l.b16 %v1694
    %v2149 = vunpack.c.h.b16 %v1694
    %v2150 = vunpack.c.l.b16 %v1695
    %v2151 = vunpack.c.h.b16 %v1695
    %v2152 = vunpack.c.l.b16 %v1696
    %v2153 = vunpack.c.h.b16 %v1696
    %v2154 = vunpack.c.l.b16 %v1697
    %v2155 = vunpack.c.h.b16 %v1697
    %v2156 = vunpack.c.l.b16 %v1698
    %v2157 = vunpack.c.h.b16 %v1698
    %v2158 = vunpack.c.l.b16 %v1699
    %v2159 = vunpack.c.h.b16 %v1699
    %v2160 = vpack.c.b16 %v2098, %v2096
    %v2161 = vpack.c.b16 %v2099, %v2097
    %v2162 = vpack.c.b16 %v2102, %v2100
    %v2163 = vpack.c.b16 %v2103, %v2101
    %v2164 = vpack.c.b16 %v2106, %v2104
    %v2165 = vpack.c.b16 %v2107, %v2105
    %v2166 = vpack.c.b16 %v2110, %v2108
    %v2167 = vpack.c.b16 %v2111, %v2109
    %v2168 = vpack.c.b16 %v2114, %v2112
    %v2169 = vpack.c.b16 %v2115, %v2113
    %v2170 = vpack.c.b16 %v2118, %v2116
    %v2171 = vpack.c.b16 %v2119, %v2117
    %v2172 = vpack.c.b16 %v2122, %v2120
    %v2173 = vpack.c.b16 %v2123, %v2121
    %v2174 = vpack.c.b16 %v2126, %v2124
    %v2175 = vpack.c.b16 %v2127, %v2125
    %v2176 = vpack.c.b16 %v2130, %v2128
    %v2177 = vpack.c.b16 %v2131, %v2129
    %v2178 = vpack.c.b16 %v2134, %v2132
    %v2179 = vpack.c.b16 %v2135, %v2133
    %v2180 = vpack.c.b16 %v2138, %v2136
    %v2181 = vpack.c.b16 %v2139, %v2137
    %v2182 = vpack.c.b16 %v2142, %v2140
    %v2183 = vpack.c.b16 %v2143, %v2141
    %v2184 = vpack.c.b16 %v2146, %v2144
    %v2185 = vpack.c.b16 %v2147, %v2145
    %v2186 = vpack.c.b16 %v2150, %v2148
    %v2187 = vpack.c.b16 %v2151, %v2149
    %v2188 = vpack.c.b16 %v2154, %v2152
    %v2189 = vpack.c.b16 %v2155, %v2153
    %v2190 = vpack.c.b16 %v2158, %v2156
    %v2191 = vpack.c.b16 %v2159, %v2157
    %2224 = vmatpush.bf16.msra.mxu0 %v2174
    %2225 = vmatpush.bf16.msra.mxu0 %v2172
    %2226 = vmatpush.bf16.msra.mxu0 %v2170
    %2227 = vmatpush.bf16.msra.mxu0 %v2168
    %2228 = vmatpush.bf16.msra.mxu0 %v2166
    %2229 = vmatpush.bf16.msra.mxu0 %v2164
    %2230 = vmatpush.bf16.msra.mxu0 %v2162
    %2231 = vmatpush.bf16.msra.mxu0 %v2160
    %2232 = vmatmul.bf16.gmra.mxu0 %v1660
    %v2233 = vpop.f32.mrf.mxu0
    %v2234 = vadd.f32 %v1987, %v2233
    %v2235 = vpop.f32.mrf.mxu0
    %v2236 = vadd.f32 %v1989, %v2235
    %2237 = vmatmul.bf16.gmra.mxu0 %v1662
    %v2238 = vpop.f32.mrf.mxu0
    %v2239 = vadd.f32 %v1992, %v2238
    %v2240 = vpop.f32.mrf.mxu0
    %v2241 = vadd.f32 %v1994, %v2240
    %2242 = vmatmul.bf16.gmra.mxu0 %v1664
    %v2243 = vpop.f32.mrf.mxu0
    %v2244 = vadd.f32 %v1997, %v2243
    %v2245 = vpop.f32.mrf.mxu0
    %v2246 = vadd.f32 %v1999, %v2245
    %2247 = vmatmul.bf16.gmra.mxu0 %v1666
    %v2248 = vpop.f32.mrf.mxu0
    %v2249 = vadd.f32 %v2002, %v2248
    %v2250 = vpop.f32.mrf.mxu0
    %v2251 = vadd.f32 %v2004, %v2250
    %2252 = vdwg.mxu0
    %2253 = vmatpush.bf16.msra.mxu0 %v2190
    %2254 = vmatpush.bf16.msra.mxu0 %v2188
    %2255 = vmatpush.bf16.msra.mxu0 %v2186
    %2256 = vmatpush.bf16.msra.mxu0 %v2184
    %2257 = vmatpush.bf16.msra.mxu0 %v2182
    %2258 = vmatpush.bf16.msra.mxu0 %v2180
    %2259 = vmatpush.bf16.msra.mxu0 %v2178
    %2260 = vmatpush.bf16.msra.mxu0 %v2176
    %2261 = vmatmul.bf16.gmra.mxu0 %v1661
    %v2262 = vpop.f32.mrf.mxu0
    %v2263 = vadd.f32 %v2234, %v2262
    %v2264 = vpop.f32.mrf.mxu0
    %v2265 = vadd.f32 %v2236, %v2264
    %2266 = vmatmul.bf16.gmra.mxu0 %v1663
    %v2267 = vpop.f32.mrf.mxu0
    %v2268 = vadd.f32 %v2239, %v2267
    %v2269 = vpop.f32.mrf.mxu0
    %v2270 = vadd.f32 %v2241, %v2269
    %2271 = vmatmul.bf16.gmra.mxu0 %v1665
    %v2272 = vpop.f32.mrf.mxu0
    %v2273 = vadd.f32 %v2244, %v2272
    %v2274 = vpop.f32.mrf.mxu0
    %v2275 = vadd.f32 %v2246, %v2274
    %2276 = vmatmul.bf16.gmra.mxu0 %v1667
    %v2277 = vpop.f32.mrf.mxu0
    %v2278 = vadd.f32 %v2249, %v2277
    %v2279 = vpop.f32.mrf.mxu0
    %v2280 = vadd.f32 %v2251, %v2279
    %2281 = vdwg.mxu0
    %2282 = vmatpush.bf16.msra.mxu0 %v2175
    %2283 = vmatpush.bf16.msra.mxu0 %v2173
    %2284 = vmatpush.bf16.msra.mxu0 %v2171
    %2285 = vmatpush.bf16.msra.mxu0 %v2169
    %2286 = vmatpush.bf16.msra.mxu0 %v2167
    %2287 = vmatpush.bf16.msra.mxu0 %v2165
    %2288 = vmatpush.bf16.msra.mxu0 %v2163
    %2289 = vmatpush.bf16.msra.mxu0 %v2161
    %2290 = vmatmul.bf16.gmra.mxu0 %v1660
    %v2291 = vpop.f32.mrf.mxu0
    %v2292 = vadd.f32 %v2045, %v2291
    %v2293 = vpop.f32.mrf.mxu0
    %v2294 = vadd.f32 %v2047, %v2293
    %2295 = vmatmul.bf16.gmra.mxu0 %v1662
    %v2296 = vpop.f32.mrf.mxu0
    %v2297 = vadd.f32 %v2050, %v2296
    %v2298 = vpop.f32.mrf.mxu0
    %v2299 = vadd.f32 %v2052, %v2298
    %2300 = vmatmul.bf16.gmra.mxu0 %v1664
    %v2301 = vpop.f32.mrf.mxu0
    %v2302 = vadd.f32 %v2055, %v2301
    %v2303 = vpop.f32.mrf.mxu0
    %v2304 = vadd.f32 %v2057, %v2303
    %2305 = vmatmul.bf16.gmra.mxu0 %v1666
    %v2306 = vpop.f32.mrf.mxu0
    %v2307 = vadd.f32 %v2060, %v2306
    %v2308 = vpop.f32.mrf.mxu0
    %v2309 = vadd.f32 %v2062, %v2308
    %2310 = vdwg.mxu0
    %2311 = vmatpush.bf16.msra.mxu0 %v2191
    %2312 = vmatpush.bf16.msra.mxu0 %v2189
    %2313 = vmatpush.bf16.msra.mxu0 %v2187
    %2314 = vmatpush.bf16.msra.mxu0 %v2185
    %2315 = vmatpush.bf16.msra.mxu0 %v2183
    %2316 = vmatpush.bf16.msra.mxu0 %v2181
    %2317 = vmatpush.bf16.msra.mxu0 %v2179
    %2318 = vmatpush.bf16.msra.mxu0 %v2177
    %2319 = vmatmul.bf16.gmra.mxu0 %v1661
    %v2320 = vpop.f32.mrf.mxu0
    %v2321 = vadd.f32 %v2292, %v2320
    %v2322 = vpop.f32.mrf.mxu0
    %v2323 = vadd.f32 %v2294, %v2322
    %2324 = vmatmul.bf16.gmra.mxu0 %v1663
    %v2325 = vpop.f32.mrf.mxu0
    %v2326 = vadd.f32 %v2297, %v2325
    %v2327 = vpop.f32.mrf.mxu0
    %v2328 = vadd.f32 %v2299, %v2327
    %2329 = vmatmul.bf16.gmra.mxu0 %v1665
    %v2330 = vpop.f32.mrf.mxu0
    %v2331 = vadd.f32 %v2302, %v2330
    %v2332 = vpop.f32.mrf.mxu0
    %v2333 = vadd.f32 %v2304, %v2332
    %2334 = vmatmul.bf16.gmra.mxu0 %v1667
    %v2335 = vpop.f32.mrf.mxu0
    %v2336 = vadd.f32 %v2307, %v2335
    %v2337 = vpop.f32.mrf.mxu0
    %v2338 = vadd.f32 %v2309, %v2337
    %2339 = vdwg.mxu0
    %v2340 = vrot.slane %v1612, 1
    %v2341 = vrot.slane %v1641, 1
    %v2342 = vrot.slane %v1614, 1
    %v2343 = vrot.slane %v1643, 1
    %v2344 = vrot.slane %v1617, 1
    %v2345 = vrot.slane %v1646, 1
    %v2346 = vrot.slane %v1619, 1
    %v2347 = vrot.slane %v1648, 1
    %v2348 = vrot.slane %v1622, 1
    %v2349 = vrot.slane %v1651, 1
    %v2350 = vrot.slane %v1624, 1
    %v2351 = vrot.slane %v1653, 1
    %v2352 = vrot.slane %v1627, 1
    %v2353 = vrot.slane %v1656, 1
    %v2354 = vrot.slane %v1629, 1
    %v2355 = vrot.slane %v1658, 1
    %v2356 = vsel %vm966, %v2352, %v2354
    %v2357 = vsel %vm966, %v2353, %v2355
    %v2358 = vsel %vm966, %v2350, %v2352
    %v2359 = vsel %vm966, %v2351, %v2353
    %v2360 = vsel %vm966, %v2348, %v2350
    %v2361 = vsel %vm966, %v2349, %v2351
    %v2362 = vsel %vm966, %v2346, %v2348
    %v2363 = vsel %vm966, %v2347, %v2349
    %v2364 = vsel %vm966, %v2344, %v2346
    %v2365 = vsel %vm966, %v2345, %v2347
    %v2366 = vsel %vm966, %v2342, %v2344
    %v2367 = vsel %vm966, %v2343, %v2345
    %v2368 = vsel %vm966, %v2340, %v2342
    %v2369 = vsel %vm966, %v2341, %v2343
    %v2370 = vsel %vm966, %v2354, %v2340
    %v2371 = vsel %vm966, %v2355, %v2341
    %v2372 = vsel %vm991, %v2368, 0.0
    %v2373 = vsel %vm991, %v2369, 0.0
    %v2374 = vsel %vm992, %v2366, 0.0
    %v2375 = vsel %vm992, %v2367, 0.0
    %v2376 = vsel %vm993, %v2364, 0.0
    %v2377 = vsel %vm993, %v2365, 0.0
    %v2378 = vsel %vm994, %v2362, 0.0
    %v2379 = vsel %vm994, %v2363, 0.0
    %v2380 = vsel %vm995, %v2360, 0.0
    %v2381 = vsel %vm995, %v2361, 0.0
    %v2382 = vsel %vm996, %v2358, 0.0
    %v2383 = vsel %vm996, %v2359, 0.0
    %v2384 = vsel %vm997, %v2356, 0.0
    %v2385 = vsel %vm997, %v2357, 0.0
    %v2386 = vsel %vm998, %v2370, 0.0
    %v2387 = vsel %vm998, %v2371, 0.0
    %v2388 = vpack.c.bf16 %v2374, %v2372
    %v2389 = vpack.c.bf16 %v2375, %v2373
    %v2390 = vpack.c.bf16 %v2378, %v2376
    %v2391 = vpack.c.bf16 %v2379, %v2377
    %v2392 = vpack.c.bf16 %v2382, %v2380
    %v2393 = vpack.c.bf16 %v2383, %v2381
    %v2394 = vpack.c.bf16 %v2386, %v2384
    %v2395 = vpack.c.bf16 %v2387, %v2385
    %v2396 = vld [vmem:[#allocation2 + $0x620] sm:$0xff]
    %v2397 = vld [vmem:[#allocation2 + $0x628] sm:$0xff]
    %v2398 = vld [vmem:[#allocation2 + $0x630] sm:$0xff]
    %v2399 = vld [vmem:[#allocation2 + $0x638] sm:$0xff]
    %v2400 = vld [vmem:[#allocation2 + $0x640] sm:$0xff]
    %v2401 = vld [vmem:[#allocation2 + $0x648] sm:$0xff]
    %v2402 = vld [vmem:[#allocation2 + $0x650] sm:$0xff]
    %v2403 = vld [vmem:[#allocation2 + $0x658] sm:$0xff]
    %v2404 = vld [vmem:[#allocation2 + $0x660] sm:$0xff]
    %v2405 = vld [vmem:[#allocation2 + $0x668] sm:$0xff]
    %v2406 = vld [vmem:[#allocation2 + $0x670] sm:$0xff]
    %v2407 = vld [vmem:[#allocation2 + $0x678] sm:$0xff]
    %v2408 = vld [vmem:[#allocation2 + $0x680] sm:$0xff]
    %v2409 = vld [vmem:[#allocation2 + $0x688] sm:$0xff]
    %v2410 = vld [vmem:[#allocation2 + $0x690] sm:$0xff]
    %v2411 = vld [vmem:[#allocation2 + $0x698] sm:$0xff]
    %v2412 = vld [vmem:[#allocation2 + $0x6a0] sm:$0xff]
    %v2413 = vld [vmem:[#allocation2 + $0x6a8] sm:$0xff]
    %v2414 = vld [vmem:[#allocation2 + $0x6b0] sm:$0xff]
    %v2415 = vld [vmem:[#allocation2 + $0x6b8] sm:$0xff]
    %v2416 = vld [vmem:[#allocation2 + $0x6c0] sm:$0xff]
    %v2417 = vld [vmem:[#allocation2 + $0x6c8] sm:$0xff]
    %v2418 = vld [vmem:[#allocation2 + $0x6d0] sm:$0xff]
    %v2419 = vld [vmem:[#allocation2 + $0x6d8] sm:$0xff]
    %v2420 = vld [vmem:[#allocation2 + $0x6e0] sm:$0xff]
    %v2421 = vld [vmem:[#allocation2 + $0x6e8] sm:$0xff]
    %v2422 = vld [vmem:[#allocation2 + $0x6f0] sm:$0xff]
    %v2423 = vld [vmem:[#allocation2 + $0x6f8] sm:$0xff]
    %v2424 = vld [vmem:[#allocation2 + $0x700] sm:$0xff]
    %v2425 = vld [vmem:[#allocation2 + $0x708] sm:$0xff]
    %v2426 = vld [vmem:[#allocation2 + $0x710] sm:$0xff]
    %v2427 = vld [vmem:[#allocation2 + $0x718] sm:$0xff]
    %v2460 = vunpack.c.l.b16 %v2396
    %v2461 = vunpack.c.h.b16 %v2396
    %v2462 = vunpack.c.l.b16 %v2397
    %v2463 = vunpack.c.h.b16 %v2397
    %v2464 = vunpack.c.l.b16 %v2398
    %v2465 = vunpack.c.h.b16 %v2398
    %v2466 = vunpack.c.l.b16 %v2399
    %v2467 = vunpack.c.h.b16 %v2399
    %v2468 = vunpack.c.l.b16 %v2400
    %v2469 = vunpack.c.h.b16 %v2400
    %v2470 = vunpack.c.l.b16 %v2401
    %v2471 = vunpack.c.h.b16 %v2401
    %v2472 = vunpack.c.l.b16 %v2402
    %v2473 = vunpack.c.h.b16 %v2402
    %v2474 = vunpack.c.l.b16 %v2403
    %v2475 = vunpack.c.h.b16 %v2403
    %v2476 = vunpack.c.l.b16 %v2404
    %v2477 = vunpack.c.h.b16 %v2404
    %v2478 = vunpack.c.l.b16 %v2405
    %v2479 = vunpack.c.h.b16 %v2405
    %v2480 = vunpack.c.l.b16 %v2406
    %v2481 = vunpack.c.h.b16 %v2406
    %v2482 = vunpack.c.l.b16 %v2407
    %v2483 = vunpack.c.h.b16 %v2407
    %v2484 = vunpack.c.l.b16 %v2408
    %v2485 = vunpack.c.h.b16 %v2408
    %v2486 = vunpack.c.l.b16 %v2409
    %v2487 = vunpack.c.h.b16 %v2409
    %v2488 = vunpack.c.l.b16 %v2410
    %v2489 = vunpack.c.h.b16 %v2410
    %v2490 = vunpack.c.l.b16 %v2411
    %v2491 = vunpack.c.h.b16 %v2411
    %v2492 = vunpack.c.l.b16 %v2412
    %v2493 = vunpack.c.h.b16 %v2412
    %v2494 = vunpack.c.l.b16 %v2413
    %v2495 = vunpack.c.h.b16 %v2413
    %v2496 = vunpack.c.l.b16 %v2414
    %v2497 = vunpack.c.h.b16 %v2414
    %v2498 = vunpack.c.l.b16 %v2415
    %v2499 = vunpack.c.h.b16 %v2415
    %v2500 = vunpack.c.l.b16 %v2416
    %v2501 = vunpack.c.h.b16 %v2416
    %v2502 = vunpack.c.l.b16 %v2417
    %v2503 = vunpack.c.h.b16 %v2417
    %v2504 = vunpack.c.l.b16 %v2418
    %v2505 = vunpack.c.h.b16 %v2418
    %v2506 = vunpack.c.l.b16 %v2419
    %v2507 = vunpack.c.h.b16 %v2419
    %v2508 = vunpack.c.l.b16 %v2420
    %v2509 = vunpack.c.h.b16 %v2420
    %v2510 = vunpack.c.l.b16 %v2421
    %v2511 = vunpack.c.h.b16 %v2421
    %v2512 = vunpack.c.l.b16 %v2422
    %v2513 = vunpack.c.h.b16 %v2422
    %v2514 = vunpack.c.l.b16 %v2423
    %v2515 = vunpack.c.h.b16 %v2423
    %v2516 = vunpack.c.l.b16 %v2424
    %v2517 = vunpack.c.h.b16 %v2424
    %v2518 = vunpack.c.l.b16 %v2425
    %v2519 = vunpack.c.h.b16 %v2425
    %v2520 = vunpack.c.l.b16 %v2426
    %v2521 = vunpack.c.h.b16 %v2426
    %v2522 = vunpack.c.l.b16 %v2427
    %v2523 = vunpack.c.h.b16 %v2427
    %v2524 = vpack.c.b16 %v2462, %v2460
    %v2525 = vpack.c.b16 %v2463, %v2461
    %v2526 = vpack.c.b16 %v2466, %v2464
    %v2527 = vpack.c.b16 %v2467, %v2465
    %v2528 = vpack.c.b16 %v2470, %v2468
    %v2529 = vpack.c.b16 %v2471, %v2469
    %v2530 = vpack.c.b16 %v2474, %v2472
    %v2531 = vpack.c.b16 %v2475, %v2473
    %v2532 = vpack.c.b16 %v2478, %v2476
    %v2533 = vpack.c.b16 %v2479, %v2477
    %v2534 = vpack.c.b16 %v2482, %v2480
    %v2535 = vpack.c.b16 %v2483, %v2481
    %v2536 = vpack.c.b16 %v2486, %v2484
    %v2537 = vpack.c.b16 %v2487, %v2485
    %v2538 = vpack.c.b16 %v2490, %v2488
    %v2539 = vpack.c.b16 %v2491, %v2489
    %v2540 = vpack.c.b16 %v2494, %v2492
    %v2541 = vpack.c.b16 %v2495, %v2493
    %v2542 = vpack.c.b16 %v2498, %v2496
    %v2543 = vpack.c.b16 %v2499, %v2497
    %v2544 = vpack.c.b16 %v2502, %v2500
    %v2545 = vpack.c.b16 %v2503, %v2501
    %v2546 = vpack.c.b16 %v2506, %v2504
    %v2547 = vpack.c.b16 %v2507, %v2505
    %v2548 = vpack.c.b16 %v2510, %v2508
    %v2549 = vpack.c.b16 %v2511, %v2509
    %v2550 = vpack.c.b16 %v2514, %v2512
    %v2551 = vpack.c.b16 %v2515, %v2513
    %v2552 = vpack.c.b16 %v2518, %v2516
    %v2553 = vpack.c.b16 %v2519, %v2517
    %v2554 = vpack.c.b16 %v2522, %v2520
    %v2555 = vpack.c.b16 %v2523, %v2521
    %2588 = vmatpush.bf16.msra.mxu0 %v2538
    %2589 = vmatpush.bf16.msra.mxu0 %v2536
    %2590 = vmatpush.bf16.msra.mxu0 %v2534
    %2591 = vmatpush.bf16.msra.mxu0 %v2532
    %2592 = vmatpush.bf16.msra.mxu0 %v2530
    %2593 = vmatpush.bf16.msra.mxu0 %v2528
    %2594 = vmatpush.bf16.msra.mxu0 %v2526
    %2595 = vmatpush.bf16.msra.mxu0 %v2524
    %2596 = vmatmul.bf16.gmra.mxu0 %v2388
    %v2597 = vpop.f32.mrf.mxu0
    %v2598 = vadd.f32 0.0, %v2597
    %v2599 = vpop.f32.mrf.mxu0
    %v2600 = vadd.f32 0.0, %v2599
    %2601 = vmatmul.bf16.gmra.mxu0 %v2390
    %v2602 = vpop.f32.mrf.mxu0
    %v2603 = vadd.f32 0.0, %v2602
    %v2604 = vpop.f32.mrf.mxu0
    %v2605 = vadd.f32 0.0, %v2604
    %2606 = vmatmul.bf16.gmra.mxu0 %v2392
    %v2607 = vpop.f32.mrf.mxu0
    %v2608 = vadd.f32 0.0, %v2607
    %v2609 = vpop.f32.mrf.mxu0
    %v2610 = vadd.f32 0.0, %v2609
    %2611 = vmatmul.bf16.gmra.mxu0 %v2394
    %v2612 = vpop.f32.mrf.mxu0
    %v2613 = vadd.f32 0.0, %v2612
    %v2614 = vpop.f32.mrf.mxu0
    %v2615 = vadd.f32 0.0, %v2614
    %2616 = vdwg.mxu0
    %2617 = vmatpush.bf16.msra.mxu0 %v2554
    %2618 = vmatpush.bf16.msra.mxu0 %v2552
    %2619 = vmatpush.bf16.msra.mxu0 %v2550
    %2620 = vmatpush.bf16.msra.mxu0 %v2548
    %2621 = vmatpush.bf16.msra.mxu0 %v2546
    %2622 = vmatpush.bf16.msra.mxu0 %v2544
    %2623 = vmatpush.bf16.msra.mxu0 %v2542
    %2624 = vmatpush.bf16.msra.mxu0 %v2540
    %2625 = vmatmul.bf16.gmra.mxu0 %v2389
    %v2626 = vpop.f32.mrf.mxu0
    %v2627 = vadd.f32 %v2598, %v2626
    %v2628 = vpop.f32.mrf.mxu0
    %v2629 = vadd.f32 %v2600, %v2628
    %2630 = vmatmul.bf16.gmra.mxu0 %v2391
    %v2631 = vpop.f32.mrf.mxu0
    %v2632 = vadd.f32 %v2603, %v2631
    %v2633 = vpop.f32.mrf.mxu0
    %v2634 = vadd.f32 %v2605, %v2633
    %2635 = vmatmul.bf16.gmra.mxu0 %v2393
    %v2636 = vpop.f32.mrf.mxu0
    %v2637 = vadd.f32 %v2608, %v2636
    %v2638 = vpop.f32.mrf.mxu0
    %v2639 = vadd.f32 %v2610, %v2638
    %2640 = vmatmul.bf16.gmra.mxu0 %v2395
    %v2641 = vpop.f32.mrf.mxu0
    %v2642 = vadd.f32 %v2613, %v2641
    %v2643 = vpop.f32.mrf.mxu0
    %v2644 = vadd.f32 %v2615, %v2643
    %2645 = vdwg.mxu0
    %2646 = vmatpush.bf16.msra.mxu0 %v2539
    %2647 = vmatpush.bf16.msra.mxu0 %v2537
    %2648 = vmatpush.bf16.msra.mxu0 %v2535
    %2649 = vmatpush.bf16.msra.mxu0 %v2533
    %2650 = vmatpush.bf16.msra.mxu0 %v2531
    %2651 = vmatpush.bf16.msra.mxu0 %v2529
    %2652 = vmatpush.bf16.msra.mxu0 %v2527
    %2653 = vmatpush.bf16.msra.mxu0 %v2525
    %2654 = vmatmul.bf16.gmra.mxu0 %v2388
    %v2655 = vpop.f32.mrf.mxu0
    %v2656 = vadd.f32 0.0, %v2655
    %v2657 = vpop.f32.mrf.mxu0
    %v2658 = vadd.f32 0.0, %v2657
    %2659 = vmatmul.bf16.gmra.mxu0 %v2390
    %v2660 = vpop.f32.mrf.mxu0
    %v2661 = vadd.f32 0.0, %v2660
    %v2662 = vpop.f32.mrf.mxu0
    %v2663 = vadd.f32 0.0, %v2662
    %2664 = vmatmul.bf16.gmra.mxu0 %v2392
    %v2665 = vpop.f32.mrf.mxu0
    %v2666 = vadd.f32 0.0, %v2665
    %v2667 = vpop.f32.mrf.mxu0
    %v2668 = vadd.f32 0.0, %v2667
    %2669 = vmatmul.bf16.gmra.mxu0 %v2394
    %v2670 = vpop.f32.mrf.mxu0
    %v2671 = vadd.f32 0.0, %v2670
    %v2672 = vpop.f32.mrf.mxu0
    %v2673 = vadd.f32 0.0, %v2672
    %2674 = vdwg.mxu0
    %2675 = vmatpush.bf16.msra.mxu0 %v2555
    %2676 = vmatpush.bf16.msra.mxu0 %v2553
    %2677 = vmatpush.bf16.msra.mxu0 %v2551
    %2678 = vmatpush.bf16.msra.mxu0 %v2549
    %2679 = vmatpush.bf16.msra.mxu0 %v2547
    %2680 = vmatpush.bf16.msra.mxu0 %v2545
    %2681 = vmatpush.bf16.msra.mxu0 %v2543
    %2682 = vmatpush.bf16.msra.mxu0 %v2541
    %2683 = vmatmul.bf16.gmra.mxu0 %v2389
    %v2684 = vpop.f32.mrf.mxu0
    %v2685 = vadd.f32 %v2656, %v2684
    %v2686 = vpop.f32.mrf.mxu0
    %v2687 = vadd.f32 %v2658, %v2686
    %2688 = vmatmul.bf16.gmra.mxu0 %v2391
    %v2689 = vpop.f32.mrf.mxu0
    %v2690 = vadd.f32 %v2661, %v2689
    %v2691 = vpop.f32.mrf.mxu0
    %v2692 = vadd.f32 %v2663, %v2691
    %2693 = vmatmul.bf16.gmra.mxu0 %v2393
    %v2694 = vpop.f32.mrf.mxu0
    %v2695 = vadd.f32 %v2666, %v2694
    %v2696 = vpop.f32.mrf.mxu0
    %v2697 = vadd.f32 %v2668, %v2696
    %2698 = vmatmul.bf16.gmra.mxu0 %v2395
    %v2699 = vpop.f32.mrf.mxu0
    %v2700 = vadd.f32 %v2671, %v2699
    %v2701 = vpop.f32.mrf.mxu0
    %v2702 = vadd.f32 %v2673, %v2701
    %2703 = vdwg.mxu0
    %v2704 = vadd.f32 %v2263, %v2627
    %v2705 = vadd.f32 %v2321, %v2685
    %v2706 = vadd.f32 %v2265, %v2629
    %v2707 = vadd.f32 %v2323, %v2687
    %v2708 = vadd.f32 %v2268, %v2632
    %v2709 = vadd.f32 %v2326, %v2690
    %v2710 = vadd.f32 %v2270, %v2634
    %v2711 = vadd.f32 %v2328, %v2692
    %v2712 = vadd.f32 %v2273, %v2637
    %v2713 = vadd.f32 %v2331, %v2695
    %v2714 = vadd.f32 %v2275, %v2639
    %v2715 = vadd.f32 %v2333, %v2697
    %v2716 = vadd.f32 %v2278, %v2642
    %v2717 = vadd.f32 %v2336, %v2700
    %v2718 = vadd.f32 %v2280, %v2644
    %v2719 = vadd.f32 %v2338, %v2702
    %v2720 = vmul.f32 %v2704, %v1348
    %v2721 = vmul.f32 %v2705, %v1349
    %v2722 = vmul.f32 %v2706, %v1348
    %v2723 = vmul.f32 %v2707, %v1349
    %v2724 = vmul.f32 %v2708, %v1348
    %v2725 = vmul.f32 %v2709, %v1349
    %v2726 = vmul.f32 %v2710, %v1348
    %v2727 = vmul.f32 %v2711, %v1349
    %v2728 = vmul.f32 %v2712, %v1348
    %v2729 = vmul.f32 %v2713, %v1349
    %v2730 = vmul.f32 %v2714, %v1348
    %v2731 = vmul.f32 %v2715, %v1349
    %v2732 = vmul.f32 %v2716, %v1348
    %v2733 = vmul.f32 %v2717, %v1349
    %v2734 = vmul.f32 %v2718, %v1348
    %v2735 = vmul.f32 %v2719, %v1349
    %s2736 = scalar_lea.vmem [#allocation6], 2
    %v2737 = vld [vmem:[%s2736] ss:$8 sm:$0x3]
    %v2739 = vperm.slane %v2737, 0
    %v2740 = vperm.slane %v2737, 1
    %v2743 = vadd.f32 %v2720, %v2739
    %v2744 = vadd.f32 %v2721, %v2740
    %v2745 = vadd.f32 %v2722, %v2739
    %v2746 = vadd.f32 %v2723, %v2740
    %v2747 = vadd.f32 %v2724, %v2739
    %v2748 = vadd.f32 %v2725, %v2740
    %v2749 = vadd.f32 %v2726, %v2739
    %v2750 = vadd.f32 %v2727, %v2740
    %v2751 = vadd.f32 %v2728, %v2739
    %v2752 = vadd.f32 %v2729, %v2740
    %v2753 = vadd.f32 %v2730, %v2739
    %v2754 = vadd.f32 %v2731, %v2740
    %v2755 = vadd.f32 %v2732, %v2739
    %v2756 = vadd.f32 %v2733, %v2740
    %v2757 = vadd.f32 %v2734, %v2739
    %v2758 = vadd.f32 %v2735, %v2740
    %v2759 = vmax.f32 %v2743, 0.0
    %v2760 = vmax.f32 %v2744, 0.0
    %v2761 = vmax.f32 %v2745, 0.0
    %v2762 = vmax.f32 %v2746, 0.0
    %v2763 = vmax.f32 %v2747, 0.0
    %v2764 = vmax.f32 %v2748, 0.0
    %v2765 = vmax.f32 %v2749, 0.0
    %v2766 = vmax.f32 %v2750, 0.0
    %v2767 = vmax.f32 %v2751, 0.0
    %v2768 = vmax.f32 %v2752, 0.0
    %v2769 = vmax.f32 %v2753, 0.0
    %v2770 = vmax.f32 %v2754, 0.0
    %v2771 = vmax.f32 %v2755, 0.0
    %v2772 = vmax.f32 %v2756, 0.0
    %v2773 = vmax.f32 %v2757, 0.0
    %v2774 = vmax.f32 %v2758, 0.0
    %v2775 = vld [vmem:[%s2] sm:$0xf]
    %v2776 = vld [vmem:[%s2 + $0x4] sm:$0xf]
    %v2777 = vld [vmem:[#allocation4 + $0x20] sm:$0xf]
    %v2778 = vld [vmem:[#allocation4 + $0x24] sm:$0xf]
    %v2779 = vld [vmem:[#allocation4 + $0x28] sm:$0xf]
    %v2780 = vld [vmem:[#allocation4 + $0x2c] sm:$0xf]
    %v2781 = vld [vmem:[#allocation4 + $0x30] sm:$0xf]
    %v2782 = vld [vmem:[#allocation4 + $0x34] sm:$0xf]
    %v2783 = vld [vmem:[#allocation4 + $0x38] sm:$0xf]
    %v2784 = vld [vmem:[#allocation4 + $0x3c] sm:$0xf]
    %v2785 = vld [vmem:[#allocation2 + $0x80] sm:$0xff]
    %v2786 = vld [vmem:[#allocation2 + $0x88] sm:$0xff]
    %v2787 = vld [vmem:[#allocation2 + $0x90] sm:$0xff]
    %v2788 = vld [vmem:[#allocation2 + $0x98] sm:$0xff]
    %v2789 = vld [vmem:[#allocation2 + $0xa0] sm:$0xff]
    %v2790 = vld [vmem:[#allocation2 + $0xa8] sm:$0xff]
    %v2791 = vld [vmem:[#allocation2 + $0xb0] sm:$0xff]
    %v2792 = vld [vmem:[#allocation2 + $0xb8] sm:$0xff]
    %v2795 = vunpack.c.l.b16 %v2775
    %v2796 = vunpack.c.l.b16 %v2776
    %v2797 = vpack.c.b16 %v2796, %v2795
    %v2806 = vunpack.c.l.b16 %v2785
    %v2807 = vunpack.c.h.b16 %v2785
    %v2808 = vunpack.c.l.b16 %v2786
    %v2809 = vunpack.c.h.b16 %v2786
    %v2810 = vunpack.c.l.b16 %v2787
    %v2811 = vunpack.c.h.b16 %v2787
    %v2812 = vunpack.c.l.b16 %v2788
    %v2813 = vunpack.c.h.b16 %v2788
    %v2814 = vunpack.c.l.b16 %v2789
    %v2815 = vunpack.c.h.b16 %v2789
    %v2816 = vunpack.c.l.b16 %v2790
    %v2817 = vunpack.c.h.b16 %v2790
    %v2818 = vunpack.c.l.b16 %v2791
    %v2819 = vunpack.c.h.b16 %v2791
    %v2820 = vunpack.c.l.b16 %v2792
    %v2821 = vunpack.c.h.b16 %v2792
    %v2822 = vpack.c.b16 %v2808, %v2806
    %v2823 = vpack.c.b16 %v2809, %v2807
    %v2824 = vpack.c.b16 %v2812, %v2810
    %v2825 = vpack.c.b16 %v2813, %v2811
    %v2826 = vpack.c.b16 %v2816, %v2814
    %v2827 = vpack.c.b16 %v2817, %v2815
    %v2828 = vpack.c.b16 %v2820, %v2818
    %v2829 = vpack.c.b16 %v2821, %v2819
    %vm2838 = vcmask 523264
    %v2840 = vsel %vm2838, %v2797, 0
    %2842 = vmatpush.bf16.msra.mxu0 0
    %2843 = vmatpush.bf16.msra.mxu0 0
    %2844 = vmatpush.bf16.msra.mxu0 0
    %2845 = vmatpush.bf16.msra.mxu0 0
    %2846 = vmatpush.bf16.msra.mxu0 %v2828
    %2847 = vmatpush.bf16.msra.mxu0 %v2826
    %2848 = vmatpush.bf16.msra.mxu0 %v2824
    %2849 = vmatpush.bf16.msra.mxu0 %v2822
    %2850 = vmatmul.bf16.gmra.mxu0 %v2840
    %v2851 = vpop.f32.mrf.mxu0
    %v2852 = vadd.f32 0.0, %v2851
    %v2853 = vpop.f32.mrf.mxu0
    %v2854 = vadd.f32 0.0, %v2853
    %2855 = vdwg.mxu0
    %2856 = vmatpush.bf16.msra.mxu0 0
    %2857 = vmatpush.bf16.msra.mxu0 0
    %2858 = vmatpush.bf16.msra.mxu0 0
    %2859 = vmatpush.bf16.msra.mxu0 0
    %2860 = vmatpush.bf16.msra.mxu0 %v2829
    %2861 = vmatpush.bf16.msra.mxu0 %v2827
    %2862 = vmatpush.bf16.msra.mxu0 %v2825
    %2863 = vmatpush.bf16.msra.mxu0 %v2823
    %2864 = vmatmul.bf16.gmra.mxu0 %v2840
    %v2865 = vpop.f32.mrf.mxu0
    %v2866 = vadd.f32 0.0, %v2865
    %v2867 = vpop.f32.mrf.mxu0
    %v2868 = vadd.f32 0.0, %v2867
    %2869 = vdwg.mxu0
    %v2870 = vpack.c.bf16 %v2854, %v2852
    %v2871 = vpack.c.bf16 %v2868, %v2866
    %v2880 = vunpack.c.l.b16 %v2777
    %v2881 = vunpack.c.l.b16 %v2778
    %v2882 = vunpack.c.l.b16 %v2779
    %v2883 = vunpack.c.l.b16 %v2780
    %v2884 = vunpack.c.l.b16 %v2781
    %v2885 = vunpack.c.l.b16 %v2782
    %v2886 = vunpack.c.l.b16 %v2783
    %v2887 = vunpack.c.l.b16 %v2784
    %v2888 = vpack.c.b16 %v2881, %v2880
    %v2889 = vpack.c.b16 %v2883, %v2882
    %v2890 = vpack.c.b16 %v2885, %v2884
    %v2891 = vpack.c.b16 %v2887, %v2886
    %vm2892 = vcmask 130048
    %v2894 = vsel %vm2892, %v2888, 0
    %v2897 = vsel %vm2892, %v2889, 0
    %v2900 = vsel %vm2892, %v2890, 0
    %v2903 = vsel %vm2892, %v2891, 0
    %2905 = vmatpush.bf16.msra.mxu0 0
    %2906 = vmatpush.bf16.msra.mxu0 0
    %2907 = vmatpush.bf16.msra.mxu0 0
    %2908 = vmatpush.bf16.msra.mxu0 0
    %2909 = vmatpush.bf16.msra.mxu0 0
    %2910 = vmatpush.bf16.msra.mxu0 0
    %2911 = vmatpush.bf16.msra.mxu0 0
    %2912 = vmatpush.bf16.msra.mxu0 %v2870
    %2913 = vmatmul.bf16.gmra.mxu0 %v2894
    %v2914 = vpop.f32.mrf.mxu0
    %v2915 = vadd.f32 0.0, %v2914
    %v2916 = vpop.f32.mrf.mxu0
    %v2917 = vadd.f32 0.0, %v2916
    %2918 = vmatmul.bf16.gmra.mxu0 %v2897
    %v2919 = vpop.f32.mrf.mxu0
    %v2920 = vadd.f32 0.0, %v2919
    %v2921 = vpop.f32.mrf.mxu0
    %v2922 = vadd.f32 0.0, %v2921
    %2923 = vmatmul.bf16.gmra.mxu0 %v2900
    %v2924 = vpop.f32.mrf.mxu0
    %v2925 = vadd.f32 0.0, %v2924
    %v2926 = vpop.f32.mrf.mxu0
    %v2927 = vadd.f32 0.0, %v2926
    %2928 = vmatmul.bf16.gmra.mxu0 %v2903
    %v2929 = vpop.f32.mrf.mxu0
    %v2930 = vadd.f32 0.0, %v2929
    %v2931 = vpop.f32.mrf.mxu0
    %v2932 = vadd.f32 0.0, %v2931
    %2933 = vdwg.mxu0
    %2934 = vmatpush.bf16.msra.mxu0 0
    %2935 = vmatpush.bf16.msra.mxu0 0
    %2936 = vmatpush.bf16.msra.mxu0 0
    %2937 = vmatpush.bf16.msra.mxu0 0
    %2938 = vmatpush.bf16.msra.mxu0 0
    %2939 = vmatpush.bf16.msra.mxu0 0
    %2940 = vmatpush.bf16.msra.mxu0 0
    %2941 = vmatpush.bf16.msra.mxu0 %v2871
    %2942 = vmatmul.bf16.gmra.mxu0 %v2894
    %v2943 = vpop.f32.mrf.mxu0
    %v2944 = vadd.f32 0.0, %v2943
    %v2945 = vpop.f32.mrf.mxu0
    %v2946 = vadd.f32 0.0, %v2945
    %2947 = vmatmul.bf16.gmra.mxu0 %v2897
    %v2948 = vpop.f32.mrf.mxu0
    %v2949 = vadd.f32 0.0, %v2948
    %v2950 = vpop.f32.mrf.mxu0
    %v2951 = vadd.f32 0.0, %v2950
    %2952 = vmatmul.bf16.gmra.mxu0 %v2900
    %v2953 = vpop.f32.mrf.mxu0
    %v2954 = vadd.f32 0.0, %v2953
    %v2955 = vpop.f32.mrf.mxu0
    %v2956 = vadd.f32 0.0, %v2955
    %2957 = vmatmul.bf16.gmra.mxu0 %v2903
    %v2958 = vpop.f32.mrf.mxu0
    %v2959 = vadd.f32 0.0, %v2958
    %v2960 = vpop.f32.mrf.mxu0
    %v2961 = vadd.f32 0.0, %v2960
    %2962 = vdwg.mxu0
    %v2963 = vpack.c.bf16 %v2917, %v2915
    %v2964 = vpack.c.bf16 %v2946, %v2944
    %v2965 = vpack.c.bf16 %v2922, %v2920
    %v2966 = vpack.c.bf16 %v2951, %v2949
    %v2967 = vpack.c.bf16 %v2927, %v2925
    %v2968 = vpack.c.bf16 %v2956, %v2954
    %v2969 = vpack.c.bf16 %v2932, %v2930
    %v2970 = vpack.c.bf16 %v2961, %v2959
    %v2971 = vld [vmem:[#allocation2 + $0x820] sm:$0xff]
    %v2972 = vld [vmem:[#allocation2 + $0x828] sm:$0xff]
    %v2973 = vld [vmem:[#allocation2 + $0x830] sm:$0xff]
    %v2974 = vld [vmem:[#allocation2 + $0x838] sm:$0xff]
    %v2975 = vld [vmem:[#allocation2 + $0x840] sm:$0xff]
    %v2976 = vld [vmem:[#allocation2 + $0x848] sm:$0xff]
    %v2977 = vld [vmem:[#allocation2 + $0x850] sm:$0xff]
    %v2978 = vld [vmem:[#allocation2 + $0x858] sm:$0xff]
    %v2979 = vld [vmem:[#allocation2 + $0x860] sm:$0xff]
    %v2980 = vld [vmem:[#allocation2 + $0x868] sm:$0xff]
    %v2981 = vld [vmem:[#allocation2 + $0x870] sm:$0xff]
    %v2982 = vld [vmem:[#allocation2 + $0x878] sm:$0xff]
    %v2983 = vld [vmem:[#allocation2 + $0x880] sm:$0xff]
    %v2984 = vld [vmem:[#allocation2 + $0x888] sm:$0xff]
    %v2985 = vld [vmem:[#allocation2 + $0x890] sm:$0xff]
    %v2986 = vld [vmem:[#allocation2 + $0x898] sm:$0xff]
    %v2987 = vld [vmem:[#allocation2 + $0x8a0] sm:$0xff]
    %v2988 = vld [vmem:[#allocation2 + $0x8a8] sm:$0xff]
    %v2989 = vld [vmem:[#allocation2 + $0x8b0] sm:$0xff]
    %v2990 = vld [vmem:[#allocation2 + $0x8b8] sm:$0xff]
    %v2991 = vld [vmem:[#allocation2 + $0x8c0] sm:$0xff]
    %v2992 = vld [vmem:[#allocation2 + $0x8c8] sm:$0xff]
    %v2993 = vld [vmem:[#allocation2 + $0x8d0] sm:$0xff]
    %v2994 = vld [vmem:[#allocation2 + $0x8d8] sm:$0xff]
    %v2995 = vld [vmem:[#allocation2 + $0x8e0] sm:$0xff]
    %v2996 = vld [vmem:[#allocation2 + $0x8e8] sm:$0xff]
    %v2997 = vld [vmem:[#allocation2 + $0x8f0] sm:$0xff]
    %v2998 = vld [vmem:[#allocation2 + $0x8f8] sm:$0xff]
    %v2999 = vld [vmem:[#allocation2 + $0x900] sm:$0xff]
    %v3000 = vld [vmem:[#allocation2 + $0x908] sm:$0xff]
    %v3001 = vld [vmem:[#allocation2 + $0x910] sm:$0xff]
    %v3002 = vld [vmem:[#allocation2 + $0x918] sm:$0xff]
    %v3003 = vrot.slane %v2915, 7
    %v3004 = vrot.slane %v2944, 7
    %v3005 = vrot.slane %v2917, 7
    %v3006 = vrot.slane %v2946, 7
    %v3007 = vrot.slane %v2920, 7
    %v3008 = vrot.slane %v2949, 7
    %v3009 = vrot.slane %v2922, 7
    %v3010 = vrot.slane %v2951, 7
    %v3011 = vrot.slane %v2925, 7
    %v3012 = vrot.slane %v2954, 7
    %v3013 = vrot.slane %v2927, 7
    %v3014 = vrot.slane %v2956, 7
    %v3015 = vrot.slane %v2930, 7
    %v3016 = vrot.slane %v2959, 7
    %v3017 = vrot.slane %v2932, 7
    %v3018 = vrot.slane %v2961, 7
    %v3019 = vsel %vm269, %v3015, %v3017
    %v3020 = vsel %vm269, %v3016, %v3018
    %v3021 = vsel %vm269, %v3013, %v3015
    %v3022 = vsel %vm269, %v3014, %v3016
    %v3023 = vsel %vm269, %v3011, %v3013
    %v3024 = vsel %vm269, %v3012, %v3014
    %v3025 = vsel %vm269, %v3009, %v3011
    %v3026 = vsel %vm269, %v3010, %v3012
    %v3027 = vsel %vm269, %v3007, %v3009
    %v3028 = vsel %vm269, %v3008, %v3010
    %v3029 = vsel %vm269, %v3005, %v3007
    %v3030 = vsel %vm269, %v3006, %v3008
    %v3031 = vsel %vm269, %v3003, %v3005
    %v3032 = vsel %vm269, %v3004, %v3006
    %v3033 = vsel %vm269, %v3017, %v3003
    %v3034 = vsel %vm269, %v3018, %v3004
    %v3035 = vsel %vm294, %v3033, 0.0
    %v3036 = vsel %vm294, %v3034, 0.0
    %v3037 = vsel %vm295, %v3031, 0.0
    %v3038 = vsel %vm295, %v3032, 0.0
    %v3039 = vsel %vm296, %v3029, 0.0
    %v3040 = vsel %vm296, %v3030, 0.0
    %v3041 = vsel %vm297, %v3027, 0.0
    %v3042 = vsel %vm297, %v3028, 0.0
    %v3043 = vsel %vm298, %v3025, 0.0
    %v3044 = vsel %vm298, %v3026, 0.0
    %v3045 = vsel %vm299, %v3023, 0.0
    %v3046 = vsel %vm299, %v3024, 0.0
    %v3047 = vsel %vm300, %v3021, 0.0
    %v3048 = vsel %vm300, %v3022, 0.0
    %v3049 = vsel %vm301, %v3019, 0.0
    %v3050 = vsel %vm301, %v3020, 0.0
    %v3051 = vpack.c.bf16 %v3037, %v3035
    %v3052 = vpack.c.bf16 %v3038, %v3036
    %v3053 = vpack.c.bf16 %v3041, %v3039
    %v3054 = vpack.c.bf16 %v3042, %v3040
    %v3055 = vpack.c.bf16 %v3045, %v3043
    %v3056 = vpack.c.bf16 %v3046, %v3044
    %v3057 = vpack.c.bf16 %v3049, %v3047
    %v3058 = vpack.c.bf16 %v3050, %v3048
    %v3059 = vld [vmem:[#allocation2 + $0x720] sm:$0xff]
    %v3060 = vld [vmem:[#allocation2 + $0x728] sm:$0xff]
    %v3061 = vld [vmem:[#allocation2 + $0x730] sm:$0xff]
    %v3062 = vld [vmem:[#allocation2 + $0x738] sm:$0xff]
    %v3063 = vld [vmem:[#allocation2 + $0x740] sm:$0xff]
    %v3064 = vld [vmem:[#allocation2 + $0x748] sm:$0xff]
    %v3065 = vld [vmem:[#allocation2 + $0x750] sm:$0xff]
    %v3066 = vld [vmem:[#allocation2 + $0x758] sm:$0xff]
    %v3067 = vld [vmem:[#allocation2 + $0x760] sm:$0xff]
    %v3068 = vld [vmem:[#allocation2 + $0x768] sm:$0xff]
    %v3069 = vld [vmem:[#allocation2 + $0x770] sm:$0xff]
    %v3070 = vld [vmem:[#allocation2 + $0x778] sm:$0xff]
    %v3071 = vld [vmem:[#allocation2 + $0x780] sm:$0xff]
    %v3072 = vld [vmem:[#allocation2 + $0x788] sm:$0xff]
    %v3073 = vld [vmem:[#allocation2 + $0x790] sm:$0xff]
    %v3074 = vld [vmem:[#allocation2 + $0x798] sm:$0xff]
    %v3075 = vld [vmem:[#allocation2 + $0x7a0] sm:$0xff]
    %v3076 = vld [vmem:[#allocation2 + $0x7a8] sm:$0xff]
    %v3077 = vld [vmem:[#allocation2 + $0x7b0] sm:$0xff]
    %v3078 = vld [vmem:[#allocation2 + $0x7b8] sm:$0xff]
    %v3079 = vld [vmem:[#allocation2 + $0x7c0] sm:$0xff]
    %v3080 = vld [vmem:[#allocation2 + $0x7c8] sm:$0xff]
    %v3081 = vld [vmem:[#allocation2 + $0x7d0] sm:$0xff]
    %v3082 = vld [vmem:[#allocation2 + $0x7d8] sm:$0xff]
    %v3083 = vld [vmem:[#allocation2 + $0x7e0] sm:$0xff]
    %v3084 = vld [vmem:[#allocation2 + $0x7e8] sm:$0xff]
    %v3085 = vld [vmem:[#allocation2 + $0x7f0] sm:$0xff]
    %v3086 = vld [vmem:[#allocation2 + $0x7f8] sm:$0xff]
    %v3087 = vld [vmem:[#allocation2 + $0x800] sm:$0xff]
    %v3088 = vld [vmem:[#allocation2 + $0x808] sm:$0xff]
    %v3089 = vld [vmem:[#allocation2 + $0x810] sm:$0xff]
    %v3090 = vld [vmem:[#allocation2 + $0x818] sm:$0xff]
    %v3123 = vunpack.c.l.b16 %v3059
    %v3124 = vunpack.c.h.b16 %v3059
    %v3125 = vunpack.c.l.b16 %v3060
    %v3126 = vunpack.c.h.b16 %v3060
    %v3127 = vunpack.c.l.b16 %v3061
    %v3128 = vunpack.c.h.b16 %v3061
    %v3129 = vunpack.c.l.b16 %v3062
    %v3130 = vunpack.c.h.b16 %v3062
    %v3131 = vunpack.c.l.b16 %v3063
    %v3132 = vunpack.c.h.b16 %v3063
    %v3133 = vunpack.c.l.b16 %v3064
    %v3134 = vunpack.c.h.b16 %v3064
    %v3135 = vunpack.c.l.b16 %v3065
    %v3136 = vunpack.c.h.b16 %v3065
    %v3137 = vunpack.c.l.b16 %v3066
    %v3138 = vunpack.c.h.b16 %v3066
    %v3139 = vunpack.c.l.b16 %v3067
    %v3140 = vunpack.c.h.b16 %v3067
    %v3141 = vunpack.c.l.b16 %v3068
    %v3142 = vunpack.c.h.b16 %v3068
    %v3143 = vunpack.c.l.b16 %v3069
    %v3144 = vunpack.c.h.b16 %v3069
    %v3145 = vunpack.c.l.b16 %v3070
    %v3146 = vunpack.c.h.b16 %v3070
    %v3147 = vunpack.c.l.b16 %v3071
    %v3148 = vunpack.c.h.b16 %v3071
    %v3149 = vunpack.c.l.b16 %v3072
    %v3150 = vunpack.c.h.b16 %v3072
    %v3151 = vunpack.c.l.b16 %v3073
    %v3152 = vunpack.c.h.b16 %v3073
    %v3153 = vunpack.c.l.b16 %v3074
    %v3154 = vunpack.c.h.b16 %v3074
    %v3155 = vunpack.c.l.b16 %v3075
    %v3156 = vunpack.c.h.b16 %v3075
    %v3157 = vunpack.c.l.b16 %v3076
    %v3158 = vunpack.c.h.b16 %v3076
    %v3159 = vunpack.c.l.b16 %v3077
    %v3160 = vunpack.c.h.b16 %v3077
    %v3161 = vunpack.c.l.b16 %v3078
    %v3162 = vunpack.c.h.b16 %v3078
    %v3163 = vunpack.c.l.b16 %v3079
    %v3164 = vunpack.c.h.b16 %v3079
    %v3165 = vunpack.c.l.b16 %v3080
    %v3166 = vunpack.c.h.b16 %v3080
    %v3167 = vunpack.c.l.b16 %v3081
    %v3168 = vunpack.c.h.b16 %v3081
    %v3169 = vunpack.c.l.b16 %v3082
    %v3170 = vunpack.c.h.b16 %v3082
    %v3171 = vunpack.c.l.b16 %v3083
    %v3172 = vunpack.c.h.b16 %v3083
    %v3173 = vunpack.c.l.b16 %v3084
    %v3174 = vunpack.c.h.b16 %v3084
    %v3175 = vunpack.c.l.b16 %v3085
    %v3176 = vunpack.c.h.b16 %v3085
    %v3177 = vunpack.c.l.b16 %v3086
    %v3178 = vunpack.c.h.b16 %v3086
    %v3179 = vunpack.c.l.b16 %v3087
    %v3180 = vunpack.c.h.b16 %v3087
    %v3181 = vunpack.c.l.b16 %v3088
    %v3182 = vunpack.c.h.b16 %v3088
    %v3183 = vunpack.c.l.b16 %v3089
    %v3184 = vunpack.c.h.b16 %v3089
    %v3185 = vunpack.c.l.b16 %v3090
    %v3186 = vunpack.c.h.b16 %v3090
    %v3187 = vpack.c.b16 %v3125, %v3123
    %v3188 = vpack.c.b16 %v3126, %v3124
    %v3189 = vpack.c.b16 %v3129, %v3127
    %v3190 = vpack.c.b16 %v3130, %v3128
    %v3191 = vpack.c.b16 %v3133, %v3131
    %v3192 = vpack.c.b16 %v3134, %v3132
    %v3193 = vpack.c.b16 %v3137, %v3135
    %v3194 = vpack.c.b16 %v3138, %v3136
    %v3195 = vpack.c.b16 %v3141, %v3139
    %v3196 = vpack.c.b16 %v3142, %v3140
    %v3197 = vpack.c.b16 %v3145, %v3143
    %v3198 = vpack.c.b16 %v3146, %v3144
    %v3199 = vpack.c.b16 %v3149, %v3147
    %v3200 = vpack.c.b16 %v3150, %v3148
    %v3201 = vpack.c.b16 %v3153, %v3151
    %v3202 = vpack.c.b16 %v3154, %v3152
    %v3203 = vpack.c.b16 %v3157, %v3155
    %v3204 = vpack.c.b16 %v3158, %v3156
    %v3205 = vpack.c.b16 %v3161, %v3159
    %v3206 = vpack.c.b16 %v3162, %v3160
    %v3207 = vpack.c.b16 %v3165, %v3163
    %v3208 = vpack.c.b16 %v3166, %v3164
    %v3209 = vpack.c.b16 %v3169, %v3167
    %v3210 = vpack.c.b16 %v3170, %v3168
    %v3211 = vpack.c.b16 %v3173, %v3171
    %v3212 = vpack.c.b16 %v3174, %v3172
    %v3213 = vpack.c.b16 %v3177, %v3175
    %v3214 = vpack.c.b16 %v3178, %v3176
    %v3215 = vpack.c.b16 %v3181, %v3179
    %v3216 = vpack.c.b16 %v3182, %v3180
    %v3217 = vpack.c.b16 %v3185, %v3183
    %v3218 = vpack.c.b16 %v3186, %v3184
    %3251 = vmatpush.bf16.msra.mxu0 %v3201
    %3252 = vmatpush.bf16.msra.mxu0 %v3199
    %3253 = vmatpush.bf16.msra.mxu0 %v3197
    %3254 = vmatpush.bf16.msra.mxu0 %v3195
    %3255 = vmatpush.bf16.msra.mxu0 %v3193
    %3256 = vmatpush.bf16.msra.mxu0 %v3191
    %3257 = vmatpush.bf16.msra.mxu0 %v3189
    %3258 = vmatpush.bf16.msra.mxu0 %v3187
    %3259 = vmatmul.bf16.gmra.mxu0 %v3051
    %v3260 = vpop.f32.mrf.mxu0
    %v3261 = vadd.f32 0.0, %v3260
    %v3262 = vpop.f32.mrf.mxu0
    %v3263 = vadd.f32 0.0, %v3262
    %3264 = vmatmul.bf16.gmra.mxu0 %v3053
    %v3265 = vpop.f32.mrf.mxu0
    %v3266 = vadd.f32 0.0, %v3265
    %v3267 = vpop.f32.mrf.mxu0
    %v3268 = vadd.f32 0.0, %v3267
    %3269 = vmatmul.bf16.gmra.mxu0 %v3055
    %v3270 = vpop.f32.mrf.mxu0
    %v3271 = vadd.f32 0.0, %v3270
    %v3272 = vpop.f32.mrf.mxu0
    %v3273 = vadd.f32 0.0, %v3272
    %3274 = vmatmul.bf16.gmra.mxu0 %v3057
    %v3275 = vpop.f32.mrf.mxu0
    %v3276 = vadd.f32 0.0, %v3275
    %v3277 = vpop.f32.mrf.mxu0
    %v3278 = vadd.f32 0.0, %v3277
    %3279 = vdwg.mxu0
    %3280 = vmatpush.bf16.msra.mxu0 %v3217
    %3281 = vmatpush.bf16.msra.mxu0 %v3215
    %3282 = vmatpush.bf16.msra.mxu0 %v3213
    %3283 = vmatpush.bf16.msra.mxu0 %v3211
    %3284 = vmatpush.bf16.msra.mxu0 %v3209
    %3285 = vmatpush.bf16.msra.mxu0 %v3207
    %3286 = vmatpush.bf16.msra.mxu0 %v3205
    %3287 = vmatpush.bf16.msra.mxu0 %v3203
    %3288 = vmatmul.bf16.gmra.mxu0 %v3052
    %v3289 = vpop.f32.mrf.mxu0
    %v3290 = vadd.f32 %v3261, %v3289
    %v3291 = vpop.f32.mrf.mxu0
    %v3292 = vadd.f32 %v3263, %v3291
    %3293 = vmatmul.bf16.gmra.mxu0 %v3054
    %v3294 = vpop.f32.mrf.mxu0
    %v3295 = vadd.f32 %v3266, %v3294
    %v3296 = vpop.f32.mrf.mxu0
    %v3297 = vadd.f32 %v3268, %v3296
    %3298 = vmatmul.bf16.gmra.mxu0 %v3056
    %v3299 = vpop.f32.mrf.mxu0
    %v3300 = vadd.f32 %v3271, %v3299
    %v3301 = vpop.f32.mrf.mxu0
    %v3302 = vadd.f32 %v3273, %v3301
    %3303 = vmatmul.bf16.gmra.mxu0 %v3058
    %v3304 = vpop.f32.mrf.mxu0
    %v3305 = vadd.f32 %v3276, %v3304
    %v3306 = vpop.f32.mrf.mxu0
    %v3307 = vadd.f32 %v3278, %v3306
    %3308 = vdwg.mxu0
    %3309 = vmatpush.bf16.msra.mxu0 %v3202
    %3310 = vmatpush.bf16.msra.mxu0 %v3200
    %3311 = vmatpush.bf16.msra.mxu0 %v3198
    %3312 = vmatpush.bf16.msra.mxu0 %v3196
    %3313 = vmatpush.bf16.msra.mxu0 %v3194
    %3314 = vmatpush.bf16.msra.mxu0 %v3192
    %3315 = vmatpush.bf16.msra.mxu0 %v3190
    %3316 = vmatpush.bf16.msra.mxu0 %v3188
    %3317 = vmatmul.bf16.gmra.mxu0 %v3051
    %v3318 = vpop.f32.mrf.mxu0
    %v3319 = vadd.f32 0.0, %v3318
    %v3320 = vpop.f32.mrf.mxu0
    %v3321 = vadd.f32 0.0, %v3320
    %3322 = vmatmul.bf16.gmra.mxu0 %v3053
    %v3323 = vpop.f32.mrf.mxu0
    %v3324 = vadd.f32 0.0, %v3323
    %v3325 = vpop.f32.mrf.mxu0
    %v3326 = vadd.f32 0.0, %v3325
    %3327 = vmatmul.bf16.gmra.mxu0 %v3055
    %v3328 = vpop.f32.mrf.mxu0
    %v3329 = vadd.f32 0.0, %v3328
    %v3330 = vpop.f32.mrf.mxu0
    %v3331 = vadd.f32 0.0, %v3330
    %3332 = vmatmul.bf16.gmra.mxu0 %v3057
    %v3333 = vpop.f32.mrf.mxu0
    %v3334 = vadd.f32 0.0, %v3333
    %v3335 = vpop.f32.mrf.mxu0
    %v3336 = vadd.f32 0.0, %v3335
    %3337 = vdwg.mxu0
    %3338 = vmatpush.bf16.msra.mxu0 %v3218
    %3339 = vmatpush.bf16.msra.mxu0 %v3216
    %3340 = vmatpush.bf16.msra.mxu0 %v3214
    %3341 = vmatpush.bf16.msra.mxu0 %v3212
    %3342 = vmatpush.bf16.msra.mxu0 %v3210
    %3343 = vmatpush.bf16.msra.mxu0 %v3208
    %3344 = vmatpush.bf16.msra.mxu0 %v3206
    %3345 = vmatpush.bf16.msra.mxu0 %v3204
    %3346 = vmatmul.bf16.gmra.mxu0 %v3052
    %v3347 = vpop.f32.mrf.mxu0
    %v3348 = vadd.f32 %v3319, %v3347
    %v3349 = vpop.f32.mrf.mxu0
    %v3350 = vadd.f32 %v3321, %v3349
    %3351 = vmatmul.bf16.gmra.mxu0 %v3054
    %v3352 = vpop.f32.mrf.mxu0
    %v3353 = vadd.f32 %v3324, %v3352
    %v3354 = vpop.f32.mrf.mxu0
    %v3355 = vadd.f32 %v3326, %v3354
    %3356 = vmatmul.bf16.gmra.mxu0 %v3056
    %v3357 = vpop.f32.mrf.mxu0
    %v3358 = vadd.f32 %v3329, %v3357
    %v3359 = vpop.f32.mrf.mxu0
    %v3360 = vadd.f32 %v3331, %v3359
    %3361 = vmatmul.bf16.gmra.mxu0 %v3058
    %v3362 = vpop.f32.mrf.mxu0
    %v3363 = vadd.f32 %v3334, %v3362
    %v3364 = vpop.f32.mrf.mxu0
    %v3365 = vadd.f32 %v3336, %v3364
    %3366 = vdwg.mxu0
    %v3399 = vunpack.c.l.b16 %v2971
    %v3400 = vunpack.c.h.b16 %v2971
    %v3401 = vunpack.c.l.b16 %v2972
    %v3402 = vunpack.c.h.b16 %v2972
    %v3403 = vunpack.c.l.b16 %v2973
    %v3404 = vunpack.c.h.b16 %v2973
    %v3405 = vunpack.c.l.b16 %v2974
    %v3406 = vunpack.c.h.b16 %v2974
    %v3407 = vunpack.c.l.b16 %v2975
    %v3408 = vunpack.c.h.b16 %v2975
    %v3409 = vunpack.c.l.b16 %v2976
    %v3410 = vunpack.c.h.b16 %v2976
    %v3411 = vunpack.c.l.b16 %v2977
    %v3412 = vunpack.c.h.b16 %v2977
    %v3413 = vunpack.c.l.b16 %v2978
    %v3414 = vunpack.c.h.b16 %v2978
    %v3415 = vunpack.c.l.b16 %v2979
    %v3416 = vunpack.c.h.b16 %v2979
    %v3417 = vunpack.c.l.b16 %v2980
    %v3418 = vunpack.c.h.b16 %v2980
    %v3419 = vunpack.c.l.b16 %v2981
    %v3420 = vunpack.c.h.b16 %v2981
    %v3421 = vunpack.c.l.b16 %v2982
    %v3422 = vunpack.c.h.b16 %v2982
    %v3423 = vunpack.c.l.b16 %v2983
    %v3424 = vunpack.c.h.b16 %v2983
    %v3425 = vunpack.c.l.b16 %v2984
    %v3426 = vunpack.c.h.b16 %v2984
    %v3427 = vunpack.c.l.b16 %v2985
    %v3428 = vunpack.c.h.b16 %v2985
    %v3429 = vunpack.c.l.b16 %v2986
    %v3430 = vunpack.c.h.b16 %v2986
    %v3431 = vunpack.c.l.b16 %v2987
    %v3432 = vunpack.c.h.b16 %v2987
    %v3433 = vunpack.c.l.b16 %v2988
    %v3434 = vunpack.c.h.b16 %v2988
    %v3435 = vunpack.c.l.b16 %v2989
    %v3436 = vunpack.c.h.b16 %v2989
    %v3437 = vunpack.c.l.b16 %v2990
    %v3438 = vunpack.c.h.b16 %v2990
    %v3439 = vunpack.c.l.b16 %v2991
    %v3440 = vunpack.c.h.b16 %v2991
    %v3441 = vunpack.c.l.b16 %v2992
    %v3442 = vunpack.c.h.b16 %v2992
    %v3443 = vunpack.c.l.b16 %v2993
    %v3444 = vunpack.c.h.b16 %v2993
    %v3445 = vunpack.c.l.b16 %v2994
    %v3446 = vunpack.c.h.b16 %v2994
    %v3447 = vunpack.c.l.b16 %v2995
    %v3448 = vunpack.c.h.b16 %v2995
    %v3449 = vunpack.c.l.b16 %v2996
    %v3450 = vunpack.c.h.b16 %v2996
    %v3451 = vunpack.c.l.b16 %v2997
    %v3452 = vunpack.c.h.b16 %v2997
    %v3453 = vunpack.c.l.b16 %v2998
    %v3454 = vunpack.c.h.b16 %v2998
    %v3455 = vunpack.c.l.b16 %v2999
    %v3456 = vunpack.c.h.b16 %v2999
    %v3457 = vunpack.c.l.b16 %v3000
    %v3458 = vunpack.c.h.b16 %v3000
    %v3459 = vunpack.c.l.b16 %v3001
    %v3460 = vunpack.c.h.b16 %v3001
    %v3461 = vunpack.c.l.b16 %v3002
    %v3462 = vunpack.c.h.b16 %v3002
    %v3463 = vpack.c.b16 %v3401, %v3399
    %v3464 = vpack.c.b16 %v3402, %v3400
    %v3465 = vpack.c.b16 %v3405, %v3403
    %v3466 = vpack.c.b16 %v3406, %v3404
    %v3467 = vpack.c.b16 %v3409, %v3407
    %v3468 = vpack.c.b16 %v3410, %v3408
    %v3469 = vpack.c.b16 %v3413, %v3411
    %v3470 = vpack.c.b16 %v3414, %v3412
    %v3471 = vpack.c.b16 %v3417, %v3415
    %v3472 = vpack.c.b16 %v3418, %v3416
    %v3473 = vpack.c.b16 %v3421, %v3419
    %v3474 = vpack.c.b16 %v3422, %v3420
    %v3475 = vpack.c.b16 %v3425, %v3423
    %v3476 = vpack.c.b16 %v3426, %v3424
    %v3477 = vpack.c.b16 %v3429, %v3427
    %v3478 = vpack.c.b16 %v3430, %v3428
    %v3479 = vpack.c.b16 %v3433, %v3431
    %v3480 = vpack.c.b16 %v3434, %v3432
    %v3481 = vpack.c.b16 %v3437, %v3435
    %v3482 = vpack.c.b16 %v3438, %v3436
    %v3483 = vpack.c.b16 %v3441, %v3439
    %v3484 = vpack.c.b16 %v3442, %v3440
    %v3485 = vpack.c.b16 %v3445, %v3443
    %v3486 = vpack.c.b16 %v3446, %v3444
    %v3487 = vpack.c.b16 %v3449, %v3447
    %v3488 = vpack.c.b16 %v3450, %v3448
    %v3489 = vpack.c.b16 %v3453, %v3451
    %v3490 = vpack.c.b16 %v3454, %v3452
    %v3491 = vpack.c.b16 %v3457, %v3455
    %v3492 = vpack.c.b16 %v3458, %v3456
    %v3493 = vpack.c.b16 %v3461, %v3459
    %v3494 = vpack.c.b16 %v3462, %v3460
    %3527 = vmatpush.bf16.msra.mxu0 %v3477
    %3528 = vmatpush.bf16.msra.mxu0 %v3475
    %3529 = vmatpush.bf16.msra.mxu0 %v3473
    %3530 = vmatpush.bf16.msra.mxu0 %v3471
    %3531 = vmatpush.bf16.msra.mxu0 %v3469
    %3532 = vmatpush.bf16.msra.mxu0 %v3467
    %3533 = vmatpush.bf16.msra.mxu0 %v3465
    %3534 = vmatpush.bf16.msra.mxu0 %v3463
    %3535 = vmatmul.bf16.gmra.mxu0 %v2963
    %v3536 = vpop.f32.mrf.mxu0
    %v3537 = vadd.f32 %v3290, %v3536
    %v3538 = vpop.f32.mrf.mxu0
    %v3539 = vadd.f32 %v3292, %v3538
    %3540 = vmatmul.bf16.gmra.mxu0 %v2965
    %v3541 = vpop.f32.mrf.mxu0
    %v3542 = vadd.f32 %v3295, %v3541
    %v3543 = vpop.f32.mrf.mxu0
    %v3544 = vadd.f32 %v3297, %v3543
    %3545 = vmatmul.bf16.gmra.mxu0 %v2967
    %v3546 = vpop.f32.mrf.mxu0
    %v3547 = vadd.f32 %v3300, %v3546
    %v3548 = vpop.f32.mrf.mxu0
    %v3549 = vadd.f32 %v3302, %v3548
    %3550 = vmatmul.bf16.gmra.mxu0 %v2969
    %v3551 = vpop.f32.mrf.mxu0
    %v3552 = vadd.f32 %v3305, %v3551
    %v3553 = vpop.f32.mrf.mxu0
    %v3554 = vadd.f32 %v3307, %v3553
    %3555 = vdwg.mxu0
    %3556 = vmatpush.bf16.msra.mxu0 %v3493
    %3557 = vmatpush.bf16.msra.mxu0 %v3491
    %3558 = vmatpush.bf16.msra.mxu0 %v3489
    %3559 = vmatpush.bf16.msra.mxu0 %v3487
    %3560 = vmatpush.bf16.msra.mxu0 %v3485
    %3561 = vmatpush.bf16.msra.mxu0 %v3483
    %3562 = vmatpush.bf16.msra.mxu0 %v3481
    %3563 = vmatpush.bf16.msra.mxu0 %v3479
    %3564 = vmatmul.bf16.gmra.mxu0 %v2964
    %v3565 = vpop.f32.mrf.mxu0
    %v3566 = vadd.f32 %v3537, %v3565
    %v3567 = vpop.f32.mrf.mxu0
    %v3568 = vadd.f32 %v3539, %v3567
    %3569 = vmatmul.bf16.gmra.mxu0 %v2966
    %v3570 = vpop.f32.mrf.mxu0
    %v3571 = vadd.f32 %v3542, %v3570
    %v3572 = vpop.f32.mrf.mxu0
    %v3573 = vadd.f32 %v3544, %v3572
    %3574 = vmatmul.bf16.gmra.mxu0 %v2968
    %v3575 = vpop.f32.mrf.mxu0
    %v3576 = vadd.f32 %v3547, %v3575
    %v3577 = vpop.f32.mrf.mxu0
    %v3578 = vadd.f32 %v3549, %v3577
    %3579 = vmatmul.bf16.gmra.mxu0 %v2970
    %v3580 = vpop.f32.mrf.mxu0
    %v3581 = vadd.f32 %v3552, %v3580
    %v3582 = vpop.f32.mrf.mxu0
    %v3583 = vadd.f32 %v3554, %v3582
    %3584 = vdwg.mxu0
    %3585 = vmatpush.bf16.msra.mxu0 %v3478
    %3586 = vmatpush.bf16.msra.mxu0 %v3476
    %3587 = vmatpush.bf16.msra.mxu0 %v3474
    %3588 = vmatpush.bf16.msra.mxu0 %v3472
    %3589 = vmatpush.bf16.msra.mxu0 %v3470
    %3590 = vmatpush.bf16.msra.mxu0 %v3468
    %3591 = vmatpush.bf16.msra.mxu0 %v3466
    %3592 = vmatpush.bf16.msra.mxu0 %v3464
    %3593 = vmatmul.bf16.gmra.mxu0 %v2963
    %v3594 = vpop.f32.mrf.mxu0
    %v3595 = vadd.f32 %v3348, %v3594
    %v3596 = vpop.f32.mrf.mxu0
    %v3597 = vadd.f32 %v3350, %v3596
    %3598 = vmatmul.bf16.gmra.mxu0 %v2965
    %v3599 = vpop.f32.mrf.mxu0
    %v3600 = vadd.f32 %v3353, %v3599
    %v3601 = vpop.f32.mrf.mxu0
    %v3602 = vadd.f32 %v3355, %v3601
    %3603 = vmatmul.bf16.gmra.mxu0 %v2967
    %v3604 = vpop.f32.mrf.mxu0
    %v3605 = vadd.f32 %v3358, %v3604
    %v3606 = vpop.f32.mrf.mxu0
    %v3607 = vadd.f32 %v3360, %v3606
    %3608 = vmatmul.bf16.gmra.mxu0 %v2969
    %v3609 = vpop.f32.mrf.mxu0
    %v3610 = vadd.f32 %v3363, %v3609
    %v3611 = vpop.f32.mrf.mxu0
    %v3612 = vadd.f32 %v3365, %v3611
    %3613 = vdwg.mxu0
    %3614 = vmatpush.bf16.msra.mxu0 %v3494
    %3615 = vmatpush.bf16.msra.mxu0 %v3492
    %3616 = vmatpush.bf16.msra.mxu0 %v3490
    %3617 = vmatpush.bf16.msra.mxu0 %v3488
    %3618 = vmatpush.bf16.msra.mxu0 %v3486
    %3619 = vmatpush.bf16.msra.mxu0 %v3484
    %3620 = vmatpush.bf16.msra.mxu0 %v3482
    %3621 = vmatpush.bf16.msra.mxu0 %v3480
    %3622 = vmatmul.bf16.gmra.mxu0 %v2964
    %v3623 = vpop.f32.mrf.mxu0
    %v3624 = vadd.f32 %v3595, %v3623
    %v3625 = vpop.f32.mrf.mxu0
    %v3626 = vadd.f32 %v3597, %v3625
    %3627 = vmatmul.bf16.gmra.mxu0 %v2966
    %v3628 = vpop.f32.mrf.mxu0
    %v3629 = vadd.f32 %v3600, %v3628
    %v3630 = vpop.f32.mrf.mxu0
    %v3631 = vadd.f32 %v3602, %v3630
    %3632 = vmatmul.bf16.gmra.mxu0 %v2968
    %v3633 = vpop.f32.mrf.mxu0
    %v3634 = vadd.f32 %v3605, %v3633
    %v3635 = vpop.f32.mrf.mxu0
    %v3636 = vadd.f32 %v3607, %v3635
    %3637 = vmatmul.bf16.gmra.mxu0 %v2970
    %v3638 = vpop.f32.mrf.mxu0
    %v3639 = vadd.f32 %v3610, %v3638
    %v3640 = vpop.f32.mrf.mxu0
    %v3641 = vadd.f32 %v3612, %v3640
    %3642 = vdwg.mxu0
    %v3643 = vrot.slane %v2915, 1
    %v3644 = vrot.slane %v2944, 1
    %v3645 = vrot.slane %v2917, 1
    %v3646 = vrot.slane %v2946, 1
    %v3647 = vrot.slane %v2920, 1
    %v3648 = vrot.slane %v2949, 1
    %v3649 = vrot.slane %v2922, 1
    %v3650 = vrot.slane %v2951, 1
    %v3651 = vrot.slane %v2925, 1
    %v3652 = vrot.slane %v2954, 1
    %v3653 = vrot.slane %v2927, 1
    %v3654 = vrot.slane %v2956, 1
    %v3655 = vrot.slane %v2930, 1
    %v3656 = vrot.slane %v2959, 1
    %v3657 = vrot.slane %v2932, 1
    %v3658 = vrot.slane %v2961, 1
    %v3659 = vsel %vm966, %v3655, %v3657
    %v3660 = vsel %vm966, %v3656, %v3658
    %v3661 = vsel %vm966, %v3653, %v3655
    %v3662 = vsel %vm966, %v3654, %v3656
    %v3663 = vsel %vm966, %v3651, %v3653
    %v3664 = vsel %vm966, %v3652, %v3654
    %v3665 = vsel %vm966, %v3649, %v3651
    %v3666 = vsel %vm966, %v3650, %v3652
    %v3667 = vsel %vm966, %v3647, %v3649
    %v3668 = vsel %vm966, %v3648, %v3650
    %v3669 = vsel %vm966, %v3645, %v3647
    %v3670 = vsel %vm966, %v3646, %v3648
    %v3671 = vsel %vm966, %v3643, %v3645
    %v3672 = vsel %vm966, %v3644, %v3646
    %v3673 = vsel %vm966, %v3657, %v3643
    %v3674 = vsel %vm966, %v3658, %v3644
    %v3675 = vsel %vm991, %v3671, 0.0
    %v3676 = vsel %vm991, %v3672, 0.0
    %v3677 = vsel %vm992, %v3669, 0.0
    %v3678 = vsel %vm992, %v3670, 0.0
    %v3679 = vsel %vm993, %v3667, 0.0
    %v3680 = vsel %vm993, %v3668, 0.0
    %v3681 = vsel %vm994, %v3665, 0.0
    %v3682 = vsel %vm994, %v3666, 0.0
    %v3683 = vsel %vm995, %v3663, 0.0
    %v3684 = vsel %vm995, %v3664, 0.0
    %v3685 = vsel %vm996, %v3661, 0.0
    %v3686 = vsel %vm996, %v3662, 0.0
    %v3687 = vsel %vm997, %v3659, 0.0
    %v3688 = vsel %vm997, %v3660, 0.0
    %v3689 = vsel %vm998, %v3673, 0.0
    %v3690 = vsel %vm998, %v3674, 0.0
    %v3691 = vpack.c.bf16 %v3677, %v3675
    %v3692 = vpack.c.bf16 %v3678, %v3676
    %v3693 = vpack.c.bf16 %v3681, %v3679
    %v3694 = vpack.c.bf16 %v3682, %v3680
    %v3695 = vpack.c.bf16 %v3685, %v3683
    %v3696 = vpack.c.bf16 %v3686, %v3684
    %v3697 = vpack.c.bf16 %v3689, %v3687
    %v3698 = vpack.c.bf16 %v3690, %v3688
    %v3699 = vld [vmem:[#allocation2 + $0x920] sm:$0xff]
    %v3700 = vld [vmem:[#allocation2 + $0x928] sm:$0xff]
    %v3701 = vld [vmem:[#allocation2 + $0x930] sm:$0xff]
    %v3702 = vld [vmem:[#allocation2 + $0x938] sm:$0xff]
    %v3703 = vld [vmem:[#allocation2 + $0x940] sm:$0xff]
    %v3704 = vld [vmem:[#allocation2 + $0x948] sm:$0xff]
    %v3705 = vld [vmem:[#allocation2 + $0x950] sm:$0xff]
    %v3706 = vld [vmem:[#allocation2 + $0x958] sm:$0xff]
    %v3707 = vld [vmem:[#allocation2 + $0x960] sm:$0xff]
    %v3708 = vld [vmem:[#allocation2 + $0x968] sm:$0xff]
    %v3709 = vld [vmem:[#allocation2 + $0x970] sm:$0xff]
    %v3710 = vld [vmem:[#allocation2 + $0x978] sm:$0xff]
    %v3711 = vld [vmem:[#allocation2 + $0x980] sm:$0xff]
    %v3712 = vld [vmem:[#allocation2 + $0x988] sm:$0xff]
    %v3713 = vld [vmem:[#allocation2 + $0x990] sm:$0xff]
    %v3714 = vld [vmem:[#allocation2 + $0x998] sm:$0xff]
    %v3715 = vld [vmem:[#allocation2 + $0x9a0] sm:$0xff]
    %v3716 = vld [vmem:[#allocation2 + $0x9a8] sm:$0xff]
    %v3717 = vld [vmem:[#allocation2 + $0x9b0] sm:$0xff]
    %v3718 = vld [vmem:[#allocation2 + $0x9b8] sm:$0xff]
    %v3719 = vld [vmem:[#allocation2 + $0x9c0] sm:$0xff]
    %v3720 = vld [vmem:[#allocation2 + $0x9c8] sm:$0xff]
    %v3721 = vld [vmem:[#allocation2 + $0x9d0] sm:$0xff]
    %v3722 = vld [vmem:[#allocation2 + $0x9d8] sm:$0xff]
    %v3723 = vld [vmem:[#allocation2 + $0x9e0] sm:$0xff]
    %v3724 = vld [vmem:[#allocation2 + $0x9e8] sm:$0xff]
    %v3725 = vld [vmem:[#allocation2 + $0x9f0] sm:$0xff]
    %v3726 = vld [vmem:[#allocation2 + $0x9f8] sm:$0xff]
    %v3727 = vld [vmem:[#allocation2 + $0xa00] sm:$0xff]
    %v3728 = vld [vmem:[#allocation2 + $0xa08] sm:$0xff]
    %v3729 = vld [vmem:[#allocation2 + $0xa10] sm:$0xff]
    %v3730 = vld [vmem:[#allocation2 + $0xa18] sm:$0xff]
    %v3763 = vunpack.c.l.b16 %v3699
    %v3764 = vunpack.c.h.b16 %v3699
    %v3765 = vunpack.c.l.b16 %v3700
    %v3766 = vunpack.c.h.b16 %v3700
    %v3767 = vunpack.c.l.b16 %v3701
    %v3768 = vunpack.c.h.b16 %v3701
    %v3769 = vunpack.c.l.b16 %v3702
    %v3770 = vunpack.c.h.b16 %v3702
    %v3771 = vunpack.c.l.b16 %v3703
    %v3772 = vunpack.c.h.b16 %v3703
    %v3773 = vunpack.c.l.b16 %v3704
    %v3774 = vunpack.c.h.b16 %v3704
    %v3775 = vunpack.c.l.b16 %v3705
    %v3776 = vunpack.c.h.b16 %v3705
    %v3777 = vunpack.c.l.b16 %v3706
    %v3778 = vunpack.c.h.b16 %v3706
    %v3779 = vunpack.c.l.b16 %v3707
    %v3780 = vunpack.c.h.b16 %v3707
    %v3781 = vunpack.c.l.b16 %v3708
    %v3782 = vunpack.c.h.b16 %v3708
    %v3783 = vunpack.c.l.b16 %v3709
    %v3784 = vunpack.c.h.b16 %v3709
    %v3785 = vunpack.c.l.b16 %v3710
    %v3786 = vunpack.c.h.b16 %v3710
    %v3787 = vunpack.c.l.b16 %v3711
    %v3788 = vunpack.c.h.b16 %v3711
    %v3789 = vunpack.c.l.b16 %v3712
    %v3790 = vunpack.c.h.b16 %v3712
    %v3791 = vunpack.c.l.b16 %v3713
    %v3792 = vunpack.c.h.b16 %v3713
    %v3793 = vunpack.c.l.b16 %v3714
    %v3794 = vunpack.c.h.b16 %v3714
    %v3795 = vunpack.c.l.b16 %v3715
    %v3796 = vunpack.c.h.b16 %v3715
    %v3797 = vunpack.c.l.b16 %v3716
    %v3798 = vunpack.c.h.b16 %v3716
    %v3799 = vunpack.c.l.b16 %v3717
    %v3800 = vunpack.c.h.b16 %v3717
    %v3801 = vunpack.c.l.b16 %v3718
    %v3802 = vunpack.c.h.b16 %v3718
    %v3803 = vunpack.c.l.b16 %v3719
    %v3804 = vunpack.c.h.b16 %v3719
    %v3805 = vunpack.c.l.b16 %v3720
    %v3806 = vunpack.c.h.b16 %v3720
    %v3807 = vunpack.c.l.b16 %v3721
    %v3808 = vunpack.c.h.b16 %v3721
    %v3809 = vunpack.c.l.b16 %v3722
    %v3810 = vunpack.c.h.b16 %v3722
    %v3811 = vunpack.c.l.b16 %v3723
    %v3812 = vunpack.c.h.b16 %v3723
    %v3813 = vunpack.c.l.b16 %v3724
    %v3814 = vunpack.c.h.b16 %v3724
    %v3815 = vunpack.c.l.b16 %v3725
    %v3816 = vunpack.c.h.b16 %v3725
    %v3817 = vunpack.c.l.b16 %v3726
    %v3818 = vunpack.c.h.b16 %v3726
    %v3819 = vunpack.c.l.b16 %v3727
    %v3820 = vunpack.c.h.b16 %v3727
    %v3821 = vunpack.c.l.b16 %v3728
    %v3822 = vunpack.c.h.b16 %v3728
    %v3823 = vunpack.c.l.b16 %v3729
    %v3824 = vunpack.c.h.b16 %v3729
    %v3825 = vunpack.c.l.b16 %v3730
    %v3826 = vunpack.c.h.b16 %v3730
    %v3827 = vpack.c.b16 %v3765, %v3763
    %v3828 = vpack.c.b16 %v3766, %v3764
    %v3829 = vpack.c.b16 %v3769, %v3767
    %v3830 = vpack.c.b16 %v3770, %v3768
    %v3831 = vpack.c.b16 %v3773, %v3771
    %v3832 = vpack.c.b16 %v3774, %v3772
    %v3833 = vpack.c.b16 %v3777, %v3775
    %v3834 = vpack.c.b16 %v3778, %v3776
    %v3835 = vpack.c.b16 %v3781, %v3779
    %v3836 = vpack.c.b16 %v3782, %v3780
    %v3837 = vpack.c.b16 %v3785, %v3783
    %v3838 = vpack.c.b16 %v3786, %v3784
    %v3839 = vpack.c.b16 %v3789, %v3787
    %v3840 = vpack.c.b16 %v3790, %v3788
    %v3841 = vpack.c.b16 %v3793, %v3791
    %v3842 = vpack.c.b16 %v3794, %v3792
    %v3843 = vpack.c.b16 %v3797, %v3795
    %v3844 = vpack.c.b16 %v3798, %v3796
    %v3845 = vpack.c.b16 %v3801, %v3799
    %v3846 = vpack.c.b16 %v3802, %v3800
    %v3847 = vpack.c.b16 %v3805, %v3803
    %v3848 = vpack.c.b16 %v3806, %v3804
    %v3849 = vpack.c.b16 %v3809, %v3807
    %v3850 = vpack.c.b16 %v3810, %v3808
    %v3851 = vpack.c.b16 %v3813, %v3811
    %v3852 = vpack.c.b16 %v3814, %v3812
    %v3853 = vpack.c.b16 %v3817, %v3815
    %v3854 = vpack.c.b16 %v3818, %v3816
    %v3855 = vpack.c.b16 %v3821, %v3819
    %v3856 = vpack.c.b16 %v3822, %v3820
    %v3857 = vpack.c.b16 %v3825, %v3823
    %v3858 = vpack.c.b16 %v3826, %v3824
    %3891 = vmatpush.bf16.msra.mxu0 %v3841
    %3892 = vmatpush.bf16.msra.mxu0 %v3839
    %3893 = vmatpush.bf16.msra.mxu0 %v3837
    %3894 = vmatpush.bf16.msra.mxu0 %v3835
    %3895 = vmatpush.bf16.msra.mxu0 %v3833
    %3896 = vmatpush.bf16.msra.mxu0 %v3831
    %3897 = vmatpush.bf16.msra.mxu0 %v3829
    %3898 = vmatpush.bf16.msra.mxu0 %v3827
    %3899 = vmatmul.bf16.gmra.mxu0 %v3691
    %v3900 = vpop.f32.mrf.mxu0
    %v3901 = vadd.f32 0.0, %v3900
    %v3902 = vpop.f32.mrf.mxu0
    %v3903 = vadd.f32 0.0, %v3902
    %3904 = vmatmul.bf16.gmra.mxu0 %v3693
    %v3905 = vpop.f32.mrf.mxu0
    %v3906 = vadd.f32 0.0, %v3905
    %v3907 = vpop.f32.mrf.mxu0
    %v3908 = vadd.f32 0.0, %v3907
    %3909 = vmatmul.bf16.gmra.mxu0 %v3695
    %v3910 = vpop.f32.mrf.mxu0
    %v3911 = vadd.f32 0.0, %v3910
    %v3912 = vpop.f32.mrf.mxu0
    %v3913 = vadd.f32 0.0, %v3912
    %3914 = vmatmul.bf16.gmra.mxu0 %v3697
    %v3915 = vpop.f32.mrf.mxu0
    %v3916 = vadd.f32 0.0, %v3915
    %v3917 = vpop.f32.mrf.mxu0
    %v3918 = vadd.f32 0.0, %v3917
    %3919 = vdwg.mxu0
    %3920 = vmatpush.bf16.msra.mxu0 %v3857
    %3921 = vmatpush.bf16.msra.mxu0 %v3855
    %3922 = vmatpush.bf16.msra.mxu0 %v3853
    %3923 = vmatpush.bf16.msra.mxu0 %v3851
    %3924 = vmatpush.bf16.msra.mxu0 %v3849
    %3925 = vmatpush.bf16.msra.mxu0 %v3847
    %3926 = vmatpush.bf16.msra.mxu0 %v3845
    %3927 = vmatpush.bf16.msra.mxu0 %v3843
    %3928 = vmatmul.bf16.gmra.mxu0 %v3692
    %v3929 = vpop.f32.mrf.mxu0
    %v3930 = vadd.f32 %v3901, %v3929
    %v3931 = vpop.f32.mrf.mxu0
    %v3932 = vadd.f32 %v3903, %v3931
    %3933 = vmatmul.bf16.gmra.mxu0 %v3694
    %v3934 = vpop.f32.mrf.mxu0
    %v3935 = vadd.f32 %v3906, %v3934
    %v3936 = vpop.f32.mrf.mxu0
    %v3937 = vadd.f32 %v3908, %v3936
    %3938 = vmatmul.bf16.gmra.mxu0 %v3696
    %v3939 = vpop.f32.mrf.mxu0
    %v3940 = vadd.f32 %v3911, %v3939
    %v3941 = vpop.f32.mrf.mxu0
    %v3942 = vadd.f32 %v3913, %v3941
    %3943 = vmatmul.bf16.gmra.mxu0 %v3698
    %v3944 = vpop.f32.mrf.mxu0
    %v3945 = vadd.f32 %v3916, %v3944
    %v3946 = vpop.f32.mrf.mxu0
    %v3947 = vadd.f32 %v3918, %v3946
    %3948 = vdwg.mxu0
    %3949 = vmatpush.bf16.msra.mxu0 %v3842
    %3950 = vmatpush.bf16.msra.mxu0 %v3840
    %3951 = vmatpush.bf16.msra.mxu0 %v3838
    %3952 = vmatpush.bf16.msra.mxu0 %v3836
    %3953 = vmatpush.bf16.msra.mxu0 %v3834
    %3954 = vmatpush.bf16.msra.mxu0 %v3832
    %3955 = vmatpush.bf16.msra.mxu0 %v3830
    %3956 = vmatpush.bf16.msra.mxu0 %v3828
    %3957 = vmatmul.bf16.gmra.mxu0 %v3691
    %v3958 = vpop.f32.mrf.mxu0
    %v3959 = vadd.f32 0.0, %v3958
    %v3960 = vpop.f32.mrf.mxu0
    %v3961 = vadd.f32 0.0, %v3960
    %3962 = vmatmul.bf16.gmra.mxu0 %v3693
    %v3963 = vpop.f32.mrf.mxu0
    %v3964 = vadd.f32 0.0, %v3963
    %v3965 = vpop.f32.mrf.mxu0
    %v3966 = vadd.f32 0.0, %v3965
    %3967 = vmatmul.bf16.gmra.mxu0 %v3695
    %v3968 = vpop.f32.mrf.mxu0
    %v3969 = vadd.f32 0.0, %v3968
    %v3970 = vpop.f32.mrf.mxu0
    %v3971 = vadd.f32 0.0, %v3970
    %3972 = vmatmul.bf16.gmra.mxu0 %v3697
    %v3973 = vpop.f32.mrf.mxu0
    %v3974 = vadd.f32 0.0, %v3973
    %v3975 = vpop.f32.mrf.mxu0
    %v3976 = vadd.f32 0.0, %v3975
    %3977 = vdwg.mxu0
    %3978 = vmatpush.bf16.msra.mxu0 %v3858
    %3979 = vmatpush.bf16.msra.mxu0 %v3856
    %3980 = vmatpush.bf16.msra.mxu0 %v3854
    %3981 = vmatpush.bf16.msra.mxu0 %v3852
    %3982 = vmatpush.bf16.msra.mxu0 %v3850
    %3983 = vmatpush.bf16.msra.mxu0 %v3848
    %3984 = vmatpush.bf16.msra.mxu0 %v3846
    %3985 = vmatpush.bf16.msra.mxu0 %v3844
    %3986 = vmatmul.bf16.gmra.mxu0 %v3692
    %v3987 = vpop.f32.mrf.mxu0
    %v3988 = vadd.f32 %v3959, %v3987
    %v3989 = vpop.f32.mrf.mxu0
    %v3990 = vadd.f32 %v3961, %v3989
    %3991 = vmatmul.bf16.gmra.mxu0 %v3694
    %v3992 = vpop.f32.mrf.mxu0
    %v3993 = vadd.f32 %v3964, %v3992
    %v3994 = vpop.f32.mrf.mxu0
    %v3995 = vadd.f32 %v3966, %v3994
    %3996 = vmatmul.bf16.gmra.mxu0 %v3696
    %v3997 = vpop.f32.mrf.mxu0
    %v3998 = vadd.f32 %v3969, %v3997
    %v3999 = vpop.f32.mrf.mxu0
    %v4000 = vadd.f32 %v3971, %v3999
    %4001 = vmatmul.bf16.gmra.mxu0 %v3698
    %v4002 = vpop.f32.mrf.mxu0
    %v4003 = vadd.f32 %v3974, %v4002
    %v4004 = vpop.f32.mrf.mxu0
    %v4005 = vadd.f32 %v3976, %v4004
    %4006 = vdwg.mxu0
    %v4007 = vadd.f32 %v3566, %v3930
    %v4008 = vadd.f32 %v3624, %v3988
    %v4009 = vadd.f32 %v3568, %v3932
    %v4010 = vadd.f32 %v3626, %v3990
    %v4011 = vadd.f32 %v3571, %v3935
    %v4012 = vadd.f32 %v3629, %v3993
    %v4013 = vadd.f32 %v3573, %v3937
    %v4014 = vadd.f32 %v3631, %v3995
    %v4015 = vadd.f32 %v3576, %v3940
    %v4016 = vadd.f32 %v3634, %v3998
    %v4017 = vadd.f32 %v3578, %v3942
    %v4018 = vadd.f32 %v3636, %v4000
    %v4019 = vadd.f32 %v3581, %v3945
    %v4020 = vadd.f32 %v3639, %v4003
    %v4021 = vadd.f32 %v3583, %v3947
    %v4022 = vadd.f32 %v3641, %v4005
    %v4023 = vmul.f32 %v4007, %v1348
    %v4024 = vmul.f32 %v4008, %v1349
    %v4025 = vmul.f32 %v4009, %v1348
    %v4026 = vmul.f32 %v4010, %v1349
    %v4027 = vmul.f32 %v4011, %v1348
    %v4028 = vmul.f32 %v4012, %v1349
    %v4029 = vmul.f32 %v4013, %v1348
    %v4030 = vmul.f32 %v4014, %v1349
    %v4031 = vmul.f32 %v4015, %v1348
    %v4032 = vmul.f32 %v4016, %v1349
    %v4033 = vmul.f32 %v4017, %v1348
    %v4034 = vmul.f32 %v4018, %v1349
    %v4035 = vmul.f32 %v4019, %v1348
    %v4036 = vmul.f32 %v4020, %v1349
    %v4037 = vmul.f32 %v4021, %v1348
    %v4038 = vmul.f32 %v4022, %v1349
    %s4039 = scalar_lea.vmem [#allocation6], 3
    %v4040 = vld [vmem:[%s4039] ss:$8 sm:$0x3]
    %v4042 = vperm.slane %v4040, 0
    %v4043 = vperm.slane %v4040, 1
    %v4046 = vadd.f32 %v4023, %v4042
    %v4047 = vadd.f32 %v4024, %v4043
    %v4048 = vadd.f32 %v4025, %v4042
    %v4049 = vadd.f32 %v4026, %v4043
    %v4050 = vadd.f32 %v4027, %v4042
    %v4051 = vadd.f32 %v4028, %v4043
    %v4052 = vadd.f32 %v4029, %v4042
    %v4053 = vadd.f32 %v4030, %v4043
    %v4054 = vadd.f32 %v4031, %v4042
    %v4055 = vadd.f32 %v4032, %v4043
    %v4056 = vadd.f32 %v4033, %v4042
    %v4057 = vadd.f32 %v4034, %v4043
    %v4058 = vadd.f32 %v4035, %v4042
    %v4059 = vadd.f32 %v4036, %v4043
    %v4060 = vadd.f32 %v4037, %v4042
    %v4061 = vadd.f32 %v4038, %v4043
    %v4062 = vmax.f32 %v4046, 0.0
    %v4063 = vmax.f32 %v4047, 0.0
    %v4064 = vmax.f32 %v4048, 0.0
    %v4065 = vmax.f32 %v4049, 0.0
    %v4066 = vmax.f32 %v4050, 0.0
    %v4067 = vmax.f32 %v4051, 0.0
    %v4068 = vmax.f32 %v4052, 0.0
    %v4069 = vmax.f32 %v4053, 0.0
    %v4070 = vmax.f32 %v4054, 0.0
    %v4071 = vmax.f32 %v4055, 0.0
    %v4072 = vmax.f32 %v4056, 0.0
    %v4073 = vmax.f32 %v4057, 0.0
    %v4074 = vmax.f32 %v4058, 0.0
    %v4075 = vmax.f32 %v4059, 0.0
    %v4076 = vmax.f32 %v4060, 0.0
    %v4077 = vmax.f32 %v4061, 0.0
    %v4078 = vld [vmem:[%s3] sm:$0xf]
    %v4079 = vld [vmem:[%s3 + $0x4] sm:$0xf]
    %v4080 = vld [vmem:[#allocation4 + $0x40] sm:$0xf]
    %v4081 = vld [vmem:[#allocation4 + $0x44] sm:$0xf]
    %v4082 = vld [vmem:[#allocation4 + $0x48] sm:$0xf]
    %v4083 = vld [vmem:[#allocation4 + $0x4c] sm:$0xf]
    %v4084 = vld [vmem:[#allocation4 + $0x50] sm:$0xf]
    %v4085 = vld [vmem:[#allocation4 + $0x54] sm:$0xf]
    %v4086 = vld [vmem:[#allocation4 + $0x58] sm:$0xf]
    %v4087 = vld [vmem:[#allocation4 + $0x5c] sm:$0xf]
    %v4088 = vld [vmem:[#allocation2 + $0xc0] sm:$0xff]
    %v4089 = vld [vmem:[#allocation2 + $0xc8] sm:$0xff]
    %v4090 = vld [vmem:[#allocation2 + $0xd0] sm:$0xff]
    %v4091 = vld [vmem:[#allocation2 + $0xd8] sm:$0xff]
    %v4094 = vunpack.c.l.b16 %v4078
    %v4095 = vunpack.c.l.b16 %v4079
    %v4096 = vpack.c.b16 %v4095, %v4094
    %v4101 = vunpack.c.l.b16 %v4088
    %v4102 = vunpack.c.h.b16 %v4088
    %v4103 = vunpack.c.l.b16 %v4089
    %v4104 = vunpack.c.h.b16 %v4089
    %v4105 = vunpack.c.l.b16 %v4090
    %v4106 = vunpack.c.h.b16 %v4090
    %v4107 = vunpack.c.l.b16 %v4091
    %v4108 = vunpack.c.h.b16 %v4091
    %v4109 = vpack.c.b16 %v4103, %v4101
    %v4110 = vpack.c.b16 %v4104, %v4102
    %v4111 = vpack.c.b16 %v4107, %v4105
    %v4112 = vpack.c.b16 %v4108, %v4106
    %v4118 = vsel %vm1589, %v4096, 0
    %4120 = vmatpush.bf16.msra.mxu0 0
    %4121 = vmatpush.bf16.msra.mxu0 0
    %4122 = vmatpush.bf16.msra.mxu0 0
    %4123 = vmatpush.bf16.msra.mxu0 0
    %4124 = vmatpush.bf16.msra.mxu0 0
    %4125 = vmatpush.bf16.msra.mxu0 0
    %4126 = vmatpush.bf16.msra.mxu0 %v4111
    %4127 = vmatpush.bf16.msra.mxu0 %v4109
    %4128 = vmatmul.bf16.gmra.mxu0 %v4118
    %v4129 = vpop.f32.mrf.mxu0
    %v4130 = vadd.f32 0.0, %v4129
    %v4131 = vpop.f32.mrf.mxu0
    %v4132 = vadd.f32 0.0, %v4131
    %4133 = vdwg.mxu0
    %4134 = vmatpush.bf16.msra.mxu0 0
    %4135 = vmatpush.bf16.msra.mxu0 0
    %4136 = vmatpush.bf16.msra.mxu0 0
    %4137 = vmatpush.bf16.msra.mxu0 0
    %4138 = vmatpush.bf16.msra.mxu0 0
    %4139 = vmatpush.bf16.msra.mxu0 0
    %4140 = vmatpush.bf16.msra.mxu0 %v4112
    %4141 = vmatpush.bf16.msra.mxu0 %v4110
    %4142 = vmatmul.bf16.gmra.mxu0 %v4118
    %v4143 = vpop.f32.mrf.mxu0
    %v4144 = vadd.f32 0.0, %v4143
    %v4145 = vpop.f32.mrf.mxu0
    %v4146 = vadd.f32 0.0, %v4145
    %4147 = vdwg.mxu0
    %v4148 = vpack.c.bf16 %v4132, %v4130
    %v4149 = vpack.c.bf16 %v4146, %v4144
    %v4158 = vunpack.c.l.b16 %v4080
    %v4159 = vunpack.c.l.b16 %v4081
    %v4160 = vunpack.c.l.b16 %v4082
    %v4161 = vunpack.c.l.b16 %v4083
    %v4162 = vunpack.c.l.b16 %v4084
    %v4163 = vunpack.c.l.b16 %v4085
    %v4164 = vunpack.c.l.b16 %v4086
    %v4165 = vunpack.c.l.b16 %v4087
    %v4166 = vpack.c.b16 %v4159, %v4158
    %v4167 = vpack.c.b16 %v4161, %v4160
    %v4168 = vpack.c.b16 %v4163, %v4162
    %v4169 = vpack.c.b16 %v4165, %v4164
    %v4171 = vsel %vm2892, %v4166, 0
    %v4174 = vsel %vm2892, %v4167, 0
    %v4177 = vsel %vm2892, %v4168, 0
    %v4180 = vsel %vm2892, %v4169, 0
    %4182 = vmatpush.bf16.msra.mxu0 0
    %4183 = vmatpush.bf16.msra.mxu0 0
    %4184 = vmatpush.bf16.msra.mxu0 0
    %4185 = vmatpush.bf16.msra.mxu0 0
    %4186 = vmatpush.bf16.msra.mxu0 0
    %4187 = vmatpush.bf16.msra.mxu0 0
    %4188 = vmatpush.bf16.msra.mxu0 0
    %4189 = vmatpush.bf16.msra.mxu0 %v4148
    %4190 = vmatmul.bf16.gmra.mxu0 %v4171
    %v4191 = vpop.f32.mrf.mxu0
    %v4192 = vadd.f32 0.0, %v4191
    %v4193 = vpop.f32.mrf.mxu0
    %v4194 = vadd.f32 0.0, %v4193
    %4195 = vmatmul.bf16.gmra.mxu0 %v4174
    %v4196 = vpop.f32.mrf.mxu0
    %v4197 = vadd.f32 0.0, %v4196
    %v4198 = vpop.f32.mrf.mxu0
    %v4199 = vadd.f32 0.0, %v4198
    %4200 = vmatmul.bf16.gmra.mxu0 %v4177
    %v4201 = vpop.f32.mrf.mxu0
    %v4202 = vadd.f32 0.0, %v4201
    %v4203 = vpop.f32.mrf.mxu0
    %v4204 = vadd.f32 0.0, %v4203
    %4205 = vmatmul.bf16.gmra.mxu0 %v4180
    %v4206 = vpop.f32.mrf.mxu0
    %v4207 = vadd.f32 0.0, %v4206
    %v4208 = vpop.f32.mrf.mxu0
    %v4209 = vadd.f32 0.0, %v4208
    %4210 = vdwg.mxu0
    %4211 = vmatpush.bf16.msra.mxu0 0
    %4212 = vmatpush.bf16.msra.mxu0 0
    %4213 = vmatpush.bf16.msra.mxu0 0
    %4214 = vmatpush.bf16.msra.mxu0 0
    %4215 = vmatpush.bf16.msra.mxu0 0
    %4216 = vmatpush.bf16.msra.mxu0 0
    %4217 = vmatpush.bf16.msra.mxu0 0
    %4218 = vmatpush.bf16.msra.mxu0 %v4149
    %4219 = vmatmul.bf16.gmra.mxu0 %v4171
    %v4220 = vpop.f32.mrf.mxu0
    %v4221 = vadd.f32 0.0, %v4220
    %v4222 = vpop.f32.mrf.mxu0
    %v4223 = vadd.f32 0.0, %v4222
    %4224 = vmatmul.bf16.gmra.mxu0 %v4174
    %v4225 = vpop.f32.mrf.mxu0
    %v4226 = vadd.f32 0.0, %v4225
    %v4227 = vpop.f32.mrf.mxu0
    %v4228 = vadd.f32 0.0, %v4227
    %4229 = vmatmul.bf16.gmra.mxu0 %v4177
    %v4230 = vpop.f32.mrf.mxu0
    %v4231 = vadd.f32 0.0, %v4230
    %v4232 = vpop.f32.mrf.mxu0
    %v4233 = vadd.f32 0.0, %v4232
    %4234 = vmatmul.bf16.gmra.mxu0 %v4180
    %v4235 = vpop.f32.mrf.mxu0
    %v4236 = vadd.f32 0.0, %v4235
    %v4237 = vpop.f32.mrf.mxu0
    %v4238 = vadd.f32 0.0, %v4237
    %4239 = vdwg.mxu0
    %v4240 = vpack.c.bf16 %v4194, %v4192
    %v4241 = vpack.c.bf16 %v4223, %v4221
    %v4242 = vpack.c.bf16 %v4199, %v4197
    %v4243 = vpack.c.bf16 %v4228, %v4226
    %v4244 = vpack.c.bf16 %v4204, %v4202
    %v4245 = vpack.c.bf16 %v4233, %v4231
    %v4246 = vpack.c.bf16 %v4209, %v4207
    %v4247 = vpack.c.bf16 %v4238, %v4236
    %v4248 = vld [vmem:[#allocation2 + $0xb20] sm:$0xff]
    %v4249 = vld [vmem:[#allocation2 + $0xb28] sm:$0xff]
    %v4250 = vld [vmem:[#allocation2 + $0xb30] sm:$0xff]
    %v4251 = vld [vmem:[#allocation2 + $0xb38] sm:$0xff]
    %v4252 = vld [vmem:[#allocation2 + $0xb40] sm:$0xff]
    %v4253 = vld [vmem:[#allocation2 + $0xb48] sm:$0xff]
    %v4254 = vld [vmem:[#allocation2 + $0xb50] sm:$0xff]
    %v4255 = vld [vmem:[#allocation2 + $0xb58] sm:$0xff]
    %v4256 = vld [vmem:[#allocation2 + $0xb60] sm:$0xff]
    %v4257 = vld [vmem:[#allocation2 + $0xb68] sm:$0xff]
    %v4258 = vld [vmem:[#allocation2 + $0xb70] sm:$0xff]
    %v4259 = vld [vmem:[#allocation2 + $0xb78] sm:$0xff]
    %v4260 = vld [vmem:[#allocation2 + $0xb80] sm:$0xff]
    %v4261 = vld [vmem:[#allocation2 + $0xb88] sm:$0xff]
    %v4262 = vld [vmem:[#allocation2 + $0xb90] sm:$0xff]
    %v4263 = vld [vmem:[#allocation2 + $0xb98] sm:$0xff]
    %v4264 = vld [vmem:[#allocation2 + $0xba0] sm:$0xff]
    %v4265 = vld [vmem:[#allocation2 + $0xba8] sm:$0xff]
    %v4266 = vld [vmem:[#allocation2 + $0xbb0] sm:$0xff]
    %v4267 = vld [vmem:[#allocation2 + $0xbb8] sm:$0xff]
    %v4268 = vld [vmem:[#allocation2 + $0xbc0] sm:$0xff]
    %v4269 = vld [vmem:[#allocation2 + $0xbc8] sm:$0xff]
    %v4270 = vld [vmem:[#allocation2 + $0xbd0] sm:$0xff]
    %v4271 = vld [vmem:[#allocation2 + $0xbd8] sm:$0xff]
    %v4272 = vld [vmem:[#allocation2 + $0xbe0] sm:$0xff]
    %v4273 = vld [vmem:[#allocation2 + $0xbe8] sm:$0xff]
    %v4274 = vld [vmem:[#allocation2 + $0xbf0] sm:$0xff]
    %v4275 = vld [vmem:[#allocation2 + $0xbf8] sm:$0xff]
    %v4276 = vld [vmem:[#allocation2 + $0xc00] sm:$0xff]
    %v4277 = vld [vmem:[#allocation2 + $0xc08] sm:$0xff]
    %v4278 = vld [vmem:[#allocation2 + $0xc10] sm:$0xff]
    %v4279 = vld [vmem:[#allocation2 + $0xc18] sm:$0xff]
    %v4280 = vrot.slane %v4192, 7
    %v4281 = vrot.slane %v4221, 7
    %v4282 = vrot.slane %v4194, 7
    %v4283 = vrot.slane %v4223, 7
    %v4284 = vrot.slane %v4197, 7
    %v4285 = vrot.slane %v4226, 7
    %v4286 = vrot.slane %v4199, 7
    %v4287 = vrot.slane %v4228, 7
    %v4288 = vrot.slane %v4202, 7
    %v4289 = vrot.slane %v4231, 7
    %v4290 = vrot.slane %v4204, 7
    %v4291 = vrot.slane %v4233, 7
    %v4292 = vrot.slane %v4207, 7
    %v4293 = vrot.slane %v4236, 7
    %v4294 = vrot.slane %v4209, 7
    %v4295 = vrot.slane %v4238, 7
    %v4296 = vsel %vm269, %v4292, %v4294
    %v4297 = vsel %vm269, %v4293, %v4295
    %v4298 = vsel %vm269, %v4290, %v4292
    %v4299 = vsel %vm269, %v4291, %v4293
    %v4300 = vsel %vm269, %v4288, %v4290
    %v4301 = vsel %vm269, %v4289, %v4291
    %v4302 = vsel %vm269, %v4286, %v4288
    %v4303 = vsel %vm269, %v4287, %v4289
    %v4304 = vsel %vm269, %v4284, %v4286
    %v4305 = vsel %vm269, %v4285, %v4287
    %v4306 = vsel %vm269, %v4282, %v4284
    %v4307 = vsel %vm269, %v4283, %v4285
    %v4308 = vsel %vm269, %v4280, %v4282
    %v4309 = vsel %vm269, %v4281, %v4283
    %v4310 = vsel %vm269, %v4294, %v4280
    %v4311 = vsel %vm269, %v4295, %v4281
    %v4312 = vsel %vm294, %v4310, 0.0
    %v4313 = vsel %vm294, %v4311, 0.0
    %v4314 = vsel %vm295, %v4308, 0.0
    %v4315 = vsel %vm295, %v4309, 0.0
    %v4316 = vsel %vm296, %v4306, 0.0
    %v4317 = vsel %vm296, %v4307, 0.0
    %v4318 = vsel %vm297, %v4304, 0.0
    %v4319 = vsel %vm297, %v4305, 0.0
    %v4320 = vsel %vm298, %v4302, 0.0
    %v4321 = vsel %vm298, %v4303, 0.0
    %v4322 = vsel %vm299, %v4300, 0.0
    %v4323 = vsel %vm299, %v4301, 0.0
    %v4324 = vsel %vm300, %v4298, 0.0
    %v4325 = vsel %vm300, %v4299, 0.0
    %v4326 = vsel %vm301, %v4296, 0.0
    %v4327 = vsel %vm301, %v4297, 0.0
    %v4328 = vpack.c.bf16 %v4314, %v4312
    %v4329 = vpack.c.bf16 %v4315, %v4313
    %v4330 = vpack.c.bf16 %v4318, %v4316
    %v4331 = vpack.c.bf16 %v4319, %v4317
    %v4332 = vpack.c.bf16 %v4322, %v4320
    %v4333 = vpack.c.bf16 %v4323, %v4321
    %v4334 = vpack.c.bf16 %v4326, %v4324
    %v4335 = vpack.c.bf16 %v4327, %v4325
    %v4336 = vld [vmem:[#allocation2 + $0xa20] sm:$0xff]
    %v4337 = vld [vmem:[#allocation2 + $0xa28] sm:$0xff]
    %v4338 = vld [vmem:[#allocation2 + $0xa30] sm:$0xff]
    %v4339 = vld [vmem:[#allocation2 + $0xa38] sm:$0xff]
    %v4340 = vld [vmem:[#allocation2 + $0xa40] sm:$0xff]
    %v4341 = vld [vmem:[#allocation2 + $0xa48] sm:$0xff]
    %v4342 = vld [vmem:[#allocation2 + $0xa50] sm:$0xff]
    %v4343 = vld [vmem:[#allocation2 + $0xa58] sm:$0xff]
    %v4344 = vld [vmem:[#allocation2 + $0xa60] sm:$0xff]
    %v4345 = vld [vmem:[#allocation2 + $0xa68] sm:$0xff]
    %v4346 = vld [vmem:[#allocation2 + $0xa70] sm:$0xff]
    %v4347 = vld [vmem:[#allocation2 + $0xa78] sm:$0xff]
    %v4348 = vld [vmem:[#allocation2 + $0xa80] sm:$0xff]
    %v4349 = vld [vmem:[#allocation2 + $0xa88] sm:$0xff]
    %v4350 = vld [vmem:[#allocation2 + $0xa90] sm:$0xff]
    %v4351 = vld [vmem:[#allocation2 + $0xa98] sm:$0xff]
    %v4352 = vld [vmem:[#allocation2 + $0xaa0] sm:$0xff]
    %v4353 = vld [vmem:[#allocation2 + $0xaa8] sm:$0xff]
    %v4354 = vld [vmem:[#allocation2 + $0xab0] sm:$0xff]
    %v4355 = vld [vmem:[#allocation2 + $0xab8] sm:$0xff]
    %v4356 = vld [vmem:[#allocation2 + $0xac0] sm:$0xff]
    %v4357 = vld [vmem:[#allocation2 + $0xac8] sm:$0xff]
    %v4358 = vld [vmem:[#allocation2 + $0xad0] sm:$0xff]
    %v4359 = vld [vmem:[#allocation2 + $0xad8] sm:$0xff]
    %v4360 = vld [vmem:[#allocation2 + $0xae0] sm:$0xff]
    %v4361 = vld [vmem:[#allocation2 + $0xae8] sm:$0xff]
    %v4362 = vld [vmem:[#allocation2 + $0xaf0] sm:$0xff]
    %v4363 = vld [vmem:[#allocation2 + $0xaf8] sm:$0xff]
    %v4364 = vld [vmem:[#allocation2 + $0xb00] sm:$0xff]
    %v4365 = vld [vmem:[#allocation2 + $0xb08] sm:$0xff]
    %v4366 = vld [vmem:[#allocation2 + $0xb10] sm:$0xff]
    %v4367 = vld [vmem:[#allocation2 + $0xb18] sm:$0xff]
    %v4400 = vunpack.c.l.b16 %v4336
    %v4401 = vunpack.c.h.b16 %v4336
    %v4402 = vunpack.c.l.b16 %v4337
    %v4403 = vunpack.c.h.b16 %v4337
    %v4404 = vunpack.c.l.b16 %v4338
    %v4405 = vunpack.c.h.b16 %v4338
    %v4406 = vunpack.c.l.b16 %v4339
    %v4407 = vunpack.c.h.b16 %v4339
    %v4408 = vunpack.c.l.b16 %v4340
    %v4409 = vunpack.c.h.b16 %v4340
    %v4410 = vunpack.c.l.b16 %v4341
    %v4411 = vunpack.c.h.b16 %v4341
    %v4412 = vunpack.c.l.b16 %v4342
    %v4413 = vunpack.c.h.b16 %v4342
    %v4414 = vunpack.c.l.b16 %v4343
    %v4415 = vunpack.c.h.b16 %v4343
    %v4416 = vunpack.c.l.b16 %v4344
    %v4417 = vunpack.c.h.b16 %v4344
    %v4418 = vunpack.c.l.b16 %v4345
    %v4419 = vunpack.c.h.b16 %v4345
    %v4420 = vunpack.c.l.b16 %v4346
    %v4421 = vunpack.c.h.b16 %v4346
    %v4422 = vunpack.c.l.b16 %v4347
    %v4423 = vunpack.c.h.b16 %v4347
    %v4424 = vunpack.c.l.b16 %v4348
    %v4425 = vunpack.c.h.b16 %v4348
    %v4426 = vunpack.c.l.b16 %v4349
    %v4427 = vunpack.c.h.b16 %v4349
    %v4428 = vunpack.c.l.b16 %v4350
    %v4429 = vunpack.c.h.b16 %v4350
    %v4430 = vunpack.c.l.b16 %v4351
    %v4431 = vunpack.c.h.b16 %v4351
    %v4432 = vunpack.c.l.b16 %v4352
    %v4433 = vunpack.c.h.b16 %v4352
    %v4434 = vunpack.c.l.b16 %v4353
    %v4435 = vunpack.c.h.b16 %v4353
    %v4436 = vunpack.c.l.b16 %v4354
    %v4437 = vunpack.c.h.b16 %v4354
    %v4438 = vunpack.c.l.b16 %v4355
    %v4439 = vunpack.c.h.b16 %v4355
    %v4440 = vunpack.c.l.b16 %v4356
    %v4441 = vunpack.c.h.b16 %v4356
    %v4442 = vunpack.c.l.b16 %v4357
    %v4443 = vunpack.c.h.b16 %v4357
    %v4444 = vunpack.c.l.b16 %v4358
    %v4445 = vunpack.c.h.b16 %v4358
    %v4446 = vunpack.c.l.b16 %v4359
    %v4447 = vunpack.c.h.b16 %v4359
    %v4448 = vunpack.c.l.b16 %v4360
    %v4449 = vunpack.c.h.b16 %v4360
    %v4450 = vunpack.c.l.b16 %v4361
    %v4451 = vunpack.c.h.b16 %v4361
    %v4452 = vunpack.c.l.b16 %v4362
    %v4453 = vunpack.c.h.b16 %v4362
    %v4454 = vunpack.c.l.b16 %v4363
    %v4455 = vunpack.c.h.b16 %v4363
    %v4456 = vunpack.c.l.b16 %v4364
    %v4457 = vunpack.c.h.b16 %v4364
    %v4458 = vunpack.c.l.b16 %v4365
    %v4459 = vunpack.c.h.b16 %v4365
    %v4460 = vunpack.c.l.b16 %v4366
    %v4461 = vunpack.c.h.b16 %v4366
    %v4462 = vunpack.c.l.b16 %v4367
    %v4463 = vunpack.c.h.b16 %v4367
    %v4464 = vpack.c.b16 %v4402, %v4400
    %v4465 = vpack.c.b16 %v4403, %v4401
    %v4466 = vpack.c.b16 %v4406, %v4404
    %v4467 = vpack.c.b16 %v4407, %v4405
    %v4468 = vpack.c.b16 %v4410, %v4408
    %v4469 = vpack.c.b16 %v4411, %v4409
    %v4470 = vpack.c.b16 %v4414, %v4412
    %v4471 = vpack.c.b16 %v4415, %v4413
    %v4472 = vpack.c.b16 %v4418, %v4416
    %v4473 = vpack.c.b16 %v4419, %v4417
    %v4474 = vpack.c.b16 %v4422, %v4420
    %v4475 = vpack.c.b16 %v4423, %v4421
    %v4476 = vpack.c.b16 %v4426, %v4424
    %v4477 = vpack.c.b16 %v4427, %v4425
    %v4478 = vpack.c.b16 %v4430, %v4428
    %v4479 = vpack.c.b16 %v4431, %v4429
    %v4480 = vpack.c.b16 %v4434, %v4432
    %v4481 = vpack.c.b16 %v4435, %v4433
    %v4482 = vpack.c.b16 %v4438, %v4436
    %v4483 = vpack.c.b16 %v4439, %v4437
    %v4484 = vpack.c.b16 %v4442, %v4440
    %v4485 = vpack.c.b16 %v4443, %v4441
    %v4486 = vpack.c.b16 %v4446, %v4444
    %v4487 = vpack.c.b16 %v4447, %v4445
    %v4488 = vpack.c.b16 %v4450, %v4448
    %v4489 = vpack.c.b16 %v4451, %v4449
    %v4490 = vpack.c.b16 %v4454, %v4452
    %v4491 = vpack.c.b16 %v4455, %v4453
    %v4492 = vpack.c.b16 %v4458, %v4456
    %v4493 = vpack.c.b16 %v4459, %v4457
    %v4494 = vpack.c.b16 %v4462, %v4460
    %v4495 = vpack.c.b16 %v4463, %v4461
    %4528 = vmatpush.bf16.msra.mxu0 %v4478
    %4529 = vmatpush.bf16.msra.mxu0 %v4476
    %4530 = vmatpush.bf16.msra.mxu0 %v4474
    %4531 = vmatpush.bf16.msra.mxu0 %v4472
    %4532 = vmatpush.bf16.msra.mxu0 %v4470
    %4533 = vmatpush.bf16.msra.mxu0 %v4468
    %4534 = vmatpush.bf16.msra.mxu0 %v4466
    %4535 = vmatpush.bf16.msra.mxu0 %v4464
    %4536 = vmatmul.bf16.gmra.mxu0 %v4328
    %v4537 = vpop.f32.mrf.mxu0
    %v4538 = vadd.f32 0.0, %v4537
    %v4539 = vpop.f32.mrf.mxu0
    %v4540 = vadd.f32 0.0, %v4539
    %4541 = vmatmul.bf16.gmra.mxu0 %v4330
    %v4542 = vpop.f32.mrf.mxu0
    %v4543 = vadd.f32 0.0, %v4542
    %v4544 = vpop.f32.mrf.mxu0
    %v4545 = vadd.f32 0.0, %v4544
    %4546 = vmatmul.bf16.gmra.mxu0 %v4332
    %v4547 = vpop.f32.mrf.mxu0
    %v4548 = vadd.f32 0.0, %v4547
    %v4549 = vpop.f32.mrf.mxu0
    %v4550 = vadd.f32 0.0, %v4549
    %4551 = vmatmul.bf16.gmra.mxu0 %v4334
    %v4552 = vpop.f32.mrf.mxu0
    %v4553 = vadd.f32 0.0, %v4552
    %v4554 = vpop.f32.mrf.mxu0
    %v4555 = vadd.f32 0.0, %v4554
    %4556 = vdwg.mxu0
    %4557 = vmatpush.bf16.msra.mxu0 %v4494
    %4558 = vmatpush.bf16.msra.mxu0 %v4492
    %4559 = vmatpush.bf16.msra.mxu0 %v4490
    %4560 = vmatpush.bf16.msra.mxu0 %v4488
    %4561 = vmatpush.bf16.msra.mxu0 %v4486
    %4562 = vmatpush.bf16.msra.mxu0 %v4484
    %4563 = vmatpush.bf16.msra.mxu0 %v4482
    %4564 = vmatpush.bf16.msra.mxu0 %v4480
    %4565 = vmatmul.bf16.gmra.mxu0 %v4329
    %v4566 = vpop.f32.mrf.mxu0
    %v4567 = vadd.f32 %v4538, %v4566
    %v4568 = vpop.f32.mrf.mxu0
    %v4569 = vadd.f32 %v4540, %v4568
    %4570 = vmatmul.bf16.gmra.mxu0 %v4331
    %v4571 = vpop.f32.mrf.mxu0
    %v4572 = vadd.f32 %v4543, %v4571
    %v4573 = vpop.f32.mrf.mxu0
    %v4574 = vadd.f32 %v4545, %v4573
    %4575 = vmatmul.bf16.gmra.mxu0 %v4333
    %v4576 = vpop.f32.mrf.mxu0
    %v4577 = vadd.f32 %v4548, %v4576
    %v4578 = vpop.f32.mrf.mxu0
    %v4579 = vadd.f32 %v4550, %v4578
    %4580 = vmatmul.bf16.gmra.mxu0 %v4335
    %v4581 = vpop.f32.mrf.mxu0
    %v4582 = vadd.f32 %v4553, %v4581
    %v4583 = vpop.f32.mrf.mxu0
    %v4584 = vadd.f32 %v4555, %v4583
    %4585 = vdwg.mxu0
    %4586 = vmatpush.bf16.msra.mxu0 %v4479
    %4587 = vmatpush.bf16.msra.mxu0 %v4477
    %4588 = vmatpush.bf16.msra.mxu0 %v4475
    %4589 = vmatpush.bf16.msra.mxu0 %v4473
    %4590 = vmatpush.bf16.msra.mxu0 %v4471
    %4591 = vmatpush.bf16.msra.mxu0 %v4469
    %4592 = vmatpush.bf16.msra.mxu0 %v4467
    %4593 = vmatpush.bf16.msra.mxu0 %v4465
    %4594 = vmatmul.bf16.gmra.mxu0 %v4328
    %v4595 = vpop.f32.mrf.mxu0
    %v4596 = vadd.f32 0.0, %v4595
    %v4597 = vpop.f32.mrf.mxu0
    %v4598 = vadd.f32 0.0, %v4597
    %4599 = vmatmul.bf16.gmra.mxu0 %v4330
    %v4600 = vpop.f32.mrf.mxu0
    %v4601 = vadd.f32 0.0, %v4600
    %v4602 = vpop.f32.mrf.mxu0
    %v4603 = vadd.f32 0.0, %v4602
    %4604 = vmatmul.bf16.gmra.mxu0 %v4332
    %v4605 = vpop.f32.mrf.mxu0
    %v4606 = vadd.f32 0.0, %v4605
    %v4607 = vpop.f32.mrf.mxu0
    %v4608 = vadd.f32 0.0, %v4607
    %4609 = vmatmul.bf16.gmra.mxu0 %v4334
    %v4610 = vpop.f32.mrf.mxu0
    %v4611 = vadd.f32 0.0, %v4610
    %v4612 = vpop.f32.mrf.mxu0
    %v4613 = vadd.f32 0.0, %v4612
    %4614 = vdwg.mxu0
    %4615 = vmatpush.bf16.msra.mxu0 %v4495
    %4616 = vmatpush.bf16.msra.mxu0 %v4493
    %4617 = vmatpush.bf16.msra.mxu0 %v4491
    %4618 = vmatpush.bf16.msra.mxu0 %v4489
    %4619 = vmatpush.bf16.msra.mxu0 %v4487
    %4620 = vmatpush.bf16.msra.mxu0 %v4485
    %4621 = vmatpush.bf16.msra.mxu0 %v4483
    %4622 = vmatpush.bf16.msra.mxu0 %v4481
    %4623 = vmatmul.bf16.gmra.mxu0 %v4329
    %v4624 = vpop.f32.mrf.mxu0
    %v4625 = vadd.f32 %v4596, %v4624
    %v4626 = vpop.f32.mrf.mxu0
    %v4627 = vadd.f32 %v4598, %v4626
    %4628 = vmatmul.bf16.gmra.mxu0 %v4331
    %v4629 = vpop.f32.mrf.mxu0
    %v4630 = vadd.f32 %v4601, %v4629
    %v4631 = vpop.f32.mrf.mxu0
    %v4632 = vadd.f32 %v4603, %v4631
    %4633 = vmatmul.bf16.gmra.mxu0 %v4333
    %v4634 = vpop.f32.mrf.mxu0
    %v4635 = vadd.f32 %v4606, %v4634
    %v4636 = vpop.f32.mrf.mxu0
    %v4637 = vadd.f32 %v4608, %v4636
    %4638 = vmatmul.bf16.gmra.mxu0 %v4335
    %v4639 = vpop.f32.mrf.mxu0
    %v4640 = vadd.f32 %v4611, %v4639
    %v4641 = vpop.f32.mrf.mxu0
    %v4642 = vadd.f32 %v4613, %v4641
    %4643 = vdwg.mxu0
    %v4676 = vunpack.c.l.b16 %v4248
    %v4677 = vunpack.c.h.b16 %v4248
    %v4678 = vunpack.c.l.b16 %v4249
    %v4679 = vunpack.c.h.b16 %v4249
    %v4680 = vunpack.c.l.b16 %v4250
    %v4681 = vunpack.c.h.b16 %v4250
    %v4682 = vunpack.c.l.b16 %v4251
    %v4683 = vunpack.c.h.b16 %v4251
    %v4684 = vunpack.c.l.b16 %v4252
    %v4685 = vunpack.c.h.b16 %v4252
    %v4686 = vunpack.c.l.b16 %v4253
    %v4687 = vunpack.c.h.b16 %v4253
    %v4688 = vunpack.c.l.b16 %v4254
    %v4689 = vunpack.c.h.b16 %v4254
    %v4690 = vunpack.c.l.b16 %v4255
    %v4691 = vunpack.c.h.b16 %v4255
    %v4692 = vunpack.c.l.b16 %v4256
    %v4693 = vunpack.c.h.b16 %v4256
    %v4694 = vunpack.c.l.b16 %v4257
    %v4695 = vunpack.c.h.b16 %v4257
    %v4696 = vunpack.c.l.b16 %v4258
    %v4697 = vunpack.c.h.b16 %v4258
    %v4698 = vunpack.c.l.b16 %v4259
    %v4699 = vunpack.c.h.b16 %v4259
    %v4700 = vunpack.c.l.b16 %v4260
    %v4701 = vunpack.c.h.b16 %v4260
    %v4702 = vunpack.c.l.b16 %v4261
    %v4703 = vunpack.c.h.b16 %v4261
    %v4704 = vunpack.c.l.b16 %v4262
    %v4705 = vunpack.c.h.b16 %v4262
    %v4706 = vunpack.c.l.b16 %v4263
    %v4707 = vunpack.c.h.b16 %v4263
    %v4708 = vunpack.c.l.b16 %v4264
    %v4709 = vunpack.c.h.b16 %v4264
    %v4710 = vunpack.c.l.b16 %v4265
    %v4711 = vunpack.c.h.b16 %v4265
    %v4712 = vunpack.c.l.b16 %v4266
    %v4713 = vunpack.c.h.b16 %v4266
    %v4714 = vunpack.c.l.b16 %v4267
    %v4715 = vunpack.c.h.b16 %v4267
    %v4716 = vunpack.c.l.b16 %v4268
    %v4717 = vunpack.c.h.b16 %v4268
    %v4718 = vunpack.c.l.b16 %v4269
    %v4719 = vunpack.c.h.b16 %v4269
    %v4720 = vunpack.c.l.b16 %v4270
    %v4721 = vunpack.c.h.b16 %v4270
    %v4722 = vunpack.c.l.b16 %v4271
    %v4723 = vunpack.c.h.b16 %v4271
    %v4724 = vunpack.c.l.b16 %v4272
    %v4725 = vunpack.c.h.b16 %v4272
    %v4726 = vunpack.c.l.b16 %v4273
    %v4727 = vunpack.c.h.b16 %v4273
    %v4728 = vunpack.c.l.b16 %v4274
    %v4729 = vunpack.c.h.b16 %v4274
    %v4730 = vunpack.c.l.b16 %v4275
    %v4731 = vunpack.c.h.b16 %v4275
    %v4732 = vunpack.c.l.b16 %v4276
    %v4733 = vunpack.c.h.b16 %v4276
    %v4734 = vunpack.c.l.b16 %v4277
    %v4735 = vunpack.c.h.b16 %v4277
    %v4736 = vunpack.c.l.b16 %v4278
    %v4737 = vunpack.c.h.b16 %v4278
    %v4738 = vunpack.c.l.b16 %v4279
    %v4739 = vunpack.c.h.b16 %v4279
    %v4740 = vpack.c.b16 %v4678, %v4676
    %v4741 = vpack.c.b16 %v4679, %v4677
    %v4742 = vpack.c.b16 %v4682, %v4680
    %v4743 = vpack.c.b16 %v4683, %v4681
    %v4744 = vpack.c.b16 %v4686, %v4684
    %v4745 = vpack.c.b16 %v4687, %v4685
    %v4746 = vpack.c.b16 %v4690, %v4688
    %v4747 = vpack.c.b16 %v4691, %v4689
    %v4748 = vpack.c.b16 %v4694, %v4692
    %v4749 = vpack.c.b16 %v4695, %v4693
    %v4750 = vpack.c.b16 %v4698, %v4696
    %v4751 = vpack.c.b16 %v4699, %v4697
    %v4752 = vpack.c.b16 %v4702, %v4700
    %v4753 = vpack.c.b16 %v4703, %v4701
    %v4754 = vpack.c.b16 %v4706, %v4704
    %v4755 = vpack.c.b16 %v4707, %v4705
    %v4756 = vpack.c.b16 %v4710, %v4708
    %v4757 = vpack.c.b16 %v4711, %v4709
    %v4758 = vpack.c.b16 %v4714, %v4712
    %v4759 = vpack.c.b16 %v4715, %v4713
    %v4760 = vpack.c.b16 %v4718, %v4716
    %v4761 = vpack.c.b16 %v4719, %v4717
    %v4762 = vpack.c.b16 %v4722, %v4720
    %v4763 = vpack.c.b16 %v4723, %v4721
    %v4764 = vpack.c.b16 %v4726, %v4724
    %v4765 = vpack.c.b16 %v4727, %v4725
    %v4766 = vpack.c.b16 %v4730, %v4728
    %v4767 = vpack.c.b16 %v4731, %v4729
    %v4768 = vpack.c.b16 %v4734, %v4732
    %v4769 = vpack.c.b16 %v4735, %v4733
    %v4770 = vpack.c.b16 %v4738, %v4736
    %v4771 = vpack.c.b16 %v4739, %v4737
    %4804 = vmatpush.bf16.msra.mxu0 %v4754
    %4805 = vmatpush.bf16.msra.mxu0 %v4752
    %4806 = vmatpush.bf16.msra.mxu0 %v4750
    %4807 = vmatpush.bf16.msra.mxu0 %v4748
    %4808 = vmatpush.bf16.msra.mxu0 %v4746
    %4809 = vmatpush.bf16.msra.mxu0 %v4744
    %4810 = vmatpush.bf16.msra.mxu0 %v4742
    %4811 = vmatpush.bf16.msra.mxu0 %v4740
    %4812 = vmatmul.bf16.gmra.mxu0 %v4240
    %v4813 = vpop.f32.mrf.mxu0
    %v4814 = vadd.f32 %v4567, %v4813
    %v4815 = vpop.f32.mrf.mxu0
    %v4816 = vadd.f32 %v4569, %v4815
    %4817 = vmatmul.bf16.gmra.mxu0 %v4242
    %v4818 = vpop.f32.mrf.mxu0
    %v4819 = vadd.f32 %v4572, %v4818
    %v4820 = vpop.f32.mrf.mxu0
    %v4821 = vadd.f32 %v4574, %v4820
    %4822 = vmatmul.bf16.gmra.mxu0 %v4244
    %v4823 = vpop.f32.mrf.mxu0
    %v4824 = vadd.f32 %v4577, %v4823
    %v4825 = vpop.f32.mrf.mxu0
    %v4826 = vadd.f32 %v4579, %v4825
    %4827 = vmatmul.bf16.gmra.mxu0 %v4246
    %v4828 = vpop.f32.mrf.mxu0
    %v4829 = vadd.f32 %v4582, %v4828
    %v4830 = vpop.f32.mrf.mxu0
    %v4831 = vadd.f32 %v4584, %v4830
    %4832 = vdwg.mxu0
    %4833 = vmatpush.bf16.msra.mxu0 %v4770
    %4834 = vmatpush.bf16.msra.mxu0 %v4768
    %4835 = vmatpush.bf16.msra.mxu0 %v4766
    %4836 = vmatpush.bf16.msra.mxu0 %v4764
    %4837 = vmatpush.bf16.msra.mxu0 %v4762
    %4838 = vmatpush.bf16.msra.mxu0 %v4760
    %4839 = vmatpush.bf16.msra.mxu0 %v4758
    %4840 = vmatpush.bf16.msra.mxu0 %v4756
    %4841 = vmatmul.bf16.gmra.mxu0 %v4241
    %v4842 = vpop.f32.mrf.mxu0
    %v4843 = vadd.f32 %v4814, %v4842
    %v4844 = vpop.f32.mrf.mxu0
    %v4845 = vadd.f32 %v4816, %v4844
    %4846 = vmatmul.bf16.gmra.mxu0 %v4243
    %v4847 = vpop.f32.mrf.mxu0
    %v4848 = vadd.f32 %v4819, %v4847
    %v4849 = vpop.f32.mrf.mxu0
    %v4850 = vadd.f32 %v4821, %v4849
    %4851 = vmatmul.bf16.gmra.mxu0 %v4245
    %v4852 = vpop.f32.mrf.mxu0
    %v4853 = vadd.f32 %v4824, %v4852
    %v4854 = vpop.f32.mrf.mxu0
    %v4855 = vadd.f32 %v4826, %v4854
    %4856 = vmatmul.bf16.gmra.mxu0 %v4247
    %v4857 = vpop.f32.mrf.mxu0
    %v4858 = vadd.f32 %v4829, %v4857
    %v4859 = vpop.f32.mrf.mxu0
    %v4860 = vadd.f32 %v4831, %v4859
    %4861 = vdwg.mxu0
    %4862 = vmatpush.bf16.msra.mxu0 %v4755
    %4863 = vmatpush.bf16.msra.mxu0 %v4753
    %4864 = vmatpush.bf16.msra.mxu0 %v4751
    %4865 = vmatpush.bf16.msra.mxu0 %v4749
    %4866 = vmatpush.bf16.msra.mxu0 %v4747
    %4867 = vmatpush.bf16.msra.mxu0 %v4745
    %4868 = vmatpush.bf16.msra.mxu0 %v4743
    %4869 = vmatpush.bf16.msra.mxu0 %v4741
    %4870 = vmatmul.bf16.gmra.mxu0 %v4240
    %v4871 = vpop.f32.mrf.mxu0
    %v4872 = vadd.f32 %v4625, %v4871
    %v4873 = vpop.f32.mrf.mxu0
    %v4874 = vadd.f32 %v4627, %v4873
    %4875 = vmatmul.bf16.gmra.mxu0 %v4242
    %v4876 = vpop.f32.mrf.mxu0
    %v4877 = vadd.f32 %v4630, %v4876
    %v4878 = vpop.f32.mrf.mxu0
    %v4879 = vadd.f32 %v4632, %v4878
    %4880 = vmatmul.bf16.gmra.mxu0 %v4244
    %v4881 = vpop.f32.mrf.mxu0
    %v4882 = vadd.f32 %v4635, %v4881
    %v4883 = vpop.f32.mrf.mxu0
    %v4884 = vadd.f32 %v4637, %v4883
    %4885 = vmatmul.bf16.gmra.mxu0 %v4246
    %v4886 = vpop.f32.mrf.mxu0
    %v4887 = vadd.f32 %v4640, %v4886
    %v4888 = vpop.f32.mrf.mxu0
    %v4889 = vadd.f32 %v4642, %v4888
    %4890 = vdwg.mxu0
    %4891 = vmatpush.bf16.msra.mxu0 %v4771
    %4892 = vmatpush.bf16.msra.mxu0 %v4769
    %4893 = vmatpush.bf16.msra.mxu0 %v4767
    %4894 = vmatpush.bf16.msra.mxu0 %v4765
    %4895 = vmatpush.bf16.msra.mxu0 %v4763
    %4896 = vmatpush.bf16.msra.mxu0 %v4761
    %4897 = vmatpush.bf16.msra.mxu0 %v4759
    %4898 = vmatpush.bf16.msra.mxu0 %v4757
    %4899 = vmatmul.bf16.gmra.mxu0 %v4241
    %v4900 = vpop.f32.mrf.mxu0
    %v4901 = vadd.f32 %v4872, %v4900
    %v4902 = vpop.f32.mrf.mxu0
    %v4903 = vadd.f32 %v4874, %v4902
    %4904 = vmatmul.bf16.gmra.mxu0 %v4243
    %v4905 = vpop.f32.mrf.mxu0
    %v4906 = vadd.f32 %v4877, %v4905
    %v4907 = vpop.f32.mrf.mxu0
    %v4908 = vadd.f32 %v4879, %v4907
    %4909 = vmatmul.bf16.gmra.mxu0 %v4245
    %v4910 = vpop.f32.mrf.mxu0
    %v4911 = vadd.f32 %v4882, %v4910
    %v4912 = vpop.f32.mrf.mxu0
    %v4913 = vadd.f32 %v4884, %v4912
    %4914 = vmatmul.bf16.gmra.mxu0 %v4247
    %v4915 = vpop.f32.mrf.mxu0
    %v4916 = vadd.f32 %v4887, %v4915
    %v4917 = vpop.f32.mrf.mxu0
    %v4918 = vadd.f32 %v4889, %v4917
    %4919 = vdwg.mxu0
    %v4920 = vrot.slane %v4192, 1
    %v4921 = vrot.slane %v4221, 1
    %v4922 = vrot.slane %v4194, 1
    %v4923 = vrot.slane %v4223, 1
    %v4924 = vrot.slane %v4197, 1
    %v4925 = vrot.slane %v4226, 1
    %v4926 = vrot.slane %v4199, 1
    %v4927 = vrot.slane %v4228, 1
    %v4928 = vrot.slane %v4202, 1
    %v4929 = vrot.slane %v4231, 1
    %v4930 = vrot.slane %v4204, 1
    %v4931 = vrot.slane %v4233, 1
    %v4932 = vrot.slane %v4207, 1
    %v4933 = vrot.slane %v4236, 1
    %v4934 = vrot.slane %v4209, 1
    %v4935 = vrot.slane %v4238, 1
    %v4936 = vsel %vm966, %v4932, %v4934
    %v4937 = vsel %vm966, %v4933, %v4935
    %v4938 = vsel %vm966, %v4930, %v4932
    %v4939 = vsel %vm966, %v4931, %v4933
    %v4940 = vsel %vm966, %v4928, %v4930
    %v4941 = vsel %vm966, %v4929, %v4931
    %v4942 = vsel %vm966, %v4926, %v4928
    %v4943 = vsel %vm966, %v4927, %v4929
    %v4944 = vsel %vm966, %v4924, %v4926
    %v4945 = vsel %vm966, %v4925, %v4927
    %v4946 = vsel %vm966, %v4922, %v4924
    %v4947 = vsel %vm966, %v4923, %v4925
    %v4948 = vsel %vm966, %v4920, %v4922
    %v4949 = vsel %vm966, %v4921, %v4923
    %v4950 = vsel %vm966, %v4934, %v4920
    %v4951 = vsel %vm966, %v4935, %v4921
    %v4952 = vsel %vm991, %v4948, 0.0
    %v4953 = vsel %vm991, %v4949, 0.0
    %v4954 = vsel %vm992, %v4946, 0.0
    %v4955 = vsel %vm992, %v4947, 0.0
    %v4956 = vsel %vm993, %v4944, 0.0
    %v4957 = vsel %vm993, %v4945, 0.0
    %v4958 = vsel %vm994, %v4942, 0.0
    %v4959 = vsel %vm994, %v4943, 0.0
    %v4960 = vsel %vm995, %v4940, 0.0
    %v4961 = vsel %vm995, %v4941, 0.0
    %v4962 = vsel %vm996, %v4938, 0.0
    %v4963 = vsel %vm996, %v4939, 0.0
    %v4964 = vsel %vm997, %v4936, 0.0
    %v4965 = vsel %vm997, %v4937, 0.0
    %v4966 = vsel %vm998, %v4950, 0.0
    %v4967 = vsel %vm998, %v4951, 0.0
    %v4968 = vpack.c.bf16 %v4954, %v4952
    %v4969 = vpack.c.bf16 %v4955, %v4953
    %v4970 = vpack.c.bf16 %v4958, %v4956
    %v4971 = vpack.c.bf16 %v4959, %v4957
    %v4972 = vpack.c.bf16 %v4962, %v4960
    %v4973 = vpack.c.bf16 %v4963, %v4961
    %v4974 = vpack.c.bf16 %v4966, %v4964
    %v4975 = vpack.c.bf16 %v4967, %v4965
    %v4976 = vld [vmem:[#allocation2 + $0xc20] sm:$0xff]
    %v4977 = vld [vmem:[#allocation2 + $0xc28] sm:$0xff]
    %v4978 = vld [vmem:[#allocation2 + $0xc30] sm:$0xff]
    %v4979 = vld [vmem:[#allocation2 + $0xc38] sm:$0xff]
    %v4980 = vld [vmem:[#allocation2 + $0xc40] sm:$0xff]
    %v4981 = vld [vmem:[#allocation2 + $0xc48] sm:$0xff]
    %v4982 = vld [vmem:[#allocation2 + $0xc50] sm:$0xff]
    %v4983 = vld [vmem:[#allocation2 + $0xc58] sm:$0xff]
    %v4984 = vld [vmem:[#allocation2 + $0xc60] sm:$0xff]
    %v4985 = vld [vmem:[#allocation2 + $0xc68] sm:$0xff]
    %v4986 = vld [vmem:[#allocation2 + $0xc70] sm:$0xff]
    %v4987 = vld [vmem:[#allocation2 + $0xc78] sm:$0xff]
    %v4988 = vld [vmem:[#allocation2 + $0xc80] sm:$0xff]
    %v4989 = vld [vmem:[#allocation2 + $0xc88] sm:$0xff]
    %v4990 = vld [vmem:[#allocation2 + $0xc90] sm:$0xff]
    %v4991 = vld [vmem:[#allocation2 + $0xc98] sm:$0xff]
    %v4992 = vld [vmem:[#allocation2 + $0xca0] sm:$0xff]
    %v4993 = vld [vmem:[#allocation2 + $0xca8] sm:$0xff]
    %v4994 = vld [vmem:[#allocation2 + $0xcb0] sm:$0xff]
    %v4995 = vld [vmem:[#allocation2 + $0xcb8] sm:$0xff]
    %v4996 = vld [vmem:[#allocation2 + $0xcc0] sm:$0xff]
    %v4997 = vld [vmem:[#allocation2 + $0xcc8] sm:$0xff]
    %v4998 = vld [vmem:[#allocation2 + $0xcd0] sm:$0xff]
    %v4999 = vld [vmem:[#allocation2 + $0xcd8] sm:$0xff]
    %v5000 = vld [vmem:[#allocation2 + $0xce0] sm:$0xff]
    %v5001 = vld [vmem:[#allocation2 + $0xce8] sm:$0xff]
    %v5002 = vld [vmem:[#allocation2 + $0xcf0] sm:$0xff]
    %v5003 = vld [vmem:[#allocation2 + $0xcf8] sm:$0xff]
    %v5004 = vld [vmem:[#allocation2 + $0xd00] sm:$0xff]
    %v5005 = vld [vmem:[#allocation2 + $0xd08] sm:$0xff]
    %v5006 = vld [vmem:[#allocation2 + $0xd10] sm:$0xff]
    %v5007 = vld [vmem:[#allocation2 + $0xd18] sm:$0xff]
    %v5040 = vunpack.c.l.b16 %v4976
    %v5041 = vunpack.c.h.b16 %v4976
    %v5042 = vunpack.c.l.b16 %v4977
    %v5043 = vunpack.c.h.b16 %v4977
    %v5044 = vunpack.c.l.b16 %v4978
    %v5045 = vunpack.c.h.b16 %v4978
    %v5046 = vunpack.c.l.b16 %v4979
    %v5047 = vunpack.c.h.b16 %v4979
    %v5048 = vunpack.c.l.b16 %v4980
    %v5049 = vunpack.c.h.b16 %v4980
    %v5050 = vunpack.c.l.b16 %v4981
    %v5051 = vunpack.c.h.b16 %v4981
    %v5052 = vunpack.c.l.b16 %v4982
    %v5053 = vunpack.c.h.b16 %v4982
    %v5054 = vunpack.c.l.b16 %v4983
    %v5055 = vunpack.c.h.b16 %v4983
    %v5056 = vunpack.c.l.b16 %v4984
    %v5057 = vunpack.c.h.b16 %v4984
    %v5058 = vunpack.c.l.b16 %v4985
    %v5059 = vunpack.c.h.b16 %v4985
    %v5060 = vunpack.c.l.b16 %v4986
    %v5061 = vunpack.c.h.b16 %v4986
    %v5062 = vunpack.c.l.b16 %v4987
    %v5063 = vunpack.c.h.b16 %v4987
    %v5064 = vunpack.c.l.b16 %v4988
    %v5065 = vunpack.c.h.b16 %v4988
    %v5066 = vunpack.c.l.b16 %v4989
    %v5067 = vunpack.c.h.b16 %v4989
    %v5068 = vunpack.c.l.b16 %v4990
    %v5069 = vunpack.c.h.b16 %v4990
    %v5070 = vunpack.c.l.b16 %v4991
    %v5071 = vunpack.c.h.b16 %v4991
    %v5072 = vunpack.c.l.b16 %v4992
    %v5073 = vunpack.c.h.b16 %v4992
    %v5074 = vunpack.c.l.b16 %v4993
    %v5075 = vunpack.c.h.b16 %v4993
    %v5076 = vunpack.c.l.b16 %v4994
    %v5077 = vunpack.c.h.b16 %v4994
    %v5078 = vunpack.c.l.b16 %v4995
    %v5079 = vunpack.c.h.b16 %v4995
    %v5080 = vunpack.c.l.b16 %v4996
    %v5081 = vunpack.c.h.b16 %v4996
    %v5082 = vunpack.c.l.b16 %v4997
    %v5083 = vunpack.c.h.b16 %v4997
    %v5084 = vunpack.c.l.b16 %v4998
    %v5085 = vunpack.c.h.b16 %v4998
    %v5086 = vunpack.c.l.b16 %v4999
    %v5087 = vunpack.c.h.b16 %v4999
    %v5088 = vunpack.c.l.b16 %v5000
    %v5089 = vunpack.c.h.b16 %v5000
    %v5090 = vunpack.c.l.b16 %v5001
    %v5091 = vunpack.c.h.b16 %v5001
    %v5092 = vunpack.c.l.b16 %v5002
    %v5093 = vunpack.c.h.b16 %v5002
    %v5094 = vunpack.c.l.b16 %v5003
    %v5095 = vunpack.c.h.b16 %v5003
    %v5096 = vunpack.c.l.b16 %v5004
    %v5097 = vunpack.c.h.b16 %v5004
    %v5098 = vunpack.c.l.b16 %v5005
    %v5099 = vunpack.c.h.b16 %v5005
    %v5100 = vunpack.c.l.b16 %v5006
    %v5101 = vunpack.c.h.b16 %v5006
    %v5102 = vunpack.c.l.b16 %v5007
    %v5103 = vunpack.c.h.b16 %v5007
    %v5104 = vpack.c.b16 %v5042, %v5040
    %v5105 = vpack.c.b16 %v5043, %v5041
    %v5106 = vpack.c.b16 %v5046, %v5044
    %v5107 = vpack.c.b16 %v5047, %v5045
    %v5108 = vpack.c.b16 %v5050, %v5048
    %v5109 = vpack.c.b16 %v5051, %v5049
    %v5110 = vpack.c.b16 %v5054, %v5052
    %v5111 = vpack.c.b16 %v5055, %v5053
    %v5112 = vpack.c.b16 %v5058, %v5056
    %v5113 = vpack.c.b16 %v5059, %v5057
    %v5114 = vpack.c.b16 %v5062, %v5060
    %v5115 = vpack.c.b16 %v5063, %v5061
    %v5116 = vpack.c.b16 %v5066, %v5064
    %v5117 = vpack.c.b16 %v5067, %v5065
    %v5118 = vpack.c.b16 %v5070, %v5068
    %v5119 = vpack.c.b16 %v5071, %v5069
    %v5120 = vpack.c.b16 %v5074, %v5072
    %v5121 = vpack.c.b16 %v5075, %v5073
    %v5122 = vpack.c.b16 %v5078, %v5076
    %v5123 = vpack.c.b16 %v5079, %v5077
    %v5124 = vpack.c.b16 %v5082, %v5080
    %v5125 = vpack.c.b16 %v5083, %v5081
    %v5126 = vpack.c.b16 %v5086, %v5084
    %v5127 = vpack.c.b16 %v5087, %v5085
    %v5128 = vpack.c.b16 %v5090, %v5088
    %v5129 = vpack.c.b16 %v5091, %v5089
    %v5130 = vpack.c.b16 %v5094, %v5092
    %v5131 = vpack.c.b16 %v5095, %v5093
    %v5132 = vpack.c.b16 %v5098, %v5096
    %v5133 = vpack.c.b16 %v5099, %v5097
    %v5134 = vpack.c.b16 %v5102, %v5100
    %v5135 = vpack.c.b16 %v5103, %v5101
    %5168 = vmatpush.bf16.msra.mxu0 %v5118
    %5169 = vmatpush.bf16.msra.mxu0 %v5116
    %5170 = vmatpush.bf16.msra.mxu0 %v5114
    %5171 = vmatpush.bf16.msra.mxu0 %v5112
    %5172 = vmatpush.bf16.msra.mxu0 %v5110
    %5173 = vmatpush.bf16.msra.mxu0 %v5108
    %5174 = vmatpush.bf16.msra.mxu0 %v5106
    %5175 = vmatpush.bf16.msra.mxu0 %v5104
    %5176 = vmatmul.bf16.gmra.mxu0 %v4968
    %v5177 = vpop.f32.mrf.mxu0
    %v5178 = vadd.f32 0.0, %v5177
    %v5179 = vpop.f32.mrf.mxu0
    %v5180 = vadd.f32 0.0, %v5179
    %5181 = vmatmul.bf16.gmra.mxu0 %v4970
    %v5182 = vpop.f32.mrf.mxu0
    %v5183 = vadd.f32 0.0, %v5182
    %v5184 = vpop.f32.mrf.mxu0
    %v5185 = vadd.f32 0.0, %v5184
    %5186 = vmatmul.bf16.gmra.mxu0 %v4972
    %v5187 = vpop.f32.mrf.mxu0
    %v5188 = vadd.f32 0.0, %v5187
    %v5189 = vpop.f32.mrf.mxu0
    %v5190 = vadd.f32 0.0, %v5189
    %5191 = vmatmul.bf16.gmra.mxu0 %v4974
    %v5192 = vpop.f32.mrf.mxu0
    %v5193 = vadd.f32 0.0, %v5192
    %v5194 = vpop.f32.mrf.mxu0
    %v5195 = vadd.f32 0.0, %v5194
    %5196 = vdwg.mxu0
    %5197 = vmatpush.bf16.msra.mxu0 %v5134
    %5198 = vmatpush.bf16.msra.mxu0 %v5132
    %5199 = vmatpush.bf16.msra.mxu0 %v5130
    %5200 = vmatpush.bf16.msra.mxu0 %v5128
    %5201 = vmatpush.bf16.msra.mxu0 %v5126
    %5202 = vmatpush.bf16.msra.mxu0 %v5124
    %5203 = vmatpush.bf16.msra.mxu0 %v5122
    %5204 = vmatpush.bf16.msra.mxu0 %v5120
    %5205 = vmatmul.bf16.gmra.mxu0 %v4969
    %v5206 = vpop.f32.mrf.mxu0
    %v5207 = vadd.f32 %v5178, %v5206
    %v5208 = vpop.f32.mrf.mxu0
    %v5209 = vadd.f32 %v5180, %v5208
    %5210 = vmatmul.bf16.gmra.mxu0 %v4971
    %v5211 = vpop.f32.mrf.mxu0
    %v5212 = vadd.f32 %v5183, %v5211
    %v5213 = vpop.f32.mrf.mxu0
    %v5214 = vadd.f32 %v5185, %v5213
    %5215 = vmatmul.bf16.gmra.mxu0 %v4973
    %v5216 = vpop.f32.mrf.mxu0
    %v5217 = vadd.f32 %v5188, %v5216
    %v5218 = vpop.f32.mrf.mxu0
    %v5219 = vadd.f32 %v5190, %v5218
    %5220 = vmatmul.bf16.gmra.mxu0 %v4975
    %v5221 = vpop.f32.mrf.mxu0
    %v5222 = vadd.f32 %v5193, %v5221
    %v5223 = vpop.f32.mrf.mxu0
    %v5224 = vadd.f32 %v5195, %v5223
    %5225 = vdwg.mxu0
    %5226 = vmatpush.bf16.msra.mxu0 %v5119
    %5227 = vmatpush.bf16.msra.mxu0 %v5117
    %5228 = vmatpush.bf16.msra.mxu0 %v5115
    %5229 = vmatpush.bf16.msra.mxu0 %v5113
    %5230 = vmatpush.bf16.msra.mxu0 %v5111
    %5231 = vmatpush.bf16.msra.mxu0 %v5109
    %5232 = vmatpush.bf16.msra.mxu0 %v5107
    %5233 = vmatpush.bf16.msra.mxu0 %v5105
    %5234 = vmatmul.bf16.gmra.mxu0 %v4968
    %v5235 = vpop.f32.mrf.mxu0
    %v5236 = vadd.f32 0.0, %v5235
    %v5237 = vpop.f32.mrf.mxu0
    %v5238 = vadd.f32 0.0, %v5237
    %5239 = vmatmul.bf16.gmra.mxu0 %v4970
    %v5240 = vpop.f32.mrf.mxu0
    %v5241 = vadd.f32 0.0, %v5240
    %v5242 = vpop.f32.mrf.mxu0
    %v5243 = vadd.f32 0.0, %v5242
    %5244 = vmatmul.bf16.gmra.mxu0 %v4972
    %v5245 = vpop.f32.mrf.mxu0
    %v5246 = vadd.f32 0.0, %v5245
    %v5247 = vpop.f32.mrf.mxu0
    %v5248 = vadd.f32 0.0, %v5247
    %5249 = vmatmul.bf16.gmra.mxu0 %v4974
    %v5250 = vpop.f32.mrf.mxu0
    %v5251 = vadd.f32 0.0, %v5250
    %v5252 = vpop.f32.mrf.mxu0
    %v5253 = vadd.f32 0.0, %v5252
    %5254 = vdwg.mxu0
    %5255 = vmatpush.bf16.msra.mxu0 %v5135
    %5256 = vmatpush.bf16.msra.mxu0 %v5133
    %5257 = vmatpush.bf16.msra.mxu0 %v5131
    %5258 = vmatpush.bf16.msra.mxu0 %v5129
    %5259 = vmatpush.bf16.msra.mxu0 %v5127
    %5260 = vmatpush.bf16.msra.mxu0 %v5125
    %5261 = vmatpush.bf16.msra.mxu0 %v5123
    %5262 = vmatpush.bf16.msra.mxu0 %v5121
    %5263 = vmatmul.bf16.gmra.mxu0 %v4969
    %v5264 = vpop.f32.mrf.mxu0
    %v5265 = vadd.f32 %v5236, %v5264
    %v5266 = vpop.f32.mrf.mxu0
    %v5267 = vadd.f32 %v5238, %v5266
    %5268 = vmatmul.bf16.gmra.mxu0 %v4971
    %v5269 = vpop.f32.mrf.mxu0
    %v5270 = vadd.f32 %v5241, %v5269
    %v5271 = vpop.f32.mrf.mxu0
    %v5272 = vadd.f32 %v5243, %v5271
    %5273 = vmatmul.bf16.gmra.mxu0 %v4973
    %v5274 = vpop.f32.mrf.mxu0
    %v5275 = vadd.f32 %v5246, %v5274
    %v5276 = vpop.f32.mrf.mxu0
    %v5277 = vadd.f32 %v5248, %v5276
    %5278 = vmatmul.bf16.gmra.mxu0 %v4975
    %v5279 = vpop.f32.mrf.mxu0
    %v5280 = vadd.f32 %v5251, %v5279
    %v5281 = vpop.f32.mrf.mxu0
    %v5282 = vadd.f32 %v5253, %v5281
    %5283 = vdwg.mxu0
    %v5284 = vadd.f32 %v4843, %v5207
    %v5285 = vadd.f32 %v4901, %v5265
    %v5286 = vadd.f32 %v4845, %v5209
    %v5287 = vadd.f32 %v4903, %v5267
    %v5288 = vadd.f32 %v4848, %v5212
    %v5289 = vadd.f32 %v4906, %v5270
    %v5290 = vadd.f32 %v4850, %v5214
    %v5291 = vadd.f32 %v4908, %v5272
    %v5292 = vadd.f32 %v4853, %v5217
    %v5293 = vadd.f32 %v4911, %v5275
    %v5294 = vadd.f32 %v4855, %v5219
    %v5295 = vadd.f32 %v4913, %v5277
    %v5296 = vadd.f32 %v4858, %v5222
    %v5297 = vadd.f32 %v4916, %v5280
    %v5298 = vadd.f32 %v4860, %v5224
    %v5299 = vadd.f32 %v4918, %v5282
    %v5300 = vmul.f32 %v5284, %v1348
    %v5301 = vmul.f32 %v5285, %v1349
    %v5302 = vmul.f32 %v5286, %v1348
    %v5303 = vmul.f32 %v5287, %v1349
    %v5304 = vmul.f32 %v5288, %v1348
    %v5305 = vmul.f32 %v5289, %v1349
    %v5306 = vmul.f32 %v5290, %v1348
    %v5307 = vmul.f32 %v5291, %v1349
    %v5308 = vmul.f32 %v5292, %v1348
    %v5309 = vmul.f32 %v5293, %v1349
    %v5310 = vmul.f32 %v5294, %v1348
    %v5311 = vmul.f32 %v5295, %v1349
    %v5312 = vmul.f32 %v5296, %v1348
    %v5313 = vmul.f32 %v5297, %v1349
    %v5314 = vmul.f32 %v5298, %v1348
    %v5315 = vmul.f32 %v5299, %v1349
    %s5316 = scalar_lea.vmem [#allocation6], 4
    %v5317 = vld [vmem:[%s5316] ss:$8 sm:$0x3]
    %v5319 = vperm.slane %v5317, 0
    %v5320 = vperm.slane %v5317, 1
    %v5323 = vadd.f32 %v5300, %v5319
    %v5324 = vadd.f32 %v5301, %v5320
    %v5325 = vadd.f32 %v5302, %v5319
    %v5326 = vadd.f32 %v5303, %v5320
    %v5327 = vadd.f32 %v5304, %v5319
    %v5328 = vadd.f32 %v5305, %v5320
    %v5329 = vadd.f32 %v5306, %v5319
    %v5330 = vadd.f32 %v5307, %v5320
    %v5331 = vadd.f32 %v5308, %v5319
    %v5332 = vadd.f32 %v5309, %v5320
    %v5333 = vadd.f32 %v5310, %v5319
    %v5334 = vadd.f32 %v5311, %v5320
    %v5335 = vadd.f32 %v5312, %v5319
    %v5336 = vadd.f32 %v5313, %v5320
    %v5337 = vadd.f32 %v5314, %v5319
    %v5338 = vadd.f32 %v5315, %v5320
    %v5339 = vmax.f32 %v5323, 0.0
    %v5340 = vmax.f32 %v5324, 0.0
    %v5341 = vmax.f32 %v5325, 0.0
    %v5342 = vmax.f32 %v5326, 0.0
    %v5343 = vmax.f32 %v5327, 0.0
    %v5344 = vmax.f32 %v5328, 0.0
    %v5345 = vmax.f32 %v5329, 0.0
    %v5346 = vmax.f32 %v5330, 0.0
    %v5347 = vmax.f32 %v5331, 0.0
    %v5348 = vmax.f32 %v5332, 0.0
    %v5349 = vmax.f32 %v5333, 0.0
    %v5350 = vmax.f32 %v5334, 0.0
    %v5351 = vmax.f32 %v5335, 0.0
    %v5352 = vmax.f32 %v5336, 0.0
    %v5353 = vmax.f32 %v5337, 0.0
    %v5354 = vmax.f32 %v5338, 0.0
    %v5355 = vld [vmem:[%s4] sm:$0xf]
    %v5356 = vld [vmem:[%s4 + $0x4] sm:$0xf]
    %v5357 = vld [vmem:[#allocation4 + $0x60] sm:$0xf]
    %v5358 = vld [vmem:[#allocation4 + $0x64] sm:$0xf]
    %v5359 = vld [vmem:[#allocation4 + $0x68] sm:$0xf]
    %v5360 = vld [vmem:[#allocation4 + $0x6c] sm:$0xf]
    %v5361 = vld [vmem:[#allocation4 + $0x70] sm:$0xf]
    %v5362 = vld [vmem:[#allocation4 + $0x74] sm:$0xf]
    %v5363 = vld [vmem:[#allocation4 + $0x78] sm:$0xf]
    %v5364 = vld [vmem:[#allocation4 + $0x7c] sm:$0xf]
    %v5365 = vld [vmem:[#allocation2 + $0xe0] sm:$0xff]
    %v5366 = vld [vmem:[#allocation2 + $0xe8] sm:$0xff]
    %v5367 = vld [vmem:[#allocation2 + $0xf0] sm:$0xff]
    %v5368 = vld [vmem:[#allocation2 + $0xf8] sm:$0xff]
    %v5371 = vunpack.c.l.b16 %v5355
    %v5372 = vunpack.c.l.b16 %v5356
    %v5373 = vpack.c.b16 %v5372, %v5371
    %v5378 = vunpack.c.l.b16 %v5365
    %v5379 = vunpack.c.h.b16 %v5365
    %v5380 = vunpack.c.l.b16 %v5366
    %v5381 = vunpack.c.h.b16 %v5366
    %v5382 = vunpack.c.l.b16 %v5367
    %v5383 = vunpack.c.h.b16 %v5367
    %v5384 = vunpack.c.l.b16 %v5368
    %v5385 = vunpack.c.h.b16 %v5368
    %v5386 = vpack.c.b16 %v5380, %v5378
    %v5387 = vpack.c.b16 %v5381, %v5379
    %v5388 = vpack.c.b16 %v5384, %v5382
    %v5389 = vpack.c.b16 %v5385, %v5383
    %v5395 = vsel %vm1589, %v5373, 0
    %5397 = vmatpush.bf16.msra.mxu0 0
    %5398 = vmatpush.bf16.msra.mxu0 0
    %5399 = vmatpush.bf16.msra.mxu0 0
    %5400 = vmatpush.bf16.msra.mxu0 0
    %5401 = vmatpush.bf16.msra.mxu0 0
    %5402 = vmatpush.bf16.msra.mxu0 0
    %5403 = vmatpush.bf16.msra.mxu0 %v5388
    %5404 = vmatpush.bf16.msra.mxu0 %v5386
    %5405 = vmatmul.bf16.gmra.mxu0 %v5395
    %v5406 = vpop.f32.mrf.mxu0
    %v5407 = vadd.f32 0.0, %v5406
    %v5408 = vpop.f32.mrf.mxu0
    %v5409 = vadd.f32 0.0, %v5408
    %5410 = vdwg.mxu0
    %5411 = vmatpush.bf16.msra.mxu0 0
    %5412 = vmatpush.bf16.msra.mxu0 0
    %5413 = vmatpush.bf16.msra.mxu0 0
    %5414 = vmatpush.bf16.msra.mxu0 0
    %5415 = vmatpush.bf16.msra.mxu0 0
    %5416 = vmatpush.bf16.msra.mxu0 0
    %5417 = vmatpush.bf16.msra.mxu0 %v5389
    %5418 = vmatpush.bf16.msra.mxu0 %v5387
    %5419 = vmatmul.bf16.gmra.mxu0 %v5395
    %v5420 = vpop.f32.mrf.mxu0
    %v5421 = vadd.f32 0.0, %v5420
    %v5422 = vpop.f32.mrf.mxu0
    %v5423 = vadd.f32 0.0, %v5422
    %5424 = vdwg.mxu0
    %v5425 = vpack.c.bf16 %v5409, %v5407
    %v5426 = vpack.c.bf16 %v5423, %v5421
    %v5435 = vunpack.c.l.b16 %v5357
    %v5436 = vunpack.c.l.b16 %v5358
    %v5437 = vunpack.c.l.b16 %v5359
    %v5438 = vunpack.c.l.b16 %v5360
    %v5439 = vunpack.c.l.b16 %v5361
    %v5440 = vunpack.c.l.b16 %v5362
    %v5441 = vunpack.c.l.b16 %v5363
    %v5442 = vunpack.c.l.b16 %v5364
    %v5443 = vpack.c.b16 %v5436, %v5435
    %v5444 = vpack.c.b16 %v5438, %v5437
    %v5445 = vpack.c.b16 %v5440, %v5439
    %v5446 = vpack.c.b16 %v5442, %v5441
    %v5448 = vsel %vm2892, %v5443, 0
    %v5451 = vsel %vm2892, %v5444, 0
    %v5454 = vsel %vm2892, %v5445, 0
    %v5457 = vsel %vm2892, %v5446, 0
    %5459 = vmatpush.bf16.msra.mxu0 0
    %5460 = vmatpush.bf16.msra.mxu0 0
    %5461 = vmatpush.bf16.msra.mxu0 0
    %5462 = vmatpush.bf16.msra.mxu0 0
    %5463 = vmatpush.bf16.msra.mxu0 0
    %5464 = vmatpush.bf16.msra.mxu0 0
    %5465 = vmatpush.bf16.msra.mxu0 0
    %5466 = vmatpush.bf16.msra.mxu0 %v5425
    %5467 = vmatmul.bf16.gmra.mxu0 %v5448
    %v5468 = vpop.f32.mrf.mxu0
    %v5469 = vadd.f32 0.0, %v5468
    %v5470 = vpop.f32.mrf.mxu0
    %v5471 = vadd.f32 0.0, %v5470
    %5472 = vmatmul.bf16.gmra.mxu0 %v5451
    %v5473 = vpop.f32.mrf.mxu0
    %v5474 = vadd.f32 0.0, %v5473
    %v5475 = vpop.f32.mrf.mxu0
    %v5476 = vadd.f32 0.0, %v5475
    %5477 = vmatmul.bf16.gmra.mxu0 %v5454
    %v5478 = vpop.f32.mrf.mxu0
    %v5479 = vadd.f32 0.0, %v5478
    %v5480 = vpop.f32.mrf.mxu0
    %v5481 = vadd.f32 0.0, %v5480
    %5482 = vmatmul.bf16.gmra.mxu0 %v5457
    %v5483 = vpop.f32.mrf.mxu0
    %v5484 = vadd.f32 0.0, %v5483
    %v5485 = vpop.f32.mrf.mxu0
    %v5486 = vadd.f32 0.0, %v5485
    %5487 = vdwg.mxu0
    %5488 = vmatpush.bf16.msra.mxu0 0
    %5489 = vmatpush.bf16.msra.mxu0 0
    %5490 = vmatpush.bf16.msra.mxu0 0
    %5491 = vmatpush.bf16.msra.mxu0 0
    %5492 = vmatpush.bf16.msra.mxu0 0
    %5493 = vmatpush.bf16.msra.mxu0 0
    %5494 = vmatpush.bf16.msra.mxu0 0
    %5495 = vmatpush.bf16.msra.mxu0 %v5426
    %5496 = vmatmul.bf16.gmra.mxu0 %v5448
    %v5497 = vpop.f32.mrf.mxu0
    %v5498 = vadd.f32 0.0, %v5497
    %v5499 = vpop.f32.mrf.mxu0
    %v5500 = vadd.f32 0.0, %v5499
    %5501 = vmatmul.bf16.gmra.mxu0 %v5451
    %v5502 = vpop.f32.mrf.mxu0
    %v5503 = vadd.f32 0.0, %v5502
    %v5504 = vpop.f32.mrf.mxu0
    %v5505 = vadd.f32 0.0, %v5504
    %5506 = vmatmul.bf16.gmra.mxu0 %v5454
    %v5507 = vpop.f32.mrf.mxu0
    %v5508 = vadd.f32 0.0, %v5507
    %v5509 = vpop.f32.mrf.mxu0
    %v5510 = vadd.f32 0.0, %v5509
    %5511 = vmatmul.bf16.gmra.mxu0 %v5457
    %v5512 = vpop.f32.mrf.mxu0
    %v5513 = vadd.f32 0.0, %v5512
    %v5514 = vpop.f32.mrf.mxu0
    %v5515 = vadd.f32 0.0, %v5514
    %5516 = vdwg.mxu0
    %v5517 = vld [vmem:[#allocation2 + $0x100] sm:$0xff]
    %v5518 = vld [vmem:[#allocation2 + $0x108] sm:$0xff]
    %v5519 = vld [vmem:[#allocation2 + $0x110] sm:$0xff]
    %v5520 = vld [vmem:[#allocation2 + $0x118] sm:$0xff]
    %v5525 = vunpack.c.l.b16 %v5517
    %v5526 = vunpack.c.h.b16 %v5517
    %v5527 = vunpack.c.l.b16 %v5518
    %v5528 = vunpack.c.h.b16 %v5518
    %v5529 = vunpack.c.l.b16 %v5519
    %v5530 = vunpack.c.h.b16 %v5519
    %v5531 = vunpack.c.l.b16 %v5520
    %v5532 = vunpack.c.h.b16 %v5520
    %v5533 = vpack.c.b16 %v5527, %v5525
    %v5534 = vpack.c.b16 %v5528, %v5526
    %v5535 = vpack.c.b16 %v5531, %v5529
    %v5536 = vpack.c.b16 %v5532, %v5530
    %5541 = vmatpush.bf16.msra.mxu0 0
    %5542 = vmatpush.bf16.msra.mxu0 0
    %5543 = vmatpush.bf16.msra.mxu0 0
    %5544 = vmatpush.bf16.msra.mxu0 0
    %5545 = vmatpush.bf16.msra.mxu0 0
    %5546 = vmatpush.bf16.msra.mxu0 0
    %5547 = vmatpush.bf16.msra.mxu0 %v5535
    %5548 = vmatpush.bf16.msra.mxu0 %v5533
    %5549 = vmatmul.bf16.gmra.mxu0 %v5395
    %v5550 = vpop.f32.mrf.mxu0
    %v5551 = vadd.f32 0.0, %v5550
    %v5552 = vpop.f32.mrf.mxu0
    %v5553 = vadd.f32 0.0, %v5552
    %5554 = vdwg.mxu0
    %5555 = vmatpush.bf16.msra.mxu0 0
    %5556 = vmatpush.bf16.msra.mxu0 0
    %5557 = vmatpush.bf16.msra.mxu0 0
    %5558 = vmatpush.bf16.msra.mxu0 0
    %5559 = vmatpush.bf16.msra.mxu0 0
    %5560 = vmatpush.bf16.msra.mxu0 0
    %5561 = vmatpush.bf16.msra.mxu0 %v5536
    %5562 = vmatpush.bf16.msra.mxu0 %v5534
    %5563 = vmatmul.bf16.gmra.mxu0 %v5395
    %v5564 = vpop.f32.mrf.mxu0
    %v5565 = vadd.f32 0.0, %v5564
    %v5566 = vpop.f32.mrf.mxu0
    %v5567 = vadd.f32 0.0, %v5566
    %5568 = vdwg.mxu0
    %v5569 = vpack.c.bf16 %v5553, %v5551
    %v5570 = vpack.c.bf16 %v5567, %v5565
    %5571 = vmatpush.bf16.msra.mxu0 0
    %5572 = vmatpush.bf16.msra.mxu0 0
    %5573 = vmatpush.bf16.msra.mxu0 0
    %5574 = vmatpush.bf16.msra.mxu0 0
    %5575 = vmatpush.bf16.msra.mxu0 0
    %5576 = vmatpush.bf16.msra.mxu0 0
    %5577 = vmatpush.bf16.msra.mxu0 0
    %5578 = vmatpush.bf16.msra.mxu0 %v5569
    %5579 = vmatmul.bf16.gmra.mxu0 %v5448
    %v5580 = vpop.f32.mrf.mxu0
    %v5581 = vadd.f32 0.0, %v5580
    %v5582 = vpop.f32.mrf.mxu0
    %v5583 = vadd.f32 0.0, %v5582
    %5584 = vmatmul.bf16.gmra.mxu0 %v5451
    %v5585 = vpop.f32.mrf.mxu0
    %v5586 = vadd.f32 0.0, %v5585
    %v5587 = vpop.f32.mrf.mxu0
    %v5588 = vadd.f32 0.0, %v5587
    %5589 = vmatmul.bf16.gmra.mxu0 %v5454
    %v5590 = vpop.f32.mrf.mxu0
    %v5591 = vadd.f32 0.0, %v5590
    %v5592 = vpop.f32.mrf.mxu0
    %v5593 = vadd.f32 0.0, %v5592
    %5594 = vmatmul.bf16.gmra.mxu0 %v5457
    %v5595 = vpop.f32.mrf.mxu0
    %v5596 = vadd.f32 0.0, %v5595
    %v5597 = vpop.f32.mrf.mxu0
    %v5598 = vadd.f32 0.0, %v5597
    %5599 = vdwg.mxu0
    %5600 = vmatpush.bf16.msra.mxu0 0
    %5601 = vmatpush.bf16.msra.mxu0 0
    %5602 = vmatpush.bf16.msra.mxu0 0
    %5603 = vmatpush.bf16.msra.mxu0 0
    %5604 = vmatpush.bf16.msra.mxu0 0
    %5605 = vmatpush.bf16.msra.mxu0 0
    %5606 = vmatpush.bf16.msra.mxu0 0
    %5607 = vmatpush.bf16.msra.mxu0 %v5570
    %5608 = vmatmul.bf16.gmra.mxu0 %v5448
    %v5609 = vpop.f32.mrf.mxu0
    %v5610 = vadd.f32 0.0, %v5609
    %v5611 = vpop.f32.mrf.mxu0
    %v5612 = vadd.f32 0.0, %v5611
    %5613 = vmatmul.bf16.gmra.mxu0 %v5451
    %v5614 = vpop.f32.mrf.mxu0
    %v5615 = vadd.f32 0.0, %v5614
    %v5616 = vpop.f32.mrf.mxu0
    %v5617 = vadd.f32 0.0, %v5616
    %5618 = vmatmul.bf16.gmra.mxu0 %v5454
    %v5619 = vpop.f32.mrf.mxu0
    %v5620 = vadd.f32 0.0, %v5619
    %v5621 = vpop.f32.mrf.mxu0
    %v5622 = vadd.f32 0.0, %v5621
    %5623 = vmatmul.bf16.gmra.mxu0 %v5457
    %v5624 = vpop.f32.mrf.mxu0
    %v5625 = vadd.f32 0.0, %v5624
    %v5626 = vpop.f32.mrf.mxu0
    %v5627 = vadd.f32 0.0, %v5626
    %5628 = vdwg.mxu0
    %v5629 = vpack.c.bf16 %v5471, %v5469
    %v5630 = vpack.c.bf16 %v5500, %v5498
    %v5631 = vpack.c.bf16 %v5583, %v5581
    %v5632 = vpack.c.bf16 %v5612, %v5610
    %v5633 = vpack.c.bf16 %v5476, %v5474
    %v5634 = vpack.c.bf16 %v5505, %v5503
    %v5635 = vpack.c.bf16 %v5588, %v5586
    %v5636 = vpack.c.bf16 %v5617, %v5615
    %v5637 = vpack.c.bf16 %v5481, %v5479
    %v5638 = vpack.c.bf16 %v5510, %v5508
    %v5639 = vpack.c.bf16 %v5593, %v5591
    %v5640 = vpack.c.bf16 %v5622, %v5620
    %v5641 = vpack.c.bf16 %v5486, %v5484
    %v5642 = vpack.c.bf16 %v5515, %v5513
    %v5643 = vpack.c.bf16 %v5598, %v5596
    %v5644 = vpack.c.bf16 %v5627, %v5625
    %v5645 = vld [vmem:[#allocation2 + $0xf20] sm:$0xff]
    %v5646 = vld [vmem:[#allocation2 + $0xf28] sm:$0xff]
    %v5647 = vld [vmem:[#allocation2 + $0xf30] sm:$0xff]
    %v5648 = vld [vmem:[#allocation2 + $0xf38] sm:$0xff]
    %v5649 = vld [vmem:[#allocation2 + $0xf40] sm:$0xff]
    %v5650 = vld [vmem:[#allocation2 + $0xf48] sm:$0xff]
    %v5651 = vld [vmem:[#allocation2 + $0xf50] sm:$0xff]
    %v5652 = vld [vmem:[#allocation2 + $0xf58] sm:$0xff]
    %v5653 = vld [vmem:[#allocation2 + $0xf60] sm:$0xff]
    %v5654 = vld [vmem:[#allocation2 + $0xf68] sm:$0xff]
    %v5655 = vld [vmem:[#allocation2 + $0xf70] sm:$0xff]
    %v5656 = vld [vmem:[#allocation2 + $0xf78] sm:$0xff]
    %v5657 = vld [vmem:[#allocation2 + $0xf80] sm:$0xff]
    %v5658 = vld [vmem:[#allocation2 + $0xf88] sm:$0xff]
    %v5659 = vld [vmem:[#allocation2 + $0xf90] sm:$0xff]
    %v5660 = vld [vmem:[#allocation2 + $0xf98] sm:$0xff]
    %v5661 = vld [vmem:[#allocation2 + $0xfa0] sm:$0xff]
    %v5662 = vld [vmem:[#allocation2 + $0xfa8] sm:$0xff]
    %v5663 = vld [vmem:[#allocation2 + $0xfb0] sm:$0xff]
    %v5664 = vld [vmem:[#allocation2 + $0xfb8] sm:$0xff]
    %v5665 = vld [vmem:[#allocation2 + $0xfc0] sm:$0xff]
    %v5666 = vld [vmem:[#allocation2 + $0xfc8] sm:$0xff]
    %v5667 = vld [vmem:[#allocation2 + $0xfd0] sm:$0xff]
    %v5668 = vld [vmem:[#allocation2 + $0xfd8] sm:$0xff]
    %v5669 = vld [vmem:[#allocation2 + $0xfe0] sm:$0xff]
    %v5670 = vld [vmem:[#allocation2 + $0xfe8] sm:$0xff]
    %v5671 = vld [vmem:[#allocation2 + $0xff0] sm:$0xff]
    %v5672 = vld [vmem:[#allocation2 + $0xff8] sm:$0xff]
    %v5673 = vld [vmem:[#allocation2 + $0x1000] sm:$0xff]
    %v5674 = vld [vmem:[#allocation2 + $0x1008] sm:$0xff]
    %v5675 = vld [vmem:[#allocation2 + $0x1010] sm:$0xff]
    %v5676 = vld [vmem:[#allocation2 + $0x1018] sm:$0xff]
    %v5677 = vld [vmem:[#allocation2 + $0x1020] sm:$0xff]
    %v5678 = vld [vmem:[#allocation2 + $0x1028] sm:$0xff]
    %v5679 = vld [vmem:[#allocation2 + $0x1030] sm:$0xff]
    %v5680 = vld [vmem:[#allocation2 + $0x1038] sm:$0xff]
    %v5681 = vld [vmem:[#allocation2 + $0x1040] sm:$0xff]
    %v5682 = vld [vmem:[#allocation2 + $0x1048] sm:$0xff]
    %v5683 = vld [vmem:[#allocation2 + $0x1050] sm:$0xff]
    %v5684 = vld [vmem:[#allocation2 + $0x1058] sm:$0xff]
    %v5685 = vld [vmem:[#allocation2 + $0x1060] sm:$0xff]
    %v5686 = vld [vmem:[#allocation2 + $0x1068] sm:$0xff]
    %v5687 = vld [vmem:[#allocation2 + $0x1070] sm:$0xff]
    %v5688 = vld [vmem:[#allocation2 + $0x1078] sm:$0xff]
    %v5689 = vld [vmem:[#allocation2 + $0x1080] sm:$0xff]
    %v5690 = vld [vmem:[#allocation2 + $0x1088] sm:$0xff]
    %v5691 = vld [vmem:[#allocation2 + $0x1090] sm:$0xff]
    %v5692 = vld [vmem:[#allocation2 + $0x1098] sm:$0xff]
    %v5693 = vld [vmem:[#allocation2 + $0x10a0] sm:$0xff]
    %v5694 = vld [vmem:[#allocation2 + $0x10a8] sm:$0xff]
    %v5695 = vld [vmem:[#allocation2 + $0x10b0] sm:$0xff]
    %v5696 = vld [vmem:[#allocation2 + $0x10b8] sm:$0xff]
    %v5697 = vld [vmem:[#allocation2 + $0x10c0] sm:$0xff]
    %v5698 = vld [vmem:[#allocation2 + $0x10c8] sm:$0xff]
    %v5699 = vld [vmem:[#allocation2 + $0x10d0] sm:$0xff]
    %v5700 = vld [vmem:[#allocation2 + $0x10d8] sm:$0xff]
    %v5701 = vld [vmem:[#allocation2 + $0x10e0] sm:$0xff]
    %v5702 = vld [vmem:[#allocation2 + $0x10e8] sm:$0xff]
    %v5703 = vld [vmem:[#allocation2 + $0x10f0] sm:$0xff]
    %v5704 = vld [vmem:[#allocation2 + $0x10f8] sm:$0xff]
    %v5705 = vld [vmem:[#allocation2 + $0x1100] sm:$0xff]
    %v5706 = vld [vmem:[#allocation2 + $0x1108] sm:$0xff]
    %v5707 = vld [vmem:[#allocation2 + $0x1110] sm:$0xff]
    %v5708 = vld [vmem:[#allocation2 + $0x1118] sm:$0xff]
    %v5709 = vrot.slane %v5469, 7
    %v5710 = vrot.slane %v5498, 7
    %v5711 = vrot.slane %v5581, 7
    %v5712 = vrot.slane %v5610, 7
    %v5713 = vrot.slane %v5471, 7
    %v5714 = vrot.slane %v5500, 7
    %v5715 = vrot.slane %v5583, 7
    %v5716 = vrot.slane %v5612, 7
    %v5717 = vrot.slane %v5474, 7
    %v5718 = vrot.slane %v5503, 7
    %v5719 = vrot.slane %v5586, 7
    %v5720 = vrot.slane %v5615, 7
    %v5721 = vrot.slane %v5476, 7
    %v5722 = vrot.slane %v5505, 7
    %v5723 = vrot.slane %v5588, 7
    %v5724 = vrot.slane %v5617, 7
    %v5725 = vrot.slane %v5479, 7
    %v5726 = vrot.slane %v5508, 7
    %v5727 = vrot.slane %v5591, 7
    %v5728 = vrot.slane %v5620, 7
    %v5729 = vrot.slane %v5481, 7
    %v5730 = vrot.slane %v5510, 7
    %v5731 = vrot.slane %v5593, 7
    %v5732 = vrot.slane %v5622, 7
    %v5733 = vrot.slane %v5484, 7
    %v5734 = vrot.slane %v5513, 7
    %v5735 = vrot.slane %v5596, 7
    %v5736 = vrot.slane %v5625, 7
    %v5737 = vrot.slane %v5486, 7
    %v5738 = vrot.slane %v5515, 7
    %v5739 = vrot.slane %v5598, 7
    %v5740 = vrot.slane %v5627, 7
    %v5741 = vsel %vm269, %v5733, %v5737
    %v5742 = vsel %vm269, %v5734, %v5738
    %v5743 = vsel %vm269, %v5735, %v5739
    %v5744 = vsel %vm269, %v5736, %v5740
    %v5745 = vsel %vm269, %v5729, %v5733
    %v5746 = vsel %vm269, %v5730, %v5734
    %v5747 = vsel %vm269, %v5731, %v5735
    %v5748 = vsel %vm269, %v5732, %v5736
    %v5749 = vsel %vm269, %v5725, %v5729
    %v5750 = vsel %vm269, %v5726, %v5730
    %v5751 = vsel %vm269, %v5727, %v5731
    %v5752 = vsel %vm269, %v5728, %v5732
    %v5753 = vsel %vm269, %v5721, %v5725
    %v5754 = vsel %vm269, %v5722, %v5726
    %v5755 = vsel %vm269, %v5723, %v5727
    %v5756 = vsel %vm269, %v5724, %v5728
    %v5757 = vsel %vm269, %v5717, %v5721
    %v5758 = vsel %vm269, %v5718, %v5722
    %v5759 = vsel %vm269, %v5719, %v5723
    %v5760 = vsel %vm269, %v5720, %v5724
    %v5761 = vsel %vm269, %v5713, %v5717
    %v5762 = vsel %vm269, %v5714, %v5718
    %v5763 = vsel %vm269, %v5715, %v5719
    %v5764 = vsel %vm269, %v5716, %v5720
    %v5765 = vsel %vm269, %v5709, %v5713
    %v5766 = vsel %vm269, %v5710, %v5714
    %v5767 = vsel %vm269, %v5711, %v5715
    %v5768 = vsel %vm269, %v5712, %v5716
    %v5769 = vsel %vm269, %v5737, %v5709
    %v5770 = vsel %vm269, %v5738, %v5710
    %v5771 = vsel %vm269, %v5739, %v5711
    %v5772 = vsel %vm269, %v5740, %v5712
    %v5773 = vsel %vm294, %v5769, 0.0
    %v5774 = vsel %vm294, %v5770, 0.0
    %v5775 = vsel %vm294, %v5771, 0.0
    %v5776 = vsel %vm294, %v5772, 0.0
    %v5777 = vsel %vm295, %v5765, 0.0
    %v5778 = vsel %vm295, %v5766, 0.0
    %v5779 = vsel %vm295, %v5767, 0.0
    %v5780 = vsel %vm295, %v5768, 0.0
    %v5781 = vsel %vm296, %v5761, 0.0
    %v5782 = vsel %vm296, %v5762, 0.0
    %v5783 = vsel %vm296, %v5763, 0.0
    %v5784 = vsel %vm296, %v5764, 0.0
    %v5785 = vsel %vm297, %v5757, 0.0
    %v5786 = vsel %vm297, %v5758, 0.0
    %v5787 = vsel %vm297, %v5759, 0.0
    %v5788 = vsel %vm297, %v5760, 0.0
    %v5789 = vsel %vm298, %v5753, 0.0
    %v5790 = vsel %vm298, %v5754, 0.0
    %v5791 = vsel %vm298, %v5755, 0.0
    %v5792 = vsel %vm298, %v5756, 0.0
    %v5793 = vsel %vm299, %v5749, 0.0
    %v5794 = vsel %vm299, %v5750, 0.0
    %v5795 = vsel %vm299, %v5751, 0.0
    %v5796 = vsel %vm299, %v5752, 0.0
    %v5797 = vsel %vm300, %v5745, 0.0
    %v5798 = vsel %vm300, %v5746, 0.0
    %v5799 = vsel %vm300, %v5747, 0.0
    %v5800 = vsel %vm300, %v5748, 0.0
    %v5801 = vsel %vm301, %v5741, 0.0
    %v5802 = vsel %vm301, %v5742, 0.0
    %v5803 = vsel %vm301, %v5743, 0.0
    %v5804 = vsel %vm301, %v5744, 0.0
    %v5805 = vpack.c.bf16 %v5777, %v5773
    %v5806 = vpack.c.bf16 %v5778, %v5774
    %v5807 = vpack.c.bf16 %v5779, %v5775
    %v5808 = vpack.c.bf16 %v5780, %v5776
    %v5809 = vpack.c.bf16 %v5785, %v5781
    %v5810 = vpack.c.bf16 %v5786, %v5782
    %v5811 = vpack.c.bf16 %v5787, %v5783
    %v5812 = vpack.c.bf16 %v5788, %v5784
    %v5813 = vpack.c.bf16 %v5793, %v5789
    %v5814 = vpack.c.bf16 %v5794, %v5790
    %v5815 = vpack.c.bf16 %v5795, %v5791
    %v5816 = vpack.c.bf16 %v5796, %v5792
    %v5817 = vpack.c.bf16 %v5801, %v5797
    %v5818 = vpack.c.bf16 %v5802, %v5798
    %v5819 = vpack.c.bf16 %v5803, %v5799
    %v5820 = vpack.c.bf16 %v5804, %v5800
    %v5821 = vld [vmem:[#allocation2 + $0xd20] sm:$0xff]
    %v5822 = vld [vmem:[#allocation2 + $0xd28] sm:$0xff]
    %v5823 = vld [vmem:[#allocation2 + $0xd30] sm:$0xff]
    %v5824 = vld [vmem:[#allocation2 + $0xd38] sm:$0xff]
    %v5825 = vld [vmem:[#allocation2 + $0xd40] sm:$0xff]
    %v5826 = vld [vmem:[#allocation2 + $0xd48] sm:$0xff]
    %v5827 = vld [vmem:[#allocation2 + $0xd50] sm:$0xff]
    %v5828 = vld [vmem:[#allocation2 + $0xd58] sm:$0xff]
    %v5829 = vld [vmem:[#allocation2 + $0xd60] sm:$0xff]
    %v5830 = vld [vmem:[#allocation2 + $0xd68] sm:$0xff]
    %v5831 = vld [vmem:[#allocation2 + $0xd70] sm:$0xff]
    %v5832 = vld [vmem:[#allocation2 + $0xd78] sm:$0xff]
    %v5833 = vld [vmem:[#allocation2 + $0xd80] sm:$0xff]
    %v5834 = vld [vmem:[#allocation2 + $0xd88] sm:$0xff]
    %v5835 = vld [vmem:[#allocation2 + $0xd90] sm:$0xff]
    %v5836 = vld [vmem:[#allocation2 + $0xd98] sm:$0xff]
    %v5837 = vld [vmem:[#allocation2 + $0xda0] sm:$0xff]
    %v5838 = vld [vmem:[#allocation2 + $0xda8] sm:$0xff]
    %v5839 = vld [vmem:[#allocation2 + $0xdb0] sm:$0xff]
    %v5840 = vld [vmem:[#allocation2 + $0xdb8] sm:$0xff]
    %v5841 = vld [vmem:[#allocation2 + $0xdc0] sm:$0xff]
    %v5842 = vld [vmem:[#allocation2 + $0xdc8] sm:$0xff]
    %v5843 = vld [vmem:[#allocation2 + $0xdd0] sm:$0xff]
    %v5844 = vld [vmem:[#allocation2 + $0xdd8] sm:$0xff]
    %v5845 = vld [vmem:[#allocation2 + $0xde0] sm:$0xff]
    %v5846 = vld [vmem:[#allocation2 + $0xde8] sm:$0xff]
    %v5847 = vld [vmem:[#allocation2 + $0xdf0] sm:$0xff]
    %v5848 = vld [vmem:[#allocation2 + $0xdf8] sm:$0xff]
    %v5849 = vld [vmem:[#allocation2 + $0xe00] sm:$0xff]
    %v5850 = vld [vmem:[#allocation2 + $0xe08] sm:$0xff]
    %v5851 = vld [vmem:[#allocation2 + $0xe10] sm:$0xff]
    %v5852 = vld [vmem:[#allocation2 + $0xe18] sm:$0xff]
    %v5853 = vld [vmem:[#allocation2 + $0xe20] sm:$0xff]
    %v5854 = vld [vmem:[#allocation2 + $0xe28] sm:$0xff]
    %v5855 = vld [vmem:[#allocation2 + $0xe30] sm:$0xff]
    %v5856 = vld [vmem:[#allocation2 + $0xe38] sm:$0xff]
    %v5857 = vld [vmem:[#allocation2 + $0xe40] sm:$0xff]
    %v5858 = vld [vmem:[#allocation2 + $0xe48] sm:$0xff]
    %v5859 = vld [vmem:[#allocation2 + $0xe50] sm:$0xff]
    %v5860 = vld [vmem:[#allocation2 + $0xe58] sm:$0xff]
    %v5861 = vld [vmem:[#allocation2 + $0xe60] sm:$0xff]
    %v5862 = vld [vmem:[#allocation2 + $0xe68] sm:$0xff]
    %v5863 = vld [vmem:[#allocation2 + $0xe70] sm:$0xff]
    %v5864 = vld [vmem:[#allocation2 + $0xe78] sm:$0xff]
    %v5865 = vld [vmem:[#allocation2 + $0xe80] sm:$0xff]
    %v5866 = vld [vmem:[#allocation2 + $0xe88] sm:$0xff]
    %v5867 = vld [vmem:[#allocation2 + $0xe90] sm:$0xff]
    %v5868 = vld [vmem:[#allocation2 + $0xe98] sm:$0xff]
    %v5869 = vld [vmem:[#allocation2 + $0xea0] sm:$0xff]
    %v5870 = vld [vmem:[#allocation2 + $0xea8] sm:$0xff]
    %v5871 = vld [vmem:[#allocation2 + $0xeb0] sm:$0xff]
    %v5872 = vld [vmem:[#allocation2 + $0xeb8] sm:$0xff]
    %v5873 = vld [vmem:[#allocation2 + $0xec0] sm:$0xff]
    %v5874 = vld [vmem:[#allocation2 + $0xec8] sm:$0xff]
    %v5875 = vld [vmem:[#allocation2 + $0xed0] sm:$0xff]
    %v5876 = vld [vmem:[#allocation2 + $0xed8] sm:$0xff]
    %v5877 = vld [vmem:[#allocation2 + $0xee0] sm:$0xff]
    %v5878 = vld [vmem:[#allocation2 + $0xee8] sm:$0xff]
    %v5879 = vld [vmem:[#allocation2 + $0xef0] sm:$0xff]
    %v5880 = vld [vmem:[#allocation2 + $0xef8] sm:$0xff]
    %v5881 = vld [vmem:[#allocation2 + $0xf00] sm:$0xff]
    %v5882 = vld [vmem:[#allocation2 + $0xf08] sm:$0xff]
    %v5883 = vld [vmem:[#allocation2 + $0xf10] sm:$0xff]
    %v5884 = vld [vmem:[#allocation2 + $0xf18] sm:$0xff]
    %v5949 = vunpack.c.l.b16 %v5821
    %v5950 = vunpack.c.h.b16 %v5821
    %v5951 = vunpack.c.l.b16 %v5822
    %v5952 = vunpack.c.h.b16 %v5822
    %v5953 = vunpack.c.l.b16 %v5823
    %v5954 = vunpack.c.h.b16 %v5823
    %v5955 = vunpack.c.l.b16 %v5824
    %v5956 = vunpack.c.h.b16 %v5824
    %v5957 = vunpack.c.l.b16 %v5825
    %v5958 = vunpack.c.h.b16 %v5825
    %v5959 = vunpack.c.l.b16 %v5826
    %v5960 = vunpack.c.h.b16 %v5826
    %v5961 = vunpack.c.l.b16 %v5827
    %v5962 = vunpack.c.h.b16 %v5827
    %v5963 = vunpack.c.l.b16 %v5828
    %v5964 = vunpack.c.h.b16 %v5828
    %v5965 = vunpack.c.l.b16 %v5829
    %v5966 = vunpack.c.h.b16 %v5829
    %v5967 = vunpack.c.l.b16 %v5830
    %v5968 = vunpack.c.h.b16 %v5830
    %v5969 = vunpack.c.l.b16 %v5831
    %v5970 = vunpack.c.h.b16 %v5831
    %v5971 = vunpack.c.l.b16 %v5832
    %v5972 = vunpack.c.h.b16 %v5832
    %v5973 = vunpack.c.l.b16 %v5833
    %v5974 = vunpack.c.h.b16 %v5833
    %v5975 = vunpack.c.l.b16 %v5834
    %v5976 = vunpack.c.h.b16 %v5834
    %v5977 = vunpack.c.l.b16 %v5835
    %v5978 = vunpack.c.h.b16 %v5835
    %v5979 = vunpack.c.l.b16 %v5836
    %v5980 = vunpack.c.h.b16 %v5836
    %v5981 = vunpack.c.l.b16 %v5837
    %v5982 = vunpack.c.h.b16 %v5837
    %v5983 = vunpack.c.l.b16 %v5838
    %v5984 = vunpack.c.h.b16 %v5838
    %v5985 = vunpack.c.l.b16 %v5839
    %v5986 = vunpack.c.h.b16 %v5839
    %v5987 = vunpack.c.l.b16 %v5840
    %v5988 = vunpack.c.h.b16 %v5840
    %v5989 = vunpack.c.l.b16 %v5841
    %v5990 = vunpack.c.h.b16 %v5841
    %v5991 = vunpack.c.l.b16 %v5842
    %v5992 = vunpack.c.h.b16 %v5842
    %v5993 = vunpack.c.l.b16 %v5843
    %v5994 = vunpack.c.h.b16 %v5843
    %v5995 = vunpack.c.l.b16 %v5844
    %v5996 = vunpack.c.h.b16 %v5844
    %v5997 = vunpack.c.l.b16 %v5845
    %v5998 = vunpack.c.h.b16 %v5845
    %v5999 = vunpack.c.l.b16 %v5846
    %v6000 = vunpack.c.h.b16 %v5846
    %v6001 = vunpack.c.l.b16 %v5847
    %v6002 = vunpack.c.h.b16 %v5847
    %v6003 = vunpack.c.l.b16 %v5848
    %v6004 = vunpack.c.h.b16 %v5848
    %v6005 = vunpack.c.l.b16 %v5849
    %v6006 = vunpack.c.h.b16 %v5849
    %v6007 = vunpack.c.l.b16 %v5850
    %v6008 = vunpack.c.h.b16 %v5850
    %v6009 = vunpack.c.l.b16 %v5851
    %v6010 = vunpack.c.h.b16 %v5851
    %v6011 = vunpack.c.l.b16 %v5852
    %v6012 = vunpack.c.h.b16 %v5852
    %v6013 = vunpack.c.l.b16 %v5853
    %v6014 = vunpack.c.h.b16 %v5853
    %v6015 = vunpack.c.l.b16 %v5854
    %v6016 = vunpack.c.h.b16 %v5854
    %v6017 = vunpack.c.l.b16 %v5855
    %v6018 = vunpack.c.h.b16 %v5855
    %v6019 = vunpack.c.l.b16 %v5856
    %v6020 = vunpack.c.h.b16 %v5856
    %v6021 = vunpack.c.l.b16 %v5857
    %v6022 = vunpack.c.h.b16 %v5857
    %v6023 = vunpack.c.l.b16 %v5858
    %v6024 = vunpack.c.h.b16 %v5858
    %v6025 = vunpack.c.l.b16 %v5859
    %v6026 = vunpack.c.h.b16 %v5859
    %v6027 = vunpack.c.l.b16 %v5860
    %v6028 = vunpack.c.h.b16 %v5860
    %v6029 = vunpack.c.l.b16 %v5861
    %v6030 = vunpack.c.h.b16 %v5861
    %v6031 = vunpack.c.l.b16 %v5862
    %v6032 = vunpack.c.h.b16 %v5862
    %v6033 = vunpack.c.l.b16 %v5863
    %v6034 = vunpack.c.h.b16 %v5863
    %v6035 = vunpack.c.l.b16 %v5864
    %v6036 = vunpack.c.h.b16 %v5864
    %v6037 = vunpack.c.l.b16 %v5865
    %v6038 = vunpack.c.h.b16 %v5865
    %v6039 = vunpack.c.l.b16 %v5866
    %v6040 = vunpack.c.h.b16 %v5866
    %v6041 = vunpack.c.l.b16 %v5867
    %v6042 = vunpack.c.h.b16 %v5867
    %v6043 = vunpack.c.l.b16 %v5868
    %v6044 = vunpack.c.h.b16 %v5868
    %v6045 = vunpack.c.l.b16 %v5869
    %v6046 = vunpack.c.h.b16 %v5869
    %v6047 = vunpack.c.l.b16 %v5870
    %v6048 = vunpack.c.h.b16 %v5870
    %v6049 = vunpack.c.l.b16 %v5871
    %v6050 = vunpack.c.h.b16 %v5871
    %v6051 = vunpack.c.l.b16 %v5872
    %v6052 = vunpack.c.h.b16 %v5872
    %v6053 = vunpack.c.l.b16 %v5873
    %v6054 = vunpack.c.h.b16 %v5873
    %v6055 = vunpack.c.l.b16 %v5874
    %v6056 = vunpack.c.h.b16 %v5874
    %v6057 = vunpack.c.l.b16 %v5875
    %v6058 = vunpack.c.h.b16 %v5875
    %v6059 = vunpack.c.l.b16 %v5876
    %v6060 = vunpack.c.h.b16 %v5876
    %v6061 = vunpack.c.l.b16 %v5877
    %v6062 = vunpack.c.h.b16 %v5877
    %v6063 = vunpack.c.l.b16 %v5878
    %v6064 = vunpack.c.h.b16 %v5878
    %v6065 = vunpack.c.l.b16 %v5879
    %v6066 = vunpack.c.h.b16 %v5879
    %v6067 = vunpack.c.l.b16 %v5880
    %v6068 = vunpack.c.h.b16 %v5880
    %v6069 = vunpack.c.l.b16 %v5881
    %v6070 = vunpack.c.h.b16 %v5881
    %v6071 = vunpack.c.l.b16 %v5882
    %v6072 = vunpack.c.h.b16 %v5882
    %v6073 = vunpack.c.l.b16 %v5883
    %v6074 = vunpack.c.h.b16 %v5883
    %v6075 = vunpack.c.l.b16 %v5884
    %v6076 = vunpack.c.h.b16 %v5884
    %v6077 = vpack.c.b16 %v5951, %v5949
    %v6078 = vpack.c.b16 %v5952, %v5950
    %v6079 = vpack.c.b16 %v5955, %v5953
    %v6080 = vpack.c.b16 %v5956, %v5954
    %v6081 = vpack.c.b16 %v5959, %v5957
    %v6082 = vpack.c.b16 %v5960, %v5958
    %v6083 = vpack.c.b16 %v5963, %v5961
    %v6084 = vpack.c.b16 %v5964, %v5962
    %v6085 = vpack.c.b16 %v5967, %v5965
    %v6086 = vpack.c.b16 %v5968, %v5966
    %v6087 = vpack.c.b16 %v5971, %v5969
    %v6088 = vpack.c.b16 %v5972, %v5970
    %v6089 = vpack.c.b16 %v5975, %v5973
    %v6090 = vpack.c.b16 %v5976, %v5974
    %v6091 = vpack.c.b16 %v5979, %v5977
    %v6092 = vpack.c.b16 %v5980, %v5978
    %v6093 = vpack.c.b16 %v5983, %v5981
    %v6094 = vpack.c.b16 %v5984, %v5982
    %v6095 = vpack.c.b16 %v5987, %v5985
    %v6096 = vpack.c.b16 %v5988, %v5986
    %v6097 = vpack.c.b16 %v5991, %v5989
    %v6098 = vpack.c.b16 %v5992, %v5990
    %v6099 = vpack.c.b16 %v5995, %v5993
    %v6100 = vpack.c.b16 %v5996, %v5994
    %v6101 = vpack.c.b16 %v5999, %v5997
    %v6102 = vpack.c.b16 %v6000, %v5998
    %v6103 = vpack.c.b16 %v6003, %v6001
    %v6104 = vpack.c.b16 %v6004, %v6002
    %v6105 = vpack.c.b16 %v6007, %v6005
    %v6106 = vpack.c.b16 %v6008, %v6006
    %v6107 = vpack.c.b16 %v6011, %v6009
    %v6108 = vpack.c.b16 %v6012, %v6010
    %v6109 = vpack.c.b16 %v6015, %v6013
    %v6110 = vpack.c.b16 %v6016, %v6014
    %v6111 = vpack.c.b16 %v6019, %v6017
    %v6112 = vpack.c.b16 %v6020, %v6018
    %v6113 = vpack.c.b16 %v6023, %v6021
    %v6114 = vpack.c.b16 %v6024, %v6022
    %v6115 = vpack.c.b16 %v6027, %v6025
    %v6116 = vpack.c.b16 %v6028, %v6026
    %v6117 = vpack.c.b16 %v6031, %v6029
    %v6118 = vpack.c.b16 %v6032, %v6030
    %v6119 = vpack.c.b16 %v6035, %v6033
    %v6120 = vpack.c.b16 %v6036, %v6034
    %v6121 = vpack.c.b16 %v6039, %v6037
    %v6122 = vpack.c.b16 %v6040, %v6038
    %v6123 = vpack.c.b16 %v6043, %v6041
    %v6124 = vpack.c.b16 %v6044, %v6042
    %v6125 = vpack.c.b16 %v6047, %v6045
    %v6126 = vpack.c.b16 %v6048, %v6046
    %v6127 = vpack.c.b16 %v6051, %v6049
    %v6128 = vpack.c.b16 %v6052, %v6050
    %v6129 = vpack.c.b16 %v6055, %v6053
    %v6130 = vpack.c.b16 %v6056, %v6054
    %v6131 = vpack.c.b16 %v6059, %v6057
    %v6132 = vpack.c.b16 %v6060, %v6058
    %v6133 = vpack.c.b16 %v6063, %v6061
    %v6134 = vpack.c.b16 %v6064, %v6062
    %v6135 = vpack.c.b16 %v6067, %v6065
    %v6136 = vpack.c.b16 %v6068, %v6066
    %v6137 = vpack.c.b16 %v6071, %v6069
    %v6138 = vpack.c.b16 %v6072, %v6070
    %v6139 = vpack.c.b16 %v6075, %v6073
    %v6140 = vpack.c.b16 %v6076, %v6074
    %6205 = vmatpush.bf16.msra.mxu0 %v6091
    %6206 = vmatpush.bf16.msra.mxu0 %v6089
    %6207 = vmatpush.bf16.msra.mxu0 %v6087
    %6208 = vmatpush.bf16.msra.mxu0 %v6085
    %6209 = vmatpush.bf16.msra.mxu0 %v6083
    %6210 = vmatpush.bf16.msra.mxu0 %v6081
    %6211 = vmatpush.bf16.msra.mxu0 %v6079
    %6212 = vmatpush.bf16.msra.mxu0 %v6077
    %6213 = vmatmul.bf16.gmra.mxu0 %v5805
    %v6214 = vpop.f32.mrf.mxu0
    %v6215 = vadd.f32 0.0, %v6214
    %v6216 = vpop.f32.mrf.mxu0
    %v6217 = vadd.f32 0.0, %v6216
    %6218 = vmatmul.bf16.gmra.mxu0 %v5809
    %v6219 = vpop.f32.mrf.mxu0
    %v6220 = vadd.f32 0.0, %v6219
    %v6221 = vpop.f32.mrf.mxu0
    %v6222 = vadd.f32 0.0, %v6221
    %6223 = vmatmul.bf16.gmra.mxu0 %v5813
    %v6224 = vpop.f32.mrf.mxu0
    %v6225 = vadd.f32 0.0, %v6224
    %v6226 = vpop.f32.mrf.mxu0
    %v6227 = vadd.f32 0.0, %v6226
    %6228 = vmatmul.bf16.gmra.mxu0 %v5817
    %v6229 = vpop.f32.mrf.mxu0
    %v6230 = vadd.f32 0.0, %v6229
    %v6231 = vpop.f32.mrf.mxu0
    %v6232 = vadd.f32 0.0, %v6231
    %6233 = vdwg.mxu0
    %6234 = vmatpush.bf16.msra.mxu0 %v6107
    %6235 = vmatpush.bf16.msra.mxu0 %v6105
    %6236 = vmatpush.bf16.msra.mxu0 %v6103
    %6237 = vmatpush.bf16.msra.mxu0 %v6101
    %6238 = vmatpush.bf16.msra.mxu0 %v6099
    %6239 = vmatpush.bf16.msra.mxu0 %v6097
    %6240 = vmatpush.bf16.msra.mxu0 %v6095
    %6241 = vmatpush.bf16.msra.mxu0 %v6093
    %6242 = vmatmul.bf16.gmra.mxu0 %v5806
    %v6243 = vpop.f32.mrf.mxu0
    %v6244 = vadd.f32 %v6215, %v6243
    %v6245 = vpop.f32.mrf.mxu0
    %v6246 = vadd.f32 %v6217, %v6245
    %6247 = vmatmul.bf16.gmra.mxu0 %v5810
    %v6248 = vpop.f32.mrf.mxu0
    %v6249 = vadd.f32 %v6220, %v6248
    %v6250 = vpop.f32.mrf.mxu0
    %v6251 = vadd.f32 %v6222, %v6250
    %6252 = vmatmul.bf16.gmra.mxu0 %v5814
    %v6253 = vpop.f32.mrf.mxu0
    %v6254 = vadd.f32 %v6225, %v6253
    %v6255 = vpop.f32.mrf.mxu0
    %v6256 = vadd.f32 %v6227, %v6255
    %6257 = vmatmul.bf16.gmra.mxu0 %v5818
    %v6258 = vpop.f32.mrf.mxu0
    %v6259 = vadd.f32 %v6230, %v6258
    %v6260 = vpop.f32.mrf.mxu0
    %v6261 = vadd.f32 %v6232, %v6260
    %6262 = vdwg.mxu0
    %6263 = vmatpush.bf16.msra.mxu0 %v6123
    %6264 = vmatpush.bf16.msra.mxu0 %v6121
    %6265 = vmatpush.bf16.msra.mxu0 %v6119
    %6266 = vmatpush.bf16.msra.mxu0 %v6117
    %6267 = vmatpush.bf16.msra.mxu0 %v6115
    %6268 = vmatpush.bf16.msra.mxu0 %v6113
    %6269 = vmatpush.bf16.msra.mxu0 %v6111
    %6270 = vmatpush.bf16.msra.mxu0 %v6109
    %6271 = vmatmul.bf16.gmra.mxu0 %v5807
    %v6272 = vpop.f32.mrf.mxu0
    %v6273 = vadd.f32 %v6244, %v6272
    %v6274 = vpop.f32.mrf.mxu0
    %v6275 = vadd.f32 %v6246, %v6274
    %6276 = vmatmul.bf16.gmra.mxu0 %v5811
    %v6277 = vpop.f32.mrf.mxu0
    %v6278 = vadd.f32 %v6249, %v6277
    %v6279 = vpop.f32.mrf.mxu0
    %v6280 = vadd.f32 %v6251, %v6279
    %6281 = vmatmul.bf16.gmra.mxu0 %v5815
    %v6282 = vpop.f32.mrf.mxu0
    %v6283 = vadd.f32 %v6254, %v6282
    %v6284 = vpop.f32.mrf.mxu0
    %v6285 = vadd.f32 %v6256, %v6284
    %6286 = vmatmul.bf16.gmra.mxu0 %v5819
    %v6287 = vpop.f32.mrf.mxu0
    %v6288 = vadd.f32 %v6259, %v6287
    %v6289 = vpop.f32.mrf.mxu0
    %v6290 = vadd.f32 %v6261, %v6289
    %6291 = vdwg.mxu0
    %6292 = vmatpush.bf16.msra.mxu0 %v6139
    %6293 = vmatpush.bf16.msra.mxu0 %v6137
    %6294 = vmatpush.bf16.msra.mxu0 %v6135
    %6295 = vmatpush.bf16.msra.mxu0 %v6133
    %6296 = vmatpush.bf16.msra.mxu0 %v6131
    %6297 = vmatpush.bf16.msra.mxu0 %v6129
    %6298 = vmatpush.bf16.msra.mxu0 %v6127
    %6299 = vmatpush.bf16.msra.mxu0 %v6125
    %6300 = vmatmul.bf16.gmra.mxu0 %v5808
    %v6301 = vpop.f32.mrf.mxu0
    %v6302 = vadd.f32 %v6273, %v6301
    %v6303 = vpop.f32.mrf.mxu0
    %v6304 = vadd.f32 %v6275, %v6303
    %6305 = vmatmul.bf16.gmra.mxu0 %v5812
    %v6306 = vpop.f32.mrf.mxu0
    %v6307 = vadd.f32 %v6278, %v6306
    %v6308 = vpop.f32.mrf.mxu0
    %v6309 = vadd.f32 %v6280, %v6308
    %6310 = vmatmul.bf16.gmra.mxu0 %v5816
    %v6311 = vpop.f32.mrf.mxu0
    %v6312 = vadd.f32 %v6283, %v6311
    %v6313 = vpop.f32.mrf.mxu0
    %v6314 = vadd.f32 %v6285, %v6313
    %6315 = vmatmul.bf16.gmra.mxu0 %v5820
    %v6316 = vpop.f32.mrf.mxu0
    %v6317 = vadd.f32 %v6288, %v6316
    %v6318 = vpop.f32.mrf.mxu0
    %v6319 = vadd.f32 %v6290, %v6318
    %6320 = vdwg.mxu0
    %6321 = vmatpush.bf16.msra.mxu0 %v6092
    %6322 = vmatpush.bf16.msra.mxu0 %v6090
    %6323 = vmatpush.bf16.msra.mxu0 %v6088
    %6324 = vmatpush.bf16.msra.mxu0 %v6086
    %6325 = vmatpush.bf16.msra.mxu0 %v6084
    %6326 = vmatpush.bf16.msra.mxu0 %v6082
    %6327 = vmatpush.bf16.msra.mxu0 %v6080
    %6328 = vmatpush.bf16.msra.mxu0 %v6078
    %6329 = vmatmul.bf16.gmra.mxu0 %v5805
    %v6330 = vpop.f32.mrf.mxu0
    %v6331 = vadd.f32 0.0, %v6330
    %v6332 = vpop.f32.mrf.mxu0
    %v6333 = vadd.f32 0.0, %v6332
    %6334 = vmatmul.bf16.gmra.mxu0 %v5809
    %v6335 = vpop.f32.mrf.mxu0
    %v6336 = vadd.f32 0.0, %v6335
    %v6337 = vpop.f32.mrf.mxu0
    %v6338 = vadd.f32 0.0, %v6337
    %6339 = vmatmul.bf16.gmra.mxu0 %v5813
    %v6340 = vpop.f32.mrf.mxu0
    %v6341 = vadd.f32 0.0, %v6340
    %v6342 = vpop.f32.mrf.mxu0
    %v6343 = vadd.f32 0.0, %v6342
    %6344 = vmatmul.bf16.gmra.mxu0 %v5817
    %v6345 = vpop.f32.mrf.mxu0
    %v6346 = vadd.f32 0.0, %v6345
    %v6347 = vpop.f32.mrf.mxu0
    %v6348 = vadd.f32 0.0, %v6347
    %6349 = vdwg.mxu0
    %6350 = vmatpush.bf16.msra.mxu0 %v6108
    %6351 = vmatpush.bf16.msra.mxu0 %v6106
    %6352 = vmatpush.bf16.msra.mxu0 %v6104
    %6353 = vmatpush.bf16.msra.mxu0 %v6102
    %6354 = vmatpush.bf16.msra.mxu0 %v6100
    %6355 = vmatpush.bf16.msra.mxu0 %v6098
    %6356 = vmatpush.bf16.msra.mxu0 %v6096
    %6357 = vmatpush.bf16.msra.mxu0 %v6094
    %6358 = vmatmul.bf16.gmra.mxu0 %v5806
    %v6359 = vpop.f32.mrf.mxu0
    %v6360 = vadd.f32 %v6331, %v6359
    %v6361 = vpop.f32.mrf.mxu0
    %v6362 = vadd.f32 %v6333, %v6361
    %6363 = vmatmul.bf16.gmra.mxu0 %v5810
    %v6364 = vpop.f32.mrf.mxu0
    %v6365 = vadd.f32 %v6336, %v6364
    %v6366 = vpop.f32.mrf.mxu0
    %v6367 = vadd.f32 %v6338, %v6366
    %6368 = vmatmul.bf16.gmra.mxu0 %v5814
    %v6369 = vpop.f32.mrf.mxu0
    %v6370 = vadd.f32 %v6341, %v6369
    %v6371 = vpop.f32.mrf.mxu0
    %v6372 = vadd.f32 %v6343, %v6371
    %6373 = vmatmul.bf16.gmra.mxu0 %v5818
    %v6374 = vpop.f32.mrf.mxu0
    %v6375 = vadd.f32 %v6346, %v6374
    %v6376 = vpop.f32.mrf.mxu0
    %v6377 = vadd.f32 %v6348, %v6376
    %6378 = vdwg.mxu0
    %6379 = vmatpush.bf16.msra.mxu0 %v6124
    %6380 = vmatpush.bf16.msra.mxu0 %v6122
    %6381 = vmatpush.bf16.msra.mxu0 %v6120
    %6382 = vmatpush.bf16.msra.mxu0 %v6118
    %6383 = vmatpush.bf16.msra.mxu0 %v6116
    %6384 = vmatpush.bf16.msra.mxu0 %v6114
    %6385 = vmatpush.bf16.msra.mxu0 %v6112
    %6386 = vmatpush.bf16.msra.mxu0 %v6110
    %6387 = vmatmul.bf16.gmra.mxu0 %v5807
    %v6388 = vpop.f32.mrf.mxu0
    %v6389 = vadd.f32 %v6360, %v6388
    %v6390 = vpop.f32.mrf.mxu0
    %v6391 = vadd.f32 %v6362, %v6390
    %6392 = vmatmul.bf16.gmra.mxu0 %v5811
    %v6393 = vpop.f32.mrf.mxu0
    %v6394 = vadd.f32 %v6365, %v6393
    %v6395 = vpop.f32.mrf.mxu0
    %v6396 = vadd.f32 %v6367, %v6395
    %6397 = vmatmul.bf16.gmra.mxu0 %v5815
    %v6398 = vpop.f32.mrf.mxu0
    %v6399 = vadd.f32 %v6370, %v6398
    %v6400 = vpop.f32.mrf.mxu0
    %v6401 = vadd.f32 %v6372, %v6400
    %6402 = vmatmul.bf16.gmra.mxu0 %v5819
    %v6403 = vpop.f32.mrf.mxu0
    %v6404 = vadd.f32 %v6375, %v6403
    %v6405 = vpop.f32.mrf.mxu0
    %v6406 = vadd.f32 %v6377, %v6405
    %6407 = vdwg.mxu0
    %6408 = vmatpush.bf16.msra.mxu0 %v6140
    %6409 = vmatpush.bf16.msra.mxu0 %v6138
    %6410 = vmatpush.bf16.msra.mxu0 %v6136
    %6411 = vmatpush.bf16.msra.mxu0 %v6134
    %6412 = vmatpush.bf16.msra.mxu0 %v6132
    %6413 = vmatpush.bf16.msra.mxu0 %v6130
    %6414 = vmatpush.bf16.msra.mxu0 %v6128
    %6415 = vmatpush.bf16.msra.mxu0 %v6126
    %6416 = vmatmul.bf16.gmra.mxu0 %v5808
    %v6417 = vpop.f32.mrf.mxu0
    %v6418 = vadd.f32 %v6389, %v6417
    %v6419 = vpop.f32.mrf.mxu0
    %v6420 = vadd.f32 %v6391, %v6419
    %6421 = vmatmul.bf16.gmra.mxu0 %v5812
    %v6422 = vpop.f32.mrf.mxu0
    %v6423 = vadd.f32 %v6394, %v6422
    %v6424 = vpop.f32.mrf.mxu0
    %v6425 = vadd.f32 %v6396, %v6424
    %6426 = vmatmul.bf16.gmra.mxu0 %v5816
    %v6427 = vpop.f32.mrf.mxu0
    %v6428 = vadd.f32 %v6399, %v6427
    %v6429 = vpop.f32.mrf.mxu0
    %v6430 = vadd.f32 %v6401, %v6429
    %6431 = vmatmul.bf16.gmra.mxu0 %v5820
    %v6432 = vpop.f32.mrf.mxu0
    %v6433 = vadd.f32 %v6404, %v6432
    %v6434 = vpop.f32.mrf.mxu0
    %v6435 = vadd.f32 %v6406, %v6434
    %6436 = vdwg.mxu0
    %v6501 = vunpack.c.l.b16 %v5645
    %v6502 = vunpack.c.h.b16 %v5645
    %v6503 = vunpack.c.l.b16 %v5646
    %v6504 = vunpack.c.h.b16 %v5646
    %v6505 = vunpack.c.l.b16 %v5647
    %v6506 = vunpack.c.h.b16 %v5647
    %v6507 = vunpack.c.l.b16 %v5648
    %v6508 = vunpack.c.h.b16 %v5648
    %v6509 = vunpack.c.l.b16 %v5649
    %v6510 = vunpack.c.h.b16 %v5649
    %v6511 = vunpack.c.l.b16 %v5650
    %v6512 = vunpack.c.h.b16 %v5650
    %v6513 = vunpack.c.l.b16 %v5651
    %v6514 = vunpack.c.h.b16 %v5651
    %v6515 = vunpack.c.l.b16 %v5652
    %v6516 = vunpack.c.h.b16 %v5652
    %v6517 = vunpack.c.l.b16 %v5653
    %v6518 = vunpack.c.h.b16 %v5653
    %v6519 = vunpack.c.l.b16 %v5654
    %v6520 = vunpack.c.h.b16 %v5654
    %v6521 = vunpack.c.l.b16 %v5655
    %v6522 = vunpack.c.h.b16 %v5655
    %v6523 = vunpack.c.l.b16 %v5656
    %v6524 = vunpack.c.h.b16 %v5656
    %v6525 = vunpack.c.l.b16 %v5657
    %v6526 = vunpack.c.h.b16 %v5657
    %v6527 = vunpack.c.l.b16 %v5658
    %v6528 = vunpack.c.h.b16 %v5658
    %v6529 = vunpack.c.l.b16 %v5659
    %v6530 = vunpack.c.h.b16 %v5659
    %v6531 = vunpack.c.l.b16 %v5660
    %v6532 = vunpack.c.h.b16 %v5660
    %v6533 = vunpack.c.l.b16 %v5661
    %v6534 = vunpack.c.h.b16 %v5661
    %v6535 = vunpack.c.l.b16 %v5662
    %v6536 = vunpack.c.h.b16 %v5662
    %v6537 = vunpack.c.l.b16 %v5663
    %v6538 = vunpack.c.h.b16 %v5663
    %v6539 = vunpack.c.l.b16 %v5664
    %v6540 = vunpack.c.h.b16 %v5664
    %v6541 = vunpack.c.l.b16 %v5665
    %v6542 = vunpack.c.h.b16 %v5665
    %v6543 = vunpack.c.l.b16 %v5666
    %v6544 = vunpack.c.h.b16 %v5666
    %v6545 = vunpack.c.l.b16 %v5667
    %v6546 = vunpack.c.h.b16 %v5667
    %v6547 = vunpack.c.l.b16 %v5668
    %v6548 = vunpack.c.h.b16 %v5668
    %v6549 = vunpack.c.l.b16 %v5669
    %v6550 = vunpack.c.h.b16 %v5669
    %v6551 = vunpack.c.l.b16 %v5670
    %v6552 = vunpack.c.h.b16 %v5670
    %v6553 = vunpack.c.l.b16 %v5671
    %v6554 = vunpack.c.h.b16 %v5671
    %v6555 = vunpack.c.l.b16 %v5672
    %v6556 = vunpack.c.h.b16 %v5672
    %v6557 = vunpack.c.l.b16 %v5673
    %v6558 = vunpack.c.h.b16 %v5673
    %v6559 = vunpack.c.l.b16 %v5674
    %v6560 = vunpack.c.h.b16 %v5674
    %v6561 = vunpack.c.l.b16 %v5675
    %v6562 = vunpack.c.h.b16 %v5675
    %v6563 = vunpack.c.l.b16 %v5676
    %v6564 = vunpack.c.h.b16 %v5676
    %v6565 = vunpack.c.l.b16 %v5677
    %v6566 = vunpack.c.h.b16 %v5677
    %v6567 = vunpack.c.l.b16 %v5678
    %v6568 = vunpack.c.h.b16 %v5678
    %v6569 = vunpack.c.l.b16 %v5679
    %v6570 = vunpack.c.h.b16 %v5679
    %v6571 = vunpack.c.l.b16 %v5680
    %v6572 = vunpack.c.h.b16 %v5680
    %v6573 = vunpack.c.l.b16 %v5681
    %v6574 = vunpack.c.h.b16 %v5681
    %v6575 = vunpack.c.l.b16 %v5682
    %v6576 = vunpack.c.h.b16 %v5682
    %v6577 = vunpack.c.l.b16 %v5683
    %v6578 = vunpack.c.h.b16 %v5683
    %v6579 = vunpack.c.l.b16 %v5684
    %v6580 = vunpack.c.h.b16 %v5684
    %v6581 = vunpack.c.l.b16 %v5685
    %v6582 = vunpack.c.h.b16 %v5685
    %v6583 = vunpack.c.l.b16 %v5686
    %v6584 = vunpack.c.h.b16 %v5686
    %v6585 = vunpack.c.l.b16 %v5687
    %v6586 = vunpack.c.h.b16 %v5687
    %v6587 = vunpack.c.l.b16 %v5688
    %v6588 = vunpack.c.h.b16 %v5688
    %v6589 = vunpack.c.l.b16 %v5689
    %v6590 = vunpack.c.h.b16 %v5689
    %v6591 = vunpack.c.l.b16 %v5690
    %v6592 = vunpack.c.h.b16 %v5690
    %v6593 = vunpack.c.l.b16 %v5691
    %v6594 = vunpack.c.h.b16 %v5691
    %v6595 = vunpack.c.l.b16 %v5692
    %v6596 = vunpack.c.h.b16 %v5692
    %v6597 = vunpack.c.l.b16 %v5693
    %v6598 = vunpack.c.h.b16 %v5693
    %v6599 = vunpack.c.l.b16 %v5694
    %v6600 = vunpack.c.h.b16 %v5694
    %v6601 = vunpack.c.l.b16 %v5695
    %v6602 = vunpack.c.h.b16 %v5695
    %v6603 = vunpack.c.l.b16 %v5696
    %v6604 = vunpack.c.h.b16 %v5696
    %v6605 = vunpack.c.l.b16 %v5697
    %v6606 = vunpack.c.h.b16 %v5697
    %v6607 = vunpack.c.l.b16 %v5698
    %v6608 = vunpack.c.h.b16 %v5698
    %v6609 = vunpack.c.l.b16 %v5699
    %v6610 = vunpack.c.h.b16 %v5699
    %v6611 = vunpack.c.l.b16 %v5700
    %v6612 = vunpack.c.h.b16 %v5700
    %v6613 = vunpack.c.l.b16 %v5701
    %v6614 = vunpack.c.h.b16 %v5701
    %v6615 = vunpack.c.l.b16 %v5702
    %v6616 = vunpack.c.h.b16 %v5702
    %v6617 = vunpack.c.l.b16 %v5703
    %v6618 = vunpack.c.h.b16 %v5703
    %v6619 = vunpack.c.l.b16 %v5704
    %v6620 = vunpack.c.h.b16 %v5704
    %v6621 = vunpack.c.l.b16 %v5705
    %v6622 = vunpack.c.h.b16 %v5705
    %v6623 = vunpack.c.l.b16 %v5706
    %v6624 = vunpack.c.h.b16 %v5706
    %v6625 = vunpack.c.l.b16 %v5707
    %v6626 = vunpack.c.h.b16 %v5707
    %v6627 = vunpack.c.l.b16 %v5708
    %v6628 = vunpack.c.h.b16 %v5708
    %v6629 = vpack.c.b16 %v6503, %v6501
    %v6630 = vpack.c.b16 %v6504, %v6502
    %v6631 = vpack.c.b16 %v6507, %v6505
    %v6632 = vpack.c.b16 %v6508, %v6506
    %v6633 = vpack.c.b16 %v6511, %v6509
    %v6634 = vpack.c.b16 %v6512, %v6510
    %v6635 = vpack.c.b16 %v6515, %v6513
    %v6636 = vpack.c.b16 %v6516, %v6514
    %v6637 = vpack.c.b16 %v6519, %v6517
    %v6638 = vpack.c.b16 %v6520, %v6518
    %v6639 = vpack.c.b16 %v6523, %v6521
    %v6640 = vpack.c.b16 %v6524, %v6522
    %v6641 = vpack.c.b16 %v6527, %v6525
    %v6642 = vpack.c.b16 %v6528, %v6526
    %v6643 = vpack.c.b16 %v6531, %v6529
    %v6644 = vpack.c.b16 %v6532, %v6530
    %v6645 = vpack.c.b16 %v6535, %v6533
    %v6646 = vpack.c.b16 %v6536, %v6534
    %v6647 = vpack.c.b16 %v6539, %v6537
    %v6648 = vpack.c.b16 %v6540, %v6538
    %v6649 = vpack.c.b16 %v6543, %v6541
    %v6650 = vpack.c.b16 %v6544, %v6542
    %v6651 = vpack.c.b16 %v6547, %v6545
    %v6652 = vpack.c.b16 %v6548, %v6546
    %v6653 = vpack.c.b16 %v6551, %v6549
    %v6654 = vpack.c.b16 %v6552, %v6550
    %v6655 = vpack.c.b16 %v6555, %v6553
    %v6656 = vpack.c.b16 %v6556, %v6554
    %v6657 = vpack.c.b16 %v6559, %v6557
    %v6658 = vpack.c.b16 %v6560, %v6558
    %v6659 = vpack.c.b16 %v6563, %v6561
    %v6660 = vpack.c.b16 %v6564, %v6562
    %v6661 = vpack.c.b16 %v6567, %v6565
    %v6662 = vpack.c.b16 %v6568, %v6566
    %v6663 = vpack.c.b16 %v6571, %v6569
    %v6664 = vpack.c.b16 %v6572, %v6570
    %v6665 = vpack.c.b16 %v6575, %v6573
    %v6666 = vpack.c.b16 %v6576, %v6574
    %v6667 = vpack.c.b16 %v6579, %v6577
    %v6668 = vpack.c.b16 %v6580, %v6578
    %v6669 = vpack.c.b16 %v6583, %v6581
    %v6670 = vpack.c.b16 %v6584, %v6582
    %v6671 = vpack.c.b16 %v6587, %v6585
    %v6672 = vpack.c.b16 %v6588, %v6586
    %v6673 = vpack.c.b16 %v6591, %v6589
    %v6674 = vpack.c.b16 %v6592, %v6590
    %v6675 = vpack.c.b16 %v6595, %v6593
    %v6676 = vpack.c.b16 %v6596, %v6594
    %v6677 = vpack.c.b16 %v6599, %v6597
    %v6678 = vpack.c.b16 %v6600, %v6598
    %v6679 = vpack.c.b16 %v6603, %v6601
    %v6680 = vpack.c.b16 %v6604, %v6602
    %v6681 = vpack.c.b16 %v6607, %v6605
    %v6682 = vpack.c.b16 %v6608, %v6606
    %v6683 = vpack.c.b16 %v6611, %v6609
    %v6684 = vpack.c.b16 %v6612, %v6610
    %v6685 = vpack.c.b16 %v6615, %v6613
    %v6686 = vpack.c.b16 %v6616, %v6614
    %v6687 = vpack.c.b16 %v6619, %v6617
    %v6688 = vpack.c.b16 %v6620, %v6618
    %v6689 = vpack.c.b16 %v6623, %v6621
    %v6690 = vpack.c.b16 %v6624, %v6622
    %v6691 = vpack.c.b16 %v6627, %v6625
    %v6692 = vpack.c.b16 %v6628, %v6626
    %6757 = vmatpush.bf16.msra.mxu0 %v6643
    %6758 = vmatpush.bf16.msra.mxu0 %v6641
    %6759 = vmatpush.bf16.msra.mxu0 %v6639
    %6760 = vmatpush.bf16.msra.mxu0 %v6637
    %6761 = vmatpush.bf16.msra.mxu0 %v6635
    %6762 = vmatpush.bf16.msra.mxu0 %v6633
    %6763 = vmatpush.bf16.msra.mxu0 %v6631
    %6764 = vmatpush.bf16.msra.mxu0 %v6629
    %6765 = vmatmul.bf16.gmra.mxu0 %v5629
    %v6766 = vpop.f32.mrf.mxu0
    %v6767 = vadd.f32 %v6302, %v6766
    %v6768 = vpop.f32.mrf.mxu0
    %v6769 = vadd.f32 %v6304, %v6768
    %6770 = vmatmul.bf16.gmra.mxu0 %v5633
    %v6771 = vpop.f32.mrf.mxu0
    %v6772 = vadd.f32 %v6307, %v6771
    %v6773 = vpop.f32.mrf.mxu0
    %v6774 = vadd.f32 %v6309, %v6773
    %6775 = vmatmul.bf16.gmra.mxu0 %v5637
    %v6776 = vpop.f32.mrf.mxu0
    %v6777 = vadd.f32 %v6312, %v6776
    %v6778 = vpop.f32.mrf.mxu0
    %v6779 = vadd.f32 %v6314, %v6778
    %6780 = vmatmul.bf16.gmra.mxu0 %v5641
    %v6781 = vpop.f32.mrf.mxu0
    %v6782 = vadd.f32 %v6317, %v6781
    %v6783 = vpop.f32.mrf.mxu0
    %v6784 = vadd.f32 %v6319, %v6783
    %6785 = vdwg.mxu0
    %6786 = vmatpush.bf16.msra.mxu0 %v6659
    %6787 = vmatpush.bf16.msra.mxu0 %v6657
    %6788 = vmatpush.bf16.msra.mxu0 %v6655
    %6789 = vmatpush.bf16.msra.mxu0 %v6653
    %6790 = vmatpush.bf16.msra.mxu0 %v6651
    %6791 = vmatpush.bf16.msra.mxu0 %v6649
    %6792 = vmatpush.bf16.msra.mxu0 %v6647
    %6793 = vmatpush.bf16.msra.mxu0 %v6645
    %6794 = vmatmul.bf16.gmra.mxu0 %v5630
    %v6795 = vpop.f32.mrf.mxu0
    %v6796 = vadd.f32 %v6767, %v6795
    %v6797 = vpop.f32.mrf.mxu0
    %v6798 = vadd.f32 %v6769, %v6797
    %6799 = vmatmul.bf16.gmra.mxu0 %v5634
    %v6800 = vpop.f32.mrf.mxu0
    %v6801 = vadd.f32 %v6772, %v6800
    %v6802 = vpop.f32.mrf.mxu0
    %v6803 = vadd.f32 %v6774, %v6802
    %6804 = vmatmul.bf16.gmra.mxu0 %v5638
    %v6805 = vpop.f32.mrf.mxu0
    %v6806 = vadd.f32 %v6777, %v6805
    %v6807 = vpop.f32.mrf.mxu0
    %v6808 = vadd.f32 %v6779, %v6807
    %6809 = vmatmul.bf16.gmra.mxu0 %v5642
    %v6810 = vpop.f32.mrf.mxu0
    %v6811 = vadd.f32 %v6782, %v6810
    %v6812 = vpop.f32.mrf.mxu0
    %v6813 = vadd.f32 %v6784, %v6812
    %6814 = vdwg.mxu0
    %6815 = vmatpush.bf16.msra.mxu0 %v6675
    %6816 = vmatpush.bf16.msra.mxu0 %v6673
    %6817 = vmatpush.bf16.msra.mxu0 %v6671
    %6818 = vmatpush.bf16.msra.mxu0 %v6669
    %6819 = vmatpush.bf16.msra.mxu0 %v6667
    %6820 = vmatpush.bf16.msra.mxu0 %v6665
    %6821 = vmatpush.bf16.msra.mxu0 %v6663
    %6822 = vmatpush.bf16.msra.mxu0 %v6661
    %6823 = vmatmul.bf16.gmra.mxu0 %v5631
    %v6824 = vpop.f32.mrf.mxu0
    %v6825 = vadd.f32 %v6796, %v6824
    %v6826 = vpop.f32.mrf.mxu0
    %v6827 = vadd.f32 %v6798, %v6826
    %6828 = vmatmul.bf16.gmra.mxu0 %v5635
    %v6829 = vpop.f32.mrf.mxu0
    %v6830 = vadd.f32 %v6801, %v6829
    %v6831 = vpop.f32.mrf.mxu0
    %v6832 = vadd.f32 %v6803, %v6831
    %6833 = vmatmul.bf16.gmra.mxu0 %v5639
    %v6834 = vpop.f32.mrf.mxu0
    %v6835 = vadd.f32 %v6806, %v6834
    %v6836 = vpop.f32.mrf.mxu0
    %v6837 = vadd.f32 %v6808, %v6836
    %6838 = vmatmul.bf16.gmra.mxu0 %v5643
    %v6839 = vpop.f32.mrf.mxu0
    %v6840 = vadd.f32 %v6811, %v6839
    %v6841 = vpop.f32.mrf.mxu0
    %v6842 = vadd.f32 %v6813, %v6841
    %6843 = vdwg.mxu0
    %6844 = vmatpush.bf16.msra.mxu0 %v6691
    %6845 = vmatpush.bf16.msra.mxu0 %v6689
    %6846 = vmatpush.bf16.msra.mxu0 %v6687
    %6847 = vmatpush.bf16.msra.mxu0 %v6685
    %6848 = vmatpush.bf16.msra.mxu0 %v6683
    %6849 = vmatpush.bf16.msra.mxu0 %v6681
    %6850 = vmatpush.bf16.msra.mxu0 %v6679
    %6851 = vmatpush.bf16.msra.mxu0 %v6677
    %6852 = vmatmul.bf16.gmra.mxu0 %v5632
    %v6853 = vpop.f32.mrf.mxu0
    %v6854 = vadd.f32 %v6825, %v6853
    %v6855 = vpop.f32.mrf.mxu0
    %v6856 = vadd.f32 %v6827, %v6855
    %6857 = vmatmul.bf16.gmra.mxu0 %v5636
    %v6858 = vpop.f32.mrf.mxu0
    %v6859 = vadd.f32 %v6830, %v6858
    %v6860 = vpop.f32.mrf.mxu0
    %v6861 = vadd.f32 %v6832, %v6860
    %6862 = vmatmul.bf16.gmra.mxu0 %v5640
    %v6863 = vpop.f32.mrf.mxu0
    %v6864 = vadd.f32 %v6835, %v6863
    %v6865 = vpop.f32.mrf.mxu0
    %v6866 = vadd.f32 %v6837, %v6865
    %6867 = vmatmul.bf16.gmra.mxu0 %v5644
    %v6868 = vpop.f32.mrf.mxu0
    %v6869 = vadd.f32 %v6840, %v6868
    %v6870 = vpop.f32.mrf.mxu0
    %v6871 = vadd.f32 %v6842, %v6870
    %6872 = vdwg.mxu0
    %6873 = vmatpush.bf16.msra.mxu0 %v6644
    %6874 = vmatpush.bf16.msra.mxu0 %v6642
    %6875 = vmatpush.bf16.msra.mxu0 %v6640
    %6876 = vmatpush.bf16.msra.mxu0 %v6638
    %6877 = vmatpush.bf16.msra.mxu0 %v6636
    %6878 = vmatpush.bf16.msra.mxu0 %v6634
    %6879 = vmatpush.bf16.msra.mxu0 %v6632
    %6880 = vmatpush.bf16.msra.mxu0 %v6630
    %6881 = vmatmul.bf16.gmra.mxu0 %v5629
    %v6882 = vpop.f32.mrf.mxu0
    %v6883 = vadd.f32 %v6418, %v6882
    %v6884 = vpop.f32.mrf.mxu0
    %v6885 = vadd.f32 %v6420, %v6884
    %6886 = vmatmul.bf16.gmra.mxu0 %v5633
    %v6887 = vpop.f32.mrf.mxu0
    %v6888 = vadd.f32 %v6423, %v6887
    %v6889 = vpop.f32.mrf.mxu0
    %v6890 = vadd.f32 %v6425, %v6889
    %6891 = vmatmul.bf16.gmra.mxu0 %v5637
    %v6892 = vpop.f32.mrf.mxu0
    %v6893 = vadd.f32 %v6428, %v6892
    %v6894 = vpop.f32.mrf.mxu0
    %v6895 = vadd.f32 %v6430, %v6894
    %6896 = vmatmul.bf16.gmra.mxu0 %v5641
    %v6897 = vpop.f32.mrf.mxu0
    %v6898 = vadd.f32 %v6433, %v6897
    %v6899 = vpop.f32.mrf.mxu0
    %v6900 = vadd.f32 %v6435, %v6899
    %6901 = vdwg.mxu0
    %6902 = vmatpush.bf16.msra.mxu0 %v6660
    %6903 = vmatpush.bf16.msra.mxu0 %v6658
    %6904 = vmatpush.bf16.msra.mxu0 %v6656
    %6905 = vmatpush.bf16.msra.mxu0 %v6654
    %6906 = vmatpush.bf16.msra.mxu0 %v6652
    %6907 = vmatpush.bf16.msra.mxu0 %v6650
    %6908 = vmatpush.bf16.msra.mxu0 %v6648
    %6909 = vmatpush.bf16.msra.mxu0 %v6646
    %6910 = vmatmul.bf16.gmra.mxu0 %v5630
    %v6911 = vpop.f32.mrf.mxu0
    %v6912 = vadd.f32 %v6883, %v6911
    %v6913 = vpop.f32.mrf.mxu0
    %v6914 = vadd.f32 %v6885, %v6913
    %6915 = vmatmul.bf16.gmra.mxu0 %v5634
    %v6916 = vpop.f32.mrf.mxu0
    %v6917 = vadd.f32 %v6888, %v6916
    %v6918 = vpop.f32.mrf.mxu0
    %v6919 = vadd.f32 %v6890, %v6918
    %6920 = vmatmul.bf16.gmra.mxu0 %v5638
    %v6921 = vpop.f32.mrf.mxu0
    %v6922 = vadd.f32 %v6893, %v6921
    %v6923 = vpop.f32.mrf.mxu0
    %v6924 = vadd.f32 %v6895, %v6923
    %6925 = vmatmul.bf16.gmra.mxu0 %v5642
    %v6926 = vpop.f32.mrf.mxu0
    %v6927 = vadd.f32 %v6898, %v6926
    %v6928 = vpop.f32.mrf.mxu0
    %v6929 = vadd.f32 %v6900, %v6928
    %6930 = vdwg.mxu0
    %6931 = vmatpush.bf16.msra.mxu0 %v6676
    %6932 = vmatpush.bf16.msra.mxu0 %v6674
    %6933 = vmatpush.bf16.msra.mxu0 %v6672
    %6934 = vmatpush.bf16.msra.mxu0 %v6670
    %6935 = vmatpush.bf16.msra.mxu0 %v6668
    %6936 = vmatpush.bf16.msra.mxu0 %v6666
    %6937 = vmatpush.bf16.msra.mxu0 %v6664
    %6938 = vmatpush.bf16.msra.mxu0 %v6662
    %6939 = vmatmul.bf16.gmra.mxu0 %v5631
    %v6940 = vpop.f32.mrf.mxu0
    %v6941 = vadd.f32 %v6912, %v6940
    %v6942 = vpop.f32.mrf.mxu0
    %v6943 = vadd.f32 %v6914, %v6942
    %6944 = vmatmul.bf16.gmra.mxu0 %v5635
    %v6945 = vpop.f32.mrf.mxu0
    %v6946 = vadd.f32 %v6917, %v6945
    %v6947 = vpop.f32.mrf.mxu0
    %v6948 = vadd.f32 %v6919, %v6947
    %6949 = vmatmul.bf16.gmra.mxu0 %v5639
    %v6950 = vpop.f32.mrf.mxu0
    %v6951 = vadd.f32 %v6922, %v6950
    %v6952 = vpop.f32.mrf.mxu0
    %v6953 = vadd.f32 %v6924, %v6952
    %6954 = vmatmul.bf16.gmra.mxu0 %v5643
    %v6955 = vpop.f32.mrf.mxu0
    %v6956 = vadd.f32 %v6927, %v6955
    %v6957 = vpop.f32.mrf.mxu0
    %v6958 = vadd.f32 %v6929, %v6957
    %6959 = vdwg.mxu0
    %6960 = vmatpush.bf16.msra.mxu0 %v6692
    %6961 = vmatpush.bf16.msra.mxu0 %v6690
    %6962 = vmatpush.bf16.msra.mxu0 %v6688
    %6963 = vmatpush.bf16.msra.mxu0 %v6686
    %6964 = vmatpush.bf16.msra.mxu0 %v6684
    %6965 = vmatpush.bf16.msra.mxu0 %v6682
    %6966 = vmatpush.bf16.msra.mxu0 %v6680
    %6967 = vmatpush.bf16.msra.mxu0 %v6678
    %6968 = vmatmul.bf16.gmra.mxu0 %v5632
    %v6969 = vpop.f32.mrf.mxu0
    %v6970 = vadd.f32 %v6941, %v6969
    %v6971 = vpop.f32.mrf.mxu0
    %v6972 = vadd.f32 %v6943, %v6971
    %6973 = vmatmul.bf16.gmra.mxu0 %v5636
    %v6974 = vpop.f32.mrf.mxu0
    %v6975 = vadd.f32 %v6946, %v6974
    %v6976 = vpop.f32.mrf.mxu0
    %v6977 = vadd.f32 %v6948, %v6976
    %6978 = vmatmul.bf16.gmra.mxu0 %v5640
    %v6979 = vpop.f32.mrf.mxu0
    %v6980 = vadd.f32 %v6951, %v6979
    %v6981 = vpop.f32.mrf.mxu0
    %v6982 = vadd.f32 %v6953, %v6981
    %6983 = vmatmul.bf16.gmra.mxu0 %v5644
    %v6984 = vpop.f32.mrf.mxu0
    %v6985 = vadd.f32 %v6956, %v6984
    %v6986 = vpop.f32.mrf.mxu0
    %v6987 = vadd.f32 %v6958, %v6986
    %6988 = vdwg.mxu0
    %v6989 = vrot.slane %v5469, 1
    %v6990 = vrot.slane %v5498, 1
    %v6991 = vrot.slane %v5581, 1
    %v6992 = vrot.slane %v5610, 1
    %v6993 = vrot.slane %v5471, 1
    %v6994 = vrot.slane %v5500, 1
    %v6995 = vrot.slane %v5583, 1
    %v6996 = vrot.slane %v5612, 1
    %v6997 = vrot.slane %v5474, 1
    %v6998 = vrot.slane %v5503, 1
    %v6999 = vrot.slane %v5586, 1
    %v7000 = vrot.slane %v5615, 1
    %v7001 = vrot.slane %v5476, 1
    %v7002 = vrot.slane %v5505, 1
    %v7003 = vrot.slane %v5588, 1
    %v7004 = vrot.slane %v5617, 1
    %v7005 = vrot.slane %v5479, 1
    %v7006 = vrot.slane %v5508, 1
    %v7007 = vrot.slane %v5591, 1
    %v7008 = vrot.slane %v5620, 1
    %v7009 = vrot.slane %v5481, 1
    %v7010 = vrot.slane %v5510, 1
    %v7011 = vrot.slane %v5593, 1
    %v7012 = vrot.slane %v5622, 1
    %v7013 = vrot.slane %v5484, 1
    %v7014 = vrot.slane %v5513, 1
    %v7015 = vrot.slane %v5596, 1
    %v7016 = vrot.slane %v5625, 1
    %v7017 = vrot.slane %v5486, 1
    %v7018 = vrot.slane %v5515, 1
    %v7019 = vrot.slane %v5598, 1
    %v7020 = vrot.slane %v5627, 1
    %v7021 = vsel %vm966, %v7013, %v7017
    %v7022 = vsel %vm966, %v7014, %v7018
    %v7023 = vsel %vm966, %v7015, %v7019
    %v7024 = vsel %vm966, %v7016, %v7020
    %v7025 = vsel %vm966, %v7009, %v7013
    %v7026 = vsel %vm966, %v7010, %v7014
    %v7027 = vsel %vm966, %v7011, %v7015
    %v7028 = vsel %vm966, %v7012, %v7016
    %v7029 = vsel %vm966, %v7005, %v7009
    %v7030 = vsel %vm966, %v7006, %v7010
    %v7031 = vsel %vm966, %v7007, %v7011
    %v7032 = vsel %vm966, %v7008, %v7012
    %v7033 = vsel %vm966, %v7001, %v7005
    %v7034 = vsel %vm966, %v7002, %v7006
    %v7035 = vsel %vm966, %v7003, %v7007
    %v7036 = vsel %vm966, %v7004, %v7008
    %v7037 = vsel %vm966, %v6997, %v7001
    %v7038 = vsel %vm966, %v6998, %v7002
    %v7039 = vsel %vm966, %v6999, %v7003
    %v7040 = vsel %vm966, %v7000, %v7004
    %v7041 = vsel %vm966, %v6993, %v6997
    %v7042 = vsel %vm966, %v6994, %v6998
    %v7043 = vsel %vm966, %v6995, %v6999
    %v7044 = vsel %vm966, %v6996, %v7000
    %v7045 = vsel %vm966, %v6989, %v6993
    %v7046 = vsel %vm966, %v6990, %v6994
    %v7047 = vsel %vm966, %v6991, %v6995
    %v7048 = vsel %vm966, %v6992, %v6996
    %v7049 = vsel %vm966, %v7017, %v6989
    %v7050 = vsel %vm966, %v7018, %v6990
    %v7051 = vsel %vm966, %v7019, %v6991
    %v7052 = vsel %vm966, %v7020, %v6992
    %v7053 = vsel %vm991, %v7045, 0.0
    %v7054 = vsel %vm991, %v7046, 0.0
    %v7055 = vsel %vm991, %v7047, 0.0
    %v7056 = vsel %vm991, %v7048, 0.0
    %v7057 = vsel %vm992, %v7041, 0.0
    %v7058 = vsel %vm992, %v7042, 0.0
    %v7059 = vsel %vm992, %v7043, 0.0
    %v7060 = vsel %vm992, %v7044, 0.0
    %v7061 = vsel %vm993, %v7037, 0.0
    %v7062 = vsel %vm993, %v7038, 0.0
    %v7063 = vsel %vm993, %v7039, 0.0
    %v7064 = vsel %vm993, %v7040, 0.0
    %v7065 = vsel %vm994, %v7033, 0.0
    %v7066 = vsel %vm994, %v7034, 0.0
    %v7067 = vsel %vm994, %v7035, 0.0
    %v7068 = vsel %vm994, %v7036, 0.0
    %v7069 = vsel %vm995, %v7029, 0.0
    %v7070 = vsel %vm995, %v7030, 0.0
    %v7071 = vsel %vm995, %v7031, 0.0
    %v7072 = vsel %vm995, %v7032, 0.0
    %v7073 = vsel %vm996, %v7025, 0.0
    %v7074 = vsel %vm996, %v7026, 0.0
    %v7075 = vsel %vm996, %v7027, 0.0
    %v7076 = vsel %vm996, %v7028, 0.0
    %v7077 = vsel %vm997, %v7021, 0.0
    %v7078 = vsel %vm997, %v7022, 0.0
    %v7079 = vsel %vm997, %v7023, 0.0
    %v7080 = vsel %vm997, %v7024, 0.0
    %v7081 = vsel %vm998, %v7049, 0.0
    %v7082 = vsel %vm998, %v7050, 0.0
    %v7083 = vsel %vm998, %v7051, 0.0
    %v7084 = vsel %vm998, %v7052, 0.0
    %v7085 = vpack.c.bf16 %v7057, %v7053
    %v7086 = vpack.c.bf16 %v7058, %v7054
    %v7087 = vpack.c.bf16 %v7059, %v7055
    %v7088 = vpack.c.bf16 %v7060, %v7056
    %v7089 = vpack.c.bf16 %v7065, %v7061
    %v7090 = vpack.c.bf16 %v7066, %v7062
    %v7091 = vpack.c.bf16 %v7067, %v7063
    %v7092 = vpack.c.bf16 %v7068, %v7064
    %v7093 = vpack.c.bf16 %v7073, %v7069
    %v7094 = vpack.c.bf16 %v7074, %v7070
    %v7095 = vpack.c.bf16 %v7075, %v7071
    %v7096 = vpack.c.bf16 %v7076, %v7072
    %v7097 = vpack.c.bf16 %v7081, %v7077
    %v7098 = vpack.c.bf16 %v7082, %v7078
    %v7099 = vpack.c.bf16 %v7083, %v7079
    %v7100 = vpack.c.bf16 %v7084, %v7080
    %v7101 = vld [vmem:[#allocation2 + $0x1120] sm:$0xff]
    %v7102 = vld [vmem:[#allocation2 + $0x1128] sm:$0xff]
    %v7103 = vld [vmem:[#allocation2 + $0x1130] sm:$0xff]
    %v7104 = vld [vmem:[#allocation2 + $0x1138] sm:$0xff]
    %v7105 = vld [vmem:[#allocation2 + $0x1140] sm:$0xff]
    %v7106 = vld [vmem:[#allocation2 + $0x1148] sm:$0xff]
    %v7107 = vld [vmem:[#allocation2 + $0x1150] sm:$0xff]
    %v7108 = vld [vmem:[#allocation2 + $0x1158] sm:$0xff]
    %v7109 = vld [vmem:[#allocation2 + $0x1160] sm:$0xff]
    %v7110 = vld [vmem:[#allocation2 + $0x1168] sm:$0xff]
    %v7111 = vld [vmem:[#allocation2 + $0x1170] sm:$0xff]
    %v7112 = vld [vmem:[#allocation2 + $0x1178] sm:$0xff]
    %v7113 = vld [vmem:[#allocation2 + $0x1180] sm:$0xff]
    %v7114 = vld [vmem:[#allocation2 + $0x1188] sm:$0xff]
    %v7115 = vld [vmem:[#allocation2 + $0x1190] sm:$0xff]
    %v7116 = vld [vmem:[#allocation2 + $0x1198] sm:$0xff]
    %v7117 = vld [vmem:[#allocation2 + $0x11a0] sm:$0xff]
    %v7118 = vld [vmem:[#allocation2 + $0x11a8] sm:$0xff]
    %v7119 = vld [vmem:[#allocation2 + $0x11b0] sm:$0xff]
    %v7120 = vld [vmem:[#allocation2 + $0x11b8] sm:$0xff]
    %v7121 = vld [vmem:[#allocation2 + $0x11c0] sm:$0xff]
    %v7122 = vld [vmem:[#allocation2 + $0x11c8] sm:$0xff]
    %v7123 = vld [vmem:[#allocation2 + $0x11d0] sm:$0xff]
    %v7124 = vld [vmem:[#allocation2 + $0x11d8] sm:$0xff]
    %v7125 = vld [vmem:[#allocation2 + $0x11e0] sm:$0xff]
    %v7126 = vld [vmem:[#allocation2 + $0x11e8] sm:$0xff]
    %v7127 = vld [vmem:[#allocation2 + $0x11f0] sm:$0xff]
    %v7128 = vld [vmem:[#allocation2 + $0x11f8] sm:$0xff]
    %v7129 = vld [vmem:[#allocation2 + $0x1200] sm:$0xff]
    %v7130 = vld [vmem:[#allocation2 + $0x1208] sm:$0xff]
    %v7131 = vld [vmem:[#allocation2 + $0x1210] sm:$0xff]
    %v7132 = vld [vmem:[#allocation2 + $0x1218] sm:$0xff]
    %v7133 = vld [vmem:[#allocation2 + $0x1220] sm:$0xff]
    %v7134 = vld [vmem:[#allocation2 + $0x1228] sm:$0xff]
    %v7135 = vld [vmem:[#allocation2 + $0x1230] sm:$0xff]
    %v7136 = vld [vmem:[#allocation2 + $0x1238] sm:$0xff]
    %v7137 = vld [vmem:[#allocation2 + $0x1240] sm:$0xff]
    %v7138 = vld [vmem:[#allocation2 + $0x1248] sm:$0xff]
    %v7139 = vld [vmem:[#allocation2 + $0x1250] sm:$0xff]
    %v7140 = vld [vmem:[#allocation2 + $0x1258] sm:$0xff]
    %v7141 = vld [vmem:[#allocation2 + $0x1260] sm:$0xff]
    %v7142 = vld [vmem:[#allocation2 + $0x1268] sm:$0xff]
    %v7143 = vld [vmem:[#allocation2 + $0x1270] sm:$0xff]
    %v7144 = vld [vmem:[#allocation2 + $0x1278] sm:$0xff]
    %v7145 = vld [vmem:[#allocation2 + $0x1280] sm:$0xff]
    %v7146 = vld [vmem:[#allocation2 + $0x1288] sm:$0xff]
    %v7147 = vld [vmem:[#allocation2 + $0x1290] sm:$0xff]
    %v7148 = vld [vmem:[#allocation2 + $0x1298] sm:$0xff]
    %v7149 = vld [vmem:[#allocation2 + $0x12a0] sm:$0xff]
    %v7150 = vld [vmem:[#allocation2 + $0x12a8] sm:$0xff]
    %v7151 = vld [vmem:[#allocation2 + $0x12b0] sm:$0xff]
    %v7152 = vld [vmem:[#allocation2 + $0x12b8] sm:$0xff]
    %v7153 = vld [vmem:[#allocation2 + $0x12c0] sm:$0xff]
    %v7154 = vld [vmem:[#allocation2 + $0x12c8] sm:$0xff]
    %v7155 = vld [vmem:[#allocation2 + $0x12d0] sm:$0xff]
    %v7156 = vld [vmem:[#allocation2 + $0x12d8] sm:$0xff]
    %v7157 = vld [vmem:[#allocation2 + $0x12e0] sm:$0xff]
    %v7158 = vld [vmem:[#allocation2 + $0x12e8] sm:$0xff]
    %v7159 = vld [vmem:[#allocation2 + $0x12f0] sm:$0xff]
    %v7160 = vld [vmem:[#allocation2 + $0x12f8] sm:$0xff]
    %v7161 = vld [vmem:[#allocation2 + $0x1300] sm:$0xff]
    %v7162 = vld [vmem:[#allocation2 + $0x1308] sm:$0xff]
    %v7163 = vld [vmem:[#allocation2 + $0x1310] sm:$0xff]
    %v7164 = vld [vmem:[#allocation2 + $0x1318] sm:$0xff]
    %v7229 = vunpack.c.l.b16 %v7101
    %v7230 = vunpack.c.h.b16 %v7101
    %v7231 = vunpack.c.l.b16 %v7102
    %v7232 = vunpack.c.h.b16 %v7102
    %v7233 = vunpack.c.l.b16 %v7103
    %v7234 = vunpack.c.h.b16 %v7103
    %v7235 = vunpack.c.l.b16 %v7104
    %v7236 = vunpack.c.h.b16 %v7104
    %v7237 = vunpack.c.l.b16 %v7105
    %v7238 = vunpack.c.h.b16 %v7105
    %v7239 = vunpack.c.l.b16 %v7106
    %v7240 = vunpack.c.h.b16 %v7106
    %v7241 = vunpack.c.l.b16 %v7107
    %v7242 = vunpack.c.h.b16 %v7107
    %v7243 = vunpack.c.l.b16 %v7108
    %v7244 = vunpack.c.h.b16 %v7108
    %v7245 = vunpack.c.l.b16 %v7109
    %v7246 = vunpack.c.h.b16 %v7109
    %v7247 = vunpack.c.l.b16 %v7110
    %v7248 = vunpack.c.h.b16 %v7110
    %v7249 = vunpack.c.l.b16 %v7111
    %v7250 = vunpack.c.h.b16 %v7111
    %v7251 = vunpack.c.l.b16 %v7112
    %v7252 = vunpack.c.h.b16 %v7112
    %v7253 = vunpack.c.l.b16 %v7113
    %v7254 = vunpack.c.h.b16 %v7113
    %v7255 = vunpack.c.l.b16 %v7114
    %v7256 = vunpack.c.h.b16 %v7114
    %v7257 = vunpack.c.l.b16 %v7115
    %v7258 = vunpack.c.h.b16 %v7115
    %v7259 = vunpack.c.l.b16 %v7116
    %v7260 = vunpack.c.h.b16 %v7116
    %v7261 = vunpack.c.l.b16 %v7117
    %v7262 = vunpack.c.h.b16 %v7117
    %v7263 = vunpack.c.l.b16 %v7118
    %v7264 = vunpack.c.h.b16 %v7118
    %v7265 = vunpack.c.l.b16 %v7119
    %v7266 = vunpack.c.h.b16 %v7119
    %v7267 = vunpack.c.l.b16 %v7120
    %v7268 = vunpack.c.h.b16 %v7120
    %v7269 = vunpack.c.l.b16 %v7121
    %v7270 = vunpack.c.h.b16 %v7121
    %v7271 = vunpack.c.l.b16 %v7122
    %v7272 = vunpack.c.h.b16 %v7122
    %v7273 = vunpack.c.l.b16 %v7123
    %v7274 = vunpack.c.h.b16 %v7123
    %v7275 = vunpack.c.l.b16 %v7124
    %v7276 = vunpack.c.h.b16 %v7124
    %v7277 = vunpack.c.l.b16 %v7125
    %v7278 = vunpack.c.h.b16 %v7125
    %v7279 = vunpack.c.l.b16 %v7126
    %v7280 = vunpack.c.h.b16 %v7126
    %v7281 = vunpack.c.l.b16 %v7127
    %v7282 = vunpack.c.h.b16 %v7127
    %v7283 = vunpack.c.l.b16 %v7128
    %v7284 = vunpack.c.h.b16 %v7128
    %v7285 = vunpack.c.l.b16 %v7129
    %v7286 = vunpack.c.h.b16 %v7129
    %v7287 = vunpack.c.l.b16 %v7130
    %v7288 = vunpack.c.h.b16 %v7130
    %v7289 = vunpack.c.l.b16 %v7131
    %v7290 = vunpack.c.h.b16 %v7131
    %v7291 = vunpack.c.l.b16 %v7132
    %v7292 = vunpack.c.h.b16 %v7132
    %v7293 = vunpack.c.l.b16 %v7133
    %v7294 = vunpack.c.h.b16 %v7133
    %v7295 = vunpack.c.l.b16 %v7134
    %v7296 = vunpack.c.h.b16 %v7134
    %v7297 = vunpack.c.l.b16 %v7135
    %v7298 = vunpack.c.h.b16 %v7135
    %v7299 = vunpack.c.l.b16 %v7136
    %v7300 = vunpack.c.h.b16 %v7136
    %v7301 = vunpack.c.l.b16 %v7137
    %v7302 = vunpack.c.h.b16 %v7137
    %v7303 = vunpack.c.l.b16 %v7138
    %v7304 = vunpack.c.h.b16 %v7138
    %v7305 = vunpack.c.l.b16 %v7139
    %v7306 = vunpack.c.h.b16 %v7139
    %v7307 = vunpack.c.l.b16 %v7140
    %v7308 = vunpack.c.h.b16 %v7140
    %v7309 = vunpack.c.l.b16 %v7141
    %v7310 = vunpack.c.h.b16 %v7141
    %v7311 = vunpack.c.l.b16 %v7142
    %v7312 = vunpack.c.h.b16 %v7142
    %v7313 = vunpack.c.l.b16 %v7143
    %v7314 = vunpack.c.h.b16 %v7143
    %v7315 = vunpack.c.l.b16 %v7144
    %v7316 = vunpack.c.h.b16 %v7144
    %v7317 = vunpack.c.l.b16 %v7145
    %v7318 = vunpack.c.h.b16 %v7145
    %v7319 = vunpack.c.l.b16 %v7146
    %v7320 = vunpack.c.h.b16 %v7146
    %v7321 = vunpack.c.l.b16 %v7147
    %v7322 = vunpack.c.h.b16 %v7147
    %v7323 = vunpack.c.l.b16 %v7148
    %v7324 = vunpack.c.h.b16 %v7148
    %v7325 = vunpack.c.l.b16 %v7149
    %v7326 = vunpack.c.h.b16 %v7149
    %v7327 = vunpack.c.l.b16 %v7150
    %v7328 = vunpack.c.h.b16 %v7150
    %v7329 = vunpack.c.l.b16 %v7151
    %v7330 = vunpack.c.h.b16 %v7151
    %v7331 = vunpack.c.l.b16 %v7152
    %v7332 = vunpack.c.h.b16 %v7152
    %v7333 = vunpack.c.l.b16 %v7153
    %v7334 = vunpack.c.h.b16 %v7153
    %v7335 = vunpack.c.l.b16 %v7154
    %v7336 = vunpack.c.h.b16 %v7154
    %v7337 = vunpack.c.l.b16 %v7155
    %v7338 = vunpack.c.h.b16 %v7155
    %v7339 = vunpack.c.l.b16 %v7156
    %v7340 = vunpack.c.h.b16 %v7156
    %v7341 = vunpack.c.l.b16 %v7157
    %v7342 = vunpack.c.h.b16 %v7157
    %v7343 = vunpack.c.l.b16 %v7158
    %v7344 = vunpack.c.h.b16 %v7158
    %v7345 = vunpack.c.l.b16 %v7159
    %v7346 = vunpack.c.h.b16 %v7159
    %v7347 = vunpack.c.l.b16 %v7160
    %v7348 = vunpack.c.h.b16 %v7160
    %v7349 = vunpack.c.l.b16 %v7161
    %v7350 = vunpack.c.h.b16 %v7161
    %v7351 = vunpack.c.l.b16 %v7162
    %v7352 = vunpack.c.h.b16 %v7162
    %v7353 = vunpack.c.l.b16 %v7163
    %v7354 = vunpack.c.h.b16 %v7163
    %v7355 = vunpack.c.l.b16 %v7164
    %v7356 = vunpack.c.h.b16 %v7164
    %v7357 = vpack.c.b16 %v7231, %v7229
    %v7358 = vpack.c.b16 %v7232, %v7230
    %v7359 = vpack.c.b16 %v7235, %v7233
    %v7360 = vpack.c.b16 %v7236, %v7234
    %v7361 = vpack.c.b16 %v7239, %v7237
    %v7362 = vpack.c.b16 %v7240, %v7238
    %v7363 = vpack.c.b16 %v7243, %v7241
    %v7364 = vpack.c.b16 %v7244, %v7242
    %v7365 = vpack.c.b16 %v7247, %v7245
    %v7366 = vpack.c.b16 %v7248, %v7246
    %v7367 = vpack.c.b16 %v7251, %v7249
    %v7368 = vpack.c.b16 %v7252, %v7250
    %v7369 = vpack.c.b16 %v7255, %v7253
    %v7370 = vpack.c.b16 %v7256, %v7254
    %v7371 = vpack.c.b16 %v7259, %v7257
    %v7372 = vpack.c.b16 %v7260, %v7258
    %v7373 = vpack.c.b16 %v7263, %v7261
    %v7374 = vpack.c.b16 %v7264, %v7262
    %v7375 = vpack.c.b16 %v7267, %v7265
    %v7376 = vpack.c.b16 %v7268, %v7266
    %v7377 = vpack.c.b16 %v7271, %v7269
    %v7378 = vpack.c.b16 %v7272, %v7270
    %v7379 = vpack.c.b16 %v7275, %v7273
    %v7380 = vpack.c.b16 %v7276, %v7274
    %v7381 = vpack.c.b16 %v7279, %v7277
    %v7382 = vpack.c.b16 %v7280, %v7278
    %v7383 = vpack.c.b16 %v7283, %v7281
    %v7384 = vpack.c.b16 %v7284, %v7282
    %v7385 = vpack.c.b16 %v7287, %v7285
    %v7386 = vpack.c.b16 %v7288, %v7286
    %v7387 = vpack.c.b16 %v7291, %v7289
    %v7388 = vpack.c.b16 %v7292, %v7290
    %v7389 = vpack.c.b16 %v7295, %v7293
    %v7390 = vpack.c.b16 %v7296, %v7294
    %v7391 = vpack.c.b16 %v7299, %v7297
    %v7392 = vpack.c.b16 %v7300, %v7298
    %v7393 = vpack.c.b16 %v7303, %v7301
    %v7394 = vpack.c.b16 %v7304, %v7302
    %v7395 = vpack.c.b16 %v7307, %v7305
    %v7396 = vpack.c.b16 %v7308, %v7306
    %v7397 = vpack.c.b16 %v7311, %v7309
    %v7398 = vpack.c.b16 %v7312, %v7310
    %v7399 = vpack.c.b16 %v7315, %v7313
    %v7400 = vpack.c.b16 %v7316, %v7314
    %v7401 = vpack.c.b16 %v7319, %v7317
    %v7402 = vpack.c.b16 %v7320, %v7318
    %v7403 = vpack.c.b16 %v7323, %v7321
    %v7404 = vpack.c.b16 %v7324, %v7322
    %v7405 = vpack.c.b16 %v7327, %v7325
    %v7406 = vpack.c.b16 %v7328, %v7326
    %v7407 = vpack.c.b16 %v7331, %v7329
    %v7408 = vpack.c.b16 %v7332, %v7330
    %v7409 = vpack.c.b16 %v7335, %v7333
    %v7410 = vpack.c.b16 %v7336, %v7334
    %v7411 = vpack.c.b16 %v7339, %v7337
    %v7412 = vpack.c.b16 %v7340, %v7338
    %v7413 = vpack.c.b16 %v7343, %v7341
    %v7414 = vpack.c.b16 %v7344, %v7342
    %v7415 = vpack.c.b16 %v7347, %v7345
    %v7416 = vpack.c.b16 %v7348, %v7346
    %v7417 = vpack.c.b16 %v7351, %v7349
    %v7418 = vpack.c.b16 %v7352, %v7350
    %v7419 = vpack.c.b16 %v7355, %v7353
    %v7420 = vpack.c.b16 %v7356, %v7354
    %7485 = vmatpush.bf16.msra.mxu0 %v7371
    %7486 = vmatpush.bf16.msra.mxu0 %v7369
    %7487 = vmatpush.bf16.msra.mxu0 %v7367
    %7488 = vmatpush.bf16.msra.mxu0 %v7365
    %7489 = vmatpush.bf16.msra.mxu0 %v7363
    %7490 = vmatpush.bf16.msra.mxu0 %v7361
    %7491 = vmatpush.bf16.msra.mxu0 %v7359
    %7492 = vmatpush.bf16.msra.mxu0 %v7357
    %7493 = vmatmul.bf16.gmra.mxu0 %v7085
    %v7494 = vpop.f32.mrf.mxu0
    %v7495 = vadd.f32 0.0, %v7494
    %v7496 = vpop.f32.mrf.mxu0
    %v7497 = vadd.f32 0.0, %v7496
    %7498 = vmatmul.bf16.gmra.mxu0 %v7089
    %v7499 = vpop.f32.mrf.mxu0
    %v7500 = vadd.f32 0.0, %v7499
    %v7501 = vpop.f32.mrf.mxu0
    %v7502 = vadd.f32 0.0, %v7501
    %7503 = vmatmul.bf16.gmra.mxu0 %v7093
    %v7504 = vpop.f32.mrf.mxu0
    %v7505 = vadd.f32 0.0, %v7504
    %v7506 = vpop.f32.mrf.mxu0
    %v7507 = vadd.f32 0.0, %v7506
    %7508 = vmatmul.bf16.gmra.mxu0 %v7097
    %v7509 = vpop.f32.mrf.mxu0
    %v7510 = vadd.f32 0.0, %v7509
    %v7511 = vpop.f32.mrf.mxu0
    %v7512 = vadd.f32 0.0, %v7511
    %7513 = vdwg.mxu0
    %7514 = vmatpush.bf16.msra.mxu0 %v7387
    %7515 = vmatpush.bf16.msra.mxu0 %v7385
    %7516 = vmatpush.bf16.msra.mxu0 %v7383
    %7517 = vmatpush.bf16.msra.mxu0 %v7381
    %7518 = vmatpush.bf16.msra.mxu0 %v7379
    %7519 = vmatpush.bf16.msra.mxu0 %v7377
    %7520 = vmatpush.bf16.msra.mxu0 %v7375
    %7521 = vmatpush.bf16.msra.mxu0 %v7373
    %7522 = vmatmul.bf16.gmra.mxu0 %v7086
    %v7523 = vpop.f32.mrf.mxu0
    %v7524 = vadd.f32 %v7495, %v7523
    %v7525 = vpop.f32.mrf.mxu0
    %v7526 = vadd.f32 %v7497, %v7525
    %7527 = vmatmul.bf16.gmra.mxu0 %v7090
    %v7528 = vpop.f32.mrf.mxu0
    %v7529 = vadd.f32 %v7500, %v7528
    %v7530 = vpop.f32.mrf.mxu0
    %v7531 = vadd.f32 %v7502, %v7530
    %7532 = vmatmul.bf16.gmra.mxu0 %v7094
    %v7533 = vpop.f32.mrf.mxu0
    %v7534 = vadd.f32 %v7505, %v7533
    %v7535 = vpop.f32.mrf.mxu0
    %v7536 = vadd.f32 %v7507, %v7535
    %7537 = vmatmul.bf16.gmra.mxu0 %v7098
    %v7538 = vpop.f32.mrf.mxu0
    %v7539 = vadd.f32 %v7510, %v7538
    %v7540 = vpop.f32.mrf.mxu0
    %v7541 = vadd.f32 %v7512, %v7540
    %7542 = vdwg.mxu0
    %7543 = vmatpush.bf16.msra.mxu0 %v7403
    %7544 = vmatpush.bf16.msra.mxu0 %v7401
    %7545 = vmatpush.bf16.msra.mxu0 %v7399
    %7546 = vmatpush.bf16.msra.mxu0 %v7397
    %7547 = vmatpush.bf16.msra.mxu0 %v7395
    %7548 = vmatpush.bf16.msra.mxu0 %v7393
    %7549 = vmatpush.bf16.msra.mxu0 %v7391
    %7550 = vmatpush.bf16.msra.mxu0 %v7389
    %7551 = vmatmul.bf16.gmra.mxu0 %v7087
    %v7552 = vpop.f32.mrf.mxu0
    %v7553 = vadd.f32 %v7524, %v7552
    %v7554 = vpop.f32.mrf.mxu0
    %v7555 = vadd.f32 %v7526, %v7554
    %7556 = vmatmul.bf16.gmra.mxu0 %v7091
    %v7557 = vpop.f32.mrf.mxu0
    %v7558 = vadd.f32 %v7529, %v7557
    %v7559 = vpop.f32.mrf.mxu0
    %v7560 = vadd.f32 %v7531, %v7559
    %7561 = vmatmul.bf16.gmra.mxu0 %v7095
    %v7562 = vpop.f32.mrf.mxu0
    %v7563 = vadd.f32 %v7534, %v7562
    %v7564 = vpop.f32.mrf.mxu0
    %v7565 = vadd.f32 %v7536, %v7564
    %7566 = vmatmul.bf16.gmra.mxu0 %v7099
    %v7567 = vpop.f32.mrf.mxu0
    %v7568 = vadd.f32 %v7539, %v7567
    %v7569 = vpop.f32.mrf.mxu0
    %v7570 = vadd.f32 %v7541, %v7569
    %7571 = vdwg.mxu0
    %7572 = vmatpush.bf16.msra.mxu0 %v7419
    %7573 = vmatpush.bf16.msra.mxu0 %v7417
    %7574 = vmatpush.bf16.msra.mxu0 %v7415
    %7575 = vmatpush.bf16.msra.mxu0 %v7413
    %7576 = vmatpush.bf16.msra.mxu0 %v7411
    %7577 = vmatpush.bf16.msra.mxu0 %v7409
    %7578 = vmatpush.bf16.msra.mxu0 %v7407
    %7579 = vmatpush.bf16.msra.mxu0 %v7405
    %7580 = vmatmul.bf16.gmra.mxu0 %v7088
    %v7581 = vpop.f32.mrf.mxu0
    %v7582 = vadd.f32 %v7553, %v7581
    %v7583 = vpop.f32.mrf.mxu0
    %v7584 = vadd.f32 %v7555, %v7583
    %7585 = vmatmul.bf16.gmra.mxu0 %v7092
    %v7586 = vpop.f32.mrf.mxu0
    %v7587 = vadd.f32 %v7558, %v7586
    %v7588 = vpop.f32.mrf.mxu0
    %v7589 = vadd.f32 %v7560, %v7588
    %7590 = vmatmul.bf16.gmra.mxu0 %v7096
    %v7591 = vpop.f32.mrf.mxu0
    %v7592 = vadd.f32 %v7563, %v7591
    %v7593 = vpop.f32.mrf.mxu0
    %v7594 = vadd.f32 %v7565, %v7593
    %7595 = vmatmul.bf16.gmra.mxu0 %v7100
    %v7596 = vpop.f32.mrf.mxu0
    %v7597 = vadd.f32 %v7568, %v7596
    %v7598 = vpop.f32.mrf.mxu0
    %v7599 = vadd.f32 %v7570, %v7598
    %7600 = vdwg.mxu0
    %7601 = vmatpush.bf16.msra.mxu0 %v7372
    %7602 = vmatpush.bf16.msra.mxu0 %v7370
    %7603 = vmatpush.bf16.msra.mxu0 %v7368
    %7604 = vmatpush.bf16.msra.mxu0 %v7366
    %7605 = vmatpush.bf16.msra.mxu0 %v7364
    %7606 = vmatpush.bf16.msra.mxu0 %v7362
    %7607 = vmatpush.bf16.msra.mxu0 %v7360
    %7608 = vmatpush.bf16.msra.mxu0 %v7358
    %7609 = vmatmul.bf16.gmra.mxu0 %v7085
    %v7610 = vpop.f32.mrf.mxu0
    %v7611 = vadd.f32 0.0, %v7610
    %v7612 = vpop.f32.mrf.mxu0
    %v7613 = vadd.f32 0.0, %v7612
    %7614 = vmatmul.bf16.gmra.mxu0 %v7089
    %v7615 = vpop.f32.mrf.mxu0
    %v7616 = vadd.f32 0.0, %v7615
    %v7617 = vpop.f32.mrf.mxu0
    %v7618 = vadd.f32 0.0, %v7617
    %7619 = vmatmul.bf16.gmra.mxu0 %v7093
    %v7620 = vpop.f32.mrf.mxu0
    %v7621 = vadd.f32 0.0, %v7620
    %v7622 = vpop.f32.mrf.mxu0
    %v7623 = vadd.f32 0.0, %v7622
    %7624 = vmatmul.bf16.gmra.mxu0 %v7097
    %v7625 = vpop.f32.mrf.mxu0
    %v7626 = vadd.f32 0.0, %v7625
    %v7627 = vpop.f32.mrf.mxu0
    %v7628 = vadd.f32 0.0, %v7627
    %7629 = vdwg.mxu0
    %7630 = vmatpush.bf16.msra.mxu0 %v7388
    %7631 = vmatpush.bf16.msra.mxu0 %v7386
    %7632 = vmatpush.bf16.msra.mxu0 %v7384
    %7633 = vmatpush.bf16.msra.mxu0 %v7382
    %7634 = vmatpush.bf16.msra.mxu0 %v7380
    %7635 = vmatpush.bf16.msra.mxu0 %v7378
    %7636 = vmatpush.bf16.msra.mxu0 %v7376
    %7637 = vmatpush.bf16.msra.mxu0 %v7374
    %7638 = vmatmul.bf16.gmra.mxu0 %v7086
    %v7639 = vpop.f32.mrf.mxu0
    %v7640 = vadd.f32 %v7611, %v7639
    %v7641 = vpop.f32.mrf.mxu0
    %v7642 = vadd.f32 %v7613, %v7641
    %7643 = vmatmul.bf16.gmra.mxu0 %v7090
    %v7644 = vpop.f32.mrf.mxu0
    %v7645 = vadd.f32 %v7616, %v7644
    %v7646 = vpop.f32.mrf.mxu0
    %v7647 = vadd.f32 %v7618, %v7646
    %7648 = vmatmul.bf16.gmra.mxu0 %v7094
    %v7649 = vpop.f32.mrf.mxu0
    %v7650 = vadd.f32 %v7621, %v7649
    %v7651 = vpop.f32.mrf.mxu0
    %v7652 = vadd.f32 %v7623, %v7651
    %7653 = vmatmul.bf16.gmra.mxu0 %v7098
    %v7654 = vpop.f32.mrf.mxu0
    %v7655 = vadd.f32 %v7626, %v7654
    %v7656 = vpop.f32.mrf.mxu0
    %v7657 = vadd.f32 %v7628, %v7656
    %7658 = vdwg.mxu0
    %7659 = vmatpush.bf16.msra.mxu0 %v7404
    %7660 = vmatpush.bf16.msra.mxu0 %v7402
    %7661 = vmatpush.bf16.msra.mxu0 %v7400
    %7662 = vmatpush.bf16.msra.mxu0 %v7398
    %7663 = vmatpush.bf16.msra.mxu0 %v7396
    %7664 = vmatpush.bf16.msra.mxu0 %v7394
    %7665 = vmatpush.bf16.msra.mxu0 %v7392
    %7666 = vmatpush.bf16.msra.mxu0 %v7390
    %7667 = vmatmul.bf16.gmra.mxu0 %v7087
    %v7668 = vpop.f32.mrf.mxu0
    %v7669 = vadd.f32 %v7640, %v7668
    %v7670 = vpop.f32.mrf.mxu0
    %v7671 = vadd.f32 %v7642, %v7670
    %7672 = vmatmul.bf16.gmra.mxu0 %v7091
    %v7673 = vpop.f32.mrf.mxu0
    %v7674 = vadd.f32 %v7645, %v7673
    %v7675 = vpop.f32.mrf.mxu0
    %v7676 = vadd.f32 %v7647, %v7675
    %7677 = vmatmul.bf16.gmra.mxu0 %v7095
    %v7678 = vpop.f32.mrf.mxu0
    %v7679 = vadd.f32 %v7650, %v7678
    %v7680 = vpop.f32.mrf.mxu0
    %v7681 = vadd.f32 %v7652, %v7680
    %7682 = vmatmul.bf16.gmra.mxu0 %v7099
    %v7683 = vpop.f32.mrf.mxu0
    %v7684 = vadd.f32 %v7655, %v7683
    %v7685 = vpop.f32.mrf.mxu0
    %v7686 = vadd.f32 %v7657, %v7685
    %7687 = vdwg.mxu0
    %7688 = vmatpush.bf16.msra.mxu0 %v7420
    %7689 = vmatpush.bf16.msra.mxu0 %v7418
    %7690 = vmatpush.bf16.msra.mxu0 %v7416
    %7691 = vmatpush.bf16.msra.mxu0 %v7414
    %7692 = vmatpush.bf16.msra.mxu0 %v7412
    %7693 = vmatpush.bf16.msra.mxu0 %v7410
    %7694 = vmatpush.bf16.msra.mxu0 %v7408
    %7695 = vmatpush.bf16.msra.mxu0 %v7406
    %7696 = vmatmul.bf16.gmra.mxu0 %v7088
    %v7697 = vpop.f32.mrf.mxu0
    %v7698 = vadd.f32 %v7669, %v7697
    %v7699 = vpop.f32.mrf.mxu0
    %v7700 = vadd.f32 %v7671, %v7699
    %7701 = vmatmul.bf16.gmra.mxu0 %v7092
    %v7702 = vpop.f32.mrf.mxu0
    %v7703 = vadd.f32 %v7674, %v7702
    %v7704 = vpop.f32.mrf.mxu0
    %v7705 = vadd.f32 %v7676, %v7704
    %7706 = vmatmul.bf16.gmra.mxu0 %v7096
    %v7707 = vpop.f32.mrf.mxu0
    %v7708 = vadd.f32 %v7679, %v7707
    %v7709 = vpop.f32.mrf.mxu0
    %v7710 = vadd.f32 %v7681, %v7709
    %7711 = vmatmul.bf16.gmra.mxu0 %v7100
    %v7712 = vpop.f32.mrf.mxu0
    %v7713 = vadd.f32 %v7684, %v7712
    %v7714 = vpop.f32.mrf.mxu0
    %v7715 = vadd.f32 %v7686, %v7714
    %7716 = vdwg.mxu0
    %v7717 = vadd.f32 %v6854, %v7582
    %v7718 = vadd.f32 %v6970, %v7698
    %v7719 = vadd.f32 %v6856, %v7584
    %v7720 = vadd.f32 %v6972, %v7700
    %v7721 = vadd.f32 %v6859, %v7587
    %v7722 = vadd.f32 %v6975, %v7703
    %v7723 = vadd.f32 %v6861, %v7589
    %v7724 = vadd.f32 %v6977, %v7705
    %v7725 = vadd.f32 %v6864, %v7592
    %v7726 = vadd.f32 %v6980, %v7708
    %v7727 = vadd.f32 %v6866, %v7594
    %v7728 = vadd.f32 %v6982, %v7710
    %v7729 = vadd.f32 %v6869, %v7597
    %v7730 = vadd.f32 %v6985, %v7713
    %v7731 = vadd.f32 %v6871, %v7599
    %v7732 = vadd.f32 %v6987, %v7715
    %v7733 = vmul.f32 %v7717, %v1348
    %v7734 = vmul.f32 %v7718, %v1349
    %v7735 = vmul.f32 %v7719, %v1348
    %v7736 = vmul.f32 %v7720, %v1349
    %v7737 = vmul.f32 %v7721, %v1348
    %v7738 = vmul.f32 %v7722, %v1349
    %v7739 = vmul.f32 %v7723, %v1348
    %v7740 = vmul.f32 %v7724, %v1349
    %v7741 = vmul.f32 %v7725, %v1348
    %v7742 = vmul.f32 %v7726, %v1349
    %v7743 = vmul.f32 %v7727, %v1348
    %v7744 = vmul.f32 %v7728, %v1349
    %v7745 = vmul.f32 %v7729, %v1348
    %v7746 = vmul.f32 %v7730, %v1349
    %v7747 = vmul.f32 %v7731, %v1348
    %v7748 = vmul.f32 %v7732, %v1349
    %s7749 = scalar_lea.vmem [#allocation6], 5
    %v7750 = vld [vmem:[%s7749] ss:$8 sm:$0x3]
    %v7752 = vperm.slane %v7750, 0
    %v7753 = vperm.slane %v7750, 1
    %v7756 = vadd.f32 %v7733, %v7752
    %v7757 = vadd.f32 %v7734, %v7753
    %v7758 = vadd.f32 %v7735, %v7752
    %v7759 = vadd.f32 %v7736, %v7753
    %v7760 = vadd.f32 %v7737, %v7752
    %v7761 = vadd.f32 %v7738, %v7753
    %v7762 = vadd.f32 %v7739, %v7752
    %v7763 = vadd.f32 %v7740, %v7753
    %v7764 = vadd.f32 %v7741, %v7752
    %v7765 = vadd.f32 %v7742, %v7753
    %v7766 = vadd.f32 %v7743, %v7752
    %v7767 = vadd.f32 %v7744, %v7753
    %v7768 = vadd.f32 %v7745, %v7752
    %v7769 = vadd.f32 %v7746, %v7753
    %v7770 = vadd.f32 %v7747, %v7752
    %v7771 = vadd.f32 %v7748, %v7753
    %v7772 = vmax.f32 %v7756, 0.0
    %v7773 = vmax.f32 %v7757, 0.0
    %v7774 = vmax.f32 %v7758, 0.0
    %v7775 = vmax.f32 %v7759, 0.0
    %v7776 = vmax.f32 %v7760, 0.0
    %v7777 = vmax.f32 %v7761, 0.0
    %v7778 = vmax.f32 %v7762, 0.0
    %v7779 = vmax.f32 %v7763, 0.0
    %v7780 = vmax.f32 %v7764, 0.0
    %v7781 = vmax.f32 %v7765, 0.0
    %v7782 = vmax.f32 %v7766, 0.0
    %v7783 = vmax.f32 %v7767, 0.0
    %v7784 = vmax.f32 %v7768, 0.0
    %v7785 = vmax.f32 %v7769, 0.0
    %v7786 = vmax.f32 %v7770, 0.0
    %v7787 = vmax.f32 %v7771, 0.0
    %v7788 = vpack.c.bf16 %v1393, %v1391
    %v7789 = vpack.c.bf16 %v1394, %v1392
    %v7790 = vpack.c.bf16 %v2761, %v2759
    %v7791 = vpack.c.bf16 %v2762, %v2760
    %v7792 = vpack.c.bf16 %v4064, %v4062
    %v7793 = vpack.c.bf16 %v4065, %v4063
    %v7794 = vpack.c.bf16 %v5341, %v5339
    %v7795 = vpack.c.bf16 %v5342, %v5340
    %v7796 = vpack.c.bf16 %v7774, %v7772
    %v7797 = vpack.c.bf16 %v7775, %v7773
    %v7798 = vpack.c.bf16 %v1397, %v1395
    %v7799 = vpack.c.bf16 %v1398, %v1396
    %v7800 = vpack.c.bf16 %v2765, %v2763
    %v7801 = vpack.c.bf16 %v2766, %v2764
    %v7802 = vpack.c.bf16 %v4068, %v4066
    %v7803 = vpack.c.bf16 %v4069, %v4067
    %v7804 = vpack.c.bf16 %v5345, %v5343
    %v7805 = vpack.c.bf16 %v5346, %v5344
    %v7806 = vpack.c.bf16 %v7778, %v7776
    %v7807 = vpack.c.bf16 %v7779, %v7777
    %v7808 = vpack.c.bf16 %v1401, %v1399
    %v7809 = vpack.c.bf16 %v1402, %v1400
    %v7810 = vpack.c.bf16 %v2769, %v2767
    %v7811 = vpack.c.bf16 %v2770, %v2768
    %v7812 = vpack.c.bf16 %v4072, %v4070
    %v7813 = vpack.c.bf16 %v4073, %v4071
    %v7814 = vpack.c.bf16 %v5349, %v5347
    %v7815 = vpack.c.bf16 %v5350, %v5348
    %v7816 = vpack.c.bf16 %v7782, %v7780
    %v7817 = vpack.c.bf16 %v7783, %v7781
    %v7818 = vpack.c.bf16 %v1405, %v1403
    %v7819 = vpack.c.bf16 %v1406, %v1404
    %v7820 = vpack.c.bf16 %v2773, %v2771
    %v7821 = vpack.c.bf16 %v2774, %v2772
    %v7822 = vpack.c.bf16 %v4076, %v4074
    %v7823 = vpack.c.bf16 %v4077, %v4075
    %v7824 = vpack.c.bf16 %v5353, %v5351
    %v7825 = vpack.c.bf16 %v5354, %v5352
    %v7826 = vpack.c.bf16 %v7786, %v7784
    %v7827 = vpack.c.bf16 %v7787, %v7785
    %v7828 = vld [vmem:[#allocation2 + $0x1820] sm:$0xff]
    %v7829 = vld [vmem:[#allocation2 + $0x1828] sm:$0xff]
    %v7830 = vld [vmem:[#allocation2 + $0x1830] sm:$0xff]
    %v7831 = vld [vmem:[#allocation2 + $0x1838] sm:$0xff]
    %v7832 = vld [vmem:[#allocation2 + $0x1840] sm:$0xff]
    %v7833 = vld [vmem:[#allocation2 + $0x1848] sm:$0xff]
    %v7834 = vld [vmem:[#allocation2 + $0x1850] sm:$0xff]
    %v7835 = vld [vmem:[#allocation2 + $0x1858] sm:$0xff]
    %v7836 = vld [vmem:[#allocation2 + $0x1860] sm:$0xff]
    %v7837 = vld [vmem:[#allocation2 + $0x1868] sm:$0xff]
    %v7838 = vld [vmem:[#allocation2 + $0x1870] sm:$0xff]
    %v7839 = vld [vmem:[#allocation2 + $0x1878] sm:$0xff]
    %v7840 = vld [vmem:[#allocation2 + $0x1880] sm:$0xff]
    %v7841 = vld [vmem:[#allocation2 + $0x1888] sm:$0xff]
    %v7842 = vld [vmem:[#allocation2 + $0x1890] sm:$0xff]
    %v7843 = vld [vmem:[#allocation2 + $0x1898] sm:$0xff]
    %v7844 = vld [vmem:[#allocation2 + $0x18a0] sm:$0xff]
    %v7845 = vld [vmem:[#allocation2 + $0x18a8] sm:$0xff]
    %v7846 = vld [vmem:[#allocation2 + $0x18b0] sm:$0xff]
    %v7847 = vld [vmem:[#allocation2 + $0x18b8] sm:$0xff]
    %v7848 = vld [vmem:[#allocation2 + $0x18c0] sm:$0xff]
    %v7849 = vld [vmem:[#allocation2 + $0x18c8] sm:$0xff]
    %v7850 = vld [vmem:[#allocation2 + $0x18d0] sm:$0xff]
    %v7851 = vld [vmem:[#allocation2 + $0x18d8] sm:$0xff]
    %v7852 = vld [vmem:[#allocation2 + $0x18e0] sm:$0xff]
    %v7853 = vld [vmem:[#allocation2 + $0x18e8] sm:$0xff]
    %v7854 = vld [vmem:[#allocation2 + $0x18f0] sm:$0xff]
    %v7855 = vld [vmem:[#allocation2 + $0x18f8] sm:$0xff]
    %v7856 = vld [vmem:[#allocation2 + $0x1900] sm:$0xff]
    %v7857 = vld [vmem:[#allocation2 + $0x1908] sm:$0xff]
    %v7858 = vld [vmem:[#allocation2 + $0x1910] sm:$0xff]
    %v7859 = vld [vmem:[#allocation2 + $0x1918] sm:$0xff]
    %v7860 = vld [vmem:[#allocation2 + $0x1920] sm:$0xff]
    %v7861 = vld [vmem:[#allocation2 + $0x1928] sm:$0xff]
    %v7862 = vld [vmem:[#allocation2 + $0x1930] sm:$0xff]
    %v7863 = vld [vmem:[#allocation2 + $0x1938] sm:$0xff]
    %v7864 = vld [vmem:[#allocation2 + $0x1940] sm:$0xff]
    %v7865 = vld [vmem:[#allocation2 + $0x1948] sm:$0xff]
    %v7866 = vld [vmem:[#allocation2 + $0x1950] sm:$0xff]
    %v7867 = vld [vmem:[#allocation2 + $0x1958] sm:$0xff]
    %v7868 = vld [vmem:[#allocation2 + $0x1960] sm:$0xff]
    %v7869 = vld [vmem:[#allocation2 + $0x1968] sm:$0xff]
    %v7870 = vld [vmem:[#allocation2 + $0x1970] sm:$0xff]
    %v7871 = vld [vmem:[#allocation2 + $0x1978] sm:$0xff]
    %v7872 = vld [vmem:[#allocation2 + $0x1980] sm:$0xff]
    %v7873 = vld [vmem:[#allocation2 + $0x1988] sm:$0xff]
    %v7874 = vld [vmem:[#allocation2 + $0x1990] sm:$0xff]
    %v7875 = vld [vmem:[#allocation2 + $0x1998] sm:$0xff]
    %v7876 = vld [vmem:[#allocation2 + $0x19a0] sm:$0xff]
    %v7877 = vld [vmem:[#allocation2 + $0x19a8] sm:$0xff]
    %v7878 = vld [vmem:[#allocation2 + $0x19b0] sm:$0xff]
    %v7879 = vld [vmem:[#allocation2 + $0x19b8] sm:$0xff]
    %v7880 = vld [vmem:[#allocation2 + $0x19c0] sm:$0xff]
    %v7881 = vld [vmem:[#allocation2 + $0x19c8] sm:$0xff]
    %v7882 = vld [vmem:[#allocation2 + $0x19d0] sm:$0xff]
    %v7883 = vld [vmem:[#allocation2 + $0x19d8] sm:$0xff]
    %v7884 = vld [vmem:[#allocation2 + $0x19e0] sm:$0xff]
    %v7885 = vld [vmem:[#allocation2 + $0x19e8] sm:$0xff]
    %v7886 = vld [vmem:[#allocation2 + $0x19f0] sm:$0xff]
    %v7887 = vld [vmem:[#allocation2 + $0x19f8] sm:$0xff]
    %v7888 = vld [vmem:[#allocation2 + $0x1a00] sm:$0xff]
    %v7889 = vld [vmem:[#allocation2 + $0x1a08] sm:$0xff]
    %v7890 = vld [vmem:[#allocation2 + $0x1a10] sm:$0xff]
    %v7891 = vld [vmem:[#allocation2 + $0x1a18] sm:$0xff]
    %v7892 = vld [vmem:[#allocation2 + $0x1a20] sm:$0xff]
    %v7893 = vld [vmem:[#allocation2 + $0x1a28] sm:$0xff]
    %v7894 = vld [vmem:[#allocation2 + $0x1a30] sm:$0xff]
    %v7895 = vld [vmem:[#allocation2 + $0x1a38] sm:$0xff]
    %v7896 = vld [vmem:[#allocation2 + $0x1a40] sm:$0xff]
    %v7897 = vld [vmem:[#allocation2 + $0x1a48] sm:$0xff]
    %v7898 = vld [vmem:[#allocation2 + $0x1a50] sm:$0xff]
    %v7899 = vld [vmem:[#allocation2 + $0x1a58] sm:$0xff]
    %v7900 = vld [vmem:[#allocation2 + $0x1a60] sm:$0xff]
    %v7901 = vld [vmem:[#allocation2 + $0x1a68] sm:$0xff]
    %v7902 = vld [vmem:[#allocation2 + $0x1a70] sm:$0xff]
    %v7903 = vld [vmem:[#allocation2 + $0x1a78] sm:$0xff]
    %v7904 = vld [vmem:[#allocation2 + $0x1a80] sm:$0xff]
    %v7905 = vld [vmem:[#allocation2 + $0x1a88] sm:$0xff]
    %v7906 = vld [vmem:[#allocation2 + $0x1a90] sm:$0xff]
    %v7907 = vld [vmem:[#allocation2 + $0x1a98] sm:$0xff]
    %v7908 = vld [vmem:[#allocation2 + $0x1aa0] sm:$0xff]
    %v7909 = vld [vmem:[#allocation2 + $0x1aa8] sm:$0xff]
    %v7910 = vld [vmem:[#allocation2 + $0x1ab0] sm:$0xff]
    %v7911 = vld [vmem:[#allocation2 + $0x1ab8] sm:$0xff]
    %v7912 = vld [vmem:[#allocation2 + $0x1ac0] sm:$0xff]
    %v7913 = vld [vmem:[#allocation2 + $0x1ac8] sm:$0xff]
    %v7914 = vld [vmem:[#allocation2 + $0x1ad0] sm:$0xff]
    %v7915 = vld [vmem:[#allocation2 + $0x1ad8] sm:$0xff]
    %v7916 = vld [vmem:[#allocation2 + $0x1ae0] sm:$0xff]
    %v7917 = vld [vmem:[#allocation2 + $0x1ae8] sm:$0xff]
    %v7918 = vld [vmem:[#allocation2 + $0x1af0] sm:$0xff]
    %v7919 = vld [vmem:[#allocation2 + $0x1af8] sm:$0xff]
    %v7920 = vld [vmem:[#allocation2 + $0x1b00] sm:$0xff]
    %v7921 = vld [vmem:[#allocation2 + $0x1b08] sm:$0xff]
    %v7922 = vld [vmem:[#allocation2 + $0x1b10] sm:$0xff]
    %v7923 = vld [vmem:[#allocation2 + $0x1b18] sm:$0xff]
    %v7924 = vld [vmem:[#allocation2 + $0x1b20] sm:$0xff]
    %v7925 = vld [vmem:[#allocation2 + $0x1b28] sm:$0xff]
    %v7926 = vld [vmem:[#allocation2 + $0x1b30] sm:$0xff]
    %v7927 = vld [vmem:[#allocation2 + $0x1b38] sm:$0xff]
    %v7928 = vld [vmem:[#allocation2 + $0x1b40] sm:$0xff]
    %v7929 = vld [vmem:[#allocation2 + $0x1b48] sm:$0xff]
    %v7930 = vld [vmem:[#allocation2 + $0x1b50] sm:$0xff]
    %v7931 = vld [vmem:[#allocation2 + $0x1b58] sm:$0xff]
    %v7932 = vld [vmem:[#allocation2 + $0x1b60] sm:$0xff]
    %v7933 = vld [vmem:[#allocation2 + $0x1b68] sm:$0xff]
    %v7934 = vld [vmem:[#allocation2 + $0x1b70] sm:$0xff]
    %v7935 = vld [vmem:[#allocation2 + $0x1b78] sm:$0xff]
    %v7936 = vld [vmem:[#allocation2 + $0x1b80] sm:$0xff]
    %v7937 = vld [vmem:[#allocation2 + $0x1b88] sm:$0xff]
    %v7938 = vld [vmem:[#allocation2 + $0x1b90] sm:$0xff]
    %v7939 = vld [vmem:[#allocation2 + $0x1b98] sm:$0xff]
    %v7940 = vld [vmem:[#allocation2 + $0x1ba0] sm:$0xff]
    %v7941 = vld [vmem:[#allocation2 + $0x1ba8] sm:$0xff]
    %v7942 = vld [vmem:[#allocation2 + $0x1bb0] sm:$0xff]
    %v7943 = vld [vmem:[#allocation2 + $0x1bb8] sm:$0xff]
    %v7944 = vld [vmem:[#allocation2 + $0x1bc0] sm:$0xff]
    %v7945 = vld [vmem:[#allocation2 + $0x1bc8] sm:$0xff]
    %v7946 = vld [vmem:[#allocation2 + $0x1bd0] sm:$0xff]
    %v7947 = vld [vmem:[#allocation2 + $0x1bd8] sm:$0xff]
    %v7948 = vld [vmem:[#allocation2 + $0x1be0] sm:$0xff]
    %v7949 = vld [vmem:[#allocation2 + $0x1be8] sm:$0xff]
    %v7950 = vld [vmem:[#allocation2 + $0x1bf0] sm:$0xff]
    %v7951 = vld [vmem:[#allocation2 + $0x1bf8] sm:$0xff]
    %v7952 = vld [vmem:[#allocation2 + $0x1c00] sm:$0xff]
    %v7953 = vld [vmem:[#allocation2 + $0x1c08] sm:$0xff]
    %v7954 = vld [vmem:[#allocation2 + $0x1c10] sm:$0xff]
    %v7955 = vld [vmem:[#allocation2 + $0x1c18] sm:$0xff]
    %v7956 = vld [vmem:[#allocation2 + $0x1c20] sm:$0xff]
    %v7957 = vld [vmem:[#allocation2 + $0x1c28] sm:$0xff]
    %v7958 = vld [vmem:[#allocation2 + $0x1c30] sm:$0xff]
    %v7959 = vld [vmem:[#allocation2 + $0x1c38] sm:$0xff]
    %v7960 = vld [vmem:[#allocation2 + $0x1c40] sm:$0xff]
    %v7961 = vld [vmem:[#allocation2 + $0x1c48] sm:$0xff]
    %v7962 = vld [vmem:[#allocation2 + $0x1c50] sm:$0xff]
    %v7963 = vld [vmem:[#allocation2 + $0x1c58] sm:$0xff]
    %v7964 = vld [vmem:[#allocation2 + $0x1c60] sm:$0xff]
    %v7965 = vld [vmem:[#allocation2 + $0x1c68] sm:$0xff]
    %v7966 = vld [vmem:[#allocation2 + $0x1c70] sm:$0xff]
    %v7967 = vld [vmem:[#allocation2 + $0x1c78] sm:$0xff]
    %v7968 = vld [vmem:[#allocation2 + $0x1c80] sm:$0xff]
    %v7969 = vld [vmem:[#allocation2 + $0x1c88] sm:$0xff]
    %v7970 = vld [vmem:[#allocation2 + $0x1c90] sm:$0xff]
    %v7971 = vld [vmem:[#allocation2 + $0x1c98] sm:$0xff]
    %v7972 = vld [vmem:[#allocation2 + $0x1ca0] sm:$0xff]
    %v7973 = vld [vmem:[#allocation2 + $0x1ca8] sm:$0xff]
    %v7974 = vld [vmem:[#allocation2 + $0x1cb0] sm:$0xff]
    %v7975 = vld [vmem:[#allocation2 + $0x1cb8] sm:$0xff]
    %v7976 = vld [vmem:[#allocation2 + $0x1cc0] sm:$0xff]
    %v7977 = vld [vmem:[#allocation2 + $0x1cc8] sm:$0xff]
    %v7978 = vld [vmem:[#allocation2 + $0x1cd0] sm:$0xff]
    %v7979 = vld [vmem:[#allocation2 + $0x1cd8] sm:$0xff]
    %v7980 = vld [vmem:[#allocation2 + $0x1ce0] sm:$0xff]
    %v7981 = vld [vmem:[#allocation2 + $0x1ce8] sm:$0xff]
    %v7982 = vld [vmem:[#allocation2 + $0x1cf0] sm:$0xff]
    %v7983 = vld [vmem:[#allocation2 + $0x1cf8] sm:$0xff]
    %v7984 = vld [vmem:[#allocation2 + $0x1d00] sm:$0xff]
    %v7985 = vld [vmem:[#allocation2 + $0x1d08] sm:$0xff]
    %v7986 = vld [vmem:[#allocation2 + $0x1d10] sm:$0xff]
    %v7987 = vld [vmem:[#allocation2 + $0x1d18] sm:$0xff]
    %v7988 = vrot.slane %v1391, 7
    %v7989 = vrot.slane %v1392, 7
    %v7990 = vrot.slane %v2759, 7
    %v7991 = vrot.slane %v2760, 7
    %v7992 = vrot.slane %v4062, 7
    %v7993 = vrot.slane %v4063, 7
    %v7994 = vrot.slane %v5339, 7
    %v7995 = vrot.slane %v5340, 7
    %v7996 = vrot.slane %v7772, 7
    %v7997 = vrot.slane %v7773, 7
    %v7998 = vrot.slane %v1393, 7
    %v7999 = vrot.slane %v1394, 7
    %v8000 = vrot.slane %v2761, 7
    %v8001 = vrot.slane %v2762, 7
    %v8002 = vrot.slane %v4064, 7
    %v8003 = vrot.slane %v4065, 7
    %v8004 = vrot.slane %v5341, 7
    %v8005 = vrot.slane %v5342, 7
    %v8006 = vrot.slane %v7774, 7
    %v8007 = vrot.slane %v7775, 7
    %v8008 = vrot.slane %v1395, 7
    %v8009 = vrot.slane %v1396, 7
    %v8010 = vrot.slane %v2763, 7
    %v8011 = vrot.slane %v2764, 7
    %v8012 = vrot.slane %v4066, 7
    %v8013 = vrot.slane %v4067, 7
    %v8014 = vrot.slane %v5343, 7
    %v8015 = vrot.slane %v5344, 7
    %v8016 = vrot.slane %v7776, 7
    %v8017 = vrot.slane %v7777, 7
    %v8018 = vrot.slane %v1397, 7
    %v8019 = vrot.slane %v1398, 7
    %v8020 = vrot.slane %v2765, 7
    %v8021 = vrot.slane %v2766, 7
    %v8022 = vrot.slane %v4068, 7
    %v8023 = vrot.slane %v4069, 7
    %v8024 = vrot.slane %v5345, 7
    %v8025 = vrot.slane %v5346, 7
    %v8026 = vrot.slane %v7778, 7
    %v8027 = vrot.slane %v7779, 7
    %v8028 = vrot.slane %v1399, 7
    %v8029 = vrot.slane %v1400, 7
    %v8030 = vrot.slane %v2767, 7
    %v8031 = vrot.slane %v2768, 7
    %v8032 = vrot.slane %v4070, 7
    %v8033 = vrot.slane %v4071, 7
    %v8034 = vrot.slane %v5347, 7
    %v8035 = vrot.slane %v5348, 7
    %v8036 = vrot.slane %v7780, 7
    %v8037 = vrot.slane %v7781, 7
    %v8038 = vrot.slane %v1401, 7
    %v8039 = vrot.slane %v1402, 7
    %v8040 = vrot.slane %v2769, 7
    %v8041 = vrot.slane %v2770, 7
    %v8042 = vrot.slane %v4072, 7
    %v8043 = vrot.slane %v4073, 7
    %v8044 = vrot.slane %v5349, 7
    %v8045 = vrot.slane %v5350, 7
    %v8046 = vrot.slane %v7782, 7
    %v8047 = vrot.slane %v7783, 7
    %v8048 = vrot.slane %v1403, 7
    %v8049 = vrot.slane %v1404, 7
    %v8050 = vrot.slane %v2771, 7
    %v8051 = vrot.slane %v2772, 7
    %v8052 = vrot.slane %v4074, 7
    %v8053 = vrot.slane %v4075, 7
    %v8054 = vrot.slane %v5351, 7
    %v8055 = vrot.slane %v5352, 7
    %v8056 = vrot.slane %v7784, 7
    %v8057 = vrot.slane %v7785, 7
    %v8058 = vrot.slane %v1405, 7
    %v8059 = vrot.slane %v1406, 7
    %v8060 = vrot.slane %v2773, 7
    %v8061 = vrot.slane %v2774, 7
    %v8062 = vrot.slane %v4076, 7
    %v8063 = vrot.slane %v4077, 7
    %v8064 = vrot.slane %v5353, 7
    %v8065 = vrot.slane %v5354, 7
    %v8066 = vrot.slane %v7786, 7
    %v8067 = vrot.slane %v7787, 7
    %v8068 = vsel %vm269, %v8048, %v8058
    %v8069 = vsel %vm269, %v8049, %v8059
    %v8070 = vsel %vm269, %v8050, %v8060
    %v8071 = vsel %vm269, %v8051, %v8061
    %v8072 = vsel %vm269, %v8052, %v8062
    %v8073 = vsel %vm269, %v8053, %v8063
    %v8074 = vsel %vm269, %v8054, %v8064
    %v8075 = vsel %vm269, %v8055, %v8065
    %v8076 = vsel %vm269, %v8056, %v8066
    %v8077 = vsel %vm269, %v8057, %v8067
    %v8078 = vsel %vm269, %v8038, %v8048
    %v8079 = vsel %vm269, %v8039, %v8049
    %v8080 = vsel %vm269, %v8040, %v8050
    %v8081 = vsel %vm269, %v8041, %v8051
    %v8082 = vsel %vm269, %v8042, %v8052
    %v8083 = vsel %vm269, %v8043, %v8053
    %v8084 = vsel %vm269, %v8044, %v8054
    %v8085 = vsel %vm269, %v8045, %v8055
    %v8086 = vsel %vm269, %v8046, %v8056
    %v8087 = vsel %vm269, %v8047, %v8057
    %v8088 = vsel %vm269, %v8028, %v8038
    %v8089 = vsel %vm269, %v8029, %v8039
    %v8090 = vsel %vm269, %v8030, %v8040
    %v8091 = vsel %vm269, %v8031, %v8041
    %v8092 = vsel %vm269, %v8032, %v8042
    %v8093 = vsel %vm269, %v8033, %v8043
    %v8094 = vsel %vm269, %v8034, %v8044
    %v8095 = vsel %vm269, %v8035, %v8045
    %v8096 = vsel %vm269, %v8036, %v8046
    %v8097 = vsel %vm269, %v8037, %v8047
    %v8098 = vsel %vm269, %v8018, %v8028
    %v8099 = vsel %vm269, %v8019, %v8029
    %v8100 = vsel %vm269, %v8020, %v8030
    %v8101 = vsel %vm269, %v8021, %v8031
    %v8102 = vsel %vm269, %v8022, %v8032
    %v8103 = vsel %vm269, %v8023, %v8033
    %v8104 = vsel %vm269, %v8024, %v8034
    %v8105 = vsel %vm269, %v8025, %v8035
    %v8106 = vsel %vm269, %v8026, %v8036
    %v8107 = vsel %vm269, %v8027, %v8037
    %v8108 = vsel %vm269, %v8008, %v8018
    %v8109 = vsel %vm269, %v8009, %v8019
    %v8110 = vsel %vm269, %v8010, %v8020
    %v8111 = vsel %vm269, %v8011, %v8021
    %v8112 = vsel %vm269, %v8012, %v8022
    %v8113 = vsel %vm269, %v8013, %v8023
    %v8114 = vsel %vm269, %v8014, %v8024
    %v8115 = vsel %vm269, %v8015, %v8025
    %v8116 = vsel %vm269, %v8016, %v8026
    %v8117 = vsel %vm269, %v8017, %v8027
    %v8118 = vsel %vm269, %v7998, %v8008
    %v8119 = vsel %vm269, %v7999, %v8009
    %v8120 = vsel %vm269, %v8000, %v8010
    %v8121 = vsel %vm269, %v8001, %v8011
    %v8122 = vsel %vm269, %v8002, %v8012
    %v8123 = vsel %vm269, %v8003, %v8013
    %v8124 = vsel %vm269, %v8004, %v8014
    %v8125 = vsel %vm269, %v8005, %v8015
    %v8126 = vsel %vm269, %v8006, %v8016
    %v8127 = vsel %vm269, %v8007, %v8017
    %v8128 = vsel %vm269, %v7988, %v7998
    %v8129 = vsel %vm269, %v7989, %v7999
    %v8130 = vsel %vm269, %v7990, %v8000
    %v8131 = vsel %vm269, %v7991, %v8001
    %v8132 = vsel %vm269, %v7992, %v8002
    %v8133 = vsel %vm269, %v7993, %v8003
    %v8134 = vsel %vm269, %v7994, %v8004
    %v8135 = vsel %vm269, %v7995, %v8005
    %v8136 = vsel %vm269, %v7996, %v8006
    %v8137 = vsel %vm269, %v7997, %v8007
    %v8138 = vsel %vm269, %v8058, %v7988
    %v8139 = vsel %vm269, %v8059, %v7989
    %v8140 = vsel %vm269, %v8060, %v7990
    %v8141 = vsel %vm269, %v8061, %v7991
    %v8142 = vsel %vm269, %v8062, %v7992
    %v8143 = vsel %vm269, %v8063, %v7993
    %v8144 = vsel %vm269, %v8064, %v7994
    %v8145 = vsel %vm269, %v8065, %v7995
    %v8146 = vsel %vm269, %v8066, %v7996
    %v8147 = vsel %vm269, %v8067, %v7997
    %v8148 = vsel %vm294, %v8138, 0.0
    %v8149 = vsel %vm294, %v8139, 0.0
    %v8150 = vsel %vm294, %v8140, 0.0
    %v8151 = vsel %vm294, %v8141, 0.0
    %v8152 = vsel %vm294, %v8142, 0.0
    %v8153 = vsel %vm294, %v8143, 0.0
    %v8154 = vsel %vm294, %v8144, 0.0
    %v8155 = vsel %vm294, %v8145, 0.0
    %v8156 = vsel %vm294, %v8146, 0.0
    %v8157 = vsel %vm294, %v8147, 0.0
    %v8158 = vsel %vm295, %v8128, 0.0
    %v8159 = vsel %vm295, %v8129, 0.0
    %v8160 = vsel %vm295, %v8130, 0.0
    %v8161 = vsel %vm295, %v8131, 0.0
    %v8162 = vsel %vm295, %v8132, 0.0
    %v8163 = vsel %vm295, %v8133, 0.0
    %v8164 = vsel %vm295, %v8134, 0.0
    %v8165 = vsel %vm295, %v8135, 0.0
    %v8166 = vsel %vm295, %v8136, 0.0
    %v8167 = vsel %vm295, %v8137, 0.0
    %v8168 = vsel %vm296, %v8118, 0.0
    %v8169 = vsel %vm296, %v8119, 0.0
    %v8170 = vsel %vm296, %v8120, 0.0
    %v8171 = vsel %vm296, %v8121, 0.0
    %v8172 = vsel %vm296, %v8122, 0.0
    %v8173 = vsel %vm296, %v8123, 0.0
    %v8174 = vsel %vm296, %v8124, 0.0
    %v8175 = vsel %vm296, %v8125, 0.0
    %v8176 = vsel %vm296, %v8126, 0.0
    %v8177 = vsel %vm296, %v8127, 0.0
    %v8178 = vsel %vm297, %v8108, 0.0
    %v8179 = vsel %vm297, %v8109, 0.0
    %v8180 = vsel %vm297, %v8110, 0.0
    %v8181 = vsel %vm297, %v8111, 0.0
    %v8182 = vsel %vm297, %v8112, 0.0
    %v8183 = vsel %vm297, %v8113, 0.0
    %v8184 = vsel %vm297, %v8114, 0.0
    %v8185 = vsel %vm297, %v8115, 0.0
    %v8186 = vsel %vm297, %v8116, 0.0
    %v8187 = vsel %vm297, %v8117, 0.0
    %v8188 = vsel %vm298, %v8098, 0.0
    %v8189 = vsel %vm298, %v8099, 0.0
    %v8190 = vsel %vm298, %v8100, 0.0
    %v8191 = vsel %vm298, %v8101, 0.0
    %v8192 = vsel %vm298, %v8102, 0.0
    %v8193 = vsel %vm298, %v8103, 0.0
    %v8194 = vsel %vm298, %v8104, 0.0
    %v8195 = vsel %vm298, %v8105, 0.0
    %v8196 = vsel %vm298, %v8106, 0.0
    %v8197 = vsel %vm298, %v8107, 0.0
    %v8198 = vsel %vm299, %v8088, 0.0
    %v8199 = vsel %vm299, %v8089, 0.0
    %v8200 = vsel %vm299, %v8090, 0.0
    %v8201 = vsel %vm299, %v8091, 0.0
    %v8202 = vsel %vm299, %v8092, 0.0
    %v8203 = vsel %vm299, %v8093, 0.0
    %v8204 = vsel %vm299, %v8094, 0.0
    %v8205 = vsel %vm299, %v8095, 0.0
    %v8206 = vsel %vm299, %v8096, 0.0
    %v8207 = vsel %vm299, %v8097, 0.0
    %v8208 = vsel %vm300, %v8078, 0.0
    %v8209 = vsel %vm300, %v8079, 0.0
    %v8210 = vsel %vm300, %v8080, 0.0
    %v8211 = vsel %vm300, %v8081, 0.0
    %v8212 = vsel %vm300, %v8082, 0.0
    %v8213 = vsel %vm300, %v8083, 0.0
    %v8214 = vsel %vm300, %v8084, 0.0
    %v8215 = vsel %vm300, %v8085, 0.0
    %v8216 = vsel %vm300, %v8086, 0.0
    %v8217 = vsel %vm300, %v8087, 0.0
    %v8218 = vsel %vm301, %v8068, 0.0
    %v8219 = vsel %vm301, %v8069, 0.0
    %v8220 = vsel %vm301, %v8070, 0.0
    %v8221 = vsel %vm301, %v8071, 0.0
    %v8222 = vsel %vm301, %v8072, 0.0
    %v8223 = vsel %vm301, %v8073, 0.0
    %v8224 = vsel %vm301, %v8074, 0.0
    %v8225 = vsel %vm301, %v8075, 0.0
    %v8226 = vsel %vm301, %v8076, 0.0
    %v8227 = vsel %vm301, %v8077, 0.0
    %v8228 = vpack.c.bf16 %v8158, %v8148
    %v8229 = vpack.c.bf16 %v8159, %v8149
    %v8230 = vpack.c.bf16 %v8160, %v8150
    %v8231 = vpack.c.bf16 %v8161, %v8151
    %v8232 = vpack.c.bf16 %v8162, %v8152
    %v8233 = vpack.c.bf16 %v8163, %v8153
    %v8234 = vpack.c.bf16 %v8164, %v8154
    %v8235 = vpack.c.bf16 %v8165, %v8155
    %v8236 = vpack.c.bf16 %v8166, %v8156
    %v8237 = vpack.c.bf16 %v8167, %v8157
    %v8238 = vpack.c.bf16 %v8178, %v8168
    %v8239 = vpack.c.bf16 %v8179, %v8169
    %v8240 = vpack.c.bf16 %v8180, %v8170
    %v8241 = vpack.c.bf16 %v8181, %v8171
    %v8242 = vpack.c.bf16 %v8182, %v8172
    %v8243 = vpack.c.bf16 %v8183, %v8173
    %v8244 = vpack.c.bf16 %v8184, %v8174
    %v8245 = vpack.c.bf16 %v8185, %v8175
    %v8246 = vpack.c.bf16 %v8186, %v8176
    %v8247 = vpack.c.bf16 %v8187, %v8177
    %v8248 = vpack.c.bf16 %v8198, %v8188
    %v8249 = vpack.c.bf16 %v8199, %v8189
    %v8250 = vpack.c.bf16 %v8200, %v8190
    %v8251 = vpack.c.bf16 %v8201, %v8191
    %v8252 = vpack.c.bf16 %v8202, %v8192
    %v8253 = vpack.c.bf16 %v8203, %v8193
    %v8254 = vpack.c.bf16 %v8204, %v8194
    %v8255 = vpack.c.bf16 %v8205, %v8195
    %v8256 = vpack.c.bf16 %v8206, %v8196
    %v8257 = vpack.c.bf16 %v8207, %v8197
    %v8258 = vpack.c.bf16 %v8218, %v8208
    %v8259 = vpack.c.bf16 %v8219, %v8209
    %v8260 = vpack.c.bf16 %v8220, %v8210
    %v8261 = vpack.c.bf16 %v8221, %v8211
    %v8262 = vpack.c.bf16 %v8222, %v8212
    %v8263 = vpack.c.bf16 %v8223, %v8213
    %v8264 = vpack.c.bf16 %v8224, %v8214
    %v8265 = vpack.c.bf16 %v8225, %v8215
    %v8266 = vpack.c.bf16 %v8226, %v8216
    %v8267 = vpack.c.bf16 %v8227, %v8217
    %v8268 = vld [vmem:[#allocation2 + $0x1320] sm:$0xff]
    %v8269 = vld [vmem:[#allocation2 + $0x1328] sm:$0xff]
    %v8270 = vld [vmem:[#allocation2 + $0x1330] sm:$0xff]
    %v8271 = vld [vmem:[#allocation2 + $0x1338] sm:$0xff]
    %v8272 = vld [vmem:[#allocation2 + $0x1340] sm:$0xff]
    %v8273 = vld [vmem:[#allocation2 + $0x1348] sm:$0xff]
    %v8274 = vld [vmem:[#allocation2 + $0x1350] sm:$0xff]
    %v8275 = vld [vmem:[#allocation2 + $0x1358] sm:$0xff]
    %v8276 = vld [vmem:[#allocation2 + $0x1360] sm:$0xff]
    %v8277 = vld [vmem:[#allocation2 + $0x1368] sm:$0xff]
    %v8278 = vld [vmem:[#allocation2 + $0x1370] sm:$0xff]
    %v8279 = vld [vmem:[#allocation2 + $0x1378] sm:$0xff]
    %v8280 = vld [vmem:[#allocation2 + $0x1380] sm:$0xff]
    %v8281 = vld [vmem:[#allocation2 + $0x1388] sm:$0xff]
    %v8282 = vld [vmem:[#allocation2 + $0x1390] sm:$0xff]
    %v8283 = vld [vmem:[#allocation2 + $0x1398] sm:$0xff]
    %v8284 = vld [vmem:[#allocation2 + $0x13a0] sm:$0xff]
    %v8285 = vld [vmem:[#allocation2 + $0x13a8] sm:$0xff]
    %v8286 = vld [vmem:[#allocation2 + $0x13b0] sm:$0xff]
    %v8287 = vld [vmem:[#allocation2 + $0x13b8] sm:$0xff]
    %v8288 = vld [vmem:[#allocation2 + $0x13c0] sm:$0xff]
    %v8289 = vld [vmem:[#allocation2 + $0x13c8] sm:$0xff]
    %v8290 = vld [vmem:[#allocation2 + $0x13d0] sm:$0xff]
    %v8291 = vld [vmem:[#allocation2 + $0x13d8] sm:$0xff]
    %v8292 = vld [vmem:[#allocation2 + $0x13e0] sm:$0xff]
    %v8293 = vld [vmem:[#allocation2 + $0x13e8] sm:$0xff]
    %v8294 = vld [vmem:[#allocation2 + $0x13f0] sm:$0xff]
    %v8295 = vld [vmem:[#allocation2 + $0x13f8] sm:$0xff]
    %v8296 = vld [vmem:[#allocation2 + $0x1400] sm:$0xff]
    %v8297 = vld [vmem:[#allocation2 + $0x1408] sm:$0xff]
    %v8298 = vld [vmem:[#allocation2 + $0x1410] sm:$0xff]
    %v8299 = vld [vmem:[#allocation2 + $0x1418] sm:$0xff]
    %v8300 = vld [vmem:[#allocation2 + $0x1420] sm:$0xff]
    %v8301 = vld [vmem:[#allocation2 + $0x1428] sm:$0xff]
    %v8302 = vld [vmem:[#allocation2 + $0x1430] sm:$0xff]
    %v8303 = vld [vmem:[#allocation2 + $0x1438] sm:$0xff]
    %v8304 = vld [vmem:[#allocation2 + $0x1440] sm:$0xff]
    %v8305 = vld [vmem:[#allocation2 + $0x1448] sm:$0xff]
    %v8306 = vld [vmem:[#allocation2 + $0x1450] sm:$0xff]
    %v8307 = vld [vmem:[#allocation2 + $0x1458] sm:$0xff]
    %v8308 = vld [vmem:[#allocation2 + $0x1460] sm:$0xff]
    %v8309 = vld [vmem:[#allocation2 + $0x1468] sm:$0xff]
    %v8310 = vld [vmem:[#allocation2 + $0x1470] sm:$0xff]
    %v8311 = vld [vmem:[#allocation2 + $0x1478] sm:$0xff]
    %v8312 = vld [vmem:[#allocation2 + $0x1480] sm:$0xff]
    %v8313 = vld [vmem:[#allocation2 + $0x1488] sm:$0xff]
    %v8314 = vld [vmem:[#allocation2 + $0x1490] sm:$0xff]
    %v8315 = vld [vmem:[#allocation2 + $0x1498] sm:$0xff]
    %v8316 = vld [vmem:[#allocation2 + $0x14a0] sm:$0xff]
    %v8317 = vld [vmem:[#allocation2 + $0x14a8] sm:$0xff]
    %v8318 = vld [vmem:[#allocation2 + $0x14b0] sm:$0xff]
    %v8319 = vld [vmem:[#allocation2 + $0x14b8] sm:$0xff]
    %v8320 = vld [vmem:[#allocation2 + $0x14c0] sm:$0xff]
    %v8321 = vld [vmem:[#allocation2 + $0x14c8] sm:$0xff]
    %v8322 = vld [vmem:[#allocation2 + $0x14d0] sm:$0xff]
    %v8323 = vld [vmem:[#allocation2 + $0x14d8] sm:$0xff]
    %v8324 = vld [vmem:[#allocation2 + $0x14e0] sm:$0xff]
    %v8325 = vld [vmem:[#allocation2 + $0x14e8] sm:$0xff]
    %v8326 = vld [vmem:[#allocation2 + $0x14f0] sm:$0xff]
    %v8327 = vld [vmem:[#allocation2 + $0x14f8] sm:$0xff]
    %v8328 = vld [vmem:[#allocation2 + $0x1500] sm:$0xff]
    %v8329 = vld [vmem:[#allocation2 + $0x1508] sm:$0xff]
    %v8330 = vld [vmem:[#allocation2 + $0x1510] sm:$0xff]
    %v8331 = vld [vmem:[#allocation2 + $0x1518] sm:$0xff]
    %v8332 = vld [vmem:[#allocation2 + $0x1520] sm:$0xff]
    %v8333 = vld [vmem:[#allocation2 + $0x1528] sm:$0xff]
    %v8334 = vld [vmem:[#allocation2 + $0x1530] sm:$0xff]
    %v8335 = vld [vmem:[#allocation2 + $0x1538] sm:$0xff]
    %v8336 = vld [vmem:[#allocation2 + $0x1540] sm:$0xff]
    %v8337 = vld [vmem:[#allocation2 + $0x1548] sm:$0xff]
    %v8338 = vld [vmem:[#allocation2 + $0x1550] sm:$0xff]
    %v8339 = vld [vmem:[#allocation2 + $0x1558] sm:$0xff]
    %v8340 = vld [vmem:[#allocation2 + $0x1560] sm:$0xff]
    %v8341 = vld [vmem:[#allocation2 + $0x1568] sm:$0xff]
    %v8342 = vld [vmem:[#allocation2 + $0x1570] sm:$0xff]
    %v8343 = vld [vmem:[#allocation2 + $0x1578] sm:$0xff]
    %v8344 = vld [vmem:[#allocation2 + $0x1580] sm:$0xff]
    %v8345 = vld [vmem:[#allocation2 + $0x1588] sm:$0xff]
    %v8346 = vld [vmem:[#allocation2 + $0x1590] sm:$0xff]
    %v8347 = vld [vmem:[#allocation2 + $0x1598] sm:$0xff]
    %v8348 = vld [vmem:[#allocation2 + $0x15a0] sm:$0xff]
    %v8349 = vld [vmem:[#allocation2 + $0x15a8] sm:$0xff]
    %v8350 = vld [vmem:[#allocation2 + $0x15b0] sm:$0xff]
    %v8351 = vld [vmem:[#allocation2 + $0x15b8] sm:$0xff]
    %v8352 = vld [vmem:[#allocation2 + $0x15c0] sm:$0xff]
    %v8353 = vld [vmem:[#allocation2 + $0x15c8] sm:$0xff]
    %v8354 = vld [vmem:[#allocation2 + $0x15d0] sm:$0xff]
    %v8355 = vld [vmem:[#allocation2 + $0x15d8] sm:$0xff]
    %v8356 = vld [vmem:[#allocation2 + $0x15e0] sm:$0xff]
    %v8357 = vld [vmem:[#allocation2 + $0x15e8] sm:$0xff]
    %v8358 = vld [vmem:[#allocation2 + $0x15f0] sm:$0xff]
    %v8359 = vld [vmem:[#allocation2 + $0x15f8] sm:$0xff]
    %v8360 = vld [vmem:[#allocation2 + $0x1600] sm:$0xff]
    %v8361 = vld [vmem:[#allocation2 + $0x1608] sm:$0xff]
    %v8362 = vld [vmem:[#allocation2 + $0x1610] sm:$0xff]
    %v8363 = vld [vmem:[#allocation2 + $0x1618] sm:$0xff]
    %v8364 = vld [vmem:[#allocation2 + $0x1620] sm:$0xff]
    %v8365 = vld [vmem:[#allocation2 + $0x1628] sm:$0xff]
    %v8366 = vld [vmem:[#allocation2 + $0x1630] sm:$0xff]
    %v8367 = vld [vmem:[#allocation2 + $0x1638] sm:$0xff]
    %v8368 = vld [vmem:[#allocation2 + $0x1640] sm:$0xff]
    %v8369 = vld [vmem:[#allocation2 + $0x1648] sm:$0xff]
    %v8370 = vld [vmem:[#allocation2 + $0x1650] sm:$0xff]
    %v8371 = vld [vmem:[#allocation2 + $0x1658] sm:$0xff]
    %v8372 = vld [vmem:[#allocation2 + $0x1660] sm:$0xff]
    %v8373 = vld [vmem:[#allocation2 + $0x1668] sm:$0xff]
    %v8374 = vld [vmem:[#allocation2 + $0x1670] sm:$0xff]
    %v8375 = vld [vmem:[#allocation2 + $0x1678] sm:$0xff]
    %v8376 = vld [vmem:[#allocation2 + $0x1680] sm:$0xff]
    %v8377 = vld [vmem:[#allocation2 + $0x1688] sm:$0xff]
    %v8378 = vld [vmem:[#allocation2 + $0x1690] sm:$0xff]
    %v8379 = vld [vmem:[#allocation2 + $0x1698] sm:$0xff]
    %v8380 = vld [vmem:[#allocation2 + $0x16a0] sm:$0xff]
    %v8381 = vld [vmem:[#allocation2 + $0x16a8] sm:$0xff]
    %v8382 = vld [vmem:[#allocation2 + $0x16b0] sm:$0xff]
    %v8383 = vld [vmem:[#allocation2 + $0x16b8] sm:$0xff]
    %v8384 = vld [vmem:[#allocation2 + $0x16c0] sm:$0xff]
    %v8385 = vld [vmem:[#allocation2 + $0x16c8] sm:$0xff]
    %v8386 = vld [vmem:[#allocation2 + $0x16d0] sm:$0xff]
    %v8387 = vld [vmem:[#allocation2 + $0x16d8] sm:$0xff]
    %v8388 = vld [vmem:[#allocation2 + $0x16e0] sm:$0xff]
    %v8389 = vld [vmem:[#allocation2 + $0x16e8] sm:$0xff]
    %v8390 = vld [vmem:[#allocation2 + $0x16f0] sm:$0xff]
    %v8391 = vld [vmem:[#allocation2 + $0x16f8] sm:$0xff]
    %v8392 = vld [vmem:[#allocation2 + $0x1700] sm:$0xff]
    %v8393 = vld [vmem:[#allocation2 + $0x1708] sm:$0xff]
    %v8394 = vld [vmem:[#allocation2 + $0x1710] sm:$0xff]
    %v8395 = vld [vmem:[#allocation2 + $0x1718] sm:$0xff]
    %v8396 = vld [vmem:[#allocation2 + $0x1720] sm:$0xff]
    %v8397 = vld [vmem:[#allocation2 + $0x1728] sm:$0xff]
    %v8398 = vld [vmem:[#allocation2 + $0x1730] sm:$0xff]
    %v8399 = vld [vmem:[#allocation2 + $0x1738] sm:$0xff]
    %v8400 = vld [vmem:[#allocation2 + $0x1740] sm:$0xff]
    %v8401 = vld [vmem:[#allocation2 + $0x1748] sm:$0xff]
    %v8402 = vld [vmem:[#allocation2 + $0x1750] sm:$0xff]
    %v8403 = vld [vmem:[#allocation2 + $0x1758] sm:$0xff]
    %v8404 = vld [vmem:[#allocation2 + $0x1760] sm:$0xff]
    %v8405 = vld [vmem:[#allocation2 + $0x1768] sm:$0xff]
    %v8406 = vld [vmem:[#allocation2 + $0x1770] sm:$0xff]
    %v8407 = vld [vmem:[#allocation2 + $0x1778] sm:$0xff]
    %v8408 = vld [vmem:[#allocation2 + $0x1780] sm:$0xff]
    %v8409 = vld [vmem:[#allocation2 + $0x1788] sm:$0xff]
    %v8410 = vld [vmem:[#allocation2 + $0x1790] sm:$0xff]
    %v8411 = vld [vmem:[#allocation2 + $0x1798] sm:$0xff]
    %v8412 = vld [vmem:[#allocation2 + $0x17a0] sm:$0xff]
    %v8413 = vld [vmem:[#allocation2 + $0x17a8] sm:$0xff]
    %v8414 = vld [vmem:[#allocation2 + $0x17b0] sm:$0xff]
    %v8415 = vld [vmem:[#allocation2 + $0x17b8] sm:$0xff]
    %v8416 = vld [vmem:[#allocation2 + $0x17c0] sm:$0xff]
    %v8417 = vld [vmem:[#allocation2 + $0x17c8] sm:$0xff]
    %v8418 = vld [vmem:[#allocation2 + $0x17d0] sm:$0xff]
    %v8419 = vld [vmem:[#allocation2 + $0x17d8] sm:$0xff]
    %v8420 = vld [vmem:[#allocation2 + $0x17e0] sm:$0xff]
    %v8421 = vld [vmem:[#allocation2 + $0x17e8] sm:$0xff]
    %v8422 = vld [vmem:[#allocation2 + $0x17f0] sm:$0xff]
    %v8423 = vld [vmem:[#allocation2 + $0x17f8] sm:$0xff]
    %v8424 = vld [vmem:[#allocation2 + $0x1800] sm:$0xff]
    %v8425 = vld [vmem:[#allocation2 + $0x1808] sm:$0xff]
    %v8426 = vld [vmem:[#allocation2 + $0x1810] sm:$0xff]
    %v8427 = vld [vmem:[#allocation2 + $0x1818] sm:$0xff]
    %v8588 = vunpack.c.l.b16 %v8268
    %v8589 = vunpack.c.h.b16 %v8268
    %v8590 = vunpack.c.l.b16 %v8269
    %v8591 = vunpack.c.h.b16 %v8269
    %v8592 = vunpack.c.l.b16 %v8270
    %v8593 = vunpack.c.h.b16 %v8270
    %v8594 = vunpack.c.l.b16 %v8271
    %v8595 = vunpack.c.h.b16 %v8271
    %v8596 = vunpack.c.l.b16 %v8272
    %v8597 = vunpack.c.h.b16 %v8272
    %v8598 = vunpack.c.l.b16 %v8273
    %v8599 = vunpack.c.h.b16 %v8273
    %v8600 = vunpack.c.l.b16 %v8274
    %v8601 = vunpack.c.h.b16 %v8274
    %v8602 = vunpack.c.l.b16 %v8275
    %v8603 = vunpack.c.h.b16 %v8275
    %v8604 = vunpack.c.l.b16 %v8276
    %v8605 = vunpack.c.h.b16 %v8276
    %v8606 = vunpack.c.l.b16 %v8277
    %v8607 = vunpack.c.h.b16 %v8277
    %v8608 = vunpack.c.l.b16 %v8278
    %v8609 = vunpack.c.h.b16 %v8278
    %v8610 = vunpack.c.l.b16 %v8279
    %v8611 = vunpack.c.h.b16 %v8279
    %v8612 = vunpack.c.l.b16 %v8280
    %v8613 = vunpack.c.h.b16 %v8280
    %v8614 = vunpack.c.l.b16 %v8281
    %v8615 = vunpack.c.h.b16 %v8281
    %v8616 = vunpack.c.l.b16 %v8282
    %v8617 = vunpack.c.h.b16 %v8282
    %v8618 = vunpack.c.l.b16 %v8283
    %v8619 = vunpack.c.h.b16 %v8283
    %v8620 = vunpack.c.l.b16 %v8284
    %v8621 = vunpack.c.h.b16 %v8284
    %v8622 = vunpack.c.l.b16 %v8285
    %v8623 = vunpack.c.h.b16 %v8285
    %v8624 = vunpack.c.l.b16 %v8286
    %v8625 = vunpack.c.h.b16 %v8286
    %v8626 = vunpack.c.l.b16 %v8287
    %v8627 = vunpack.c.h.b16 %v8287
    %v8628 = vunpack.c.l.b16 %v8288
    %v8629 = vunpack.c.h.b16 %v8288
    %v8630 = vunpack.c.l.b16 %v8289
    %v8631 = vunpack.c.h.b16 %v8289
    %v8632 = vunpack.c.l.b16 %v8290
    %v8633 = vunpack.c.h.b16 %v8290
    %v8634 = vunpack.c.l.b16 %v8291
    %v8635 = vunpack.c.h.b16 %v8291
    %v8636 = vunpack.c.l.b16 %v8292
    %v8637 = vunpack.c.h.b16 %v8292
    %v8638 = vunpack.c.l.b16 %v8293
    %v8639 = vunpack.c.h.b16 %v8293
    %v8640 = vunpack.c.l.b16 %v8294
    %v8641 = vunpack.c.h.b16 %v8294
    %v8642 = vunpack.c.l.b16 %v8295
    %v8643 = vunpack.c.h.b16 %v8295
    %v8644 = vunpack.c.l.b16 %v8296
    %v8645 = vunpack.c.h.b16 %v8296
    %v8646 = vunpack.c.l.b16 %v8297
    %v8647 = vunpack.c.h.b16 %v8297
    %v8648 = vunpack.c.l.b16 %v8298
    %v8649 = vunpack.c.h.b16 %v8298
    %v8650 = vunpack.c.l.b16 %v8299
    %v8651 = vunpack.c.h.b16 %v8299
    %v8652 = vunpack.c.l.b16 %v8300
    %v8653 = vunpack.c.h.b16 %v8300
    %v8654 = vunpack.c.l.b16 %v8301
    %v8655 = vunpack.c.h.b16 %v8301
    %v8656 = vunpack.c.l.b16 %v8302
    %v8657 = vunpack.c.h.b16 %v8302
    %v8658 = vunpack.c.l.b16 %v8303
    %v8659 = vunpack.c.h.b16 %v8303
    %v8660 = vunpack.c.l.b16 %v8304
    %v8661 = vunpack.c.h.b16 %v8304
    %v8662 = vunpack.c.l.b16 %v8305
    %v8663 = vunpack.c.h.b16 %v8305
    %v8664 = vunpack.c.l.b16 %v8306
    %v8665 = vunpack.c.h.b16 %v8306
    %v8666 = vunpack.c.l.b16 %v8307
    %v8667 = vunpack.c.h.b16 %v8307
    %v8668 = vunpack.c.l.b16 %v8308
    %v8669 = vunpack.c.h.b16 %v8308
    %v8670 = vunpack.c.l.b16 %v8309
    %v8671 = vunpack.c.h.b16 %v8309
    %v8672 = vunpack.c.l.b16 %v8310
    %v8673 = vunpack.c.h.b16 %v8310
    %v8674 = vunpack.c.l.b16 %v8311
    %v8675 = vunpack.c.h.b16 %v8311
    %v8676 = vunpack.c.l.b16 %v8312
    %v8677 = vunpack.c.h.b16 %v8312
    %v8678 = vunpack.c.l.b16 %v8313
    %v8679 = vunpack.c.h.b16 %v8313
    %v8680 = vunpack.c.l.b16 %v8314
    %v8681 = vunpack.c.h.b16 %v8314
    %v8682 = vunpack.c.l.b16 %v8315
    %v8683 = vunpack.c.h.b16 %v8315
    %v8684 = vunpack.c.l.b16 %v8316
    %v8685 = vunpack.c.h.b16 %v8316
    %v8686 = vunpack.c.l.b16 %v8317
    %v8687 = vunpack.c.h.b16 %v8317
    %v8688 = vunpack.c.l.b16 %v8318
    %v8689 = vunpack.c.h.b16 %v8318
    %v8690 = vunpack.c.l.b16 %v8319
    %v8691 = vunpack.c.h.b16 %v8319
    %v8692 = vunpack.c.l.b16 %v8320
    %v8693 = vunpack.c.h.b16 %v8320
    %v8694 = vunpack.c.l.b16 %v8321
    %v8695 = vunpack.c.h.b16 %v8321
    %v8696 = vunpack.c.l.b16 %v8322
    %v8697 = vunpack.c.h.b16 %v8322
    %v8698 = vunpack.c.l.b16 %v8323
    %v8699 = vunpack.c.h.b16 %v8323
    %v8700 = vunpack.c.l.b16 %v8324
    %v8701 = vunpack.c.h.b16 %v8324
    %v8702 = vunpack.c.l.b16 %v8325
    %v8703 = vunpack.c.h.b16 %v8325
    %v8704 = vunpack.c.l.b16 %v8326
    %v8705 = vunpack.c.h.b16 %v8326
    %v8706 = vunpack.c.l.b16 %v8327
    %v8707 = vunpack.c.h.b16 %v8327
    %v8708 = vunpack.c.l.b16 %v8328
    %v8709 = vunpack.c.h.b16 %v8328
    %v8710 = vunpack.c.l.b16 %v8329
    %v8711 = vunpack.c.h.b16 %v8329
    %v8712 = vunpack.c.l.b16 %v8330
    %v8713 = vunpack.c.h.b16 %v8330
    %v8714 = vunpack.c.l.b16 %v8331
    %v8715 = vunpack.c.h.b16 %v8331
    %v8716 = vunpack.c.l.b16 %v8332
    %v8717 = vunpack.c.h.b16 %v8332
    %v8718 = vunpack.c.l.b16 %v8333
    %v8719 = vunpack.c.h.b16 %v8333
    %v8720 = vunpack.c.l.b16 %v8334
    %v8721 = vunpack.c.h.b16 %v8334
    %v8722 = vunpack.c.l.b16 %v8335
    %v8723 = vunpack.c.h.b16 %v8335
    %v8724 = vunpack.c.l.b16 %v8336
    %v8725 = vunpack.c.h.b16 %v8336
    %v8726 = vunpack.c.l.b16 %v8337
    %v8727 = vunpack.c.h.b16 %v8337
    %v8728 = vunpack.c.l.b16 %v8338
    %v8729 = vunpack.c.h.b16 %v8338
    %v8730 = vunpack.c.l.b16 %v8339
    %v8731 = vunpack.c.h.b16 %v8339
    %v8732 = vunpack.c.l.b16 %v8340
    %v8733 = vunpack.c.h.b16 %v8340
    %v8734 = vunpack.c.l.b16 %v8341
    %v8735 = vunpack.c.h.b16 %v8341
    %v8736 = vunpack.c.l.b16 %v8342
    %v8737 = vunpack.c.h.b16 %v8342
    %v8738 = vunpack.c.l.b16 %v8343
    %v8739 = vunpack.c.h.b16 %v8343
    %v8740 = vunpack.c.l.b16 %v8344
    %v8741 = vunpack.c.h.b16 %v8344
    %v8742 = vunpack.c.l.b16 %v8345
    %v8743 = vunpack.c.h.b16 %v8345
    %v8744 = vunpack.c.l.b16 %v8346
    %v8745 = vunpack.c.h.b16 %v8346
    %v8746 = vunpack.c.l.b16 %v8347
    %v8747 = vunpack.c.h.b16 %v8347
    %v8748 = vunpack.c.l.b16 %v8348
    %v8749 = vunpack.c.h.b16 %v8348
    %v8750 = vunpack.c.l.b16 %v8349
    %v8751 = vunpack.c.h.b16 %v8349
    %v8752 = vunpack.c.l.b16 %v8350
    %v8753 = vunpack.c.h.b16 %v8350
    %v8754 = vunpack.c.l.b16 %v8351
    %v8755 = vunpack.c.h.b16 %v8351
    %v8756 = vunpack.c.l.b16 %v8352
    %v8757 = vunpack.c.h.b16 %v8352
    %v8758 = vunpack.c.l.b16 %v8353
    %v8759 = vunpack.c.h.b16 %v8353
    %v8760 = vunpack.c.l.b16 %v8354
    %v8761 = vunpack.c.h.b16 %v8354
    %v8762 = vunpack.c.l.b16 %v8355
    %v8763 = vunpack.c.h.b16 %v8355
    %v8764 = vunpack.c.l.b16 %v8356
    %v8765 = vunpack.c.h.b16 %v8356
    %v8766 = vunpack.c.l.b16 %v8357
    %v8767 = vunpack.c.h.b16 %v8357
    %v8768 = vunpack.c.l.b16 %v8358
    %v8769 = vunpack.c.h.b16 %v8358
    %v8770 = vunpack.c.l.b16 %v8359
    %v8771 = vunpack.c.h.b16 %v8359
    %v8772 = vunpack.c.l.b16 %v8360
    %v8773 = vunpack.c.h.b16 %v8360
    %v8774 = vunpack.c.l.b16 %v8361
    %v8775 = vunpack.c.h.b16 %v8361
    %v8776 = vunpack.c.l.b16 %v8362
    %v8777 = vunpack.c.h.b16 %v8362
    %v8778 = vunpack.c.l.b16 %v8363
    %v8779 = vunpack.c.h.b16 %v8363
    %v8780 = vunpack.c.l.b16 %v8364
    %v8781 = vunpack.c.h.b16 %v8364
    %v8782 = vunpack.c.l.b16 %v8365
    %v8783 = vunpack.c.h.b16 %v8365
    %v8784 = vunpack.c.l.b16 %v8366
    %v8785 = vunpack.c.h.b16 %v8366
    %v8786 = vunpack.c.l.b16 %v8367
    %v8787 = vunpack.c.h.b16 %v8367
    %v8788 = vunpack.c.l.b16 %v8368
    %v8789 = vunpack.c.h.b16 %v8368
    %v8790 = vunpack.c.l.b16 %v8369
    %v8791 = vunpack.c.h.b16 %v8369
    %v8792 = vunpack.c.l.b16 %v8370
    %v8793 = vunpack.c.h.b16 %v8370
    %v8794 = vunpack.c.l.b16 %v8371
    %v8795 = vunpack.c.h.b16 %v8371
    %v8796 = vunpack.c.l.b16 %v8372
    %v8797 = vunpack.c.h.b16 %v8372
    %v8798 = vunpack.c.l.b16 %v8373
    %v8799 = vunpack.c.h.b16 %v8373
    %v8800 = vunpack.c.l.b16 %v8374
    %v8801 = vunpack.c.h.b16 %v8374
    %v8802 = vunpack.c.l.b16 %v8375
    %v8803 = vunpack.c.h.b16 %v8375
    %v8804 = vunpack.c.l.b16 %v8376
    %v8805 = vunpack.c.h.b16 %v8376
    %v8806 = vunpack.c.l.b16 %v8377
    %v8807 = vunpack.c.h.b16 %v8377
    %v8808 = vunpack.c.l.b16 %v8378
    %v8809 = vunpack.c.h.b16 %v8378
    %v8810 = vunpack.c.l.b16 %v8379
    %v8811 = vunpack.c.h.b16 %v8379
    %v8812 = vunpack.c.l.b16 %v8380
    %v8813 = vunpack.c.h.b16 %v8380
    %v8814 = vunpack.c.l.b16 %v8381
    %v8815 = vunpack.c.h.b16 %v8381
    %v8816 = vunpack.c.l.b16 %v8382
    %v8817 = vunpack.c.h.b16 %v8382
    %v8818 = vunpack.c.l.b16 %v8383
    %v8819 = vunpack.c.h.b16 %v8383
    %v8820 = vunpack.c.l.b16 %v8384
    %v8821 = vunpack.c.h.b16 %v8384
    %v8822 = vunpack.c.l.b16 %v8385
    %v8823 = vunpack.c.h.b16 %v8385
    %v8824 = vunpack.c.l.b16 %v8386
    %v8825 = vunpack.c.h.b16 %v8386
    %v8826 = vunpack.c.l.b16 %v8387
    %v8827 = vunpack.c.h.b16 %v8387
    %v8828 = vunpack.c.l.b16 %v8388
    %v8829 = vunpack.c.h.b16 %v8388
    %v8830 = vunpack.c.l.b16 %v8389
    %v8831 = vunpack.c.h.b16 %v8389
    %v8832 = vunpack.c.l.b16 %v8390
    %v8833 = vunpack.c.h.b16 %v8390
    %v8834 = vunpack.c.l.b16 %v8391
    %v8835 = vunpack.c.h.b16 %v8391
    %v8836 = vunpack.c.l.b16 %v8392
    %v8837 = vunpack.c.h.b16 %v8392
    %v8838 = vunpack.c.l.b16 %v8393
    %v8839 = vunpack.c.h.b16 %v8393
    %v8840 = vunpack.c.l.b16 %v8394
    %v8841 = vunpack.c.h.b16 %v8394
    %v8842 = vunpack.c.l.b16 %v8395
    %v8843 = vunpack.c.h.b16 %v8395
    %v8844 = vunpack.c.l.b16 %v8396
    %v8845 = vunpack.c.h.b16 %v8396
    %v8846 = vunpack.c.l.b16 %v8397
    %v8847 = vunpack.c.h.b16 %v8397
    %v8848 = vunpack.c.l.b16 %v8398
    %v8849 = vunpack.c.h.b16 %v8398
    %v8850 = vunpack.c.l.b16 %v8399
    %v8851 = vunpack.c.h.b16 %v8399
    %v8852 = vunpack.c.l.b16 %v8400
    %v8853 = vunpack.c.h.b16 %v8400
    %v8854 = vunpack.c.l.b16 %v8401
    %v8855 = vunpack.c.h.b16 %v8401
    %v8856 = vunpack.c.l.b16 %v8402
    %v8857 = vunpack.c.h.b16 %v8402
    %v8858 = vunpack.c.l.b16 %v8403
    %v8859 = vunpack.c.h.b16 %v8403
    %v8860 = vunpack.c.l.b16 %v8404
    %v8861 = vunpack.c.h.b16 %v8404
    %v8862 = vunpack.c.l.b16 %v8405
    %v8863 = vunpack.c.h.b16 %v8405
    %v8864 = vunpack.c.l.b16 %v8406
    %v8865 = vunpack.c.h.b16 %v8406
    %v8866 = vunpack.c.l.b16 %v8407
    %v8867 = vunpack.c.h.b16 %v8407
    %v8868 = vunpack.c.l.b16 %v8408
    %v8869 = vunpack.c.h.b16 %v8408
    %v8870 = vunpack.c.l.b16 %v8409
    %v8871 = vunpack.c.h.b16 %v8409
    %v8872 = vunpack.c.l.b16 %v8410
    %v8873 = vunpack.c.h.b16 %v8410
    %v8874 = vunpack.c.l.b16 %v8411
    %v8875 = vunpack.c.h.b16 %v8411
    %v8876 = vunpack.c.l.b16 %v8412
    %v8877 = vunpack.c.h.b16 %v8412
    %v8878 = vunpack.c.l.b16 %v8413
    %v8879 = vunpack.c.h.b16 %v8413
    %v8880 = vunpack.c.l.b16 %v8414
    %v8881 = vunpack.c.h.b16 %v8414
    %v8882 = vunpack.c.l.b16 %v8415
    %v8883 = vunpack.c.h.b16 %v8415
    %v8884 = vunpack.c.l.b16 %v8416
    %v8885 = vunpack.c.h.b16 %v8416
    %v8886 = vunpack.c.l.b16 %v8417
    %v8887 = vunpack.c.h.b16 %v8417
    %v8888 = vunpack.c.l.b16 %v8418
    %v8889 = vunpack.c.h.b16 %v8418
    %v8890 = vunpack.c.l.b16 %v8419
    %v8891 = vunpack.c.h.b16 %v8419
    %v8892 = vunpack.c.l.b16 %v8420
    %v8893 = vunpack.c.h.b16 %v8420
    %v8894 = vunpack.c.l.b16 %v8421
    %v8895 = vunpack.c.h.b16 %v8421
    %v8896 = vunpack.c.l.b16 %v8422
    %v8897 = vunpack.c.h.b16 %v8422
    %v8898 = vunpack.c.l.b16 %v8423
    %v8899 = vunpack.c.h.b16 %v8423
    %v8900 = vunpack.c.l.b16 %v8424
    %v8901 = vunpack.c.h.b16 %v8424
    %v8902 = vunpack.c.l.b16 %v8425
    %v8903 = vunpack.c.h.b16 %v8425
    %v8904 = vunpack.c.l.b16 %v8426
    %v8905 = vunpack.c.h.b16 %v8426
    %v8906 = vunpack.c.l.b16 %v8427
    %v8907 = vunpack.c.h.b16 %v8427
    %v8908 = vpack.c.b16 %v8590, %v8588
    %v8909 = vpack.c.b16 %v8591, %v8589
    %v8910 = vpack.c.b16 %v8594, %v8592
    %v8911 = vpack.c.b16 %v8595, %v8593
    %v8912 = vpack.c.b16 %v8598, %v8596
    %v8913 = vpack.c.b16 %v8599, %v8597
    %v8914 = vpack.c.b16 %v8602, %v8600
    %v8915 = vpack.c.b16 %v8603, %v8601
    %v8916 = vpack.c.b16 %v8606, %v8604
    %v8917 = vpack.c.b16 %v8607, %v8605
    %v8918 = vpack.c.b16 %v8610, %v8608
    %v8919 = vpack.c.b16 %v8611, %v8609
    %v8920 = vpack.c.b16 %v8614, %v8612
    %v8921 = vpack.c.b16 %v8615, %v8613
    %v8922 = vpack.c.b16 %v8618, %v8616
    %v8923 = vpack.c.b16 %v8619, %v8617
    %v8924 = vpack.c.b16 %v8622, %v8620
    %v8925 = vpack.c.b16 %v8623, %v8621
    %v8926 = vpack.c.b16 %v8626, %v8624
    %v8927 = vpack.c.b16 %v8627, %v8625
    %v8928 = vpack.c.b16 %v8630, %v8628
    %v8929 = vpack.c.b16 %v8631, %v8629
    %v8930 = vpack.c.b16 %v8634, %v8632
    %v8931 = vpack.c.b16 %v8635, %v8633
    %v8932 = vpack.c.b16 %v8638, %v8636
    %v8933 = vpack.c.b16 %v8639, %v8637
    %v8934 = vpack.c.b16 %v8642, %v8640
    %v8935 = vpack.c.b16 %v8643, %v8641
    %v8936 = vpack.c.b16 %v8646, %v8644
    %v8937 = vpack.c.b16 %v8647, %v8645
    %v8938 = vpack.c.b16 %v8650, %v8648
    %v8939 = vpack.c.b16 %v8651, %v8649
    %v8940 = vpack.c.b16 %v8654, %v8652
    %v8941 = vpack.c.b16 %v8655, %v8653
    %v8942 = vpack.c.b16 %v8658, %v8656
    %v8943 = vpack.c.b16 %v8659, %v8657
    %v8944 = vpack.c.b16 %v8662, %v8660
    %v8945 = vpack.c.b16 %v8663, %v8661
    %v8946 = vpack.c.b16 %v8666, %v8664
    %v8947 = vpack.c.b16 %v8667, %v8665
    %v8948 = vpack.c.b16 %v8670, %v8668
    %v8949 = vpack.c.b16 %v8671, %v8669
    %v8950 = vpack.c.b16 %v8674, %v8672
    %v8951 = vpack.c.b16 %v8675, %v8673
    %v8952 = vpack.c.b16 %v8678, %v8676
    %v8953 = vpack.c.b16 %v8679, %v8677
    %v8954 = vpack.c.b16 %v8682, %v8680
    %v8955 = vpack.c.b16 %v8683, %v8681
    %v8956 = vpack.c.b16 %v8686, %v8684
    %v8957 = vpack.c.b16 %v8687, %v8685
    %v8958 = vpack.c.b16 %v8690, %v8688
    %v8959 = vpack.c.b16 %v8691, %v8689
    %v8960 = vpack.c.b16 %v8694, %v8692
    %v8961 = vpack.c.b16 %v8695, %v8693
    %v8962 = vpack.c.b16 %v8698, %v8696
    %v8963 = vpack.c.b16 %v8699, %v8697
    %v8964 = vpack.c.b16 %v8702, %v8700
    %v8965 = vpack.c.b16 %v8703, %v8701
    %v8966 = vpack.c.b16 %v8706, %v8704
    %v8967 = vpack.c.b16 %v8707, %v8705
    %v8968 = vpack.c.b16 %v8710, %v8708
    %v8969 = vpack.c.b16 %v8711, %v8709
    %v8970 = vpack.c.b16 %v8714, %v8712
    %v8971 = vpack.c.b16 %v8715, %v8713
    %v8972 = vpack.c.b16 %v8718, %v8716
    %v8973 = vpack.c.b16 %v8719, %v8717
    %v8974 = vpack.c.b16 %v8722, %v8720
    %v8975 = vpack.c.b16 %v8723, %v8721
    %v8976 = vpack.c.b16 %v8726, %v8724
    %v8977 = vpack.c.b16 %v8727, %v8725
    %v8978 = vpack.c.b16 %v8730, %v8728
    %v8979 = vpack.c.b16 %v8731, %v8729
    %v8980 = vpack.c.b16 %v8734, %v8732
    %v8981 = vpack.c.b16 %v8735, %v8733
    %v8982 = vpack.c.b16 %v8738, %v8736
    %v8983 = vpack.c.b16 %v8739, %v8737
    %v8984 = vpack.c.b16 %v8742, %v8740
    %v8985 = vpack.c.b16 %v8743, %v8741
    %v8986 = vpack.c.b16 %v8746, %v8744
    %v8987 = vpack.c.b16 %v8747, %v8745
    %v8988 = vpack.c.b16 %v8750, %v8748
    %v8989 = vpack.c.b16 %v8751, %v8749
    %v8990 = vpack.c.b16 %v8754, %v8752
    %v8991 = vpack.c.b16 %v8755, %v8753
    %v8992 = vpack.c.b16 %v8758, %v8756
    %v8993 = vpack.c.b16 %v8759, %v8757
    %v8994 = vpack.c.b16 %v8762, %v8760
    %v8995 = vpack.c.b16 %v8763, %v8761
    %v8996 = vpack.c.b16 %v8766, %v8764
    %v8997 = vpack.c.b16 %v8767, %v8765
    %v8998 = vpack.c.b16 %v8770, %v8768
    %v8999 = vpack.c.b16 %v8771, %v8769
    %v9000 = vpack.c.b16 %v8774, %v8772
    %v9001 = vpack.c.b16 %v8775, %v8773
    %v9002 = vpack.c.b16 %v8778, %v8776
    %v9003 = vpack.c.b16 %v8779, %v8777
    %v9004 = vpack.c.b16 %v8782, %v8780
    %v9005 = vpack.c.b16 %v8783, %v8781
    %v9006 = vpack.c.b16 %v8786, %v8784
    %v9007 = vpack.c.b16 %v8787, %v8785
    %v9008 = vpack.c.b16 %v8790, %v8788
    %v9009 = vpack.c.b16 %v8791, %v8789
    %v9010 = vpack.c.b16 %v8794, %v8792
    %v9011 = vpack.c.b16 %v8795, %v8793
    %v9012 = vpack.c.b16 %v8798, %v8796
    %v9013 = vpack.c.b16 %v8799, %v8797
    %v9014 = vpack.c.b16 %v8802, %v8800
    %v9015 = vpack.c.b16 %v8803, %v8801
    %v9016 = vpack.c.b16 %v8806, %v8804
    %v9017 = vpack.c.b16 %v8807, %v8805
    %v9018 = vpack.c.b16 %v8810, %v8808
    %v9019 = vpack.c.b16 %v8811, %v8809
    %v9020 = vpack.c.b16 %v8814, %v8812
    %v9021 = vpack.c.b16 %v8815, %v8813
    %v9022 = vpack.c.b16 %v8818, %v8816
    %v9023 = vpack.c.b16 %v8819, %v8817
    %v9024 = vpack.c.b16 %v8822, %v8820
    %v9025 = vpack.c.b16 %v8823, %v8821
    %v9026 = vpack.c.b16 %v8826, %v8824
    %v9027 = vpack.c.b16 %v8827, %v8825
    %v9028 = vpack.c.b16 %v8830, %v8828
    %v9029 = vpack.c.b16 %v8831, %v8829
    %v9030 = vpack.c.b16 %v8834, %v8832
    %v9031 = vpack.c.b16 %v8835, %v8833
    %v9032 = vpack.c.b16 %v8838, %v8836
    %v9033 = vpack.c.b16 %v8839, %v8837
    %v9034 = vpack.c.b16 %v8842, %v8840
    %v9035 = vpack.c.b16 %v8843, %v8841
    %v9036 = vpack.c.b16 %v8846, %v8844
    %v9037 = vpack.c.b16 %v8847, %v8845
    %v9038 = vpack.c.b16 %v8850, %v8848
    %v9039 = vpack.c.b16 %v8851, %v8849
    %v9040 = vpack.c.b16 %v8854, %v8852
    %v9041 = vpack.c.b16 %v8855, %v8853
    %v9042 = vpack.c.b16 %v8858, %v8856
    %v9043 = vpack.c.b16 %v8859, %v8857
    %v9044 = vpack.c.b16 %v8862, %v8860
    %v9045 = vpack.c.b16 %v8863, %v8861
    %v9046 = vpack.c.b16 %v8866, %v8864
    %v9047 = vpack.c.b16 %v8867, %v8865
    %v9048 = vpack.c.b16 %v8870, %v8868
    %v9049 = vpack.c.b16 %v8871, %v8869
    %v9050 = vpack.c.b16 %v8874, %v8872
    %v9051 = vpack.c.b16 %v8875, %v8873
    %v9052 = vpack.c.b16 %v8878, %v8876
    %v9053 = vpack.c.b16 %v8879, %v8877
    %v9054 = vpack.c.b16 %v8882, %v8880
    %v9055 = vpack.c.b16 %v8883, %v8881
    %v9056 = vpack.c.b16 %v8886, %v8884
    %v9057 = vpack.c.b16 %v8887, %v8885
    %v9058 = vpack.c.b16 %v8890, %v8888
    %v9059 = vpack.c.b16 %v8891, %v8889
    %v9060 = vpack.c.b16 %v8894, %v8892
    %v9061 = vpack.c.b16 %v8895, %v8893
    %v9062 = vpack.c.b16 %v8898, %v8896
    %v9063 = vpack.c.b16 %v8899, %v8897
    %v9064 = vpack.c.b16 %v8902, %v8900
    %v9065 = vpack.c.b16 %v8903, %v8901
    %v9066 = vpack.c.b16 %v8906, %v8904
    %v9067 = vpack.c.b16 %v8907, %v8905
    %9228 = vmatpush.bf16.msra.mxu0 %v8922
    %9229 = vmatpush.bf16.msra.mxu0 %v8920
    %9230 = vmatpush.bf16.msra.mxu0 %v8918
    %9231 = vmatpush.bf16.msra.mxu0 %v8916
    %9232 = vmatpush.bf16.msra.mxu0 %v8914
    %9233 = vmatpush.bf16.msra.mxu0 %v8912
    %9234 = vmatpush.bf16.msra.mxu0 %v8910
    %9235 = vmatpush.bf16.msra.mxu0 %v8908
    %9236 = vmatmul.bf16.gmra.mxu0 %v8228
    %v9237 = vpop.f32.mrf.mxu0
    %v9238 = vadd.f32 0.0, %v9237
    %v9239 = vpop.f32.mrf.mxu0
    %v9240 = vadd.f32 0.0, %v9239
    %9241 = vmatmul.bf16.gmra.mxu0 %v8238
    %v9242 = vpop.f32.mrf.mxu0
    %v9243 = vadd.f32 0.0, %v9242
    %v9244 = vpop.f32.mrf.mxu0
    %v9245 = vadd.f32 0.0, %v9244
    %9246 = vmatmul.bf16.gmra.mxu0 %v8248
    %v9247 = vpop.f32.mrf.mxu0
    %v9248 = vadd.f32 0.0, %v9247
    %v9249 = vpop.f32.mrf.mxu0
    %v9250 = vadd.f32 0.0, %v9249
    %9251 = vmatmul.bf16.gmra.mxu0 %v8258
    %v9252 = vpop.f32.mrf.mxu0
    %v9253 = vadd.f32 0.0, %v9252
    %v9254 = vpop.f32.mrf.mxu0
    %v9255 = vadd.f32 0.0, %v9254
    %9256 = vdwg.mxu0
    %9257 = vmatpush.bf16.msra.mxu0 %v8938
    %9258 = vmatpush.bf16.msra.mxu0 %v8936
    %9259 = vmatpush.bf16.msra.mxu0 %v8934
    %9260 = vmatpush.bf16.msra.mxu0 %v8932
    %9261 = vmatpush.bf16.msra.mxu0 %v8930
    %9262 = vmatpush.bf16.msra.mxu0 %v8928
    %9263 = vmatpush.bf16.msra.mxu0 %v8926
    %9264 = vmatpush.bf16.msra.mxu0 %v8924
    %9265 = vmatmul.bf16.gmra.mxu0 %v8229
    %v9266 = vpop.f32.mrf.mxu0
    %v9267 = vadd.f32 %v9238, %v9266
    %v9268 = vpop.f32.mrf.mxu0
    %v9269 = vadd.f32 %v9240, %v9268
    %9270 = vmatmul.bf16.gmra.mxu0 %v8239
    %v9271 = vpop.f32.mrf.mxu0
    %v9272 = vadd.f32 %v9243, %v9271
    %v9273 = vpop.f32.mrf.mxu0
    %v9274 = vadd.f32 %v9245, %v9273
    %9275 = vmatmul.bf16.gmra.mxu0 %v8249
    %v9276 = vpop.f32.mrf.mxu0
    %v9277 = vadd.f32 %v9248, %v9276
    %v9278 = vpop.f32.mrf.mxu0
    %v9279 = vadd.f32 %v9250, %v9278
    %9280 = vmatmul.bf16.gmra.mxu0 %v8259
    %v9281 = vpop.f32.mrf.mxu0
    %v9282 = vadd.f32 %v9253, %v9281
    %v9283 = vpop.f32.mrf.mxu0
    %v9284 = vadd.f32 %v9255, %v9283
    %9285 = vdwg.mxu0
    %9286 = vmatpush.bf16.msra.mxu0 %v8954
    %9287 = vmatpush.bf16.msra.mxu0 %v8952
    %9288 = vmatpush.bf16.msra.mxu0 %v8950
    %9289 = vmatpush.bf16.msra.mxu0 %v8948
    %9290 = vmatpush.bf16.msra.mxu0 %v8946
    %9291 = vmatpush.bf16.msra.mxu0 %v8944
    %9292 = vmatpush.bf16.msra.mxu0 %v8942
    %9293 = vmatpush.bf16.msra.mxu0 %v8940
    %9294 = vmatmul.bf16.gmra.mxu0 %v8230
    %v9295 = vpop.f32.mrf.mxu0
    %v9296 = vadd.f32 %v9267, %v9295
    %v9297 = vpop.f32.mrf.mxu0
    %v9298 = vadd.f32 %v9269, %v9297
    %9299 = vmatmul.bf16.gmra.mxu0 %v8240
    %v9300 = vpop.f32.mrf.mxu0
    %v9301 = vadd.f32 %v9272, %v9300
    %v9302 = vpop.f32.mrf.mxu0
    %v9303 = vadd.f32 %v9274, %v9302
    %9304 = vmatmul.bf16.gmra.mxu0 %v8250
    %v9305 = vpop.f32.mrf.mxu0
    %v9306 = vadd.f32 %v9277, %v9305
    %v9307 = vpop.f32.mrf.mxu0
    %v9308 = vadd.f32 %v9279, %v9307
    %9309 = vmatmul.bf16.gmra.mxu0 %v8260
    %v9310 = vpop.f32.mrf.mxu0
    %v9311 = vadd.f32 %v9282, %v9310
    %v9312 = vpop.f32.mrf.mxu0
    %v9313 = vadd.f32 %v9284, %v9312
    %9314 = vdwg.mxu0
    %9315 = vmatpush.bf16.msra.mxu0 %v8970
    %9316 = vmatpush.bf16.msra.mxu0 %v8968
    %9317 = vmatpush.bf16.msra.mxu0 %v8966
    %9318 = vmatpush.bf16.msra.mxu0 %v8964
    %9319 = vmatpush.bf16.msra.mxu0 %v8962
    %9320 = vmatpush.bf16.msra.mxu0 %v8960
    %9321 = vmatpush.bf16.msra.mxu0 %v8958
    %9322 = vmatpush.bf16.msra.mxu0 %v8956
    %9323 = vmatmul.bf16.gmra.mxu0 %v8231
    %v9324 = vpop.f32.mrf.mxu0
    %v9325 = vadd.f32 %v9296, %v9324
    %v9326 = vpop.f32.mrf.mxu0
    %v9327 = vadd.f32 %v9298, %v9326
    %9328 = vmatmul.bf16.gmra.mxu0 %v8241
    %v9329 = vpop.f32.mrf.mxu0
    %v9330 = vadd.f32 %v9301, %v9329
    %v9331 = vpop.f32.mrf.mxu0
    %v9332 = vadd.f32 %v9303, %v9331
    %9333 = vmatmul.bf16.gmra.mxu0 %v8251
    %v9334 = vpop.f32.mrf.mxu0
    %v9335 = vadd.f32 %v9306, %v9334
    %v9336 = vpop.f32.mrf.mxu0
    %v9337 = vadd.f32 %v9308, %v9336
    %9338 = vmatmul.bf16.gmra.mxu0 %v8261
    %v9339 = vpop.f32.mrf.mxu0
    %v9340 = vadd.f32 %v9311, %v9339
    %v9341 = vpop.f32.mrf.mxu0
    %v9342 = vadd.f32 %v9313, %v9341
    %9343 = vdwg.mxu0
    %9344 = vmatpush.bf16.msra.mxu0 %v8986
    %9345 = vmatpush.bf16.msra.mxu0 %v8984
    %9346 = vmatpush.bf16.msra.mxu0 %v8982
    %9347 = vmatpush.bf16.msra.mxu0 %v8980
    %9348 = vmatpush.bf16.msra.mxu0 %v8978
    %9349 = vmatpush.bf16.msra.mxu0 %v8976
    %9350 = vmatpush.bf16.msra.mxu0 %v8974
    %9351 = vmatpush.bf16.msra.mxu0 %v8972
    %9352 = vmatmul.bf16.gmra.mxu0 %v8232
    %v9353 = vpop.f32.mrf.mxu0
    %v9354 = vadd.f32 %v9325, %v9353
    %v9355 = vpop.f32.mrf.mxu0
    %v9356 = vadd.f32 %v9327, %v9355
    %9357 = vmatmul.bf16.gmra.mxu0 %v8242
    %v9358 = vpop.f32.mrf.mxu0
    %v9359 = vadd.f32 %v9330, %v9358
    %v9360 = vpop.f32.mrf.mxu0
    %v9361 = vadd.f32 %v9332, %v9360
    %9362 = vmatmul.bf16.gmra.mxu0 %v8252
    %v9363 = vpop.f32.mrf.mxu0
    %v9364 = vadd.f32 %v9335, %v9363
    %v9365 = vpop.f32.mrf.mxu0
    %v9366 = vadd.f32 %v9337, %v9365
    %9367 = vmatmul.bf16.gmra.mxu0 %v8262
    %v9368 = vpop.f32.mrf.mxu0
    %v9369 = vadd.f32 %v9340, %v9368
    %v9370 = vpop.f32.mrf.mxu0
    %v9371 = vadd.f32 %v9342, %v9370
    %9372 = vdwg.mxu0
    %9373 = vmatpush.bf16.msra.mxu0 %v9002
    %9374 = vmatpush.bf16.msra.mxu0 %v9000
    %9375 = vmatpush.bf16.msra.mxu0 %v8998
    %9376 = vmatpush.bf16.msra.mxu0 %v8996
    %9377 = vmatpush.bf16.msra.mxu0 %v8994
    %9378 = vmatpush.bf16.msra.mxu0 %v8992
    %9379 = vmatpush.bf16.msra.mxu0 %v8990
    %9380 = vmatpush.bf16.msra.mxu0 %v8988
    %9381 = vmatmul.bf16.gmra.mxu0 %v8233
    %v9382 = vpop.f32.mrf.mxu0
    %v9383 = vadd.f32 %v9354, %v9382
    %v9384 = vpop.f32.mrf.mxu0
    %v9385 = vadd.f32 %v9356, %v9384
    %9386 = vmatmul.bf16.gmra.mxu0 %v8243
    %v9387 = vpop.f32.mrf.mxu0
    %v9388 = vadd.f32 %v9359, %v9387
    %v9389 = vpop.f32.mrf.mxu0
    %v9390 = vadd.f32 %v9361, %v9389
    %9391 = vmatmul.bf16.gmra.mxu0 %v8253
    %v9392 = vpop.f32.mrf.mxu0
    %v9393 = vadd.f32 %v9364, %v9392
    %v9394 = vpop.f32.mrf.mxu0
    %v9395 = vadd.f32 %v9366, %v9394
    %9396 = vmatmul.bf16.gmra.mxu0 %v8263
    %v9397 = vpop.f32.mrf.mxu0
    %v9398 = vadd.f32 %v9369, %v9397
    %v9399 = vpop.f32.mrf.mxu0
    %v9400 = vadd.f32 %v9371, %v9399
    %9401 = vdwg.mxu0
    %9402 = vmatpush.bf16.msra.mxu0 %v9018
    %9403 = vmatpush.bf16.msra.mxu0 %v9016
    %9404 = vmatpush.bf16.msra.mxu0 %v9014
    %9405 = vmatpush.bf16.msra.mxu0 %v9012
    %9406 = vmatpush.bf16.msra.mxu0 %v9010
    %9407 = vmatpush.bf16.msra.mxu0 %v9008
    %9408 = vmatpush.bf16.msra.mxu0 %v9006
    %9409 = vmatpush.bf16.msra.mxu0 %v9004
    %9410 = vmatmul.bf16.gmra.mxu0 %v8234
    %v9411 = vpop.f32.mrf.mxu0
    %v9412 = vadd.f32 %v9383, %v9411
    %v9413 = vpop.f32.mrf.mxu0
    %v9414 = vadd.f32 %v9385, %v9413
    %9415 = vmatmul.bf16.gmra.mxu0 %v8244
    %v9416 = vpop.f32.mrf.mxu0
    %v9417 = vadd.f32 %v9388, %v9416
    %v9418 = vpop.f32.mrf.mxu0
    %v9419 = vadd.f32 %v9390, %v9418
    %9420 = vmatmul.bf16.gmra.mxu0 %v8254
    %v9421 = vpop.f32.mrf.mxu0
    %v9422 = vadd.f32 %v9393, %v9421
    %v9423 = vpop.f32.mrf.mxu0
    %v9424 = vadd.f32 %v9395, %v9423
    %9425 = vmatmul.bf16.gmra.mxu0 %v8264
    %v9426 = vpop.f32.mrf.mxu0
    %v9427 = vadd.f32 %v9398, %v9426
    %v9428 = vpop.f32.mrf.mxu0
    %v9429 = vadd.f32 %v9400, %v9428
    %9430 = vdwg.mxu0
    %9431 = vmatpush.bf16.msra.mxu0 %v9034
    %9432 = vmatpush.bf16.msra.mxu0 %v9032
    %9433 = vmatpush.bf16.msra.mxu0 %v9030
    %9434 = vmatpush.bf16.msra.mxu0 %v9028
    %9435 = vmatpush.bf16.msra.mxu0 %v9026
    %9436 = vmatpush.bf16.msra.mxu0 %v9024
    %9437 = vmatpush.bf16.msra.mxu0 %v9022
    %9438 = vmatpush.bf16.msra.mxu0 %v9020
    %9439 = vmatmul.bf16.gmra.mxu0 %v8235
    %v9440 = vpop.f32.mrf.mxu0
    %v9441 = vadd.f32 %v9412, %v9440
    %v9442 = vpop.f32.mrf.mxu0
    %v9443 = vadd.f32 %v9414, %v9442
    %9444 = vmatmul.bf16.gmra.mxu0 %v8245
    %v9445 = vpop.f32.mrf.mxu0
    %v9446 = vadd.f32 %v9417, %v9445
    %v9447 = vpop.f32.mrf.mxu0
    %v9448 = vadd.f32 %v9419, %v9447
    %9449 = vmatmul.bf16.gmra.mxu0 %v8255
    %v9450 = vpop.f32.mrf.mxu0
    %v9451 = vadd.f32 %v9422, %v9450
    %v9452 = vpop.f32.mrf.mxu0
    %v9453 = vadd.f32 %v9424, %v9452
    %9454 = vmatmul.bf16.gmra.mxu0 %v8265
    %v9455 = vpop.f32.mrf.mxu0
    %v9456 = vadd.f32 %v9427, %v9455
    %v9457 = vpop.f32.mrf.mxu0
    %v9458 = vadd.f32 %v9429, %v9457
    %9459 = vdwg.mxu0
    %9460 = vmatpush.bf16.msra.mxu0 %v9050
    %9461 = vmatpush.bf16.msra.mxu0 %v9048
    %9462 = vmatpush.bf16.msra.mxu0 %v9046
    %9463 = vmatpush.bf16.msra.mxu0 %v9044
    %9464 = vmatpush.bf16.msra.mxu0 %v9042
    %9465 = vmatpush.bf16.msra.mxu0 %v9040
    %9466 = vmatpush.bf16.msra.mxu0 %v9038
    %9467 = vmatpush.bf16.msra.mxu0 %v9036
    %9468 = vmatmul.bf16.gmra.mxu0 %v8236
    %v9469 = vpop.f32.mrf.mxu0
    %v9470 = vadd.f32 %v9441, %v9469
    %v9471 = vpop.f32.mrf.mxu0
    %v9472 = vadd.f32 %v9443, %v9471
    %9473 = vmatmul.bf16.gmra.mxu0 %v8246
    %v9474 = vpop.f32.mrf.mxu0
    %v9475 = vadd.f32 %v9446, %v9474
    %v9476 = vpop.f32.mrf.mxu0
    %v9477 = vadd.f32 %v9448, %v9476
    %9478 = vmatmul.bf16.gmra.mxu0 %v8256
    %v9479 = vpop.f32.mrf.mxu0
    %v9480 = vadd.f32 %v9451, %v9479
    %v9481 = vpop.f32.mrf.mxu0
    %v9482 = vadd.f32 %v9453, %v9481
    %9483 = vmatmul.bf16.gmra.mxu0 %v8266
    %v9484 = vpop.f32.mrf.mxu0
    %v9485 = vadd.f32 %v9456, %v9484
    %v9486 = vpop.f32.mrf.mxu0
    %v9487 = vadd.f32 %v9458, %v9486
    %9488 = vdwg.mxu0
    %9489 = vmatpush.bf16.msra.mxu0 %v9066
    %9490 = vmatpush.bf16.msra.mxu0 %v9064
    %9491 = vmatpush.bf16.msra.mxu0 %v9062
    %9492 = vmatpush.bf16.msra.mxu0 %v9060
    %9493 = vmatpush.bf16.msra.mxu0 %v9058
    %9494 = vmatpush.bf16.msra.mxu0 %v9056
    %9495 = vmatpush.bf16.msra.mxu0 %v9054
    %9496 = vmatpush.bf16.msra.mxu0 %v9052
    %9497 = vmatmul.bf16.gmra.mxu0 %v8237
    %v9498 = vpop.f32.mrf.mxu0
    %v9499 = vadd.f32 %v9470, %v9498
    %v9500 = vpop.f32.mrf.mxu0
    %v9501 = vadd.f32 %v9472, %v9500
    %9502 = vmatmul.bf16.gmra.mxu0 %v8247
    %v9503 = vpop.f32.mrf.mxu0
    %v9504 = vadd.f32 %v9475, %v9503
    %v9505 = vpop.f32.mrf.mxu0
    %v9506 = vadd.f32 %v9477, %v9505
    %9507 = vmatmul.bf16.gmra.mxu0 %v8257
    %v9508 = vpop.f32.mrf.mxu0
    %v9509 = vadd.f32 %v9480, %v9508
    %v9510 = vpop.f32.mrf.mxu0
    %v9511 = vadd.f32 %v9482, %v9510
    %9512 = vmatmul.bf16.gmra.mxu0 %v8267
    %v9513 = vpop.f32.mrf.mxu0
    %v9514 = vadd.f32 %v9485, %v9513
    %v9515 = vpop.f32.mrf.mxu0
    %v9516 = vadd.f32 %v9487, %v9515
    %9517 = vdwg.mxu0
    %9518 = vmatpush.bf16.msra.mxu0 %v8923
    %9519 = vmatpush.bf16.msra.mxu0 %v8921
    %9520 = vmatpush.bf16.msra.mxu0 %v8919
    %9521 = vmatpush.bf16.msra.mxu0 %v8917
    %9522 = vmatpush.bf16.msra.mxu0 %v8915
    %9523 = vmatpush.bf16.msra.mxu0 %v8913
    %9524 = vmatpush.bf16.msra.mxu0 %v8911
    %9525 = vmatpush.bf16.msra.mxu0 %v8909
    %9526 = vmatmul.bf16.gmra.mxu0 %v8228
    %v9527 = vpop.f32.mrf.mxu0
    %v9528 = vadd.f32 0.0, %v9527
    %v9529 = vpop.f32.mrf.mxu0
    %v9530 = vadd.f32 0.0, %v9529
    %9531 = vmatmul.bf16.gmra.mxu0 %v8238
    %v9532 = vpop.f32.mrf.mxu0
    %v9533 = vadd.f32 0.0, %v9532
    %v9534 = vpop.f32.mrf.mxu0
    %v9535 = vadd.f32 0.0, %v9534
    %9536 = vmatmul.bf16.gmra.mxu0 %v8248
    %v9537 = vpop.f32.mrf.mxu0
    %v9538 = vadd.f32 0.0, %v9537
    %v9539 = vpop.f32.mrf.mxu0
    %v9540 = vadd.f32 0.0, %v9539
    %9541 = vmatmul.bf16.gmra.mxu0 %v8258
    %v9542 = vpop.f32.mrf.mxu0
    %v9543 = vadd.f32 0.0, %v9542
    %v9544 = vpop.f32.mrf.mxu0
    %v9545 = vadd.f32 0.0, %v9544
    %9546 = vdwg.mxu0
    %9547 = vmatpush.bf16.msra.mxu0 %v8939
    %9548 = vmatpush.bf16.msra.mxu0 %v8937
    %9549 = vmatpush.bf16.msra.mxu0 %v8935
    %9550 = vmatpush.bf16.msra.mxu0 %v8933
    %9551 = vmatpush.bf16.msra.mxu0 %v8931
    %9552 = vmatpush.bf16.msra.mxu0 %v8929
    %9553 = vmatpush.bf16.msra.mxu0 %v8927
    %9554 = vmatpush.bf16.msra.mxu0 %v8925
    %9555 = vmatmul.bf16.gmra.mxu0 %v8229
    %v9556 = vpop.f32.mrf.mxu0
    %v9557 = vadd.f32 %v9528, %v9556
    %v9558 = vpop.f32.mrf.mxu0
    %v9559 = vadd.f32 %v9530, %v9558
    %9560 = vmatmul.bf16.gmra.mxu0 %v8239
    %v9561 = vpop.f32.mrf.mxu0
    %v9562 = vadd.f32 %v9533, %v9561
    %v9563 = vpop.f32.mrf.mxu0
    %v9564 = vadd.f32 %v9535, %v9563
    %9565 = vmatmul.bf16.gmra.mxu0 %v8249
    %v9566 = vpop.f32.mrf.mxu0
    %v9567 = vadd.f32 %v9538, %v9566
    %v9568 = vpop.f32.mrf.mxu0
    %v9569 = vadd.f32 %v9540, %v9568
    %9570 = vmatmul.bf16.gmra.mxu0 %v8259
    %v9571 = vpop.f32.mrf.mxu0
    %v9572 = vadd.f32 %v9543, %v9571
    %v9573 = vpop.f32.mrf.mxu0
    %v9574 = vadd.f32 %v9545, %v9573
    %9575 = vdwg.mxu0
    %9576 = vmatpush.bf16.msra.mxu0 %v8955
    %9577 = vmatpush.bf16.msra.mxu0 %v8953
    %9578 = vmatpush.bf16.msra.mxu0 %v8951
    %9579 = vmatpush.bf16.msra.mxu0 %v8949
    %9580 = vmatpush.bf16.msra.mxu0 %v8947
    %9581 = vmatpush.bf16.msra.mxu0 %v8945
    %9582 = vmatpush.bf16.msra.mxu0 %v8943
    %9583 = vmatpush.bf16.msra.mxu0 %v8941
    %9584 = vmatmul.bf16.gmra.mxu0 %v8230
    %v9585 = vpop.f32.mrf.mxu0
    %v9586 = vadd.f32 %v9557, %v9585
    %v9587 = vpop.f32.mrf.mxu0
    %v9588 = vadd.f32 %v9559, %v9587
    %9589 = vmatmul.bf16.gmra.mxu0 %v8240
    %v9590 = vpop.f32.mrf.mxu0
    %v9591 = vadd.f32 %v9562, %v9590
    %v9592 = vpop.f32.mrf.mxu0
    %v9593 = vadd.f32 %v9564, %v9592
    %9594 = vmatmul.bf16.gmra.mxu0 %v8250
    %v9595 = vpop.f32.mrf.mxu0
    %v9596 = vadd.f32 %v9567, %v9595
    %v9597 = vpop.f32.mrf.mxu0
    %v9598 = vadd.f32 %v9569, %v9597
    %9599 = vmatmul.bf16.gmra.mxu0 %v8260
    %v9600 = vpop.f32.mrf.mxu0
    %v9601 = vadd.f32 %v9572, %v9600
    %v9602 = vpop.f32.mrf.mxu0
    %v9603 = vadd.f32 %v9574, %v9602
    %9604 = vdwg.mxu0
    %9605 = vmatpush.bf16.msra.mxu0 %v8971
    %9606 = vmatpush.bf16.msra.mxu0 %v8969
    %9607 = vmatpush.bf16.msra.mxu0 %v8967
    %9608 = vmatpush.bf16.msra.mxu0 %v8965
    %9609 = vmatpush.bf16.msra.mxu0 %v8963
    %9610 = vmatpush.bf16.msra.mxu0 %v8961
    %9611 = vmatpush.bf16.msra.mxu0 %v8959
    %9612 = vmatpush.bf16.msra.mxu0 %v8957
    %9613 = vmatmul.bf16.gmra.mxu0 %v8231
    %v9614 = vpop.f32.mrf.mxu0
    %v9615 = vadd.f32 %v9586, %v9614
    %v9616 = vpop.f32.mrf.mxu0
    %v9617 = vadd.f32 %v9588, %v9616
    %9618 = vmatmul.bf16.gmra.mxu0 %v8241
    %v9619 = vpop.f32.mrf.mxu0
    %v9620 = vadd.f32 %v9591, %v9619
    %v9621 = vpop.f32.mrf.mxu0
    %v9622 = vadd.f32 %v9593, %v9621
    %9623 = vmatmul.bf16.gmra.mxu0 %v8251
    %v9624 = vpop.f32.mrf.mxu0
    %v9625 = vadd.f32 %v9596, %v9624
    %v9626 = vpop.f32.mrf.mxu0
    %v9627 = vadd.f32 %v9598, %v9626
    %9628 = vmatmul.bf16.gmra.mxu0 %v8261
    %v9629 = vpop.f32.mrf.mxu0
    %v9630 = vadd.f32 %v9601, %v9629
    %v9631 = vpop.f32.mrf.mxu0
    %v9632 = vadd.f32 %v9603, %v9631
    %9633 = vdwg.mxu0
    %9634 = vmatpush.bf16.msra.mxu0 %v8987
    %9635 = vmatpush.bf16.msra.mxu0 %v8985
    %9636 = vmatpush.bf16.msra.mxu0 %v8983
    %9637 = vmatpush.bf16.msra.mxu0 %v8981
    %9638 = vmatpush.bf16.msra.mxu0 %v8979
    %9639 = vmatpush.bf16.msra.mxu0 %v8977
    %9640 = vmatpush.bf16.msra.mxu0 %v8975
    %9641 = vmatpush.bf16.msra.mxu0 %v8973
    %9642 = vmatmul.bf16.gmra.mxu0 %v8232
    %v9643 = vpop.f32.mrf.mxu0
    %v9644 = vadd.f32 %v9615, %v9643
    %v9645 = vpop.f32.mrf.mxu0
    %v9646 = vadd.f32 %v9617, %v9645
    %9647 = vmatmul.bf16.gmra.mxu0 %v8242
    %v9648 = vpop.f32.mrf.mxu0
    %v9649 = vadd.f32 %v9620, %v9648
    %v9650 = vpop.f32.mrf.mxu0
    %v9651 = vadd.f32 %v9622, %v9650
    %9652 = vmatmul.bf16.gmra.mxu0 %v8252
    %v9653 = vpop.f32.mrf.mxu0
    %v9654 = vadd.f32 %v9625, %v9653
    %v9655 = vpop.f32.mrf.mxu0
    %v9656 = vadd.f32 %v9627, %v9655
    %9657 = vmatmul.bf16.gmra.mxu0 %v8262
    %v9658 = vpop.f32.mrf.mxu0
    %v9659 = vadd.f32 %v9630, %v9658
    %v9660 = vpop.f32.mrf.mxu0
    %v9661 = vadd.f32 %v9632, %v9660
    %9662 = vdwg.mxu0
    %9663 = vmatpush.bf16.msra.mxu0 %v9003
    %9664 = vmatpush.bf16.msra.mxu0 %v9001
    %9665 = vmatpush.bf16.msra.mxu0 %v8999
    %9666 = vmatpush.bf16.msra.mxu0 %v8997
    %9667 = vmatpush.bf16.msra.mxu0 %v8995
    %9668 = vmatpush.bf16.msra.mxu0 %v8993
    %9669 = vmatpush.bf16.msra.mxu0 %v8991
    %9670 = vmatpush.bf16.msra.mxu0 %v8989
    %9671 = vmatmul.bf16.gmra.mxu0 %v8233
    %v9672 = vpop.f32.mrf.mxu0
    %v9673 = vadd.f32 %v9644, %v9672
    %v9674 = vpop.f32.mrf.mxu0
    %v9675 = vadd.f32 %v9646, %v9674
    %9676 = vmatmul.bf16.gmra.mxu0 %v8243
    %v9677 = vpop.f32.mrf.mxu0
    %v9678 = vadd.f32 %v9649, %v9677
    %v9679 = vpop.f32.mrf.mxu0
    %v9680 = vadd.f32 %v9651, %v9679
    %9681 = vmatmul.bf16.gmra.mxu0 %v8253
    %v9682 = vpop.f32.mrf.mxu0
    %v9683 = vadd.f32 %v9654, %v9682
    %v9684 = vpop.f32.mrf.mxu0
    %v9685 = vadd.f32 %v9656, %v9684
    %9686 = vmatmul.bf16.gmra.mxu0 %v8263
    %v9687 = vpop.f32.mrf.mxu0
    %v9688 = vadd.f32 %v9659, %v9687
    %v9689 = vpop.f32.mrf.mxu0
    %v9690 = vadd.f32 %v9661, %v9689
    %9691 = vdwg.mxu0
    %9692 = vmatpush.bf16.msra.mxu0 %v9019
    %9693 = vmatpush.bf16.msra.mxu0 %v9017
    %9694 = vmatpush.bf16.msra.mxu0 %v9015
    %9695 = vmatpush.bf16.msra.mxu0 %v9013
    %9696 = vmatpush.bf16.msra.mxu0 %v9011
    %9697 = vmatpush.bf16.msra.mxu0 %v9009
    %9698 = vmatpush.bf16.msra.mxu0 %v9007
    %9699 = vmatpush.bf16.msra.mxu0 %v9005
    %9700 = vmatmul.bf16.gmra.mxu0 %v8234
    %v9701 = vpop.f32.mrf.mxu0
    %v9702 = vadd.f32 %v9673, %v9701
    %v9703 = vpop.f32.mrf.mxu0
    %v9704 = vadd.f32 %v9675, %v9703
    %9705 = vmatmul.bf16.gmra.mxu0 %v8244
    %v9706 = vpop.f32.mrf.mxu0
    %v9707 = vadd.f32 %v9678, %v9706
    %v9708 = vpop.f32.mrf.mxu0
    %v9709 = vadd.f32 %v9680, %v9708
    %9710 = vmatmul.bf16.gmra.mxu0 %v8254
    %v9711 = vpop.f32.mrf.mxu0
    %v9712 = vadd.f32 %v9683, %v9711
    %v9713 = vpop.f32.mrf.mxu0
    %v9714 = vadd.f32 %v9685, %v9713
    %9715 = vmatmul.bf16.gmra.mxu0 %v8264
    %v9716 = vpop.f32.mrf.mxu0
    %v9717 = vadd.f32 %v9688, %v9716
    %v9718 = vpop.f32.mrf.mxu0
    %v9719 = vadd.f32 %v9690, %v9718
    %9720 = vdwg.mxu0
    %9721 = vmatpush.bf16.msra.mxu0 %v9035
    %9722 = vmatpush.bf16.msra.mxu0 %v9033
    %9723 = vmatpush.bf16.msra.mxu0 %v9031
    %9724 = vmatpush.bf16.msra.mxu0 %v9029
    %9725 = vmatpush.bf16.msra.mxu0 %v9027
    %9726 = vmatpush.bf16.msra.mxu0 %v9025
    %9727 = vmatpush.bf16.msra.mxu0 %v9023
    %9728 = vmatpush.bf16.msra.mxu0 %v9021
    %9729 = vmatmul.bf16.gmra.mxu0 %v8235
    %v9730 = vpop.f32.mrf.mxu0
    %v9731 = vadd.f32 %v9702, %v9730
    %v9732 = vpop.f32.mrf.mxu0
    %v9733 = vadd.f32 %v9704, %v9732
    %9734 = vmatmul.bf16.gmra.mxu0 %v8245
    %v9735 = vpop.f32.mrf.mxu0
    %v9736 = vadd.f32 %v9707, %v9735
    %v9737 = vpop.f32.mrf.mxu0
    %v9738 = vadd.f32 %v9709, %v9737
    %9739 = vmatmul.bf16.gmra.mxu0 %v8255
    %v9740 = vpop.f32.mrf.mxu0
    %v9741 = vadd.f32 %v9712, %v9740
    %v9742 = vpop.f32.mrf.mxu0
    %v9743 = vadd.f32 %v9714, %v9742
    %9744 = vmatmul.bf16.gmra.mxu0 %v8265
    %v9745 = vpop.f32.mrf.mxu0
    %v9746 = vadd.f32 %v9717, %v9745
    %v9747 = vpop.f32.mrf.mxu0
    %v9748 = vadd.f32 %v9719, %v9747
    %9749 = vdwg.mxu0
    %9750 = vmatpush.bf16.msra.mxu0 %v9051
    %9751 = vmatpush.bf16.msra.mxu0 %v9049
    %9752 = vmatpush.bf16.msra.mxu0 %v9047
    %9753 = vmatpush.bf16.msra.mxu0 %v9045
    %9754 = vmatpush.bf16.msra.mxu0 %v9043
    %9755 = vmatpush.bf16.msra.mxu0 %v9041
    %9756 = vmatpush.bf16.msra.mxu0 %v9039
    %9757 = vmatpush.bf16.msra.mxu0 %v9037
    %9758 = vmatmul.bf16.gmra.mxu0 %v8236
    %v9759 = vpop.f32.mrf.mxu0
    %v9760 = vadd.f32 %v9731, %v9759
    %v9761 = vpop.f32.mrf.mxu0
    %v9762 = vadd.f32 %v9733, %v9761
    %9763 = vmatmul.bf16.gmra.mxu0 %v8246
    %v9764 = vpop.f32.mrf.mxu0
    %v9765 = vadd.f32 %v9736, %v9764
    %v9766 = vpop.f32.mrf.mxu0
    %v9767 = vadd.f32 %v9738, %v9766
    %9768 = vmatmul.bf16.gmra.mxu0 %v8256
    %v9769 = vpop.f32.mrf.mxu0
    %v9770 = vadd.f32 %v9741, %v9769
    %v9771 = vpop.f32.mrf.mxu0
    %v9772 = vadd.f32 %v9743, %v9771
    %9773 = vmatmul.bf16.gmra.mxu0 %v8266
    %v9774 = vpop.f32.mrf.mxu0
    %v9775 = vadd.f32 %v9746, %v9774
    %v9776 = vpop.f32.mrf.mxu0
    %v9777 = vadd.f32 %v9748, %v9776
    %9778 = vdwg.mxu0
    %9779 = vmatpush.bf16.msra.mxu0 %v9067
    %9780 = vmatpush.bf16.msra.mxu0 %v9065
    %9781 = vmatpush.bf16.msra.mxu0 %v9063
    %9782 = vmatpush.bf16.msra.mxu0 %v9061
    %9783 = vmatpush.bf16.msra.mxu0 %v9059
    %9784 = vmatpush.bf16.msra.mxu0 %v9057
    %9785 = vmatpush.bf16.msra.mxu0 %v9055
    %9786 = vmatpush.bf16.msra.mxu0 %v9053
    %9787 = vmatmul.bf16.gmra.mxu0 %v8237
    %v9788 = vpop.f32.mrf.mxu0
    %v9789 = vadd.f32 %v9760, %v9788
    %v9790 = vpop.f32.mrf.mxu0
    %v9791 = vadd.f32 %v9762, %v9790
    %9792 = vmatmul.bf16.gmra.mxu0 %v8247
    %v9793 = vpop.f32.mrf.mxu0
    %v9794 = vadd.f32 %v9765, %v9793
    %v9795 = vpop.f32.mrf.mxu0
    %v9796 = vadd.f32 %v9767, %v9795
    %9797 = vmatmul.bf16.gmra.mxu0 %v8257
    %v9798 = vpop.f32.mrf.mxu0
    %v9799 = vadd.f32 %v9770, %v9798
    %v9800 = vpop.f32.mrf.mxu0
    %v9801 = vadd.f32 %v9772, %v9800
    %9802 = vmatmul.bf16.gmra.mxu0 %v8267
    %v9803 = vpop.f32.mrf.mxu0
    %v9804 = vadd.f32 %v9775, %v9803
    %v9805 = vpop.f32.mrf.mxu0
    %v9806 = vadd.f32 %v9777, %v9805
    %9807 = vdwg.mxu0
    %v9968 = vunpack.c.l.b16 %v7828
    %v9969 = vunpack.c.h.b16 %v7828
    %v9970 = vunpack.c.l.b16 %v7829
    %v9971 = vunpack.c.h.b16 %v7829
    %v9972 = vunpack.c.l.b16 %v7830
    %v9973 = vunpack.c.h.b16 %v7830
    %v9974 = vunpack.c.l.b16 %v7831
    %v9975 = vunpack.c.h.b16 %v7831
    %v9976 = vunpack.c.l.b16 %v7832
    %v9977 = vunpack.c.h.b16 %v7832
    %v9978 = vunpack.c.l.b16 %v7833
    %v9979 = vunpack.c.h.b16 %v7833
    %v9980 = vunpack.c.l.b16 %v7834
    %v9981 = vunpack.c.h.b16 %v7834
    %v9982 = vunpack.c.l.b16 %v7835
    %v9983 = vunpack.c.h.b16 %v7835
    %v9984 = vunpack.c.l.b16 %v7836
    %v9985 = vunpack.c.h.b16 %v7836
    %v9986 = vunpack.c.l.b16 %v7837
    %v9987 = vunpack.c.h.b16 %v7837
    %v9988 = vunpack.c.l.b16 %v7838
    %v9989 = vunpack.c.h.b16 %v7838
    %v9990 = vunpack.c.l.b16 %v7839
    %v9991 = vunpack.c.h.b16 %v7839
    %v9992 = vunpack.c.l.b16 %v7840
    %v9993 = vunpack.c.h.b16 %v7840
    %v9994 = vunpack.c.l.b16 %v7841
    %v9995 = vunpack.c.h.b16 %v7841
    %v9996 = vunpack.c.l.b16 %v7842
    %v9997 = vunpack.c.h.b16 %v7842
    %v9998 = vunpack.c.l.b16 %v7843
    %v9999 = vunpack.c.h.b16 %v7843
    %v10000 = vunpack.c.l.b16 %v7844
    %v10001 = vunpack.c.h.b16 %v7844
    %v10002 = vunpack.c.l.b16 %v7845
    %v10003 = vunpack.c.h.b16 %v7845
    %v10004 = vunpack.c.l.b16 %v7846
    %v10005 = vunpack.c.h.b16 %v7846
    %v10006 = vunpack.c.l.b16 %v7847
    %v10007 = vunpack.c.h.b16 %v7847
    %v10008 = vunpack.c.l.b16 %v7848
    %v10009 = vunpack.c.h.b16 %v7848
    %v10010 = vunpack.c.l.b16 %v7849
    %v10011 = vunpack.c.h.b16 %v7849
    %v10012 = vunpack.c.l.b16 %v7850
    %v10013 = vunpack.c.h.b16 %v7850
    %v10014 = vunpack.c.l.b16 %v7851
    %v10015 = vunpack.c.h.b16 %v7851
    %v10016 = vunpack.c.l.b16 %v7852
    %v10017 = vunpack.c.h.b16 %v7852
    %v10018 = vunpack.c.l.b16 %v7853
    %v10019 = vunpack.c.h.b16 %v7853
    %v10020 = vunpack.c.l.b16 %v7854
    %v10021 = vunpack.c.h.b16 %v7854
    %v10022 = vunpack.c.l.b16 %v7855
    %v10023 = vunpack.c.h.b16 %v7855
    %v10024 = vunpack.c.l.b16 %v7856
    %v10025 = vunpack.c.h.b16 %v7856
    %v10026 = vunpack.c.l.b16 %v7857
    %v10027 = vunpack.c.h.b16 %v7857
    %v10028 = vunpack.c.l.b16 %v7858
    %v10029 = vunpack.c.h.b16 %v7858
    %v10030 = vunpack.c.l.b16 %v7859
    %v10031 = vunpack.c.h.b16 %v7859
    %v10032 = vunpack.c.l.b16 %v7860
    %v10033 = vunpack.c.h.b16 %v7860
    %v10034 = vunpack.c.l.b16 %v7861
    %v10035 = vunpack.c.h.b16 %v7861
    %v10036 = vunpack.c.l.b16 %v7862
    %v10037 = vunpack.c.h.b16 %v7862
    %v10038 = vunpack.c.l.b16 %v7863
    %v10039 = vunpack.c.h.b16 %v7863
    %v10040 = vunpack.c.l.b16 %v7864
    %v10041 = vunpack.c.h.b16 %v7864
    %v10042 = vunpack.c.l.b16 %v7865
    %v10043 = vunpack.c.h.b16 %v7865
    %v10044 = vunpack.c.l.b16 %v7866
    %v10045 = vunpack.c.h.b16 %v7866
    %v10046 = vunpack.c.l.b16 %v7867
    %v10047 = vunpack.c.h.b16 %v7867
    %v10048 = vunpack.c.l.b16 %v7868
    %v10049 = vunpack.c.h.b16 %v7868
    %v10050 = vunpack.c.l.b16 %v7869
    %v10051 = vunpack.c.h.b16 %v7869
    %v10052 = vunpack.c.l.b16 %v7870
    %v10053 = vunpack.c.h.b16 %v7870
    %v10054 = vunpack.c.l.b16 %v7871
    %v10055 = vunpack.c.h.b16 %v7871
    %v10056 = vunpack.c.l.b16 %v7872
    %v10057 = vunpack.c.h.b16 %v7872
    %v10058 = vunpack.c.l.b16 %v7873
    %v10059 = vunpack.c.h.b16 %v7873
    %v10060 = vunpack.c.l.b16 %v7874
    %v10061 = vunpack.c.h.b16 %v7874
    %v10062 = vunpack.c.l.b16 %v7875
    %v10063 = vunpack.c.h.b16 %v7875
    %v10064 = vunpack.c.l.b16 %v7876
    %v10065 = vunpack.c.h.b16 %v7876
    %v10066 = vunpack.c.l.b16 %v7877
    %v10067 = vunpack.c.h.b16 %v7877
    %v10068 = vunpack.c.l.b16 %v7878
    %v10069 = vunpack.c.h.b16 %v7878
    %v10070 = vunpack.c.l.b16 %v7879
    %v10071 = vunpack.c.h.b16 %v7879
    %v10072 = vunpack.c.l.b16 %v7880
    %v10073 = vunpack.c.h.b16 %v7880
    %v10074 = vunpack.c.l.b16 %v7881
    %v10075 = vunpack.c.h.b16 %v7881
    %v10076 = vunpack.c.l.b16 %v7882
    %v10077 = vunpack.c.h.b16 %v7882
    %v10078 = vunpack.c.l.b16 %v7883
    %v10079 = vunpack.c.h.b16 %v7883
    %v10080 = vunpack.c.l.b16 %v7884
    %v10081 = vunpack.c.h.b16 %v7884
    %v10082 = vunpack.c.l.b16 %v7885
    %v10083 = vunpack.c.h.b16 %v7885
    %v10084 = vunpack.c.l.b16 %v7886
    %v10085 = vunpack.c.h.b16 %v7886
    %v10086 = vunpack.c.l.b16 %v7887
    %v10087 = vunpack.c.h.b16 %v7887
    %v10088 = vunpack.c.l.b16 %v7888
    %v10089 = vunpack.c.h.b16 %v7888
    %v10090 = vunpack.c.l.b16 %v7889
    %v10091 = vunpack.c.h.b16 %v7889
    %v10092 = vunpack.c.l.b16 %v7890
    %v10093 = vunpack.c.h.b16 %v7890
    %v10094 = vunpack.c.l.b16 %v7891
    %v10095 = vunpack.c.h.b16 %v7891
    %v10096 = vunpack.c.l.b16 %v7892
    %v10097 = vunpack.c.h.b16 %v7892
    %v10098 = vunpack.c.l.b16 %v7893
    %v10099 = vunpack.c.h.b16 %v7893
    %v10100 = vunpack.c.l.b16 %v7894
    %v10101 = vunpack.c.h.b16 %v7894
    %v10102 = vunpack.c.l.b16 %v7895
    %v10103 = vunpack.c.h.b16 %v7895
    %v10104 = vunpack.c.l.b16 %v7896
    %v10105 = vunpack.c.h.b16 %v7896
    %v10106 = vunpack.c.l.b16 %v7897
    %v10107 = vunpack.c.h.b16 %v7897
    %v10108 = vunpack.c.l.b16 %v7898
    %v10109 = vunpack.c.h.b16 %v7898
    %v10110 = vunpack.c.l.b16 %v7899
    %v10111 = vunpack.c.h.b16 %v7899
    %v10112 = vunpack.c.l.b16 %v7900
    %v10113 = vunpack.c.h.b16 %v7900
    %v10114 = vunpack.c.l.b16 %v7901
    %v10115 = vunpack.c.h.b16 %v7901
    %v10116 = vunpack.c.l.b16 %v7902
    %v10117 = vunpack.c.h.b16 %v7902
    %v10118 = vunpack.c.l.b16 %v7903
    %v10119 = vunpack.c.h.b16 %v7903
    %v10120 = vunpack.c.l.b16 %v7904
    %v10121 = vunpack.c.h.b16 %v7904
    %v10122 = vunpack.c.l.b16 %v7905
    %v10123 = vunpack.c.h.b16 %v7905
    %v10124 = vunpack.c.l.b16 %v7906
    %v10125 = vunpack.c.h.b16 %v7906
    %v10126 = vunpack.c.l.b16 %v7907
    %v10127 = vunpack.c.h.b16 %v7907
    %v10128 = vunpack.c.l.b16 %v7908
    %v10129 = vunpack.c.h.b16 %v7908
    %v10130 = vunpack.c.l.b16 %v7909
    %v10131 = vunpack.c.h.b16 %v7909
    %v10132 = vunpack.c.l.b16 %v7910
    %v10133 = vunpack.c.h.b16 %v7910
    %v10134 = vunpack.c.l.b16 %v7911
    %v10135 = vunpack.c.h.b16 %v7911
    %v10136 = vunpack.c.l.b16 %v7912
    %v10137 = vunpack.c.h.b16 %v7912
    %v10138 = vunpack.c.l.b16 %v7913
    %v10139 = vunpack.c.h.b16 %v7913
    %v10140 = vunpack.c.l.b16 %v7914
    %v10141 = vunpack.c.h.b16 %v7914
    %v10142 = vunpack.c.l.b16 %v7915
    %v10143 = vunpack.c.h.b16 %v7915
    %v10144 = vunpack.c.l.b16 %v7916
    %v10145 = vunpack.c.h.b16 %v7916
    %v10146 = vunpack.c.l.b16 %v7917
    %v10147 = vunpack.c.h.b16 %v7917
    %v10148 = vunpack.c.l.b16 %v7918
    %v10149 = vunpack.c.h.b16 %v7918
    %v10150 = vunpack.c.l.b16 %v7919
    %v10151 = vunpack.c.h.b16 %v7919
    %v10152 = vunpack.c.l.b16 %v7920
    %v10153 = vunpack.c.h.b16 %v7920
    %v10154 = vunpack.c.l.b16 %v7921
    %v10155 = vunpack.c.h.b16 %v7921
    %v10156 = vunpack.c.l.b16 %v7922
    %v10157 = vunpack.c.h.b16 %v7922
    %v10158 = vunpack.c.l.b16 %v7923
    %v10159 = vunpack.c.h.b16 %v7923
    %v10160 = vunpack.c.l.b16 %v7924
    %v10161 = vunpack.c.h.b16 %v7924
    %v10162 = vunpack.c.l.b16 %v7925
    %v10163 = vunpack.c.h.b16 %v7925
    %v10164 = vunpack.c.l.b16 %v7926
    %v10165 = vunpack.c.h.b16 %v7926
    %v10166 = vunpack.c.l.b16 %v7927
    %v10167 = vunpack.c.h.b16 %v7927
    %v10168 = vunpack.c.l.b16 %v7928
    %v10169 = vunpack.c.h.b16 %v7928
    %v10170 = vunpack.c.l.b16 %v7929
    %v10171 = vunpack.c.h.b16 %v7929
    %v10172 = vunpack.c.l.b16 %v7930
    %v10173 = vunpack.c.h.b16 %v7930
    %v10174 = vunpack.c.l.b16 %v7931
    %v10175 = vunpack.c.h.b16 %v7931
    %v10176 = vunpack.c.l.b16 %v7932
    %v10177 = vunpack.c.h.b16 %v7932
    %v10178 = vunpack.c.l.b16 %v7933
    %v10179 = vunpack.c.h.b16 %v7933
    %v10180 = vunpack.c.l.b16 %v7934
    %v10181 = vunpack.c.h.b16 %v7934
    %v10182 = vunpack.c.l.b16 %v7935
    %v10183 = vunpack.c.h.b16 %v7935
    %v10184 = vunpack.c.l.b16 %v7936
    %v10185 = vunpack.c.h.b16 %v7936
    %v10186 = vunpack.c.l.b16 %v7937
    %v10187 = vunpack.c.h.b16 %v7937
    %v10188 = vunpack.c.l.b16 %v7938
    %v10189 = vunpack.c.h.b16 %v7938
    %v10190 = vunpack.c.l.b16 %v7939
    %v10191 = vunpack.c.h.b16 %v7939
    %v10192 = vunpack.c.l.b16 %v7940
    %v10193 = vunpack.c.h.b16 %v7940
    %v10194 = vunpack.c.l.b16 %v7941
    %v10195 = vunpack.c.h.b16 %v7941
    %v10196 = vunpack.c.l.b16 %v7942
    %v10197 = vunpack.c.h.b16 %v7942
    %v10198 = vunpack.c.l.b16 %v7943
    %v10199 = vunpack.c.h.b16 %v7943
    %v10200 = vunpack.c.l.b16 %v7944
    %v10201 = vunpack.c.h.b16 %v7944
    %v10202 = vunpack.c.l.b16 %v7945
    %v10203 = vunpack.c.h.b16 %v7945
    %v10204 = vunpack.c.l.b16 %v7946
    %v10205 = vunpack.c.h.b16 %v7946
    %v10206 = vunpack.c.l.b16 %v7947
    %v10207 = vunpack.c.h.b16 %v7947
    %v10208 = vunpack.c.l.b16 %v7948
    %v10209 = vunpack.c.h.b16 %v7948
    %v10210 = vunpack.c.l.b16 %v7949
    %v10211 = vunpack.c.h.b16 %v7949
    %v10212 = vunpack.c.l.b16 %v7950
    %v10213 = vunpack.c.h.b16 %v7950
    %v10214 = vunpack.c.l.b16 %v7951
    %v10215 = vunpack.c.h.b16 %v7951
    %v10216 = vunpack.c.l.b16 %v7952
    %v10217 = vunpack.c.h.b16 %v7952
    %v10218 = vunpack.c.l.b16 %v7953
    %v10219 = vunpack.c.h.b16 %v7953
    %v10220 = vunpack.c.l.b16 %v7954
    %v10221 = vunpack.c.h.b16 %v7954
    %v10222 = vunpack.c.l.b16 %v7955
    %v10223 = vunpack.c.h.b16 %v7955
    %v10224 = vunpack.c.l.b16 %v7956
    %v10225 = vunpack.c.h.b16 %v7956
    %v10226 = vunpack.c.l.b16 %v7957
    %v10227 = vunpack.c.h.b16 %v7957
    %v10228 = vunpack.c.l.b16 %v7958
    %v10229 = vunpack.c.h.b16 %v7958
    %v10230 = vunpack.c.l.b16 %v7959
    %v10231 = vunpack.c.h.b16 %v7959
    %v10232 = vunpack.c.l.b16 %v7960
    %v10233 = vunpack.c.h.b16 %v7960
    %v10234 = vunpack.c.l.b16 %v7961
    %v10235 = vunpack.c.h.b16 %v7961
    %v10236 = vunpack.c.l.b16 %v7962
    %v10237 = vunpack.c.h.b16 %v7962
    %v10238 = vunpack.c.l.b16 %v7963
    %v10239 = vunpack.c.h.b16 %v7963
    %v10240 = vunpack.c.l.b16 %v7964
    %v10241 = vunpack.c.h.b16 %v7964
    %v10242 = vunpack.c.l.b16 %v7965
    %v10243 = vunpack.c.h.b16 %v7965
    %v10244 = vunpack.c.l.b16 %v7966
    %v10245 = vunpack.c.h.b16 %v7966
    %v10246 = vunpack.c.l.b16 %v7967
    %v10247 = vunpack.c.h.b16 %v7967
    %v10248 = vunpack.c.l.b16 %v7968
    %v10249 = vunpack.c.h.b16 %v7968
    %v10250 = vunpack.c.l.b16 %v7969
    %v10251 = vunpack.c.h.b16 %v7969
    %v10252 = vunpack.c.l.b16 %v7970
    %v10253 = vunpack.c.h.b16 %v7970
    %v10254 = vunpack.c.l.b16 %v7971
    %v10255 = vunpack.c.h.b16 %v7971
    %v10256 = vunpack.c.l.b16 %v7972
    %v10257 = vunpack.c.h.b16 %v7972
    %v10258 = vunpack.c.l.b16 %v7973
    %v10259 = vunpack.c.h.b16 %v7973
    %v10260 = vunpack.c.l.b16 %v7974
    %v10261 = vunpack.c.h.b16 %v7974
    %v10262 = vunpack.c.l.b16 %v7975
    %v10263 = vunpack.c.h.b16 %v7975
    %v10264 = vunpack.c.l.b16 %v7976
    %v10265 = vunpack.c.h.b16 %v7976
    %v10266 = vunpack.c.l.b16 %v7977
    %v10267 = vunpack.c.h.b16 %v7977
    %v10268 = vunpack.c.l.b16 %v7978
    %v10269 = vunpack.c.h.b16 %v7978
    %v10270 = vunpack.c.l.b16 %v7979
    %v10271 = vunpack.c.h.b16 %v7979
    %v10272 = vunpack.c.l.b16 %v7980
    %v10273 = vunpack.c.h.b16 %v7980
    %v10274 = vunpack.c.l.b16 %v7981
    %v10275 = vunpack.c.h.b16 %v7981
    %v10276 = vunpack.c.l.b16 %v7982
    %v10277 = vunpack.c.h.b16 %v7982
    %v10278 = vunpack.c.l.b16 %v7983
    %v10279 = vunpack.c.h.b16 %v7983
    %v10280 = vunpack.c.l.b16 %v7984
    %v10281 = vunpack.c.h.b16 %v7984
    %v10282 = vunpack.c.l.b16 %v7985
    %v10283 = vunpack.c.h.b16 %v7985
    %v10284 = vunpack.c.l.b16 %v7986
    %v10285 = vunpack.c.h.b16 %v7986
    %v10286 = vunpack.c.l.b16 %v7987
    %v10287 = vunpack.c.h.b16 %v7987
    %v10288 = vpack.c.b16 %v9970, %v9968
    %v10289 = vpack.c.b16 %v9971, %v9969
    %v10290 = vpack.c.b16 %v9974, %v9972
    %v10291 = vpack.c.b16 %v9975, %v9973
    %v10292 = vpack.c.b16 %v9978, %v9976
    %v10293 = vpack.c.b16 %v9979, %v9977
    %v10294 = vpack.c.b16 %v9982, %v9980
    %v10295 = vpack.c.b16 %v9983, %v9981
    %v10296 = vpack.c.b16 %v9986, %v9984
    %v10297 = vpack.c.b16 %v9987, %v9985
    %v10298 = vpack.c.b16 %v9990, %v9988
    %v10299 = vpack.c.b16 %v9991, %v9989
    %v10300 = vpack.c.b16 %v9994, %v9992
    %v10301 = vpack.c.b16 %v9995, %v9993
    %v10302 = vpack.c.b16 %v9998, %v9996
    %v10303 = vpack.c.b16 %v9999, %v9997
    %v10304 = vpack.c.b16 %v10002, %v10000
    %v10305 = vpack.c.b16 %v10003, %v10001
    %v10306 = vpack.c.b16 %v10006, %v10004
    %v10307 = vpack.c.b16 %v10007, %v10005
    %v10308 = vpack.c.b16 %v10010, %v10008
    %v10309 = vpack.c.b16 %v10011, %v10009
    %v10310 = vpack.c.b16 %v10014, %v10012
    %v10311 = vpack.c.b16 %v10015, %v10013
    %v10312 = vpack.c.b16 %v10018, %v10016
    %v10313 = vpack.c.b16 %v10019, %v10017
    %v10314 = vpack.c.b16 %v10022, %v10020
    %v10315 = vpack.c.b16 %v10023, %v10021
    %v10316 = vpack.c.b16 %v10026, %v10024
    %v10317 = vpack.c.b16 %v10027, %v10025
    %v10318 = vpack.c.b16 %v10030, %v10028
    %v10319 = vpack.c.b16 %v10031, %v10029
    %v10320 = vpack.c.b16 %v10034, %v10032
    %v10321 = vpack.c.b16 %v10035, %v10033
    %v10322 = vpack.c.b16 %v10038, %v10036
    %v10323 = vpack.c.b16 %v10039, %v10037
    %v10324 = vpack.c.b16 %v10042, %v10040
    %v10325 = vpack.c.b16 %v10043, %v10041
    %v10326 = vpack.c.b16 %v10046, %v10044
    %v10327 = vpack.c.b16 %v10047, %v10045
    %v10328 = vpack.c.b16 %v10050, %v10048
    %v10329 = vpack.c.b16 %v10051, %v10049
    %v10330 = vpack.c.b16 %v10054, %v10052
    %v10331 = vpack.c.b16 %v10055, %v10053
    %v10332 = vpack.c.b16 %v10058, %v10056
    %v10333 = vpack.c.b16 %v10059, %v10057
    %v10334 = vpack.c.b16 %v10062, %v10060
    %v10335 = vpack.c.b16 %v10063, %v10061
    %v10336 = vpack.c.b16 %v10066, %v10064
    %v10337 = vpack.c.b16 %v10067, %v10065
    %v10338 = vpack.c.b16 %v10070, %v10068
    %v10339 = vpack.c.b16 %v10071, %v10069
    %v10340 = vpack.c.b16 %v10074, %v10072
    %v10341 = vpack.c.b16 %v10075, %v10073
    %v10342 = vpack.c.b16 %v10078, %v10076
    %v10343 = vpack.c.b16 %v10079, %v10077
    %v10344 = vpack.c.b16 %v10082, %v10080
    %v10345 = vpack.c.b16 %v10083, %v10081
    %v10346 = vpack.c.b16 %v10086, %v10084
    %v10347 = vpack.c.b16 %v10087, %v10085
    %v10348 = vpack.c.b16 %v10090, %v10088
    %v10349 = vpack.c.b16 %v10091, %v10089
    %v10350 = vpack.c.b16 %v10094, %v10092
    %v10351 = vpack.c.b16 %v10095, %v10093
    %v10352 = vpack.c.b16 %v10098, %v10096
    %v10353 = vpack.c.b16 %v10099, %v10097
    %v10354 = vpack.c.b16 %v10102, %v10100
    %v10355 = vpack.c.b16 %v10103, %v10101
    %v10356 = vpack.c.b16 %v10106, %v10104
    %v10357 = vpack.c.b16 %v10107, %v10105
    %v10358 = vpack.c.b16 %v10110, %v10108
    %v10359 = vpack.c.b16 %v10111, %v10109
    %v10360 = vpack.c.b16 %v10114, %v10112
    %v10361 = vpack.c.b16 %v10115, %v10113
    %v10362 = vpack.c.b16 %v10118, %v10116
    %v10363 = vpack.c.b16 %v10119, %v10117
    %v10364 = vpack.c.b16 %v10122, %v10120
    %v10365 = vpack.c.b16 %v10123, %v10121
    %v10366 = vpack.c.b16 %v10126, %v10124
    %v10367 = vpack.c.b16 %v10127, %v10125
    %v10368 = vpack.c.b16 %v10130, %v10128
    %v10369 = vpack.c.b16 %v10131, %v10129
    %v10370 = vpack.c.b16 %v10134, %v10132
    %v10371 = vpack.c.b16 %v10135, %v10133
    %v10372 = vpack.c.b16 %v10138, %v10136
    %v10373 = vpack.c.b16 %v10139, %v10137
    %v10374 = vpack.c.b16 %v10142, %v10140
    %v10375 = vpack.c.b16 %v10143, %v10141
    %v10376 = vpack.c.b16 %v10146, %v10144
    %v10377 = vpack.c.b16 %v10147, %v10145
    %v10378 = vpack.c.b16 %v10150, %v10148
    %v10379 = vpack.c.b16 %v10151, %v10149
    %v10380 = vpack.c.b16 %v10154, %v10152
    %v10381 = vpack.c.b16 %v10155, %v10153
    %v10382 = vpack.c.b16 %v10158, %v10156
    %v10383 = vpack.c.b16 %v10159, %v10157
    %v10384 = vpack.c.b16 %v10162, %v10160
    %v10385 = vpack.c.b16 %v10163, %v10161
    %v10386 = vpack.c.b16 %v10166, %v10164
    %v10387 = vpack.c.b16 %v10167, %v10165
    %v10388 = vpack.c.b16 %v10170, %v10168
    %v10389 = vpack.c.b16 %v10171, %v10169
    %v10390 = vpack.c.b16 %v10174, %v10172
    %v10391 = vpack.c.b16 %v10175, %v10173
    %v10392 = vpack.c.b16 %v10178, %v10176
    %v10393 = vpack.c.b16 %v10179, %v10177
    %v10394 = vpack.c.b16 %v10182, %v10180
    %v10395 = vpack.c.b16 %v10183, %v10181
    %v10396 = vpack.c.b16 %v10186, %v10184
    %v10397 = vpack.c.b16 %v10187, %v10185
    %v10398 = vpack.c.b16 %v10190, %v10188
    %v10399 = vpack.c.b16 %v10191, %v10189
    %v10400 = vpack.c.b16 %v10194, %v10192
    %v10401 = vpack.c.b16 %v10195, %v10193
    %v10402 = vpack.c.b16 %v10198, %v10196
    %v10403 = vpack.c.b16 %v10199, %v10197
    %v10404 = vpack.c.b16 %v10202, %v10200
    %v10405 = vpack.c.b16 %v10203, %v10201
    %v10406 = vpack.c.b16 %v10206, %v10204
    %v10407 = vpack.c.b16 %v10207, %v10205
    %v10408 = vpack.c.b16 %v10210, %v10208
    %v10409 = vpack.c.b16 %v10211, %v10209
    %v10410 = vpack.c.b16 %v10214, %v10212
    %v10411 = vpack.c.b16 %v10215, %v10213
    %v10412 = vpack.c.b16 %v10218, %v10216
    %v10413 = vpack.c.b16 %v10219, %v10217
    %v10414 = vpack.c.b16 %v10222, %v10220
    %v10415 = vpack.c.b16 %v10223, %v10221
    %v10416 = vpack.c.b16 %v10226, %v10224
    %v10417 = vpack.c.b16 %v10227, %v10225
    %v10418 = vpack.c.b16 %v10230, %v10228
    %v10419 = vpack.c.b16 %v10231, %v10229
    %v10420 = vpack.c.b16 %v10234, %v10232
    %v10421 = vpack.c.b16 %v10235, %v10233
    %v10422 = vpack.c.b16 %v10238, %v10236
    %v10423 = vpack.c.b16 %v10239, %v10237
    %v10424 = vpack.c.b16 %v10242, %v10240
    %v10425 = vpack.c.b16 %v10243, %v10241
    %v10426 = vpack.c.b16 %v10246, %v10244
    %v10427 = vpack.c.b16 %v10247, %v10245
    %v10428 = vpack.c.b16 %v10250, %v10248
    %v10429 = vpack.c.b16 %v10251, %v10249
    %v10430 = vpack.c.b16 %v10254, %v10252
    %v10431 = vpack.c.b16 %v10255, %v10253
    %v10432 = vpack.c.b16 %v10258, %v10256
    %v10433 = vpack.c.b16 %v10259, %v10257
    %v10434 = vpack.c.b16 %v10262, %v10260
    %v10435 = vpack.c.b16 %v10263, %v10261
    %v10436 = vpack.c.b16 %v10266, %v10264
    %v10437 = vpack.c.b16 %v10267, %v10265
    %v10438 = vpack.c.b16 %v10270, %v10268
    %v10439 = vpack.c.b16 %v10271, %v10269
    %v10440 = vpack.c.b16 %v10274, %v10272
    %v10441 = vpack.c.b16 %v10275, %v10273
    %v10442 = vpack.c.b16 %v10278, %v10276
    %v10443 = vpack.c.b16 %v10279, %v10277
    %v10444 = vpack.c.b16 %v10282, %v10280
    %v10445 = vpack.c.b16 %v10283, %v10281
    %v10446 = vpack.c.b16 %v10286, %v10284
    %v10447 = vpack.c.b16 %v10287, %v10285
    %10608 = vmatpush.bf16.msra.mxu0 %v10302
    %10609 = vmatpush.bf16.msra.mxu0 %v10300
    %10610 = vmatpush.bf16.msra.mxu0 %v10298
    %10611 = vmatpush.bf16.msra.mxu0 %v10296
    %10612 = vmatpush.bf16.msra.mxu0 %v10294
    %10613 = vmatpush.bf16.msra.mxu0 %v10292
    %10614 = vmatpush.bf16.msra.mxu0 %v10290
    %10615 = vmatpush.bf16.msra.mxu0 %v10288
    %10616 = vmatmul.bf16.gmra.mxu0 %v7788
    %v10617 = vpop.f32.mrf.mxu0
    %v10618 = vadd.f32 %v9499, %v10617
    %v10619 = vpop.f32.mrf.mxu0
    %v10620 = vadd.f32 %v9501, %v10619
    %10621 = vmatmul.bf16.gmra.mxu0 %v7798
    %v10622 = vpop.f32.mrf.mxu0
    %v10623 = vadd.f32 %v9504, %v10622
    %v10624 = vpop.f32.mrf.mxu0
    %v10625 = vadd.f32 %v9506, %v10624
    %10626 = vmatmul.bf16.gmra.mxu0 %v7808
    %v10627 = vpop.f32.mrf.mxu0
    %v10628 = vadd.f32 %v9509, %v10627
    %v10629 = vpop.f32.mrf.mxu0
    %v10630 = vadd.f32 %v9511, %v10629
    %10631 = vmatmul.bf16.gmra.mxu0 %v7818
    %v10632 = vpop.f32.mrf.mxu0
    %v10633 = vadd.f32 %v9514, %v10632
    %v10634 = vpop.f32.mrf.mxu0
    %v10635 = vadd.f32 %v9516, %v10634
    %10636 = vdwg.mxu0
    %10637 = vmatpush.bf16.msra.mxu0 %v10318
    %10638 = vmatpush.bf16.msra.mxu0 %v10316
    %10639 = vmatpush.bf16.msra.mxu0 %v10314
    %10640 = vmatpush.bf16.msra.mxu0 %v10312
    %10641 = vmatpush.bf16.msra.mxu0 %v10310
    %10642 = vmatpush.bf16.msra.mxu0 %v10308
    %10643 = vmatpush.bf16.msra.mxu0 %v10306
    %10644 = vmatpush.bf16.msra.mxu0 %v10304
    %10645 = vmatmul.bf16.gmra.mxu0 %v7789
    %v10646 = vpop.f32.mrf.mxu0
    %v10647 = vadd.f32 %v10618, %v10646
    %v10648 = vpop.f32.mrf.mxu0
    %v10649 = vadd.f32 %v10620, %v10648
    %10650 = vmatmul.bf16.gmra.mxu0 %v7799
    %v10651 = vpop.f32.mrf.mxu0
    %v10652 = vadd.f32 %v10623, %v10651
    %v10653 = vpop.f32.mrf.mxu0
    %v10654 = vadd.f32 %v10625, %v10653
    %10655 = vmatmul.bf16.gmra.mxu0 %v7809
    %v10656 = vpop.f32.mrf.mxu0
    %v10657 = vadd.f32 %v10628, %v10656
    %v10658 = vpop.f32.mrf.mxu0
    %v10659 = vadd.f32 %v10630, %v10658
    %10660 = vmatmul.bf16.gmra.mxu0 %v7819
    %v10661 = vpop.f32.mrf.mxu0
    %v10662 = vadd.f32 %v10633, %v10661
    %v10663 = vpop.f32.mrf.mxu0
    %v10664 = vadd.f32 %v10635, %v10663
    %10665 = vdwg.mxu0
    %10666 = vmatpush.bf16.msra.mxu0 %v10334
    %10667 = vmatpush.bf16.msra.mxu0 %v10332
    %10668 = vmatpush.bf16.msra.mxu0 %v10330
    %10669 = vmatpush.bf16.msra.mxu0 %v10328
    %10670 = vmatpush.bf16.msra.mxu0 %v10326
    %10671 = vmatpush.bf16.msra.mxu0 %v10324
    %10672 = vmatpush.bf16.msra.mxu0 %v10322
    %10673 = vmatpush.bf16.msra.mxu0 %v10320
    %10674 = vmatmul.bf16.gmra.mxu0 %v7790
    %v10675 = vpop.f32.mrf.mxu0
    %v10676 = vadd.f32 %v10647, %v10675
    %v10677 = vpop.f32.mrf.mxu0
    %v10678 = vadd.f32 %v10649, %v10677
    %10679 = vmatmul.bf16.gmra.mxu0 %v7800
    %v10680 = vpop.f32.mrf.mxu0
    %v10681 = vadd.f32 %v10652, %v10680
    %v10682 = vpop.f32.mrf.mxu0
    %v10683 = vadd.f32 %v10654, %v10682
    %10684 = vmatmul.bf16.gmra.mxu0 %v7810
    %v10685 = vpop.f32.mrf.mxu0
    %v10686 = vadd.f32 %v10657, %v10685
    %v10687 = vpop.f32.mrf.mxu0
    %v10688 = vadd.f32 %v10659, %v10687
    %10689 = vmatmul.bf16.gmra.mxu0 %v7820
    %v10690 = vpop.f32.mrf.mxu0
    %v10691 = vadd.f32 %v10662, %v10690
    %v10692 = vpop.f32.mrf.mxu0
    %v10693 = vadd.f32 %v10664, %v10692
    %10694 = vdwg.mxu0
    %10695 = vmatpush.bf16.msra.mxu0 %v10350
    %10696 = vmatpush.bf16.msra.mxu0 %v10348
    %10697 = vmatpush.bf16.msra.mxu0 %v10346
    %10698 = vmatpush.bf16.msra.mxu0 %v10344
    %10699 = vmatpush.bf16.msra.mxu0 %v10342
    %10700 = vmatpush.bf16.msra.mxu0 %v10340
    %10701 = vmatpush.bf16.msra.mxu0 %v10338
    %10702 = vmatpush.bf16.msra.mxu0 %v10336
    %10703 = vmatmul.bf16.gmra.mxu0 %v7791
    %v10704 = vpop.f32.mrf.mxu0
    %v10705 = vadd.f32 %v10676, %v10704
    %v10706 = vpop.f32.mrf.mxu0
    %v10707 = vadd.f32 %v10678, %v10706
    %10708 = vmatmul.bf16.gmra.mxu0 %v7801
    %v10709 = vpop.f32.mrf.mxu0
    %v10710 = vadd.f32 %v10681, %v10709
    %v10711 = vpop.f32.mrf.mxu0
    %v10712 = vadd.f32 %v10683, %v10711
    %10713 = vmatmul.bf16.gmra.mxu0 %v7811
    %v10714 = vpop.f32.mrf.mxu0
    %v10715 = vadd.f32 %v10686, %v10714
    %v10716 = vpop.f32.mrf.mxu0
    %v10717 = vadd.f32 %v10688, %v10716
    %10718 = vmatmul.bf16.gmra.mxu0 %v7821
    %v10719 = vpop.f32.mrf.mxu0
    %v10720 = vadd.f32 %v10691, %v10719
    %v10721 = vpop.f32.mrf.mxu0
    %v10722 = vadd.f32 %v10693, %v10721
    %10723 = vdwg.mxu0
    %10724 = vmatpush.bf16.msra.mxu0 %v10366
    %10725 = vmatpush.bf16.msra.mxu0 %v10364
    %10726 = vmatpush.bf16.msra.mxu0 %v10362
    %10727 = vmatpush.bf16.msra.mxu0 %v10360
    %10728 = vmatpush.bf16.msra.mxu0 %v10358
    %10729 = vmatpush.bf16.msra.mxu0 %v10356
    %10730 = vmatpush.bf16.msra.mxu0 %v10354
    %10731 = vmatpush.bf16.msra.mxu0 %v10352
    %10732 = vmatmul.bf16.gmra.mxu0 %v7792
    %v10733 = vpop.f32.mrf.mxu0
    %v10734 = vadd.f32 %v10705, %v10733
    %v10735 = vpop.f32.mrf.mxu0
    %v10736 = vadd.f32 %v10707, %v10735
    %10737 = vmatmul.bf16.gmra.mxu0 %v7802
    %v10738 = vpop.f32.mrf.mxu0
    %v10739 = vadd.f32 %v10710, %v10738
    %v10740 = vpop.f32.mrf.mxu0
    %v10741 = vadd.f32 %v10712, %v10740
    %10742 = vmatmul.bf16.gmra.mxu0 %v7812
    %v10743 = vpop.f32.mrf.mxu0
    %v10744 = vadd.f32 %v10715, %v10743
    %v10745 = vpop.f32.mrf.mxu0
    %v10746 = vadd.f32 %v10717, %v10745
    %10747 = vmatmul.bf16.gmra.mxu0 %v7822
    %v10748 = vpop.f32.mrf.mxu0
    %v10749 = vadd.f32 %v10720, %v10748
    %v10750 = vpop.f32.mrf.mxu0
    %v10751 = vadd.f32 %v10722, %v10750
    %10752 = vdwg.mxu0
    %10753 = vmatpush.bf16.msra.mxu0 %v10382
    %10754 = vmatpush.bf16.msra.mxu0 %v10380
    %10755 = vmatpush.bf16.msra.mxu0 %v10378
    %10756 = vmatpush.bf16.msra.mxu0 %v10376
    %10757 = vmatpush.bf16.msra.mxu0 %v10374
    %10758 = vmatpush.bf16.msra.mxu0 %v10372
    %10759 = vmatpush.bf16.msra.mxu0 %v10370
    %10760 = vmatpush.bf16.msra.mxu0 %v10368
    %10761 = vmatmul.bf16.gmra.mxu0 %v7793
    %v10762 = vpop.f32.mrf.mxu0
    %v10763 = vadd.f32 %v10734, %v10762
    %v10764 = vpop.f32.mrf.mxu0
    %v10765 = vadd.f32 %v10736, %v10764
    %10766 = vmatmul.bf16.gmra.mxu0 %v7803
    %v10767 = vpop.f32.mrf.mxu0
    %v10768 = vadd.f32 %v10739, %v10767
    %v10769 = vpop.f32.mrf.mxu0
    %v10770 = vadd.f32 %v10741, %v10769
    %10771 = vmatmul.bf16.gmra.mxu0 %v7813
    %v10772 = vpop.f32.mrf.mxu0
    %v10773 = vadd.f32 %v10744, %v10772
    %v10774 = vpop.f32.mrf.mxu0
    %v10775 = vadd.f32 %v10746, %v10774
    %10776 = vmatmul.bf16.gmra.mxu0 %v7823
    %v10777 = vpop.f32.mrf.mxu0
    %v10778 = vadd.f32 %v10749, %v10777
    %v10779 = vpop.f32.mrf.mxu0
    %v10780 = vadd.f32 %v10751, %v10779
    %10781 = vdwg.mxu0
    %10782 = vmatpush.bf16.msra.mxu0 %v10398
    %10783 = vmatpush.bf16.msra.mxu0 %v10396
    %10784 = vmatpush.bf16.msra.mxu0 %v10394
    %10785 = vmatpush.bf16.msra.mxu0 %v10392
    %10786 = vmatpush.bf16.msra.mxu0 %v10390
    %10787 = vmatpush.bf16.msra.mxu0 %v10388
    %10788 = vmatpush.bf16.msra.mxu0 %v10386
    %10789 = vmatpush.bf16.msra.mxu0 %v10384
    %10790 = vmatmul.bf16.gmra.mxu0 %v7794
    %v10791 = vpop.f32.mrf.mxu0
    %v10792 = vadd.f32 %v10763, %v10791
    %v10793 = vpop.f32.mrf.mxu0
    %v10794 = vadd.f32 %v10765, %v10793
    %10795 = vmatmul.bf16.gmra.mxu0 %v7804
    %v10796 = vpop.f32.mrf.mxu0
    %v10797 = vadd.f32 %v10768, %v10796
    %v10798 = vpop.f32.mrf.mxu0
    %v10799 = vadd.f32 %v10770, %v10798
    %10800 = vmatmul.bf16.gmra.mxu0 %v7814
    %v10801 = vpop.f32.mrf.mxu0
    %v10802 = vadd.f32 %v10773, %v10801
    %v10803 = vpop.f32.mrf.mxu0
    %v10804 = vadd.f32 %v10775, %v10803
    %10805 = vmatmul.bf16.gmra.mxu0 %v7824
    %v10806 = vpop.f32.mrf.mxu0
    %v10807 = vadd.f32 %v10778, %v10806
    %v10808 = vpop.f32.mrf.mxu0
    %v10809 = vadd.f32 %v10780, %v10808
    %10810 = vdwg.mxu0
    %10811 = vmatpush.bf16.msra.mxu0 %v10414
    %10812 = vmatpush.bf16.msra.mxu0 %v10412
    %10813 = vmatpush.bf16.msra.mxu0 %v10410
    %10814 = vmatpush.bf16.msra.mxu0 %v10408
    %10815 = vmatpush.bf16.msra.mxu0 %v10406
    %10816 = vmatpush.bf16.msra.mxu0 %v10404
    %10817 = vmatpush.bf16.msra.mxu0 %v10402
    %10818 = vmatpush.bf16.msra.mxu0 %v10400
    %10819 = vmatmul.bf16.gmra.mxu0 %v7795
    %v10820 = vpop.f32.mrf.mxu0
    %v10821 = vadd.f32 %v10792, %v10820
    %v10822 = vpop.f32.mrf.mxu0
    %v10823 = vadd.f32 %v10794, %v10822
    %10824 = vmatmul.bf16.gmra.mxu0 %v7805
    %v10825 = vpop.f32.mrf.mxu0
    %v10826 = vadd.f32 %v10797, %v10825
    %v10827 = vpop.f32.mrf.mxu0
    %v10828 = vadd.f32 %v10799, %v10827
    %10829 = vmatmul.bf16.gmra.mxu0 %v7815
    %v10830 = vpop.f32.mrf.mxu0
    %v10831 = vadd.f32 %v10802, %v10830
    %v10832 = vpop.f32.mrf.mxu0
    %v10833 = vadd.f32 %v10804, %v10832
    %10834 = vmatmul.bf16.gmra.mxu0 %v7825
    %v10835 = vpop.f32.mrf.mxu0
    %v10836 = vadd.f32 %v10807, %v10835
    %v10837 = vpop.f32.mrf.mxu0
    %v10838 = vadd.f32 %v10809, %v10837
    %10839 = vdwg.mxu0
    %10840 = vmatpush.bf16.msra.mxu0 %v10430
    %10841 = vmatpush.bf16.msra.mxu0 %v10428
    %10842 = vmatpush.bf16.msra.mxu0 %v10426
    %10843 = vmatpush.bf16.msra.mxu0 %v10424
    %10844 = vmatpush.bf16.msra.mxu0 %v10422
    %10845 = vmatpush.bf16.msra.mxu0 %v10420
    %10846 = vmatpush.bf16.msra.mxu0 %v10418
    %10847 = vmatpush.bf16.msra.mxu0 %v10416
    %10848 = vmatmul.bf16.gmra.mxu0 %v7796
    %v10849 = vpop.f32.mrf.mxu0
    %v10850 = vadd.f32 %v10821, %v10849
    %v10851 = vpop.f32.mrf.mxu0
    %v10852 = vadd.f32 %v10823, %v10851
    %10853 = vmatmul.bf16.gmra.mxu0 %v7806
    %v10854 = vpop.f32.mrf.mxu0
    %v10855 = vadd.f32 %v10826, %v10854
    %v10856 = vpop.f32.mrf.mxu0
    %v10857 = vadd.f32 %v10828, %v10856
    %10858 = vmatmul.bf16.gmra.mxu0 %v7816
    %v10859 = vpop.f32.mrf.mxu0
    %v10860 = vadd.f32 %v10831, %v10859
    %v10861 = vpop.f32.mrf.mxu0
    %v10862 = vadd.f32 %v10833, %v10861
    %10863 = vmatmul.bf16.gmra.mxu0 %v7826
    %v10864 = vpop.f32.mrf.mxu0
    %v10865 = vadd.f32 %v10836, %v10864
    %v10866 = vpop.f32.mrf.mxu0
    %v10867 = vadd.f32 %v10838, %v10866
    %10868 = vdwg.mxu0
    %10869 = vmatpush.bf16.msra.mxu0 %v10446
    %10870 = vmatpush.bf16.msra.mxu0 %v10444
    %10871 = vmatpush.bf16.msra.mxu0 %v10442
    %10872 = vmatpush.bf16.msra.mxu0 %v10440
    %10873 = vmatpush.bf16.msra.mxu0 %v10438
    %10874 = vmatpush.bf16.msra.mxu0 %v10436
    %10875 = vmatpush.bf16.msra.mxu0 %v10434
    %10876 = vmatpush.bf16.msra.mxu0 %v10432
    %10877 = vmatmul.bf16.gmra.mxu0 %v7797
    %v10878 = vpop.f32.mrf.mxu0
    %v10879 = vadd.f32 %v10850, %v10878
    %v10880 = vpop.f32.mrf.mxu0
    %v10881 = vadd.f32 %v10852, %v10880
    %10882 = vmatmul.bf16.gmra.mxu0 %v7807
    %v10883 = vpop.f32.mrf.mxu0
    %v10884 = vadd.f32 %v10855, %v10883
    %v10885 = vpop.f32.mrf.mxu0
    %v10886 = vadd.f32 %v10857, %v10885
    %10887 = vmatmul.bf16.gmra.mxu0 %v7817
    %v10888 = vpop.f32.mrf.mxu0
    %v10889 = vadd.f32 %v10860, %v10888
    %v10890 = vpop.f32.mrf.mxu0
    %v10891 = vadd.f32 %v10862, %v10890
    %10892 = vmatmul.bf16.gmra.mxu0 %v7827
    %v10893 = vpop.f32.mrf.mxu0
    %v10894 = vadd.f32 %v10865, %v10893
    %v10895 = vpop.f32.mrf.mxu0
    %v10896 = vadd.f32 %v10867, %v10895
    %10897 = vdwg.mxu0
    %10898 = vmatpush.bf16.msra.mxu0 %v10303
    %10899 = vmatpush.bf16.msra.mxu0 %v10301
    %10900 = vmatpush.bf16.msra.mxu0 %v10299
    %10901 = vmatpush.bf16.msra.mxu0 %v10297
    %10902 = vmatpush.bf16.msra.mxu0 %v10295
    %10903 = vmatpush.bf16.msra.mxu0 %v10293
    %10904 = vmatpush.bf16.msra.mxu0 %v10291
    %10905 = vmatpush.bf16.msra.mxu0 %v10289
    %10906 = vmatmul.bf16.gmra.mxu0 %v7788
    %v10907 = vpop.f32.mrf.mxu0
    %v10908 = vadd.f32 %v9789, %v10907
    %v10909 = vpop.f32.mrf.mxu0
    %v10910 = vadd.f32 %v9791, %v10909
    %10911 = vmatmul.bf16.gmra.mxu0 %v7798
    %v10912 = vpop.f32.mrf.mxu0
    %v10913 = vadd.f32 %v9794, %v10912
    %v10914 = vpop.f32.mrf.mxu0
    %v10915 = vadd.f32 %v9796, %v10914
    %10916 = vmatmul.bf16.gmra.mxu0 %v7808
    %v10917 = vpop.f32.mrf.mxu0
    %v10918 = vadd.f32 %v9799, %v10917
    %v10919 = vpop.f32.mrf.mxu0
    %v10920 = vadd.f32 %v9801, %v10919
    %10921 = vmatmul.bf16.gmra.mxu0 %v7818
    %v10922 = vpop.f32.mrf.mxu0
    %v10923 = vadd.f32 %v9804, %v10922
    %v10924 = vpop.f32.mrf.mxu0
    %v10925 = vadd.f32 %v9806, %v10924
    %10926 = vdwg.mxu0
    %10927 = vmatpush.bf16.msra.mxu0 %v10319
    %10928 = vmatpush.bf16.msra.mxu0 %v10317
    %10929 = vmatpush.bf16.msra.mxu0 %v10315
    %10930 = vmatpush.bf16.msra.mxu0 %v10313
    %10931 = vmatpush.bf16.msra.mxu0 %v10311
    %10932 = vmatpush.bf16.msra.mxu0 %v10309
    %10933 = vmatpush.bf16.msra.mxu0 %v10307
    %10934 = vmatpush.bf16.msra.mxu0 %v10305
    %10935 = vmatmul.bf16.gmra.mxu0 %v7789
    %v10936 = vpop.f32.mrf.mxu0
    %v10937 = vadd.f32 %v10908, %v10936
    %v10938 = vpop.f32.mrf.mxu0
    %v10939 = vadd.f32 %v10910, %v10938
    %10940 = vmatmul.bf16.gmra.mxu0 %v7799
    %v10941 = vpop.f32.mrf.mxu0
    %v10942 = vadd.f32 %v10913, %v10941
    %v10943 = vpop.f32.mrf.mxu0
    %v10944 = vadd.f32 %v10915, %v10943
    %10945 = vmatmul.bf16.gmra.mxu0 %v7809
    %v10946 = vpop.f32.mrf.mxu0
    %v10947 = vadd.f32 %v10918, %v10946
    %v10948 = vpop.f32.mrf.mxu0
    %v10949 = vadd.f32 %v10920, %v10948
    %10950 = vmatmul.bf16.gmra.mxu0 %v7819
    %v10951 = vpop.f32.mrf.mxu0
    %v10952 = vadd.f32 %v10923, %v10951
    %v10953 = vpop.f32.mrf.mxu0
    %v10954 = vadd.f32 %v10925, %v10953
    %10955 = vdwg.mxu0
    %10956 = vmatpush.bf16.msra.mxu0 %v10335
    %10957 = vmatpush.bf16.msra.mxu0 %v10333
    %10958 = vmatpush.bf16.msra.mxu0 %v10331
    %10959 = vmatpush.bf16.msra.mxu0 %v10329
    %10960 = vmatpush.bf16.msra.mxu0 %v10327
    %10961 = vmatpush.bf16.msra.mxu0 %v10325
    %10962 = vmatpush.bf16.msra.mxu0 %v10323
    %10963 = vmatpush.bf16.msra.mxu0 %v10321
    %10964 = vmatmul.bf16.gmra.mxu0 %v7790
    %v10965 = vpop.f32.mrf.mxu0
    %v10966 = vadd.f32 %v10937, %v10965
    %v10967 = vpop.f32.mrf.mxu0
    %v10968 = vadd.f32 %v10939, %v10967
    %10969 = vmatmul.bf16.gmra.mxu0 %v7800
    %v10970 = vpop.f32.mrf.mxu0
    %v10971 = vadd.f32 %v10942, %v10970
    %v10972 = vpop.f32.mrf.mxu0
    %v10973 = vadd.f32 %v10944, %v10972
    %10974 = vmatmul.bf16.gmra.mxu0 %v7810
    %v10975 = vpop.f32.mrf.mxu0
    %v10976 = vadd.f32 %v10947, %v10975
    %v10977 = vpop.f32.mrf.mxu0
    %v10978 = vadd.f32 %v10949, %v10977
    %10979 = vmatmul.bf16.gmra.mxu0 %v7820
    %v10980 = vpop.f32.mrf.mxu0
    %v10981 = vadd.f32 %v10952, %v10980
    %v10982 = vpop.f32.mrf.mxu0
    %v10983 = vadd.f32 %v10954, %v10982
    %10984 = vdwg.mxu0
    %10985 = vmatpush.bf16.msra.mxu0 %v10351
    %10986 = vmatpush.bf16.msra.mxu0 %v10349
    %10987 = vmatpush.bf16.msra.mxu0 %v10347
    %10988 = vmatpush.bf16.msra.mxu0 %v10345
    %10989 = vmatpush.bf16.msra.mxu0 %v10343
    %10990 = vmatpush.bf16.msra.mxu0 %v10341
    %10991 = vmatpush.bf16.msra.mxu0 %v10339
    %10992 = vmatpush.bf16.msra.mxu0 %v10337
    %10993 = vmatmul.bf16.gmra.mxu0 %v7791
    %v10994 = vpop.f32.mrf.mxu0
    %v10995 = vadd.f32 %v10966, %v10994
    %v10996 = vpop.f32.mrf.mxu0
    %v10997 = vadd.f32 %v10968, %v10996
    %10998 = vmatmul.bf16.gmra.mxu0 %v7801
    %v10999 = vpop.f32.mrf.mxu0
    %v11000 = vadd.f32 %v10971, %v10999
    %v11001 = vpop.f32.mrf.mxu0
    %v11002 = vadd.f32 %v10973, %v11001
    %11003 = vmatmul.bf16.gmra.mxu0 %v7811
    %v11004 = vpop.f32.mrf.mxu0
    %v11005 = vadd.f32 %v10976, %v11004
    %v11006 = vpop.f32.mrf.mxu0
    %v11007 = vadd.f32 %v10978, %v11006
    %11008 = vmatmul.bf16.gmra.mxu0 %v7821
    %v11009 = vpop.f32.mrf.mxu0
    %v11010 = vadd.f32 %v10981, %v11009
    %v11011 = vpop.f32.mrf.mxu0
    %v11012 = vadd.f32 %v10983, %v11011
    %11013 = vdwg.mxu0
    %11014 = vmatpush.bf16.msra.mxu0 %v10367
    %11015 = vmatpush.bf16.msra.mxu0 %v10365
    %11016 = vmatpush.bf16.msra.mxu0 %v10363
    %11017 = vmatpush.bf16.msra.mxu0 %v10361
    %11018 = vmatpush.bf16.msra.mxu0 %v10359
    %11019 = vmatpush.bf16.msra.mxu0 %v10357
    %11020 = vmatpush.bf16.msra.mxu0 %v10355
    %11021 = vmatpush.bf16.msra.mxu0 %v10353
    %11022 = vmatmul.bf16.gmra.mxu0 %v7792
    %v11023 = vpop.f32.mrf.mxu0
    %v11024 = vadd.f32 %v10995, %v11023
    %v11025 = vpop.f32.mrf.mxu0
    %v11026 = vadd.f32 %v10997, %v11025
    %11027 = vmatmul.bf16.gmra.mxu0 %v7802
    %v11028 = vpop.f32.mrf.mxu0
    %v11029 = vadd.f32 %v11000, %v11028
    %v11030 = vpop.f32.mrf.mxu0
    %v11031 = vadd.f32 %v11002, %v11030
    %11032 = vmatmul.bf16.gmra.mxu0 %v7812
    %v11033 = vpop.f32.mrf.mxu0
    %v11034 = vadd.f32 %v11005, %v11033
    %v11035 = vpop.f32.mrf.mxu0
    %v11036 = vadd.f32 %v11007, %v11035
    %11037 = vmatmul.bf16.gmra.mxu0 %v7822
    %v11038 = vpop.f32.mrf.mxu0
    %v11039 = vadd.f32 %v11010, %v11038
    %v11040 = vpop.f32.mrf.mxu0
    %v11041 = vadd.f32 %v11012, %v11040
    %11042 = vdwg.mxu0
    %11043 = vmatpush.bf16.msra.mxu0 %v10383
    %11044 = vmatpush.bf16.msra.mxu0 %v10381
    %11045 = vmatpush.bf16.msra.mxu0 %v10379
    %11046 = vmatpush.bf16.msra.mxu0 %v10377
    %11047 = vmatpush.bf16.msra.mxu0 %v10375
    %11048 = vmatpush.bf16.msra.mxu0 %v10373
    %11049 = vmatpush.bf16.msra.mxu0 %v10371
    %11050 = vmatpush.bf16.msra.mxu0 %v10369
    %11051 = vmatmul.bf16.gmra.mxu0 %v7793
    %v11052 = vpop.f32.mrf.mxu0
    %v11053 = vadd.f32 %v11024, %v11052
    %v11054 = vpop.f32.mrf.mxu0
    %v11055 = vadd.f32 %v11026, %v11054
    %11056 = vmatmul.bf16.gmra.mxu0 %v7803
    %v11057 = vpop.f32.mrf.mxu0
    %v11058 = vadd.f32 %v11029, %v11057
    %v11059 = vpop.f32.mrf.mxu0
    %v11060 = vadd.f32 %v11031, %v11059
    %11061 = vmatmul.bf16.gmra.mxu0 %v7813
    %v11062 = vpop.f32.mrf.mxu0
    %v11063 = vadd.f32 %v11034, %v11062
    %v11064 = vpop.f32.mrf.mxu0
    %v11065 = vadd.f32 %v11036, %v11064
    %11066 = vmatmul.bf16.gmra.mxu0 %v7823
    %v11067 = vpop.f32.mrf.mxu0
    %v11068 = vadd.f32 %v11039, %v11067
    %v11069 = vpop.f32.mrf.mxu0
    %v11070 = vadd.f32 %v11041, %v11069
    %11071 = vdwg.mxu0
    %11072 = vmatpush.bf16.msra.mxu0 %v10399
    %11073 = vmatpush.bf16.msra.mxu0 %v10397
    %11074 = vmatpush.bf16.msra.mxu0 %v10395
    %11075 = vmatpush.bf16.msra.mxu0 %v10393
    %11076 = vmatpush.bf16.msra.mxu0 %v10391
    %11077 = vmatpush.bf16.msra.mxu0 %v10389
    %11078 = vmatpush.bf16.msra.mxu0 %v10387
    %11079 = vmatpush.bf16.msra.mxu0 %v10385
    %11080 = vmatmul.bf16.gmra.mxu0 %v7794
    %v11081 = vpop.f32.mrf.mxu0
    %v11082 = vadd.f32 %v11053, %v11081
    %v11083 = vpop.f32.mrf.mxu0
    %v11084 = vadd.f32 %v11055, %v11083
    %11085 = vmatmul.bf16.gmra.mxu0 %v7804
    %v11086 = vpop.f32.mrf.mxu0
    %v11087 = vadd.f32 %v11058, %v11086
    %v11088 = vpop.f32.mrf.mxu0
    %v11089 = vadd.f32 %v11060, %v11088
    %11090 = vmatmul.bf16.gmra.mxu0 %v7814
    %v11091 = vpop.f32.mrf.mxu0
    %v11092 = vadd.f32 %v11063, %v11091
    %v11093 = vpop.f32.mrf.mxu0
    %v11094 = vadd.f32 %v11065, %v11093
    %11095 = vmatmul.bf16.gmra.mxu0 %v7824
    %v11096 = vpop.f32.mrf.mxu0
    %v11097 = vadd.f32 %v11068, %v11096
    %v11098 = vpop.f32.mrf.mxu0
    %v11099 = vadd.f32 %v11070, %v11098
    %11100 = vdwg.mxu0
    %11101 = vmatpush.bf16.msra.mxu0 %v10415
    %11102 = vmatpush.bf16.msra.mxu0 %v10413
    %11103 = vmatpush.bf16.msra.mxu0 %v10411
    %11104 = vmatpush.bf16.msra.mxu0 %v10409
    %11105 = vmatpush.bf16.msra.mxu0 %v10407
    %11106 = vmatpush.bf16.msra.mxu0 %v10405
    %11107 = vmatpush.bf16.msra.mxu0 %v10403
    %11108 = vmatpush.bf16.msra.mxu0 %v10401
    %11109 = vmatmul.bf16.gmra.mxu0 %v7795
    %v11110 = vpop.f32.mrf.mxu0
    %v11111 = vadd.f32 %v11082, %v11110
    %v11112 = vpop.f32.mrf.mxu0
    %v11113 = vadd.f32 %v11084, %v11112
    %11114 = vmatmul.bf16.gmra.mxu0 %v7805
    %v11115 = vpop.f32.mrf.mxu0
    %v11116 = vadd.f32 %v11087, %v11115
    %v11117 = vpop.f32.mrf.mxu0
    %v11118 = vadd.f32 %v11089, %v11117
    %11119 = vmatmul.bf16.gmra.mxu0 %v7815
    %v11120 = vpop.f32.mrf.mxu0
    %v11121 = vadd.f32 %v11092, %v11120
    %v11122 = vpop.f32.mrf.mxu0
    %v11123 = vadd.f32 %v11094, %v11122
    %11124 = vmatmul.bf16.gmra.mxu0 %v7825
    %v11125 = vpop.f32.mrf.mxu0
    %v11126 = vadd.f32 %v11097, %v11125
    %v11127 = vpop.f32.mrf.mxu0
    %v11128 = vadd.f32 %v11099, %v11127
    %11129 = vdwg.mxu0
    %11130 = vmatpush.bf16.msra.mxu0 %v10431
    %11131 = vmatpush.bf16.msra.mxu0 %v10429
    %11132 = vmatpush.bf16.msra.mxu0 %v10427
    %11133 = vmatpush.bf16.msra.mxu0 %v10425
    %11134 = vmatpush.bf16.msra.mxu0 %v10423
    %11135 = vmatpush.bf16.msra.mxu0 %v10421
    %11136 = vmatpush.bf16.msra.mxu0 %v10419
    %11137 = vmatpush.bf16.msra.mxu0 %v10417
    %11138 = vmatmul.bf16.gmra.mxu0 %v7796
    %v11139 = vpop.f32.mrf.mxu0
    %v11140 = vadd.f32 %v11111, %v11139
    %v11141 = vpop.f32.mrf.mxu0
    %v11142 = vadd.f32 %v11113, %v11141
    %11143 = vmatmul.bf16.gmra.mxu0 %v7806
    %v11144 = vpop.f32.mrf.mxu0
    %v11145 = vadd.f32 %v11116, %v11144
    %v11146 = vpop.f32.mrf.mxu0
    %v11147 = vadd.f32 %v11118, %v11146
    %11148 = vmatmul.bf16.gmra.mxu0 %v7816
    %v11149 = vpop.f32.mrf.mxu0
    %v11150 = vadd.f32 %v11121, %v11149
    %v11151 = vpop.f32.mrf.mxu0
    %v11152 = vadd.f32 %v11123, %v11151
    %11153 = vmatmul.bf16.gmra.mxu0 %v7826
    %v11154 = vpop.f32.mrf.mxu0
    %v11155 = vadd.f32 %v11126, %v11154
    %v11156 = vpop.f32.mrf.mxu0
    %v11157 = vadd.f32 %v11128, %v11156
    %11158 = vdwg.mxu0
    %11159 = vmatpush.bf16.msra.mxu0 %v10447
    %11160 = vmatpush.bf16.msra.mxu0 %v10445
    %11161 = vmatpush.bf16.msra.mxu0 %v10443
    %11162 = vmatpush.bf16.msra.mxu0 %v10441
    %11163 = vmatpush.bf16.msra.mxu0 %v10439
    %11164 = vmatpush.bf16.msra.mxu0 %v10437
    %11165 = vmatpush.bf16.msra.mxu0 %v10435
    %11166 = vmatpush.bf16.msra.mxu0 %v10433
    %11167 = vmatmul.bf16.gmra.mxu0 %v7797
    %v11168 = vpop.f32.mrf.mxu0
    %v11169 = vadd.f32 %v11140, %v11168
    %v11170 = vpop.f32.mrf.mxu0
    %v11171 = vadd.f32 %v11142, %v11170
    %11172 = vmatmul.bf16.gmra.mxu0 %v7807
    %v11173 = vpop.f32.mrf.mxu0
    %v11174 = vadd.f32 %v11145, %v11173
    %v11175 = vpop.f32.mrf.mxu0
    %v11176 = vadd.f32 %v11147, %v11175
    %11177 = vmatmul.bf16.gmra.mxu0 %v7817
    %v11178 = vpop.f32.mrf.mxu0
    %v11179 = vadd.f32 %v11150, %v11178
    %v11180 = vpop.f32.mrf.mxu0
    %v11181 = vadd.f32 %v11152, %v11180
    %11182 = vmatmul.bf16.gmra.mxu0 %v7827
    %v11183 = vpop.f32.mrf.mxu0
    %v11184 = vadd.f32 %v11155, %v11183
    %v11185 = vpop.f32.mrf.mxu0
    %v11186 = vadd.f32 %v11157, %v11185
    %11187 = vdwg.mxu0
    %v11188 = vrot.slane %v1391, 1
    %v11189 = vrot.slane %v1392, 1
    %v11190 = vrot.slane %v2759, 1
    %v11191 = vrot.slane %v2760, 1
    %v11192 = vrot.slane %v4062, 1
    %v11193 = vrot.slane %v4063, 1
    %v11194 = vrot.slane %v5339, 1
    %v11195 = vrot.slane %v5340, 1
    %v11196 = vrot.slane %v7772, 1
    %v11197 = vrot.slane %v7773, 1
    %v11198 = vrot.slane %v1393, 1
    %v11199 = vrot.slane %v1394, 1
    %v11200 = vrot.slane %v2761, 1
    %v11201 = vrot.slane %v2762, 1
    %v11202 = vrot.slane %v4064, 1
    %v11203 = vrot.slane %v4065, 1
    %v11204 = vrot.slane %v5341, 1
    %v11205 = vrot.slane %v5342, 1
    %v11206 = vrot.slane %v7774, 1
    %v11207 = vrot.slane %v7775, 1
    %v11208 = vrot.slane %v1395, 1
    %v11209 = vrot.slane %v1396, 1
    %v11210 = vrot.slane %v2763, 1
    %v11211 = vrot.slane %v2764, 1
    %v11212 = vrot.slane %v4066, 1
    %v11213 = vrot.slane %v4067, 1
    %v11214 = vrot.slane %v5343, 1
    %v11215 = vrot.slane %v5344, 1
    %v11216 = vrot.slane %v7776, 1
    %v11217 = vrot.slane %v7777, 1
    %v11218 = vrot.slane %v1397, 1
    %v11219 = vrot.slane %v1398, 1
    %v11220 = vrot.slane %v2765, 1
    %v11221 = vrot.slane %v2766, 1
    %v11222 = vrot.slane %v4068, 1
    %v11223 = vrot.slane %v4069, 1
    %v11224 = vrot.slane %v5345, 1
    %v11225 = vrot.slane %v5346, 1
    %v11226 = vrot.slane %v7778, 1
    %v11227 = vrot.slane %v7779, 1
    %v11228 = vrot.slane %v1399, 1
    %v11229 = vrot.slane %v1400, 1
    %v11230 = vrot.slane %v2767, 1
    %v11231 = vrot.slane %v2768, 1
    %v11232 = vrot.slane %v4070, 1
    %v11233 = vrot.slane %v4071, 1
    %v11234 = vrot.slane %v5347, 1
    %v11235 = vrot.slane %v5348, 1
    %v11236 = vrot.slane %v7780, 1
    %v11237 = vrot.slane %v7781, 1
    %v11238 = vrot.slane %v1401, 1
    %v11239 = vrot.slane %v1402, 1
    %v11240 = vrot.slane %v2769, 1
    %v11241 = vrot.slane %v2770, 1
    %v11242 = vrot.slane %v4072, 1
    %v11243 = vrot.slane %v4073, 1
    %v11244 = vrot.slane %v5349, 1
    %v11245 = vrot.slane %v5350, 1
    %v11246 = vrot.slane %v7782, 1
    %v11247 = vrot.slane %v7783, 1
    %v11248 = vrot.slane %v1403, 1
    %v11249 = vrot.slane %v1404, 1
    %v11250 = vrot.slane %v2771, 1
    %v11251 = vrot.slane %v2772, 1
    %v11252 = vrot.slane %v4074, 1
    %v11253 = vrot.slane %v4075, 1
    %v11254 = vrot.slane %v5351, 1
    %v11255 = vrot.slane %v5352, 1
    %v11256 = vrot.slane %v7784, 1
    %v11257 = vrot.slane %v7785, 1
    %v11258 = vrot.slane %v1405, 1
    %v11259 = vrot.slane %v1406, 1
    %v11260 = vrot.slane %v2773, 1
    %v11261 = vrot.slane %v2774, 1
    %v11262 = vrot.slane %v4076, 1
    %v11263 = vrot.slane %v4077, 1
    %v11264 = vrot.slane %v5353, 1
    %v11265 = vrot.slane %v5354, 1
    %v11266 = vrot.slane %v7786, 1
    %v11267 = vrot.slane %v7787, 1
    %v11268 = vsel %vm966, %v11248, %v11258
    %v11269 = vsel %vm966, %v11249, %v11259
    %v11270 = vsel %vm966, %v11250, %v11260
    %v11271 = vsel %vm966, %v11251, %v11261
    %v11272 = vsel %vm966, %v11252, %v11262
    %v11273 = vsel %vm966, %v11253, %v11263
    %v11274 = vsel %vm966, %v11254, %v11264
    %v11275 = vsel %vm966, %v11255, %v11265
    %v11276 = vsel %vm966, %v11256, %v11266
    %v11277 = vsel %vm966, %v11257, %v11267
    %v11278 = vsel %vm966, %v11238, %v11248
    %v11279 = vsel %vm966, %v11239, %v11249
    %v11280 = vsel %vm966, %v11240, %v11250
    %v11281 = vsel %vm966, %v11241, %v11251
    %v11282 = vsel %vm966, %v11242, %v11252
    %v11283 = vsel %vm966, %v11243, %v11253
    %v11284 = vsel %vm966, %v11244, %v11254
    %v11285 = vsel %vm966, %v11245, %v11255
    %v11286 = vsel %vm966, %v11246, %v11256
    %v11287 = vsel %vm966, %v11247, %v11257
    %v11288 = vsel %vm966, %v11228, %v11238
    %v11289 = vsel %vm966, %v11229, %v11239
    %v11290 = vsel %vm966, %v11230, %v11240
    %v11291 = vsel %vm966, %v11231, %v11241
    %v11292 = vsel %vm966, %v11232, %v11242
    %v11293 = vsel %vm966, %v11233, %v11243
    %v11294 = vsel %vm966, %v11234, %v11244
    %v11295 = vsel %vm966, %v11235, %v11245
    %v11296 = vsel %vm966, %v11236, %v11246
    %v11297 = vsel %vm966, %v11237, %v11247
    %v11298 = vsel %vm966, %v11218, %v11228
    %v11299 = vsel %vm966, %v11219, %v11229
    %v11300 = vsel %vm966, %v11220, %v11230
    %v11301 = vsel %vm966, %v11221, %v11231
    %v11302 = vsel %vm966, %v11222, %v11232
    %v11303 = vsel %vm966, %v11223, %v11233
    %v11304 = vsel %vm966, %v11224, %v11234
    %v11305 = vsel %vm966, %v11225, %v11235
    %v11306 = vsel %vm966, %v11226, %v11236
    %v11307 = vsel %vm966, %v11227, %v11237
    %v11308 = vsel %vm966, %v11208, %v11218
    %v11309 = vsel %vm966, %v11209, %v11219
    %v11310 = vsel %vm966, %v11210, %v11220
    %v11311 = vsel %vm966, %v11211, %v11221
    %v11312 = vsel %vm966, %v11212, %v11222
    %v11313 = vsel %vm966, %v11213, %v11223
    %v11314 = vsel %vm966, %v11214, %v11224
    %v11315 = vsel %vm966, %v11215, %v11225
    %v11316 = vsel %vm966, %v11216, %v11226
    %v11317 = vsel %vm966, %v11217, %v11227
    %v11318 = vsel %vm966, %v11198, %v11208
    %v11319 = vsel %vm966, %v11199, %v11209
    %v11320 = vsel %vm966, %v11200, %v11210
    %v11321 = vsel %vm966, %v11201, %v11211
    %v11322 = vsel %vm966, %v11202, %v11212
    %v11323 = vsel %vm966, %v11203, %v11213
    %v11324 = vsel %vm966, %v11204, %v11214
    %v11325 = vsel %vm966, %v11205, %v11215
    %v11326 = vsel %vm966, %v11206, %v11216
    %v11327 = vsel %vm966, %v11207, %v11217
    %v11328 = vsel %vm966, %v11188, %v11198
    %v11329 = vsel %vm966, %v11189, %v11199
    %v11330 = vsel %vm966, %v11190, %v11200
    %v11331 = vsel %vm966, %v11191, %v11201
    %v11332 = vsel %vm966, %v11192, %v11202
    %v11333 = vsel %vm966, %v11193, %v11203
    %v11334 = vsel %vm966, %v11194, %v11204
    %v11335 = vsel %vm966, %v11195, %v11205
    %v11336 = vsel %vm966, %v11196, %v11206
    %v11337 = vsel %vm966, %v11197, %v11207
    %v11338 = vsel %vm966, %v11258, %v11188
    %v11339 = vsel %vm966, %v11259, %v11189
    %v11340 = vsel %vm966, %v11260, %v11190
    %v11341 = vsel %vm966, %v11261, %v11191
    %v11342 = vsel %vm966, %v11262, %v11192
    %v11343 = vsel %vm966, %v11263, %v11193
    %v11344 = vsel %vm966, %v11264, %v11194
    %v11345 = vsel %vm966, %v11265, %v11195
    %v11346 = vsel %vm966, %v11266, %v11196
    %v11347 = vsel %vm966, %v11267, %v11197
    %v11348 = vsel %vm991, %v11328, 0.0
    %v11349 = vsel %vm991, %v11329, 0.0
    %v11350 = vsel %vm991, %v11330, 0.0
    %v11351 = vsel %vm991, %v11331, 0.0
    %v11352 = vsel %vm991, %v11332, 0.0
    %v11353 = vsel %vm991, %v11333, 0.0
    %v11354 = vsel %vm991, %v11334, 0.0
    %v11355 = vsel %vm991, %v11335, 0.0
    %v11356 = vsel %vm991, %v11336, 0.0
    %v11357 = vsel %vm991, %v11337, 0.0
    %v11358 = vsel %vm992, %v11318, 0.0
    %v11359 = vsel %vm992, %v11319, 0.0
    %v11360 = vsel %vm992, %v11320, 0.0
    %v11361 = vsel %vm992, %v11321, 0.0
    %v11362 = vsel %vm992, %v11322, 0.0
    %v11363 = vsel %vm992, %v11323, 0.0
    %v11364 = vsel %vm992, %v11324, 0.0
    %v11365 = vsel %vm992, %v11325, 0.0
    %v11366 = vsel %vm992, %v11326, 0.0
    %v11367 = vsel %vm992, %v11327, 0.0
    %v11368 = vsel %vm993, %v11308, 0.0
    %v11369 = vsel %vm993, %v11309, 0.0
    %v11370 = vsel %vm993, %v11310, 0.0
    %v11371 = vsel %vm993, %v11311, 0.0
    %v11372 = vsel %vm993, %v11312, 0.0
    %v11373 = vsel %vm993, %v11313, 0.0
    %v11374 = vsel %vm993, %v11314, 0.0
    %v11375 = vsel %vm993, %v11315, 0.0
    %v11376 = vsel %vm993, %v11316, 0.0
    %v11377 = vsel %vm993, %v11317, 0.0
    %v11378 = vsel %vm994, %v11298, 0.0
    %v11379 = vsel %vm994, %v11299, 0.0
    %v11380 = vsel %vm994, %v11300, 0.0
    %v11381 = vsel %vm994, %v11301, 0.0
    %v11382 = vsel %vm994, %v11302, 0.0
    %v11383 = vsel %vm994, %v11303, 0.0
    %v11384 = vsel %vm994, %v11304, 0.0
    %v11385 = vsel %vm994, %v11305, 0.0
    %v11386 = vsel %vm994, %v11306, 0.0
    %v11387 = vsel %vm994, %v11307, 0.0
    %v11388 = vsel %vm995, %v11288, 0.0
    %v11389 = vsel %vm995, %v11289, 0.0
    %v11390 = vsel %vm995, %v11290, 0.0
    %v11391 = vsel %vm995, %v11291, 0.0
    %v11392 = vsel %vm995, %v11292, 0.0
    %v11393 = vsel %vm995, %v11293, 0.0
    %v11394 = vsel %vm995, %v11294, 0.0
    %v11395 = vsel %vm995, %v11295, 0.0
    %v11396 = vsel %vm995, %v11296, 0.0
    %v11397 = vsel %vm995, %v11297, 0.0
    %v11398 = vsel %vm996, %v11278, 0.0
    %v11399 = vsel %vm996, %v11279, 0.0
    %v11400 = vsel %vm996, %v11280, 0.0
    %v11401 = vsel %vm996, %v11281, 0.0
    %v11402 = vsel %vm996, %v11282, 0.0
    %v11403 = vsel %vm996, %v11283, 0.0
    %v11404 = vsel %vm996, %v11284, 0.0
    %v11405 = vsel %vm996, %v11285, 0.0
    %v11406 = vsel %vm996, %v11286, 0.0
    %v11407 = vsel %vm996, %v11287, 0.0
    %v11408 = vsel %vm997, %v11268, 0.0
    %v11409 = vsel %vm997, %v11269, 0.0
    %v11410 = vsel %vm997, %v11270, 0.0
    %v11411 = vsel %vm997, %v11271, 0.0
    %v11412 = vsel %vm997, %v11272, 0.0
    %v11413 = vsel %vm997, %v11273, 0.0
    %v11414 = vsel %vm997, %v11274, 0.0
    %v11415 = vsel %vm997, %v11275, 0.0
    %v11416 = vsel %vm997, %v11276, 0.0
    %v11417 = vsel %vm997, %v11277, 0.0
    %v11418 = vsel %vm998, %v11338, 0.0
    %v11419 = vsel %vm998, %v11339, 0.0
    %v11420 = vsel %vm998, %v11340, 0.0
    %v11421 = vsel %vm998, %v11341, 0.0
    %v11422 = vsel %vm998, %v11342, 0.0
    %v11423 = vsel %vm998, %v11343, 0.0
    %v11424 = vsel %vm998, %v11344, 0.0
    %v11425 = vsel %vm998, %v11345, 0.0
    %v11426 = vsel %vm998, %v11346, 0.0
    %v11427 = vsel %vm998, %v11347, 0.0
    %v11428 = vpack.c.bf16 %v11358, %v11348
    %v11429 = vpack.c.bf16 %v11359, %v11349
    %v11430 = vpack.c.bf16 %v11360, %v11350
    %v11431 = vpack.c.bf16 %v11361, %v11351
    %v11432 = vpack.c.bf16 %v11362, %v11352
    %v11433 = vpack.c.bf16 %v11363, %v11353
    %v11434 = vpack.c.bf16 %v11364, %v11354
    %v11435 = vpack.c.bf16 %v11365, %v11355
    %v11436 = vpack.c.bf16 %v11366, %v11356
    %v11437 = vpack.c.bf16 %v11367, %v11357
    %v11438 = vpack.c.bf16 %v11378, %v11368
    %v11439 = vpack.c.bf16 %v11379, %v11369
    %v11440 = vpack.c.bf16 %v11380, %v11370
    %v11441 = vpack.c.bf16 %v11381, %v11371
    %v11442 = vpack.c.bf16 %v11382, %v11372
    %v11443 = vpack.c.bf16 %v11383, %v11373
    %v11444 = vpack.c.bf16 %v11384, %v11374
    %v11445 = vpack.c.bf16 %v11385, %v11375
    %v11446 = vpack.c.bf16 %v11386, %v11376
    %v11447 = vpack.c.bf16 %v11387, %v11377
    %v11448 = vpack.c.bf16 %v11398, %v11388
    %v11449 = vpack.c.bf16 %v11399, %v11389
    %v11450 = vpack.c.bf16 %v11400, %v11390
    %v11451 = vpack.c.bf16 %v11401, %v11391
    %v11452 = vpack.c.bf16 %v11402, %v11392
    %v11453 = vpack.c.bf16 %v11403, %v11393
    %v11454 = vpack.c.bf16 %v11404, %v11394
    %v11455 = vpack.c.bf16 %v11405, %v11395
    %v11456 = vpack.c.bf16 %v11406, %v11396
    %v11457 = vpack.c.bf16 %v11407, %v11397
    %v11458 = vpack.c.bf16 %v11418, %v11408
    %v11459 = vpack.c.bf16 %v11419, %v11409
    %v11460 = vpack.c.bf16 %v11420, %v11410
    %v11461 = vpack.c.bf16 %v11421, %v11411
    %v11462 = vpack.c.bf16 %v11422, %v11412
    %v11463 = vpack.c.bf16 %v11423, %v11413
    %v11464 = vpack.c.bf16 %v11424, %v11414
    %v11465 = vpack.c.bf16 %v11425, %v11415
    %v11466 = vpack.c.bf16 %v11426, %v11416
    %v11467 = vpack.c.bf16 %v11427, %v11417
    %v11468 = vld [vmem:[#allocation2 + $0x1d20] sm:$0xff]
    %v11469 = vld [vmem:[#allocation2 + $0x1d28] sm:$0xff]
    %v11470 = vld [vmem:[#allocation2 + $0x1d30] sm:$0xff]
    %v11471 = vld [vmem:[#allocation2 + $0x1d38] sm:$0xff]
    %v11472 = vld [vmem:[#allocation2 + $0x1d40] sm:$0xff]
    %v11473 = vld [vmem:[#allocation2 + $0x1d48] sm:$0xff]
    %v11474 = vld [vmem:[#allocation2 + $0x1d50] sm:$0xff]
    %v11475 = vld [vmem:[#allocation2 + $0x1d58] sm:$0xff]
    %v11476 = vld [vmem:[#allocation2 + $0x1d60] sm:$0xff]
    %v11477 = vld [vmem:[#allocation2 + $0x1d68] sm:$0xff]
    %v11478 = vld [vmem:[#allocation2 + $0x1d70] sm:$0xff]
    %v11479 = vld [vmem:[#allocation2 + $0x1d78] sm:$0xff]
    %v11480 = vld [vmem:[#allocation2 + $0x1d80] sm:$0xff]
    %v11481 = vld [vmem:[#allocation2 + $0x1d88] sm:$0xff]
    %v11482 = vld [vmem:[#allocation2 + $0x1d90] sm:$0xff]
    %v11483 = vld [vmem:[#allocation2 + $0x1d98] sm:$0xff]
    %v11484 = vld [vmem:[#allocation2 + $0x1da0] sm:$0xff]
    %v11485 = vld [vmem:[#allocation2 + $0x1da8] sm:$0xff]
    %v11486 = vld [vmem:[#allocation2 + $0x1db0] sm:$0xff]
    %v11487 = vld [vmem:[#allocation2 + $0x1db8] sm:$0xff]
    %v11488 = vld [vmem:[#allocation2 + $0x1dc0] sm:$0xff]
    %v11489 = vld [vmem:[#allocation2 + $0x1dc8] sm:$0xff]
    %v11490 = vld [vmem:[#allocation2 + $0x1dd0] sm:$0xff]
    %v11491 = vld [vmem:[#allocation2 + $0x1dd8] sm:$0xff]
    %v11492 = vld [vmem:[#allocation2 + $0x1de0] sm:$0xff]
    %v11493 = vld [vmem:[#allocation2 + $0x1de8] sm:$0xff]
    %v11494 = vld [vmem:[#allocation2 + $0x1df0] sm:$0xff]
    %v11495 = vld [vmem:[#allocation2 + $0x1df8] sm:$0xff]
    %v11496 = vld [vmem:[#allocation2 + $0x1e00] sm:$0xff]
    %v11497 = vld [vmem:[#allocation2 + $0x1e08] sm:$0xff]
    %v11498 = vld [vmem:[#allocation2 + $0x1e10] sm:$0xff]
    %v11499 = vld [vmem:[#allocation2 + $0x1e18] sm:$0xff]
    %v11500 = vld [vmem:[#allocation2 + $0x1e20] sm:$0xff]
    %v11501 = vld [vmem:[#allocation2 + $0x1e28] sm:$0xff]
    %v11502 = vld [vmem:[#allocation2 + $0x1e30] sm:$0xff]
    %v11503 = vld [vmem:[#allocation2 + $0x1e38] sm:$0xff]
    %v11504 = vld [vmem:[#allocation2 + $0x1e40] sm:$0xff]
    %v11505 = vld [vmem:[#allocation2 + $0x1e48] sm:$0xff]
    %v11506 = vld [vmem:[#allocation2 + $0x1e50] sm:$0xff]
    %v11507 = vld [vmem:[#allocation2 + $0x1e58] sm:$0xff]
    %v11508 = vld [vmem:[#allocation2 + $0x1e60] sm:$0xff]
    %v11509 = vld [vmem:[#allocation2 + $0x1e68] sm:$0xff]
    %v11510 = vld [vmem:[#allocation2 + $0x1e70] sm:$0xff]
    %v11511 = vld [vmem:[#allocation2 + $0x1e78] sm:$0xff]
    %v11512 = vld [vmem:[#allocation2 + $0x1e80] sm:$0xff]
    %v11513 = vld [vmem:[#allocation2 + $0x1e88] sm:$0xff]
    %v11514 = vld [vmem:[#allocation2 + $0x1e90] sm:$0xff]
    %v11515 = vld [vmem:[#allocation2 + $0x1e98] sm:$0xff]
    %v11516 = vld [vmem:[#allocation2 + $0x1ea0] sm:$0xff]
    %v11517 = vld [vmem:[#allocation2 + $0x1ea8] sm:$0xff]
    %v11518 = vld [vmem:[#allocation2 + $0x1eb0] sm:$0xff]
    %v11519 = vld [vmem:[#allocation2 + $0x1eb8] sm:$0xff]
    %v11520 = vld [vmem:[#allocation2 + $0x1ec0] sm:$0xff]
    %v11521 = vld [vmem:[#allocation2 + $0x1ec8] sm:$0xff]
    %v11522 = vld [vmem:[#allocation2 + $0x1ed0] sm:$0xff]
    %v11523 = vld [vmem:[#allocation2 + $0x1ed8] sm:$0xff]
    %v11524 = vld [vmem:[#allocation2 + $0x1ee0] sm:$0xff]
    %v11525 = vld [vmem:[#allocation2 + $0x1ee8] sm:$0xff]
    %v11526 = vld [vmem:[#allocation2 + $0x1ef0] sm:$0xff]
    %v11527 = vld [vmem:[#allocation2 + $0x1ef8] sm:$0xff]
    %v11528 = vld [vmem:[#allocation2 + $0x1f00] sm:$0xff]
    %v11529 = vld [vmem:[#allocation2 + $0x1f08] sm:$0xff]
    %v11530 = vld [vmem:[#allocation2 + $0x1f10] sm:$0xff]
    %v11531 = vld [vmem:[#allocation2 + $0x1f18] sm:$0xff]
    %v11532 = vld [vmem:[#allocation2 + $0x1f20] sm:$0xff]
    %v11533 = vld [vmem:[#allocation2 + $0x1f28] sm:$0xff]
    %v11534 = vld [vmem:[#allocation2 + $0x1f30] sm:$0xff]
    %v11535 = vld [vmem:[#allocation2 + $0x1f38] sm:$0xff]
    %v11536 = vld [vmem:[#allocation2 + $0x1f40] sm:$0xff]
    %v11537 = vld [vmem:[#allocation2 + $0x1f48] sm:$0xff]
    %v11538 = vld [vmem:[#allocation2 + $0x1f50] sm:$0xff]
    %v11539 = vld [vmem:[#allocation2 + $0x1f58] sm:$0xff]
    %v11540 = vld [vmem:[#allocation2 + $0x1f60] sm:$0xff]
    %v11541 = vld [vmem:[#allocation2 + $0x1f68] sm:$0xff]
    %v11542 = vld [vmem:[#allocation2 + $0x1f70] sm:$0xff]
    %v11543 = vld [vmem:[#allocation2 + $0x1f78] sm:$0xff]
    %v11544 = vld [vmem:[#allocation2 + $0x1f80] sm:$0xff]
    %v11545 = vld [vmem:[#allocation2 + $0x1f88] sm:$0xff]
    %v11546 = vld [vmem:[#allocation2 + $0x1f90] sm:$0xff]
    %v11547 = vld [vmem:[#allocation2 + $0x1f98] sm:$0xff]
    %v11548 = vld [vmem:[#allocation2 + $0x1fa0] sm:$0xff]
    %v11549 = vld [vmem:[#allocation2 + $0x1fa8] sm:$0xff]
    %v11550 = vld [vmem:[#allocation2 + $0x1fb0] sm:$0xff]
    %v11551 = vld [vmem:[#allocation2 + $0x1fb8] sm:$0xff]
    %v11552 = vld [vmem:[#allocation2 + $0x1fc0] sm:$0xff]
    %v11553 = vld [vmem:[#allocation2 + $0x1fc8] sm:$0xff]
    %v11554 = vld [vmem:[#allocation2 + $0x1fd0] sm:$0xff]
    %v11555 = vld [vmem:[#allocation2 + $0x1fd8] sm:$0xff]
    %v11556 = vld [vmem:[#allocation2 + $0x1fe0] sm:$0xff]
    %v11557 = vld [vmem:[#allocation2 + $0x1fe8] sm:$0xff]
    %v11558 = vld [vmem:[#allocation2 + $0x1ff0] sm:$0xff]
    %v11559 = vld [vmem:[#allocation2 + $0x1ff8] sm:$0xff]
    %v11560 = vld [vmem:[#allocation2 + $0x2000] sm:$0xff]
    %v11561 = vld [vmem:[#allocation2 + $0x2008] sm:$0xff]
    %v11562 = vld [vmem:[#allocation2 + $0x2010] sm:$0xff]
    %v11563 = vld [vmem:[#allocation2 + $0x2018] sm:$0xff]
    %v11564 = vld [vmem:[#allocation2 + $0x2020] sm:$0xff]
    %v11565 = vld [vmem:[#allocation2 + $0x2028] sm:$0xff]
    %v11566 = vld [vmem:[#allocation2 + $0x2030] sm:$0xff]
    %v11567 = vld [vmem:[#allocation2 + $0x2038] sm:$0xff]
    %v11568 = vld [vmem:[#allocation2 + $0x2040] sm:$0xff]
    %v11569 = vld [vmem:[#allocation2 + $0x2048] sm:$0xff]
    %v11570 = vld [vmem:[#allocation2 + $0x2050] sm:$0xff]
    %v11571 = vld [vmem:[#allocation2 + $0x2058] sm:$0xff]
    %v11572 = vld [vmem:[#allocation2 + $0x2060] sm:$0xff]
    %v11573 = vld [vmem:[#allocation2 + $0x2068] sm:$0xff]
    %v11574 = vld [vmem:[#allocation2 + $0x2070] sm:$0xff]
    %v11575 = vld [vmem:[#allocation2 + $0x2078] sm:$0xff]
    %v11576 = vld [vmem:[#allocation2 + $0x2080] sm:$0xff]
    %v11577 = vld [vmem:[#allocation2 + $0x2088] sm:$0xff]
    %v11578 = vld [vmem:[#allocation2 + $0x2090] sm:$0xff]
    %v11579 = vld [vmem:[#allocation2 + $0x2098] sm:$0xff]
    %v11580 = vld [vmem:[#allocation2 + $0x20a0] sm:$0xff]
    %v11581 = vld [vmem:[#allocation2 + $0x20a8] sm:$0xff]
    %v11582 = vld [vmem:[#allocation2 + $0x20b0] sm:$0xff]
    %v11583 = vld [vmem:[#allocation2 + $0x20b8] sm:$0xff]
    %v11584 = vld [vmem:[#allocation2 + $0x20c0] sm:$0xff]
    %v11585 = vld [vmem:[#allocation2 + $0x20c8] sm:$0xff]
    %v11586 = vld [vmem:[#allocation2 + $0x20d0] sm:$0xff]
    %v11587 = vld [vmem:[#allocation2 + $0x20d8] sm:$0xff]
    %v11588 = vld [vmem:[#allocation2 + $0x20e0] sm:$0xff]
    %v11589 = vld [vmem:[#allocation2 + $0x20e8] sm:$0xff]
    %v11590 = vld [vmem:[#allocation2 + $0x20f0] sm:$0xff]
    %v11591 = vld [vmem:[#allocation2 + $0x20f8] sm:$0xff]
    %v11592 = vld [vmem:[#allocation2 + $0x2100] sm:$0xff]
    %v11593 = vld [vmem:[#allocation2 + $0x2108] sm:$0xff]
    %v11594 = vld [vmem:[#allocation2 + $0x2110] sm:$0xff]
    %v11595 = vld [vmem:[#allocation2 + $0x2118] sm:$0xff]
    %v11596 = vld [vmem:[#allocation2 + $0x2120] sm:$0xff]
    %v11597 = vld [vmem:[#allocation2 + $0x2128] sm:$0xff]
    %v11598 = vld [vmem:[#allocation2 + $0x2130] sm:$0xff]
    %v11599 = vld [vmem:[#allocation2 + $0x2138] sm:$0xff]
    %v11600 = vld [vmem:[#allocation2 + $0x2140] sm:$0xff]
    %v11601 = vld [vmem:[#allocation2 + $0x2148] sm:$0xff]
    %v11602 = vld [vmem:[#allocation2 + $0x2150] sm:$0xff]
    %v11603 = vld [vmem:[#allocation2 + $0x2158] sm:$0xff]
    %v11604 = vld [vmem:[#allocation2 + $0x2160] sm:$0xff]
    %v11605 = vld [vmem:[#allocation2 + $0x2168] sm:$0xff]
    %v11606 = vld [vmem:[#allocation2 + $0x2170] sm:$0xff]
    %v11607 = vld [vmem:[#allocation2 + $0x2178] sm:$0xff]
    %v11608 = vld [vmem:[#allocation2 + $0x2180] sm:$0xff]
    %v11609 = vld [vmem:[#allocation2 + $0x2188] sm:$0xff]
    %v11610 = vld [vmem:[#allocation2 + $0x2190] sm:$0xff]
    %v11611 = vld [vmem:[#allocation2 + $0x2198] sm:$0xff]
    %v11612 = vld [vmem:[#allocation2 + $0x21a0] sm:$0xff]
    %v11613 = vld [vmem:[#allocation2 + $0x21a8] sm:$0xff]
    %v11614 = vld [vmem:[#allocation2 + $0x21b0] sm:$0xff]
    %v11615 = vld [vmem:[#allocation2 + $0x21b8] sm:$0xff]
    %v11616 = vld [vmem:[#allocation2 + $0x21c0] sm:$0xff]
    %v11617 = vld [vmem:[#allocation2 + $0x21c8] sm:$0xff]
    %v11618 = vld [vmem:[#allocation2 + $0x21d0] sm:$0xff]
    %v11619 = vld [vmem:[#allocation2 + $0x21d8] sm:$0xff]
    %v11620 = vld [vmem:[#allocation2 + $0x21e0] sm:$0xff]
    %v11621 = vld [vmem:[#allocation2 + $0x21e8] sm:$0xff]
    %v11622 = vld [vmem:[#allocation2 + $0x21f0] sm:$0xff]
    %v11623 = vld [vmem:[#allocation2 + $0x21f8] sm:$0xff]
    %v11624 = vld [vmem:[#allocation2 + $0x2200] sm:$0xff]
    %v11625 = vld [vmem:[#allocation2 + $0x2208] sm:$0xff]
    %v11626 = vld [vmem:[#allocation2 + $0x2210] sm:$0xff]
    %v11627 = vld [vmem:[#allocation2 + $0x2218] sm:$0xff]
    %v11788 = vunpack.c.l.b16 %v11468
    %v11789 = vunpack.c.h.b16 %v11468
    %v11790 = vunpack.c.l.b16 %v11469
    %v11791 = vunpack.c.h.b16 %v11469
    %v11792 = vunpack.c.l.b16 %v11470
    %v11793 = vunpack.c.h.b16 %v11470
    %v11794 = vunpack.c.l.b16 %v11471
    %v11795 = vunpack.c.h.b16 %v11471
    %v11796 = vunpack.c.l.b16 %v11472
    %v11797 = vunpack.c.h.b16 %v11472
    %v11798 = vunpack.c.l.b16 %v11473
    %v11799 = vunpack.c.h.b16 %v11473
    %v11800 = vunpack.c.l.b16 %v11474
    %v11801 = vunpack.c.h.b16 %v11474
    %v11802 = vunpack.c.l.b16 %v11475
    %v11803 = vunpack.c.h.b16 %v11475
    %v11804 = vunpack.c.l.b16 %v11476
    %v11805 = vunpack.c.h.b16 %v11476
    %v11806 = vunpack.c.l.b16 %v11477
    %v11807 = vunpack.c.h.b16 %v11477
    %v11808 = vunpack.c.l.b16 %v11478
    %v11809 = vunpack.c.h.b16 %v11478
    %v11810 = vunpack.c.l.b16 %v11479
    %v11811 = vunpack.c.h.b16 %v11479
    %v11812 = vunpack.c.l.b16 %v11480
    %v11813 = vunpack.c.h.b16 %v11480
    %v11814 = vunpack.c.l.b16 %v11481
    %v11815 = vunpack.c.h.b16 %v11481
    %v11816 = vunpack.c.l.b16 %v11482
    %v11817 = vunpack.c.h.b16 %v11482
    %v11818 = vunpack.c.l.b16 %v11483
    %v11819 = vunpack.c.h.b16 %v11483
    %v11820 = vunpack.c.l.b16 %v11484
    %v11821 = vunpack.c.h.b16 %v11484
    %v11822 = vunpack.c.l.b16 %v11485
    %v11823 = vunpack.c.h.b16 %v11485
    %v11824 = vunpack.c.l.b16 %v11486
    %v11825 = vunpack.c.h.b16 %v11486
    %v11826 = vunpack.c.l.b16 %v11487
    %v11827 = vunpack.c.h.b16 %v11487
    %v11828 = vunpack.c.l.b16 %v11488
    %v11829 = vunpack.c.h.b16 %v11488
    %v11830 = vunpack.c.l.b16 %v11489
    %v11831 = vunpack.c.h.b16 %v11489
    %v11832 = vunpack.c.l.b16 %v11490
    %v11833 = vunpack.c.h.b16 %v11490
    %v11834 = vunpack.c.l.b16 %v11491
    %v11835 = vunpack.c.h.b16 %v11491
    %v11836 = vunpack.c.l.b16 %v11492
    %v11837 = vunpack.c.h.b16 %v11492
    %v11838 = vunpack.c.l.b16 %v11493
    %v11839 = vunpack.c.h.b16 %v11493
    %v11840 = vunpack.c.l.b16 %v11494
    %v11841 = vunpack.c.h.b16 %v11494
    %v11842 = vunpack.c.l.b16 %v11495
    %v11843 = vunpack.c.h.b16 %v11495
    %v11844 = vunpack.c.l.b16 %v11496
    %v11845 = vunpack.c.h.b16 %v11496
    %v11846 = vunpack.c.l.b16 %v11497
    %v11847 = vunpack.c.h.b16 %v11497
    %v11848 = vunpack.c.l.b16 %v11498
    %v11849 = vunpack.c.h.b16 %v11498
    %v11850 = vunpack.c.l.b16 %v11499
    %v11851 = vunpack.c.h.b16 %v11499
    %v11852 = vunpack.c.l.b16 %v11500
    %v11853 = vunpack.c.h.b16 %v11500
    %v11854 = vunpack.c.l.b16 %v11501
    %v11855 = vunpack.c.h.b16 %v11501
    %v11856 = vunpack.c.l.b16 %v11502
    %v11857 = vunpack.c.h.b16 %v11502
    %v11858 = vunpack.c.l.b16 %v11503
    %v11859 = vunpack.c.h.b16 %v11503
    %v11860 = vunpack.c.l.b16 %v11504
    %v11861 = vunpack.c.h.b16 %v11504
    %v11862 = vunpack.c.l.b16 %v11505
    %v11863 = vunpack.c.h.b16 %v11505
    %v11864 = vunpack.c.l.b16 %v11506
    %v11865 = vunpack.c.h.b16 %v11506
    %v11866 = vunpack.c.l.b16 %v11507
    %v11867 = vunpack.c.h.b16 %v11507
    %v11868 = vunpack.c.l.b16 %v11508
    %v11869 = vunpack.c.h.b16 %v11508
    %v11870 = vunpack.c.l.b16 %v11509
    %v11871 = vunpack.c.h.b16 %v11509
    %v11872 = vunpack.c.l.b16 %v11510
    %v11873 = vunpack.c.h.b16 %v11510
    %v11874 = vunpack.c.l.b16 %v11511
    %v11875 = vunpack.c.h.b16 %v11511
    %v11876 = vunpack.c.l.b16 %v11512
    %v11877 = vunpack.c.h.b16 %v11512
    %v11878 = vunpack.c.l.b16 %v11513
    %v11879 = vunpack.c.h.b16 %v11513
    %v11880 = vunpack.c.l.b16 %v11514
    %v11881 = vunpack.c.h.b16 %v11514
    %v11882 = vunpack.c.l.b16 %v11515
    %v11883 = vunpack.c.h.b16 %v11515
    %v11884 = vunpack.c.l.b16 %v11516
    %v11885 = vunpack.c.h.b16 %v11516
    %v11886 = vunpack.c.l.b16 %v11517
    %v11887 = vunpack.c.h.b16 %v11517
    %v11888 = vunpack.c.l.b16 %v11518
    %v11889 = vunpack.c.h.b16 %v11518
    %v11890 = vunpack.c.l.b16 %v11519
    %v11891 = vunpack.c.h.b16 %v11519
    %v11892 = vunpack.c.l.b16 %v11520
    %v11893 = vunpack.c.h.b16 %v11520
    %v11894 = vunpack.c.l.b16 %v11521
    %v11895 = vunpack.c.h.b16 %v11521
    %v11896 = vunpack.c.l.b16 %v11522
    %v11897 = vunpack.c.h.b16 %v11522
    %v11898 = vunpack.c.l.b16 %v11523
    %v11899 = vunpack.c.h.b16 %v11523
    %v11900 = vunpack.c.l.b16 %v11524
    %v11901 = vunpack.c.h.b16 %v11524
    %v11902 = vunpack.c.l.b16 %v11525
    %v11903 = vunpack.c.h.b16 %v11525
    %v11904 = vunpack.c.l.b16 %v11526
    %v11905 = vunpack.c.h.b16 %v11526
    %v11906 = vunpack.c.l.b16 %v11527
    %v11907 = vunpack.c.h.b16 %v11527
    %v11908 = vunpack.c.l.b16 %v11528
    %v11909 = vunpack.c.h.b16 %v11528
    %v11910 = vunpack.c.l.b16 %v11529
    %v11911 = vunpack.c.h.b16 %v11529
    %v11912 = vunpack.c.l.b16 %v11530
    %v11913 = vunpack.c.h.b16 %v11530
    %v11914 = vunpack.c.l.b16 %v11531
    %v11915 = vunpack.c.h.b16 %v11531
    %v11916 = vunpack.c.l.b16 %v11532
    %v11917 = vunpack.c.h.b16 %v11532
    %v11918 = vunpack.c.l.b16 %v11533
    %v11919 = vunpack.c.h.b16 %v11533
    %v11920 = vunpack.c.l.b16 %v11534
    %v11921 = vunpack.c.h.b16 %v11534
    %v11922 = vunpack.c.l.b16 %v11535
    %v11923 = vunpack.c.h.b16 %v11535
    %v11924 = vunpack.c.l.b16 %v11536
    %v11925 = vunpack.c.h.b16 %v11536
    %v11926 = vunpack.c.l.b16 %v11537
    %v11927 = vunpack.c.h.b16 %v11537
    %v11928 = vunpack.c.l.b16 %v11538
    %v11929 = vunpack.c.h.b16 %v11538
    %v11930 = vunpack.c.l.b16 %v11539
    %v11931 = vunpack.c.h.b16 %v11539
    %v11932 = vunpack.c.l.b16 %v11540
    %v11933 = vunpack.c.h.b16 %v11540
    %v11934 = vunpack.c.l.b16 %v11541
    %v11935 = vunpack.c.h.b16 %v11541
    %v11936 = vunpack.c.l.b16 %v11542
    %v11937 = vunpack.c.h.b16 %v11542
    %v11938 = vunpack.c.l.b16 %v11543
    %v11939 = vunpack.c.h.b16 %v11543
    %v11940 = vunpack.c.l.b16 %v11544
    %v11941 = vunpack.c.h.b16 %v11544
    %v11942 = vunpack.c.l.b16 %v11545
    %v11943 = vunpack.c.h.b16 %v11545
    %v11944 = vunpack.c.l.b16 %v11546
    %v11945 = vunpack.c.h.b16 %v11546
    %v11946 = vunpack.c.l.b16 %v11547
    %v11947 = vunpack.c.h.b16 %v11547
    %v11948 = vunpack.c.l.b16 %v11548
    %v11949 = vunpack.c.h.b16 %v11548
    %v11950 = vunpack.c.l.b16 %v11549
    %v11951 = vunpack.c.h.b16 %v11549
    %v11952 = vunpack.c.l.b16 %v11550
    %v11953 = vunpack.c.h.b16 %v11550
    %v11954 = vunpack.c.l.b16 %v11551
    %v11955 = vunpack.c.h.b16 %v11551
    %v11956 = vunpack.c.l.b16 %v11552
    %v11957 = vunpack.c.h.b16 %v11552
    %v11958 = vunpack.c.l.b16 %v11553
    %v11959 = vunpack.c.h.b16 %v11553
    %v11960 = vunpack.c.l.b16 %v11554
    %v11961 = vunpack.c.h.b16 %v11554
    %v11962 = vunpack.c.l.b16 %v11555
    %v11963 = vunpack.c.h.b16 %v11555
    %v11964 = vunpack.c.l.b16 %v11556
    %v11965 = vunpack.c.h.b16 %v11556
    %v11966 = vunpack.c.l.b16 %v11557
    %v11967 = vunpack.c.h.b16 %v11557
    %v11968 = vunpack.c.l.b16 %v11558
    %v11969 = vunpack.c.h.b16 %v11558
    %v11970 = vunpack.c.l.b16 %v11559
    %v11971 = vunpack.c.h.b16 %v11559
    %v11972 = vunpack.c.l.b16 %v11560
    %v11973 = vunpack.c.h.b16 %v11560
    %v11974 = vunpack.c.l.b16 %v11561
    %v11975 = vunpack.c.h.b16 %v11561
    %v11976 = vunpack.c.l.b16 %v11562
    %v11977 = vunpack.c.h.b16 %v11562
    %v11978 = vunpack.c.l.b16 %v11563
    %v11979 = vunpack.c.h.b16 %v11563
    %v11980 = vunpack.c.l.b16 %v11564
    %v11981 = vunpack.c.h.b16 %v11564
    %v11982 = vunpack.c.l.b16 %v11565
    %v11983 = vunpack.c.h.b16 %v11565
    %v11984 = vunpack.c.l.b16 %v11566
    %v11985 = vunpack.c.h.b16 %v11566
    %v11986 = vunpack.c.l.b16 %v11567
    %v11987 = vunpack.c.h.b16 %v11567
    %v11988 = vunpack.c.l.b16 %v11568
    %v11989 = vunpack.c.h.b16 %v11568
    %v11990 = vunpack.c.l.b16 %v11569
    %v11991 = vunpack.c.h.b16 %v11569
    %v11992 = vunpack.c.l.b16 %v11570
    %v11993 = vunpack.c.h.b16 %v11570
    %v11994 = vunpack.c.l.b16 %v11571
    %v11995 = vunpack.c.h.b16 %v11571
    %v11996 = vunpack.c.l.b16 %v11572
    %v11997 = vunpack.c.h.b16 %v11572
    %v11998 = vunpack.c.l.b16 %v11573
    %v11999 = vunpack.c.h.b16 %v11573
    %v12000 = vunpack.c.l.b16 %v11574
    %v12001 = vunpack.c.h.b16 %v11574
    %v12002 = vunpack.c.l.b16 %v11575
    %v12003 = vunpack.c.h.b16 %v11575
    %v12004 = vunpack.c.l.b16 %v11576
    %v12005 = vunpack.c.h.b16 %v11576
    %v12006 = vunpack.c.l.b16 %v11577
    %v12007 = vunpack.c.h.b16 %v11577
    %v12008 = vunpack.c.l.b16 %v11578
    %v12009 = vunpack.c.h.b16 %v11578
    %v12010 = vunpack.c.l.b16 %v11579
    %v12011 = vunpack.c.h.b16 %v11579
    %v12012 = vunpack.c.l.b16 %v11580
    %v12013 = vunpack.c.h.b16 %v11580
    %v12014 = vunpack.c.l.b16 %v11581
    %v12015 = vunpack.c.h.b16 %v11581
    %v12016 = vunpack.c.l.b16 %v11582
    %v12017 = vunpack.c.h.b16 %v11582
    %v12018 = vunpack.c.l.b16 %v11583
    %v12019 = vunpack.c.h.b16 %v11583
    %v12020 = vunpack.c.l.b16 %v11584
    %v12021 = vunpack.c.h.b16 %v11584
    %v12022 = vunpack.c.l.b16 %v11585
    %v12023 = vunpack.c.h.b16 %v11585
    %v12024 = vunpack.c.l.b16 %v11586
    %v12025 = vunpack.c.h.b16 %v11586
    %v12026 = vunpack.c.l.b16 %v11587
    %v12027 = vunpack.c.h.b16 %v11587
    %v12028 = vunpack.c.l.b16 %v11588
    %v12029 = vunpack.c.h.b16 %v11588
    %v12030 = vunpack.c.l.b16 %v11589
    %v12031 = vunpack.c.h.b16 %v11589
    %v12032 = vunpack.c.l.b16 %v11590
    %v12033 = vunpack.c.h.b16 %v11590
    %v12034 = vunpack.c.l.b16 %v11591
    %v12035 = vunpack.c.h.b16 %v11591
    %v12036 = vunpack.c.l.b16 %v11592
    %v12037 = vunpack.c.h.b16 %v11592
    %v12038 = vunpack.c.l.b16 %v11593
    %v12039 = vunpack.c.h.b16 %v11593
    %v12040 = vunpack.c.l.b16 %v11594
    %v12041 = vunpack.c.h.b16 %v11594
    %v12042 = vunpack.c.l.b16 %v11595
    %v12043 = vunpack.c.h.b16 %v11595
    %v12044 = vunpack.c.l.b16 %v11596
    %v12045 = vunpack.c.h.b16 %v11596
    %v12046 = vunpack.c.l.b16 %v11597
    %v12047 = vunpack.c.h.b16 %v11597
    %v12048 = vunpack.c.l.b16 %v11598
    %v12049 = vunpack.c.h.b16 %v11598
    %v12050 = vunpack.c.l.b16 %v11599
    %v12051 = vunpack.c.h.b16 %v11599
    %v12052 = vunpack.c.l.b16 %v11600
    %v12053 = vunpack.c.h.b16 %v11600
    %v12054 = vunpack.c.l.b16 %v11601
    %v12055 = vunpack.c.h.b16 %v11601
    %v12056 = vunpack.c.l.b16 %v11602
    %v12057 = vunpack.c.h.b16 %v11602
    %v12058 = vunpack.c.l.b16 %v11603
    %v12059 = vunpack.c.h.b16 %v11603
    %v12060 = vunpack.c.l.b16 %v11604
    %v12061 = vunpack.c.h.b16 %v11604
    %v12062 = vunpack.c.l.b16 %v11605
    %v12063 = vunpack.c.h.b16 %v11605
    %v12064 = vunpack.c.l.b16 %v11606
    %v12065 = vunpack.c.h.b16 %v11606
    %v12066 = vunpack.c.l.b16 %v11607
    %v12067 = vunpack.c.h.b16 %v11607
    %v12068 = vunpack.c.l.b16 %v11608
    %v12069 = vunpack.c.h.b16 %v11608
    %v12070 = vunpack.c.l.b16 %v11609
    %v12071 = vunpack.c.h.b16 %v11609
    %v12072 = vunpack.c.l.b16 %v11610
    %v12073 = vunpack.c.h.b16 %v11610
    %v12074 = vunpack.c.l.b16 %v11611
    %v12075 = vunpack.c.h.b16 %v11611
    %v12076 = vunpack.c.l.b16 %v11612
    %v12077 = vunpack.c.h.b16 %v11612
    %v12078 = vunpack.c.l.b16 %v11613
    %v12079 = vunpack.c.h.b16 %v11613
    %v12080 = vunpack.c.l.b16 %v11614
    %v12081 = vunpack.c.h.b16 %v11614
    %v12082 = vunpack.c.l.b16 %v11615
    %v12083 = vunpack.c.h.b16 %v11615
    %v12084 = vunpack.c.l.b16 %v11616
    %v12085 = vunpack.c.h.b16 %v11616
    %v12086 = vunpack.c.l.b16 %v11617
    %v12087 = vunpack.c.h.b16 %v11617
    %v12088 = vunpack.c.l.b16 %v11618
    %v12089 = vunpack.c.h.b16 %v11618
    %v12090 = vunpack.c.l.b16 %v11619
    %v12091 = vunpack.c.h.b16 %v11619
    %v12092 = vunpack.c.l.b16 %v11620
    %v12093 = vunpack.c.h.b16 %v11620
    %v12094 = vunpack.c.l.b16 %v11621
    %v12095 = vunpack.c.h.b16 %v11621
    %v12096 = vunpack.c.l.b16 %v11622
    %v12097 = vunpack.c.h.b16 %v11622
    %v12098 = vunpack.c.l.b16 %v11623
    %v12099 = vunpack.c.h.b16 %v11623
    %v12100 = vunpack.c.l.b16 %v11624
    %v12101 = vunpack.c.h.b16 %v11624
    %v12102 = vunpack.c.l.b16 %v11625
    %v12103 = vunpack.c.h.b16 %v11625
    %v12104 = vunpack.c.l.b16 %v11626
    %v12105 = vunpack.c.h.b16 %v11626
    %v12106 = vunpack.c.l.b16 %v11627
    %v12107 = vunpack.c.h.b16 %v11627
    %v12108 = vpack.c.b16 %v11790, %v11788
    %v12109 = vpack.c.b16 %v11791, %v11789
    %v12110 = vpack.c.b16 %v11794, %v11792
    %v12111 = vpack.c.b16 %v11795, %v11793
    %v12112 = vpack.c.b16 %v11798, %v11796
    %v12113 = vpack.c.b16 %v11799, %v11797
    %v12114 = vpack.c.b16 %v11802, %v11800
    %v12115 = vpack.c.b16 %v11803, %v11801
    %v12116 = vpack.c.b16 %v11806, %v11804
    %v12117 = vpack.c.b16 %v11807, %v11805
    %v12118 = vpack.c.b16 %v11810, %v11808
    %v12119 = vpack.c.b16 %v11811, %v11809
    %v12120 = vpack.c.b16 %v11814, %v11812
    %v12121 = vpack.c.b16 %v11815, %v11813
    %v12122 = vpack.c.b16 %v11818, %v11816
    %v12123 = vpack.c.b16 %v11819, %v11817
    %v12124 = vpack.c.b16 %v11822, %v11820
    %v12125 = vpack.c.b16 %v11823, %v11821
    %v12126 = vpack.c.b16 %v11826, %v11824
    %v12127 = vpack.c.b16 %v11827, %v11825
    %v12128 = vpack.c.b16 %v11830, %v11828
    %v12129 = vpack.c.b16 %v11831, %v11829
    %v12130 = vpack.c.b16 %v11834, %v11832
    %v12131 = vpack.c.b16 %v11835, %v11833
    %v12132 = vpack.c.b16 %v11838, %v11836
    %v12133 = vpack.c.b16 %v11839, %v11837
    %v12134 = vpack.c.b16 %v11842, %v11840
    %v12135 = vpack.c.b16 %v11843, %v11841
    %v12136 = vpack.c.b16 %v11846, %v11844
    %v12137 = vpack.c.b16 %v11847, %v11845
    %v12138 = vpack.c.b16 %v11850, %v11848
    %v12139 = vpack.c.b16 %v11851, %v11849
    %v12140 = vpack.c.b16 %v11854, %v11852
    %v12141 = vpack.c.b16 %v11855, %v11853
    %v12142 = vpack.c.b16 %v11858, %v11856
    %v12143 = vpack.c.b16 %v11859, %v11857
    %v12144 = vpack.c.b16 %v11862, %v11860
    %v12145 = vpack.c.b16 %v11863, %v11861
    %v12146 = vpack.c.b16 %v11866, %v11864
    %v12147 = vpack.c.b16 %v11867, %v11865
    %v12148 = vpack.c.b16 %v11870, %v11868
    %v12149 = vpack.c.b16 %v11871, %v11869
    %v12150 = vpack.c.b16 %v11874, %v11872
    %v12151 = vpack.c.b16 %v11875, %v11873
    %v12152 = vpack.c.b16 %v11878, %v11876
    %v12153 = vpack.c.b16 %v11879, %v11877
    %v12154 = vpack.c.b16 %v11882, %v11880
    %v12155 = vpack.c.b16 %v11883, %v11881
    %v12156 = vpack.c.b16 %v11886, %v11884
    %v12157 = vpack.c.b16 %v11887, %v11885
    %v12158 = vpack.c.b16 %v11890, %v11888
    %v12159 = vpack.c.b16 %v11891, %v11889
    %v12160 = vpack.c.b16 %v11894, %v11892
    %v12161 = vpack.c.b16 %v11895, %v11893
    %v12162 = vpack.c.b16 %v11898, %v11896
    %v12163 = vpack.c.b16 %v11899, %v11897
    %v12164 = vpack.c.b16 %v11902, %v11900
    %v12165 = vpack.c.b16 %v11903, %v11901
    %v12166 = vpack.c.b16 %v11906, %v11904
    %v12167 = vpack.c.b16 %v11907, %v11905
    %v12168 = vpack.c.b16 %v11910, %v11908
    %v12169 = vpack.c.b16 %v11911, %v11909
    %v12170 = vpack.c.b16 %v11914, %v11912
    %v12171 = vpack.c.b16 %v11915, %v11913
    %v12172 = vpack.c.b16 %v11918, %v11916
    %v12173 = vpack.c.b16 %v11919, %v11917
    %v12174 = vpack.c.b16 %v11922, %v11920
    %v12175 = vpack.c.b16 %v11923, %v11921
    %v12176 = vpack.c.b16 %v11926, %v11924
    %v12177 = vpack.c.b16 %v11927, %v11925
    %v12178 = vpack.c.b16 %v11930, %v11928
    %v12179 = vpack.c.b16 %v11931, %v11929
    %v12180 = vpack.c.b16 %v11934, %v11932
    %v12181 = vpack.c.b16 %v11935, %v11933
    %v12182 = vpack.c.b16 %v11938, %v11936
    %v12183 = vpack.c.b16 %v11939, %v11937
    %v12184 = vpack.c.b16 %v11942, %v11940
    %v12185 = vpack.c.b16 %v11943, %v11941
    %v12186 = vpack.c.b16 %v11946, %v11944
    %v12187 = vpack.c.b16 %v11947, %v11945
    %v12188 = vpack.c.b16 %v11950, %v11948
    %v12189 = vpack.c.b16 %v11951, %v11949
    %v12190 = vpack.c.b16 %v11954, %v11952
    %v12191 = vpack.c.b16 %v11955, %v11953
    %v12192 = vpack.c.b16 %v11958, %v11956
    %v12193 = vpack.c.b16 %v11959, %v11957
    %v12194 = vpack.c.b16 %v11962, %v11960
    %v12195 = vpack.c.b16 %v11963, %v11961
    %v12196 = vpack.c.b16 %v11966, %v11964
    %v12197 = vpack.c.b16 %v11967, %v11965
    %v12198 = vpack.c.b16 %v11970, %v11968
    %v12199 = vpack.c.b16 %v11971, %v11969
    %v12200 = vpack.c.b16 %v11974, %v11972
    %v12201 = vpack.c.b16 %v11975, %v11973
    %v12202 = vpack.c.b16 %v11978, %v11976
    %v12203 = vpack.c.b16 %v11979, %v11977
    %v12204 = vpack.c.b16 %v11982, %v11980
    %v12205 = vpack.c.b16 %v11983, %v11981
    %v12206 = vpack.c.b16 %v11986, %v11984
    %v12207 = vpack.c.b16 %v11987, %v11985
    %v12208 = vpack.c.b16 %v11990, %v11988
    %v12209 = vpack.c.b16 %v11991, %v11989
    %v12210 = vpack.c.b16 %v11994, %v11992
    %v12211 = vpack.c.b16 %v11995, %v11993
    %v12212 = vpack.c.b16 %v11998, %v11996
    %v12213 = vpack.c.b16 %v11999, %v11997
    %v12214 = vpack.c.b16 %v12002, %v12000
    %v12215 = vpack.c.b16 %v12003, %v12001
    %v12216 = vpack.c.b16 %v12006, %v12004
    %v12217 = vpack.c.b16 %v12007, %v12005
    %v12218 = vpack.c.b16 %v12010, %v12008
    %v12219 = vpack.c.b16 %v12011, %v12009
    %v12220 = vpack.c.b16 %v12014, %v12012
    %v12221 = vpack.c.b16 %v12015, %v12013
    %v12222 = vpack.c.b16 %v12018, %v12016
    %v12223 = vpack.c.b16 %v12019, %v12017
    %v12224 = vpack.c.b16 %v12022, %v12020
    %v12225 = vpack.c.b16 %v12023, %v12021
    %v12226 = vpack.c.b16 %v12026, %v12024
    %v12227 = vpack.c.b16 %v12027, %v12025
    %v12228 = vpack.c.b16 %v12030, %v12028
    %v12229 = vpack.c.b16 %v12031, %v12029
    %v12230 = vpack.c.b16 %v12034, %v12032
    %v12231 = vpack.c.b16 %v12035, %v12033
    %v12232 = vpack.c.b16 %v12038, %v12036
    %v12233 = vpack.c.b16 %v12039, %v12037
    %v12234 = vpack.c.b16 %v12042, %v12040
    %v12235 = vpack.c.b16 %v12043, %v12041
    %v12236 = vpack.c.b16 %v12046, %v12044
    %v12237 = vpack.c.b16 %v12047, %v12045
    %v12238 = vpack.c.b16 %v12050, %v12048
    %v12239 = vpack.c.b16 %v12051, %v12049
    %v12240 = vpack.c.b16 %v12054, %v12052
    %v12241 = vpack.c.b16 %v12055, %v12053
    %v12242 = vpack.c.b16 %v12058, %v12056
    %v12243 = vpack.c.b16 %v12059, %v12057
    %v12244 = vpack.c.b16 %v12062, %v12060
    %v12245 = vpack.c.b16 %v12063, %v12061
    %v12246 = vpack.c.b16 %v12066, %v12064
    %v12247 = vpack.c.b16 %v12067, %v12065
    %v12248 = vpack.c.b16 %v12070, %v12068
    %v12249 = vpack.c.b16 %v12071, %v12069
    %v12250 = vpack.c.b16 %v12074, %v12072
    %v12251 = vpack.c.b16 %v12075, %v12073
    %v12252 = vpack.c.b16 %v12078, %v12076
    %v12253 = vpack.c.b16 %v12079, %v12077
    %v12254 = vpack.c.b16 %v12082, %v12080
    %v12255 = vpack.c.b16 %v12083, %v12081
    %v12256 = vpack.c.b16 %v12086, %v12084
    %v12257 = vpack.c.b16 %v12087, %v12085
    %v12258 = vpack.c.b16 %v12090, %v12088
    %v12259 = vpack.c.b16 %v12091, %v12089
    %v12260 = vpack.c.b16 %v12094, %v12092
    %v12261 = vpack.c.b16 %v12095, %v12093
    %v12262 = vpack.c.b16 %v12098, %v12096
    %v12263 = vpack.c.b16 %v12099, %v12097
    %v12264 = vpack.c.b16 %v12102, %v12100
    %v12265 = vpack.c.b16 %v12103, %v12101
    %v12266 = vpack.c.b16 %v12106, %v12104
    %v12267 = vpack.c.b16 %v12107, %v12105
    %12428 = vmatpush.bf16.msra.mxu0 %v12122
    %12429 = vmatpush.bf16.msra.mxu0 %v12120
    %12430 = vmatpush.bf16.msra.mxu0 %v12118
    %12431 = vmatpush.bf16.msra.mxu0 %v12116
    %12432 = vmatpush.bf16.msra.mxu0 %v12114
    %12433 = vmatpush.bf16.msra.mxu0 %v12112
    %12434 = vmatpush.bf16.msra.mxu0 %v12110
    %12435 = vmatpush.bf16.msra.mxu0 %v12108
    %12436 = vmatmul.bf16.gmra.mxu0 %v11428
    %v12437 = vpop.f32.mrf.mxu0
    %v12438 = vadd.f32 0.0, %v12437
    %v12439 = vpop.f32.mrf.mxu0
    %v12440 = vadd.f32 0.0, %v12439
    %12441 = vmatmul.bf16.gmra.mxu0 %v11438
    %v12442 = vpop.f32.mrf.mxu0
    %v12443 = vadd.f32 0.0, %v12442
    %v12444 = vpop.f32.mrf.mxu0
    %v12445 = vadd.f32 0.0, %v12444
    %12446 = vmatmul.bf16.gmra.mxu0 %v11448
    %v12447 = vpop.f32.mrf.mxu0
    %v12448 = vadd.f32 0.0, %v12447
    %v12449 = vpop.f32.mrf.mxu0
    %v12450 = vadd.f32 0.0, %v12449
    %12451 = vmatmul.bf16.gmra.mxu0 %v11458
    %v12452 = vpop.f32.mrf.mxu0
    %v12453 = vadd.f32 0.0, %v12452
    %v12454 = vpop.f32.mrf.mxu0
    %v12455 = vadd.f32 0.0, %v12454
    %12456 = vdwg.mxu0
    %12457 = vmatpush.bf16.msra.mxu0 %v12138
    %12458 = vmatpush.bf16.msra.mxu0 %v12136
    %12459 = vmatpush.bf16.msra.mxu0 %v12134
    %12460 = vmatpush.bf16.msra.mxu0 %v12132
    %12461 = vmatpush.bf16.msra.mxu0 %v12130
    %12462 = vmatpush.bf16.msra.mxu0 %v12128
    %12463 = vmatpush.bf16.msra.mxu0 %v12126
    %12464 = vmatpush.bf16.msra.mxu0 %v12124
    %12465 = vmatmul.bf16.gmra.mxu0 %v11429
    %v12466 = vpop.f32.mrf.mxu0
    %v12467 = vadd.f32 %v12438, %v12466
    %v12468 = vpop.f32.mrf.mxu0
    %v12469 = vadd.f32 %v12440, %v12468
    %12470 = vmatmul.bf16.gmra.mxu0 %v11439
    %v12471 = vpop.f32.mrf.mxu0
    %v12472 = vadd.f32 %v12443, %v12471
    %v12473 = vpop.f32.mrf.mxu0
    %v12474 = vadd.f32 %v12445, %v12473
    %12475 = vmatmul.bf16.gmra.mxu0 %v11449
    %v12476 = vpop.f32.mrf.mxu0
    %v12477 = vadd.f32 %v12448, %v12476
    %v12478 = vpop.f32.mrf.mxu0
    %v12479 = vadd.f32 %v12450, %v12478
    %12480 = vmatmul.bf16.gmra.mxu0 %v11459
    %v12481 = vpop.f32.mrf.mxu0
    %v12482 = vadd.f32 %v12453, %v12481
    %v12483 = vpop.f32.mrf.mxu0
    %v12484 = vadd.f32 %v12455, %v12483
    %12485 = vdwg.mxu0
    %12486 = vmatpush.bf16.msra.mxu0 %v12154
    %12487 = vmatpush.bf16.msra.mxu0 %v12152
    %12488 = vmatpush.bf16.msra.mxu0 %v12150
    %12489 = vmatpush.bf16.msra.mxu0 %v12148
    %12490 = vmatpush.bf16.msra.mxu0 %v12146
    %12491 = vmatpush.bf16.msra.mxu0 %v12144
    %12492 = vmatpush.bf16.msra.mxu0 %v12142
    %12493 = vmatpush.bf16.msra.mxu0 %v12140
    %12494 = vmatmul.bf16.gmra.mxu0 %v11430
    %v12495 = vpop.f32.mrf.mxu0
    %v12496 = vadd.f32 %v12467, %v12495
    %v12497 = vpop.f32.mrf.mxu0
    %v12498 = vadd.f32 %v12469, %v12497
    %12499 = vmatmul.bf16.gmra.mxu0 %v11440
    %v12500 = vpop.f32.mrf.mxu0
    %v12501 = vadd.f32 %v12472, %v12500
    %v12502 = vpop.f32.mrf.mxu0
    %v12503 = vadd.f32 %v12474, %v12502
    %12504 = vmatmul.bf16.gmra.mxu0 %v11450
    %v12505 = vpop.f32.mrf.mxu0
    %v12506 = vadd.f32 %v12477, %v12505
    %v12507 = vpop.f32.mrf.mxu0
    %v12508 = vadd.f32 %v12479, %v12507
    %12509 = vmatmul.bf16.gmra.mxu0 %v11460
    %v12510 = vpop.f32.mrf.mxu0
    %v12511 = vadd.f32 %v12482, %v12510
    %v12512 = vpop.f32.mrf.mxu0
    %v12513 = vadd.f32 %v12484, %v12512
    %12514 = vdwg.mxu0
    %12515 = vmatpush.bf16.msra.mxu0 %v12170
    %12516 = vmatpush.bf16.msra.mxu0 %v12168
    %12517 = vmatpush.bf16.msra.mxu0 %v12166
    %12518 = vmatpush.bf16.msra.mxu0 %v12164
    %12519 = vmatpush.bf16.msra.mxu0 %v12162
    %12520 = vmatpush.bf16.msra.mxu0 %v12160
    %12521 = vmatpush.bf16.msra.mxu0 %v12158
    %12522 = vmatpush.bf16.msra.mxu0 %v12156
    %12523 = vmatmul.bf16.gmra.mxu0 %v11431
    %v12524 = vpop.f32.mrf.mxu0
    %v12525 = vadd.f32 %v12496, %v12524
    %v12526 = vpop.f32.mrf.mxu0
    %v12527 = vadd.f32 %v12498, %v12526
    %12528 = vmatmul.bf16.gmra.mxu0 %v11441
    %v12529 = vpop.f32.mrf.mxu0
    %v12530 = vadd.f32 %v12501, %v12529
    %v12531 = vpop.f32.mrf.mxu0
    %v12532 = vadd.f32 %v12503, %v12531
    %12533 = vmatmul.bf16.gmra.mxu0 %v11451
    %v12534 = vpop.f32.mrf.mxu0
    %v12535 = vadd.f32 %v12506, %v12534
    %v12536 = vpop.f32.mrf.mxu0
    %v12537 = vadd.f32 %v12508, %v12536
    %12538 = vmatmul.bf16.gmra.mxu0 %v11461
    %v12539 = vpop.f32.mrf.mxu0
    %v12540 = vadd.f32 %v12511, %v12539
    %v12541 = vpop.f32.mrf.mxu0
    %v12542 = vadd.f32 %v12513, %v12541
    %12543 = vdwg.mxu0
    %12544 = vmatpush.bf16.msra.mxu0 %v12186
    %12545 = vmatpush.bf16.msra.mxu0 %v12184
    %12546 = vmatpush.bf16.msra.mxu0 %v12182
    %12547 = vmatpush.bf16.msra.mxu0 %v12180
    %12548 = vmatpush.bf16.msra.mxu0 %v12178
    %12549 = vmatpush.bf16.msra.mxu0 %v12176
    %12550 = vmatpush.bf16.msra.mxu0 %v12174
    %12551 = vmatpush.bf16.msra.mxu0 %v12172
    %12552 = vmatmul.bf16.gmra.mxu0 %v11432
    %v12553 = vpop.f32.mrf.mxu0
    %v12554 = vadd.f32 %v12525, %v12553
    %v12555 = vpop.f32.mrf.mxu0
    %v12556 = vadd.f32 %v12527, %v12555
    %12557 = vmatmul.bf16.gmra.mxu0 %v11442
    %v12558 = vpop.f32.mrf.mxu0
    %v12559 = vadd.f32 %v12530, %v12558
    %v12560 = vpop.f32.mrf.mxu0
    %v12561 = vadd.f32 %v12532, %v12560
    %12562 = vmatmul.bf16.gmra.mxu0 %v11452
    %v12563 = vpop.f32.mrf.mxu0
    %v12564 = vadd.f32 %v12535, %v12563
    %v12565 = vpop.f32.mrf.mxu0
    %v12566 = vadd.f32 %v12537, %v12565
    %12567 = vmatmul.bf16.gmra.mxu0 %v11462
    %v12568 = vpop.f32.mrf.mxu0
    %v12569 = vadd.f32 %v12540, %v12568
    %v12570 = vpop.f32.mrf.mxu0
    %v12571 = vadd.f32 %v12542, %v12570
    %12572 = vdwg.mxu0
    %12573 = vmatpush.bf16.msra.mxu0 %v12202
    %12574 = vmatpush.bf16.msra.mxu0 %v12200
    %12575 = vmatpush.bf16.msra.mxu0 %v12198
    %12576 = vmatpush.bf16.msra.mxu0 %v12196
    %12577 = vmatpush.bf16.msra.mxu0 %v12194
    %12578 = vmatpush.bf16.msra.mxu0 %v12192
    %12579 = vmatpush.bf16.msra.mxu0 %v12190
    %12580 = vmatpush.bf16.msra.mxu0 %v12188
    %12581 = vmatmul.bf16.gmra.mxu0 %v11433
    %v12582 = vpop.f32.mrf.mxu0
    %v12583 = vadd.f32 %v12554, %v12582
    %v12584 = vpop.f32.mrf.mxu0
    %v12585 = vadd.f32 %v12556, %v12584
    %12586 = vmatmul.bf16.gmra.mxu0 %v11443
    %v12587 = vpop.f32.mrf.mxu0
    %v12588 = vadd.f32 %v12559, %v12587
    %v12589 = vpop.f32.mrf.mxu0
    %v12590 = vadd.f32 %v12561, %v12589
    %12591 = vmatmul.bf16.gmra.mxu0 %v11453
    %v12592 = vpop.f32.mrf.mxu0
    %v12593 = vadd.f32 %v12564, %v12592
    %v12594 = vpop.f32.mrf.mxu0
    %v12595 = vadd.f32 %v12566, %v12594
    %12596 = vmatmul.bf16.gmra.mxu0 %v11463
    %v12597 = vpop.f32.mrf.mxu0
    %v12598 = vadd.f32 %v12569, %v12597
    %v12599 = vpop.f32.mrf.mxu0
    %v12600 = vadd.f32 %v12571, %v12599
    %12601 = vdwg.mxu0
    %12602 = vmatpush.bf16.msra.mxu0 %v12218
    %12603 = vmatpush.bf16.msra.mxu0 %v12216
    %12604 = vmatpush.bf16.msra.mxu0 %v12214
    %12605 = vmatpush.bf16.msra.mxu0 %v12212
    %12606 = vmatpush.bf16.msra.mxu0 %v12210
    %12607 = vmatpush.bf16.msra.mxu0 %v12208
    %12608 = vmatpush.bf16.msra.mxu0 %v12206
    %12609 = vmatpush.bf16.msra.mxu0 %v12204
    %12610 = vmatmul.bf16.gmra.mxu0 %v11434
    %v12611 = vpop.f32.mrf.mxu0
    %v12612 = vadd.f32 %v12583, %v12611
    %v12613 = vpop.f32.mrf.mxu0
    %v12614 = vadd.f32 %v12585, %v12613
    %12615 = vmatmul.bf16.gmra.mxu0 %v11444
    %v12616 = vpop.f32.mrf.mxu0
    %v12617 = vadd.f32 %v12588, %v12616
    %v12618 = vpop.f32.mrf.mxu0
    %v12619 = vadd.f32 %v12590, %v12618
    %12620 = vmatmul.bf16.gmra.mxu0 %v11454
    %v12621 = vpop.f32.mrf.mxu0
    %v12622 = vadd.f32 %v12593, %v12621
    %v12623 = vpop.f32.mrf.mxu0
    %v12624 = vadd.f32 %v12595, %v12623
    %12625 = vmatmul.bf16.gmra.mxu0 %v11464
    %v12626 = vpop.f32.mrf.mxu0
    %v12627 = vadd.f32 %v12598, %v12626
    %v12628 = vpop.f32.mrf.mxu0
    %v12629 = vadd.f32 %v12600, %v12628
    %12630 = vdwg.mxu0
    %12631 = vmatpush.bf16.msra.mxu0 %v12234
    %12632 = vmatpush.bf16.msra.mxu0 %v12232
    %12633 = vmatpush.bf16.msra.mxu0 %v12230
    %12634 = vmatpush.bf16.msra.mxu0 %v12228
    %12635 = vmatpush.bf16.msra.mxu0 %v12226
    %12636 = vmatpush.bf16.msra.mxu0 %v12224
    %12637 = vmatpush.bf16.msra.mxu0 %v12222
    %12638 = vmatpush.bf16.msra.mxu0 %v12220
    %12639 = vmatmul.bf16.gmra.mxu0 %v11435
    %v12640 = vpop.f32.mrf.mxu0
    %v12641 = vadd.f32 %v12612, %v12640
    %v12642 = vpop.f32.mrf.mxu0
    %v12643 = vadd.f32 %v12614, %v12642
    %12644 = vmatmul.bf16.gmra.mxu0 %v11445
    %v12645 = vpop.f32.mrf.mxu0
    %v12646 = vadd.f32 %v12617, %v12645
    %v12647 = vpop.f32.mrf.mxu0
    %v12648 = vadd.f32 %v12619, %v12647
    %12649 = vmatmul.bf16.gmra.mxu0 %v11455
    %v12650 = vpop.f32.mrf.mxu0
    %v12651 = vadd.f32 %v12622, %v12650
    %v12652 = vpop.f32.mrf.mxu0
    %v12653 = vadd.f32 %v12624, %v12652
    %12654 = vmatmul.bf16.gmra.mxu0 %v11465
    %v12655 = vpop.f32.mrf.mxu0
    %v12656 = vadd.f32 %v12627, %v12655
    %v12657 = vpop.f32.mrf.mxu0
    %v12658 = vadd.f32 %v12629, %v12657
    %12659 = vdwg.mxu0
    %12660 = vmatpush.bf16.msra.mxu0 %v12250
    %12661 = vmatpush.bf16.msra.mxu0 %v12248
    %12662 = vmatpush.bf16.msra.mxu0 %v12246
    %12663 = vmatpush.bf16.msra.mxu0 %v12244
    %12664 = vmatpush.bf16.msra.mxu0 %v12242
    %12665 = vmatpush.bf16.msra.mxu0 %v12240
    %12666 = vmatpush.bf16.msra.mxu0 %v12238
    %12667 = vmatpush.bf16.msra.mxu0 %v12236
    %12668 = vmatmul.bf16.gmra.mxu0 %v11436
    %v12669 = vpop.f32.mrf.mxu0
    %v12670 = vadd.f32 %v12641, %v12669
    %v12671 = vpop.f32.mrf.mxu0
    %v12672 = vadd.f32 %v12643, %v12671
    %12673 = vmatmul.bf16.gmra.mxu0 %v11446
    %v12674 = vpop.f32.mrf.mxu0
    %v12675 = vadd.f32 %v12646, %v12674
    %v12676 = vpop.f32.mrf.mxu0
    %v12677 = vadd.f32 %v12648, %v12676
    %12678 = vmatmul.bf16.gmra.mxu0 %v11456
    %v12679 = vpop.f32.mrf.mxu0
    %v12680 = vadd.f32 %v12651, %v12679
    %v12681 = vpop.f32.mrf.mxu0
    %v12682 = vadd.f32 %v12653, %v12681
    %12683 = vmatmul.bf16.gmra.mxu0 %v11466
    %v12684 = vpop.f32.mrf.mxu0
    %v12685 = vadd.f32 %v12656, %v12684
    %v12686 = vpop.f32.mrf.mxu0
    %v12687 = vadd.f32 %v12658, %v12686
    %12688 = vdwg.mxu0
    %12689 = vmatpush.bf16.msra.mxu0 %v12266
    %12690 = vmatpush.bf16.msra.mxu0 %v12264
    %12691 = vmatpush.bf16.msra.mxu0 %v12262
    %12692 = vmatpush.bf16.msra.mxu0 %v12260
    %12693 = vmatpush.bf16.msra.mxu0 %v12258
    %12694 = vmatpush.bf16.msra.mxu0 %v12256
    %12695 = vmatpush.bf16.msra.mxu0 %v12254
    %12696 = vmatpush.bf16.msra.mxu0 %v12252
    %12697 = vmatmul.bf16.gmra.mxu0 %v11437
    %v12698 = vpop.f32.mrf.mxu0
    %v12699 = vadd.f32 %v12670, %v12698
    %v12700 = vpop.f32.mrf.mxu0
    %v12701 = vadd.f32 %v12672, %v12700
    %12702 = vmatmul.bf16.gmra.mxu0 %v11447
    %v12703 = vpop.f32.mrf.mxu0
    %v12704 = vadd.f32 %v12675, %v12703
    %v12705 = vpop.f32.mrf.mxu0
    %v12706 = vadd.f32 %v12677, %v12705
    %12707 = vmatmul.bf16.gmra.mxu0 %v11457
    %v12708 = vpop.f32.mrf.mxu0
    %v12709 = vadd.f32 %v12680, %v12708
    %v12710 = vpop.f32.mrf.mxu0
    %v12711 = vadd.f32 %v12682, %v12710
    %12712 = vmatmul.bf16.gmra.mxu0 %v11467
    %v12713 = vpop.f32.mrf.mxu0
    %v12714 = vadd.f32 %v12685, %v12713
    %v12715 = vpop.f32.mrf.mxu0
    %v12716 = vadd.f32 %v12687, %v12715
    %12717 = vdwg.mxu0
    %12718 = vmatpush.bf16.msra.mxu0 %v12123
    %12719 = vmatpush.bf16.msra.mxu0 %v12121
    %12720 = vmatpush.bf16.msra.mxu0 %v12119
    %12721 = vmatpush.bf16.msra.mxu0 %v12117
    %12722 = vmatpush.bf16.msra.mxu0 %v12115
    %12723 = vmatpush.bf16.msra.mxu0 %v12113
    %12724 = vmatpush.bf16.msra.mxu0 %v12111
    %12725 = vmatpush.bf16.msra.mxu0 %v12109
    %12726 = vmatmul.bf16.gmra.mxu0 %v11428
    %v12727 = vpop.f32.mrf.mxu0
    %v12728 = vadd.f32 0.0, %v12727
    %v12729 = vpop.f32.mrf.mxu0
    %v12730 = vadd.f32 0.0, %v12729
    %12731 = vmatmul.bf16.gmra.mxu0 %v11438
    %v12732 = vpop.f32.mrf.mxu0
    %v12733 = vadd.f32 0.0, %v12732
    %v12734 = vpop.f32.mrf.mxu0
    %v12735 = vadd.f32 0.0, %v12734
    %12736 = vmatmul.bf16.gmra.mxu0 %v11448
    %v12737 = vpop.f32.mrf.mxu0
    %v12738 = vadd.f32 0.0, %v12737
    %v12739 = vpop.f32.mrf.mxu0
    %v12740 = vadd.f32 0.0, %v12739
    %12741 = vmatmul.bf16.gmra.mxu0 %v11458
    %v12742 = vpop.f32.mrf.mxu0
    %v12743 = vadd.f32 0.0, %v12742
    %v12744 = vpop.f32.mrf.mxu0
    %v12745 = vadd.f32 0.0, %v12744
    %12746 = vdwg.mxu0
    %12747 = vmatpush.bf16.msra.mxu0 %v12139
    %12748 = vmatpush.bf16.msra.mxu0 %v12137
    %12749 = vmatpush.bf16.msra.mxu0 %v12135
    %12750 = vmatpush.bf16.msra.mxu0 %v12133
    %12751 = vmatpush.bf16.msra.mxu0 %v12131
    %12752 = vmatpush.bf16.msra.mxu0 %v12129
    %12753 = vmatpush.bf16.msra.mxu0 %v12127
    %12754 = vmatpush.bf16.msra.mxu0 %v12125
    %12755 = vmatmul.bf16.gmra.mxu0 %v11429
    %v12756 = vpop.f32.mrf.mxu0
    %v12757 = vadd.f32 %v12728, %v12756
    %v12758 = vpop.f32.mrf.mxu0
    %v12759 = vadd.f32 %v12730, %v12758
    %12760 = vmatmul.bf16.gmra.mxu0 %v11439
    %v12761 = vpop.f32.mrf.mxu0
    %v12762 = vadd.f32 %v12733, %v12761
    %v12763 = vpop.f32.mrf.mxu0
    %v12764 = vadd.f32 %v12735, %v12763
    %12765 = vmatmul.bf16.gmra.mxu0 %v11449
    %v12766 = vpop.f32.mrf.mxu0
    %v12767 = vadd.f32 %v12738, %v12766
    %v12768 = vpop.f32.mrf.mxu0
    %v12769 = vadd.f32 %v12740, %v12768
    %12770 = vmatmul.bf16.gmra.mxu0 %v11459
    %v12771 = vpop.f32.mrf.mxu0
    %v12772 = vadd.f32 %v12743, %v12771
    %v12773 = vpop.f32.mrf.mxu0
    %v12774 = vadd.f32 %v12745, %v12773
    %12775 = vdwg.mxu0
    %12776 = vmatpush.bf16.msra.mxu0 %v12155
    %12777 = vmatpush.bf16.msra.mxu0 %v12153
    %12778 = vmatpush.bf16.msra.mxu0 %v12151
    %12779 = vmatpush.bf16.msra.mxu0 %v12149
    %12780 = vmatpush.bf16.msra.mxu0 %v12147
    %12781 = vmatpush.bf16.msra.mxu0 %v12145
    %12782 = vmatpush.bf16.msra.mxu0 %v12143
    %12783 = vmatpush.bf16.msra.mxu0 %v12141
    %12784 = vmatmul.bf16.gmra.mxu0 %v11430
    %v12785 = vpop.f32.mrf.mxu0
    %v12786 = vadd.f32 %v12757, %v12785
    %v12787 = vpop.f32.mrf.mxu0
    %v12788 = vadd.f32 %v12759, %v12787
    %12789 = vmatmul.bf16.gmra.mxu0 %v11440
    %v12790 = vpop.f32.mrf.mxu0
    %v12791 = vadd.f32 %v12762, %v12790
    %v12792 = vpop.f32.mrf.mxu0
    %v12793 = vadd.f32 %v12764, %v12792
    %12794 = vmatmul.bf16.gmra.mxu0 %v11450
    %v12795 = vpop.f32.mrf.mxu0
    %v12796 = vadd.f32 %v12767, %v12795
    %v12797 = vpop.f32.mrf.mxu0
    %v12798 = vadd.f32 %v12769, %v12797
    %12799 = vmatmul.bf16.gmra.mxu0 %v11460
    %v12800 = vpop.f32.mrf.mxu0
    %v12801 = vadd.f32 %v12772, %v12800
    %v12802 = vpop.f32.mrf.mxu0
    %v12803 = vadd.f32 %v12774, %v12802
    %12804 = vdwg.mxu0
    %12805 = vmatpush.bf16.msra.mxu0 %v12171
    %12806 = vmatpush.bf16.msra.mxu0 %v12169
    %12807 = vmatpush.bf16.msra.mxu0 %v12167
    %12808 = vmatpush.bf16.msra.mxu0 %v12165
    %12809 = vmatpush.bf16.msra.mxu0 %v12163
    %12810 = vmatpush.bf16.msra.mxu0 %v12161
    %12811 = vmatpush.bf16.msra.mxu0 %v12159
    %12812 = vmatpush.bf16.msra.mxu0 %v12157
    %12813 = vmatmul.bf16.gmra.mxu0 %v11431
    %v12814 = vpop.f32.mrf.mxu0
    %v12815 = vadd.f32 %v12786, %v12814
    %v12816 = vpop.f32.mrf.mxu0
    %v12817 = vadd.f32 %v12788, %v12816
    %12818 = vmatmul.bf16.gmra.mxu0 %v11441
    %v12819 = vpop.f32.mrf.mxu0
    %v12820 = vadd.f32 %v12791, %v12819
    %v12821 = vpop.f32.mrf.mxu0
    %v12822 = vadd.f32 %v12793, %v12821
    %12823 = vmatmul.bf16.gmra.mxu0 %v11451
    %v12824 = vpop.f32.mrf.mxu0
    %v12825 = vadd.f32 %v12796, %v12824
    %v12826 = vpop.f32.mrf.mxu0
    %v12827 = vadd.f32 %v12798, %v12826
    %12828 = vmatmul.bf16.gmra.mxu0 %v11461
    %v12829 = vpop.f32.mrf.mxu0
    %v12830 = vadd.f32 %v12801, %v12829
    %v12831 = vpop.f32.mrf.mxu0
    %v12832 = vadd.f32 %v12803, %v12831
    %12833 = vdwg.mxu0
    %12834 = vmatpush.bf16.msra.mxu0 %v12187
    %12835 = vmatpush.bf16.msra.mxu0 %v12185
    %12836 = vmatpush.bf16.msra.mxu0 %v12183
    %12837 = vmatpush.bf16.msra.mxu0 %v12181
    %12838 = vmatpush.bf16.msra.mxu0 %v12179
    %12839 = vmatpush.bf16.msra.mxu0 %v12177
    %12840 = vmatpush.bf16.msra.mxu0 %v12175
    %12841 = vmatpush.bf16.msra.mxu0 %v12173
    %12842 = vmatmul.bf16.gmra.mxu0 %v11432
    %v12843 = vpop.f32.mrf.mxu0
    %v12844 = vadd.f32 %v12815, %v12843
    %v12845 = vpop.f32.mrf.mxu0
    %v12846 = vadd.f32 %v12817, %v12845
    %12847 = vmatmul.bf16.gmra.mxu0 %v11442
    %v12848 = vpop.f32.mrf.mxu0
    %v12849 = vadd.f32 %v12820, %v12848
    %v12850 = vpop.f32.mrf.mxu0
    %v12851 = vadd.f32 %v12822, %v12850
    %12852 = vmatmul.bf16.gmra.mxu0 %v11452
    %v12853 = vpop.f32.mrf.mxu0
    %v12854 = vadd.f32 %v12825, %v12853
    %v12855 = vpop.f32.mrf.mxu0
    %v12856 = vadd.f32 %v12827, %v12855
    %12857 = vmatmul.bf16.gmra.mxu0 %v11462
    %v12858 = vpop.f32.mrf.mxu0
    %v12859 = vadd.f32 %v12830, %v12858
    %v12860 = vpop.f32.mrf.mxu0
    %v12861 = vadd.f32 %v12832, %v12860
    %12862 = vdwg.mxu0
    %12863 = vmatpush.bf16.msra.mxu0 %v12203
    %12864 = vmatpush.bf16.msra.mxu0 %v12201
    %12865 = vmatpush.bf16.msra.mxu0 %v12199
    %12866 = vmatpush.bf16.msra.mxu0 %v12197
    %12867 = vmatpush.bf16.msra.mxu0 %v12195
    %12868 = vmatpush.bf16.msra.mxu0 %v12193
    %12869 = vmatpush.bf16.msra.mxu0 %v12191
    %12870 = vmatpush.bf16.msra.mxu0 %v12189
    %12871 = vmatmul.bf16.gmra.mxu0 %v11433
    %v12872 = vpop.f32.mrf.mxu0
    %v12873 = vadd.f32 %v12844, %v12872
    %v12874 = vpop.f32.mrf.mxu0
    %v12875 = vadd.f32 %v12846, %v12874
    %12876 = vmatmul.bf16.gmra.mxu0 %v11443
    %v12877 = vpop.f32.mrf.mxu0
    %v12878 = vadd.f32 %v12849, %v12877
    %v12879 = vpop.f32.mrf.mxu0
    %v12880 = vadd.f32 %v12851, %v12879
    %12881 = vmatmul.bf16.gmra.mxu0 %v11453
    %v12882 = vpop.f32.mrf.mxu0
    %v12883 = vadd.f32 %v12854, %v12882
    %v12884 = vpop.f32.mrf.mxu0
    %v12885 = vadd.f32 %v12856, %v12884
    %12886 = vmatmul.bf16.gmra.mxu0 %v11463
    %v12887 = vpop.f32.mrf.mxu0
    %v12888 = vadd.f32 %v12859, %v12887
    %v12889 = vpop.f32.mrf.mxu0
    %v12890 = vadd.f32 %v12861, %v12889
    %12891 = vdwg.mxu0
    %12892 = vmatpush.bf16.msra.mxu0 %v12219
    %12893 = vmatpush.bf16.msra.mxu0 %v12217
    %12894 = vmatpush.bf16.msra.mxu0 %v12215
    %12895 = vmatpush.bf16.msra.mxu0 %v12213
    %12896 = vmatpush.bf16.msra.mxu0 %v12211
    %12897 = vmatpush.bf16.msra.mxu0 %v12209
    %12898 = vmatpush.bf16.msra.mxu0 %v12207
    %12899 = vmatpush.bf16.msra.mxu0 %v12205
    %12900 = vmatmul.bf16.gmra.mxu0 %v11434
    %v12901 = vpop.f32.mrf.mxu0
    %v12902 = vadd.f32 %v12873, %v12901
    %v12903 = vpop.f32.mrf.mxu0
    %v12904 = vadd.f32 %v12875, %v12903
    %12905 = vmatmul.bf16.gmra.mxu0 %v11444
    %v12906 = vpop.f32.mrf.mxu0
    %v12907 = vadd.f32 %v12878, %v12906
    %v12908 = vpop.f32.mrf.mxu0
    %v12909 = vadd.f32 %v12880, %v12908
    %12910 = vmatmul.bf16.gmra.mxu0 %v11454
    %v12911 = vpop.f32.mrf.mxu0
    %v12912 = vadd.f32 %v12883, %v12911
    %v12913 = vpop.f32.mrf.mxu0
    %v12914 = vadd.f32 %v12885, %v12913
    %12915 = vmatmul.bf16.gmra.mxu0 %v11464
    %v12916 = vpop.f32.mrf.mxu0
    %v12917 = vadd.f32 %v12888, %v12916
    %v12918 = vpop.f32.mrf.mxu0
    %v12919 = vadd.f32 %v12890, %v12918
    %12920 = vdwg.mxu0
    %12921 = vmatpush.bf16.msra.mxu0 %v12235
    %12922 = vmatpush.bf16.msra.mxu0 %v12233
    %12923 = vmatpush.bf16.msra.mxu0 %v12231
    %12924 = vmatpush.bf16.msra.mxu0 %v12229
    %12925 = vmatpush.bf16.msra.mxu0 %v12227
    %12926 = vmatpush.bf16.msra.mxu0 %v12225
    %12927 = vmatpush.bf16.msra.mxu0 %v12223
    %12928 = vmatpush.bf16.msra.mxu0 %v12221
    %12929 = vmatmul.bf16.gmra.mxu0 %v11435
    %v12930 = vpop.f32.mrf.mxu0
    %v12931 = vadd.f32 %v12902, %v12930
    %v12932 = vpop.f32.mrf.mxu0
    %v12933 = vadd.f32 %v12904, %v12932
    %12934 = vmatmul.bf16.gmra.mxu0 %v11445
    %v12935 = vpop.f32.mrf.mxu0
    %v12936 = vadd.f32 %v12907, %v12935
    %v12937 = vpop.f32.mrf.mxu0
    %v12938 = vadd.f32 %v12909, %v12937
    %12939 = vmatmul.bf16.gmra.mxu0 %v11455
    %v12940 = vpop.f32.mrf.mxu0
    %v12941 = vadd.f32 %v12912, %v12940
    %v12942 = vpop.f32.mrf.mxu0
    %v12943 = vadd.f32 %v12914, %v12942
    %12944 = vmatmul.bf16.gmra.mxu0 %v11465
    %v12945 = vpop.f32.mrf.mxu0
    %v12946 = vadd.f32 %v12917, %v12945
    %v12947 = vpop.f32.mrf.mxu0
    %v12948 = vadd.f32 %v12919, %v12947
    %12949 = vdwg.mxu0
    %12950 = vmatpush.bf16.msra.mxu0 %v12251
    %12951 = vmatpush.bf16.msra.mxu0 %v12249
    %12952 = vmatpush.bf16.msra.mxu0 %v12247
    %12953 = vmatpush.bf16.msra.mxu0 %v12245
    %12954 = vmatpush.bf16.msra.mxu0 %v12243
    %12955 = vmatpush.bf16.msra.mxu0 %v12241
    %12956 = vmatpush.bf16.msra.mxu0 %v12239
    %12957 = vmatpush.bf16.msra.mxu0 %v12237
    %12958 = vmatmul.bf16.gmra.mxu0 %v11436
    %v12959 = vpop.f32.mrf.mxu0
    %v12960 = vadd.f32 %v12931, %v12959
    %v12961 = vpop.f32.mrf.mxu0
    %v12962 = vadd.f32 %v12933, %v12961
    %12963 = vmatmul.bf16.gmra.mxu0 %v11446
    %v12964 = vpop.f32.mrf.mxu0
    %v12965 = vadd.f32 %v12936, %v12964
    %v12966 = vpop.f32.mrf.mxu0
    %v12967 = vadd.f32 %v12938, %v12966
    %12968 = vmatmul.bf16.gmra.mxu0 %v11456
    %v12969 = vpop.f32.mrf.mxu0
    %v12970 = vadd.f32 %v12941, %v12969
    %v12971 = vpop.f32.mrf.mxu0
    %v12972 = vadd.f32 %v12943, %v12971
    %12973 = vmatmul.bf16.gmra.mxu0 %v11466
    %v12974 = vpop.f32.mrf.mxu0
    %v12975 = vadd.f32 %v12946, %v12974
    %v12976 = vpop.f32.mrf.mxu0
    %v12977 = vadd.f32 %v12948, %v12976
    %12978 = vdwg.mxu0
    %12979 = vmatpush.bf16.msra.mxu0 %v12267
    %12980 = vmatpush.bf16.msra.mxu0 %v12265
    %12981 = vmatpush.bf16.msra.mxu0 %v12263
    %12982 = vmatpush.bf16.msra.mxu0 %v12261
    %12983 = vmatpush.bf16.msra.mxu0 %v12259
    %12984 = vmatpush.bf16.msra.mxu0 %v12257
    %12985 = vmatpush.bf16.msra.mxu0 %v12255
    %12986 = vmatpush.bf16.msra.mxu0 %v12253
    %12987 = vmatmul.bf16.gmra.mxu0 %v11437
    %v12988 = vpop.f32.mrf.mxu0
    %v12989 = vadd.f32 %v12960, %v12988
    %v12990 = vpop.f32.mrf.mxu0
    %v12991 = vadd.f32 %v12962, %v12990
    %12992 = vmatmul.bf16.gmra.mxu0 %v11447
    %v12993 = vpop.f32.mrf.mxu0
    %v12994 = vadd.f32 %v12965, %v12993
    %v12995 = vpop.f32.mrf.mxu0
    %v12996 = vadd.f32 %v12967, %v12995
    %12997 = vmatmul.bf16.gmra.mxu0 %v11457
    %v12998 = vpop.f32.mrf.mxu0
    %v12999 = vadd.f32 %v12970, %v12998
    %v13000 = vpop.f32.mrf.mxu0
    %v13001 = vadd.f32 %v12972, %v13000
    %13002 = vmatmul.bf16.gmra.mxu0 %v11467
    %v13003 = vpop.f32.mrf.mxu0
    %v13004 = vadd.f32 %v12975, %v13003
    %v13005 = vpop.f32.mrf.mxu0
    %v13006 = vadd.f32 %v12977, %v13005
    %13007 = vdwg.mxu0
    %v13008 = vadd.f32 %v10879, %v12699
    %v13009 = vadd.f32 %v11169, %v12989
    %v13010 = vadd.f32 %v10881, %v12701
    %v13011 = vadd.f32 %v11171, %v12991
    %v13012 = vadd.f32 %v10884, %v12704
    %v13013 = vadd.f32 %v11174, %v12994
    %v13014 = vadd.f32 %v10886, %v12706
    %v13015 = vadd.f32 %v11176, %v12996
    %v13016 = vadd.f32 %v10889, %v12709
    %v13017 = vadd.f32 %v11179, %v12999
    %v13018 = vadd.f32 %v10891, %v12711
    %v13019 = vadd.f32 %v11181, %v13001
    %v13020 = vadd.f32 %v10894, %v12714
    %v13021 = vadd.f32 %v11184, %v13004
    %v13022 = vadd.f32 %v10896, %v12716
    %v13023 = vadd.f32 %v11186, %v13006
    %v13024 = vmul.f32 %v13008, %v1348
    %v13025 = vmul.f32 %v13009, %v1349
    %v13026 = vmul.f32 %v13010, %v1348
    %v13027 = vmul.f32 %v13011, %v1349
    %v13028 = vmul.f32 %v13012, %v1348
    %v13029 = vmul.f32 %v13013, %v1349
    %v13030 = vmul.f32 %v13014, %v1348
    %v13031 = vmul.f32 %v13015, %v1349
    %v13032 = vmul.f32 %v13016, %v1348
    %v13033 = vmul.f32 %v13017, %v1349
    %v13034 = vmul.f32 %v13018, %v1348
    %v13035 = vmul.f32 %v13019, %v1349
    %v13036 = vmul.f32 %v13020, %v1348
    %v13037 = vmul.f32 %v13021, %v1349
    %v13038 = vmul.f32 %v13022, %v1348
    %v13039 = vmul.f32 %v13023, %v1349
    %s13040 = scalar_lea.vmem [#allocation6], 6
    %v13041 = vld [vmem:[%s13040] ss:$8 sm:$0x3]
    %v13043 = vperm.slane %v13041, 0
    %v13044 = vperm.slane %v13041, 1
    %v13047 = vadd.f32 %v13024, %v13043
    %v13048 = vadd.f32 %v13025, %v13044
    %v13049 = vadd.f32 %v13026, %v13043
    %v13050 = vadd.f32 %v13027, %v13044
    %v13051 = vadd.f32 %v13028, %v13043
    %v13052 = vadd.f32 %v13029, %v13044
    %v13053 = vadd.f32 %v13030, %v13043
    %v13054 = vadd.f32 %v13031, %v13044
    %v13055 = vadd.f32 %v13032, %v13043
    %v13056 = vadd.f32 %v13033, %v13044
    %v13057 = vadd.f32 %v13034, %v13043
    %v13058 = vadd.f32 %v13035, %v13044
    %v13059 = vadd.f32 %v13036, %v13043
    %v13060 = vadd.f32 %v13037, %v13044
    %v13061 = vadd.f32 %v13038, %v13043
    %v13062 = vadd.f32 %v13039, %v13044
    %v13063 = vmax.f32 %v13047, 0.0
    %v13064 = vmax.f32 %v13048, 0.0
    %v13065 = vmax.f32 %v13049, 0.0
    %v13066 = vmax.f32 %v13050, 0.0
    %v13067 = vmax.f32 %v13051, 0.0
    %v13068 = vmax.f32 %v13052, 0.0
    %v13069 = vmax.f32 %v13053, 0.0
    %v13070 = vmax.f32 %v13054, 0.0
    %v13071 = vmax.f32 %v13055, 0.0
    %v13072 = vmax.f32 %v13056, 0.0
    %v13073 = vmax.f32 %v13057, 0.0
    %v13074 = vmax.f32 %v13058, 0.0
    %v13075 = vmax.f32 %v13059, 0.0
    %v13076 = vmax.f32 %v13060, 0.0
    %v13077 = vmax.f32 %v13061, 0.0
    %v13078 = vmax.f32 %v13062, 0.0
    %13079 = vst [vmem:[%s8] sm:$0xff] %v13063
    %13080 = vst [vmem:[%s8 + $0x8] sm:$0xff] %v13064
    %13081 = vst [vmem:[%s8 + $0x10] sm:$0xff] %v13065
    %13082 = vst [vmem:[%s8 + $0x18] sm:$0xff] %v13066
    %13083 = vst [vmem:[%s8 + $0x20] sm:$0xff] %v13067
    %13084 = vst [vmem:[%s8 + $0x28] sm:$0xff] %v13068
    %13085 = vst [vmem:[%s8 + $0x30] sm:$0xff] %v13069
    %13086 = vst [vmem:[%s8 + $0x38] sm:$0xff] %v13070
    %13087 = vst [vmem:[%s8 + $0x40] sm:$0xff] %v13071
    %13088 = vst [vmem:[%s8 + $0x48] sm:$0xff] %v13072
    %13089 = vst [vmem:[%s8 + $0x50] sm:$0xff] %v13073
    %13090 = vst [vmem:[%s8 + $0x58] sm:$0xff] %v13074
    %13091 = vst [vmem:[%s8 + $0x60] sm:$0xff] %v13075
    %13092 = vst [vmem:[%s8 + $0x68] sm:$0xff] %v13076
    %13093 = vst [vmem:[%s8 + $0x70] sm:$0xff] %v13077
    %13094 = vst [vmem:[%s8 + $0x78] sm:$0xff] %v13078
    // Predicated region
    $region46: #{_forward.1} parent=1 // pred_check
      _
    $region47: #{_forward.1} parent=1 // pred_check_branch
      %13096 = sbr.rel (0) target = $region49
    $region48: #{_forward.1} parent=1 // pred_region
      _
    $region49: #{_forward.1} parent=1 // pred_fallthru
      _
    // Predicated region
    $region50: #{_forward.1} parent=1 // pred_check
      _
    $region51: #{_forward.1} parent=1 // pred_check_branch
      %13098 = sbr.rel (0) target = $region53
    $region52: #{_forward.1} parent=1 // pred_region
      _
    $region53: #{_forward.1} parent=1 // pred_fallthru
      _
    %13099 = vsyncpa [#allocation3], 1
    %13100 = vsyncpa [#allocation5], 1

</llo_original>
